<compile_context>
chip_gen: v6e
topology: v6e:2x2x1
jax: 0.10.0
libtpu: 0.0.40
codegen_flags: <defaults>
</compile_context>

<pallas_src>
import jax
import jax.numpy as jnp
from jax.experimental import pallas as pl
from jax.experimental.pallas import tpu as pltpu


_TAPS = tuple((di, dj) for di in range(3) for dj in range(3))  # matches HWIO reshape order
_PAD = 8  # aligned sublane offset at which the y1 interior is stored in its scratch


def _tree_max(vals):
    """Balanced-tree max reduction over a list of equal-shaped arrays."""
    vals = list(vals)
    while len(vals) > 1:
        nxt = [jnp.maximum(vals[i], vals[i + 1]) for i in range(0, len(vals) - 1, 2)]
        if len(vals) % 2:
            nxt.append(vals[-1])
        vals = nxt
    return vals[0]


# ------------------------------- Pallas kernel ------------------------------ #

def _reduction_a_kernel(xp_ref, w2_ref, b2_ref, w3a_ref, b3a_ref,
                        w3b_ref, b3b_ref, w3c_ref, b3c_ref, e1_ref,
                        o_ref, y1p_ref, y2p_ref):
    """Fully fused Reduction_A for one image.

    xp_ref : (1, 4, hh+1, wh+1, Cin)  parity-split, end-padded input
             xp[0, 2a+b, i, j] = x[2i+a, 2j+b]
    w2_ref : (9, Cin, Ctot)  3x3/2 conv, BN-folded, pre-placed at channels [Cin:Cin+n)
    w3a    : (Cin, k), w3b: (9, k, l), w3c: (9, l, Ctot) (pre-placed at [Cin+n:))
    e1_ref : (Cin, Ctot)  0/1 matrix placing the max-pool branch at channels [0:Cin)
    o_ref  : (1, Ho, Wo, Ctot)
    y1p_ref: (4, hh+2, _PAD+wh+1, k)  zero-padded, VMEM-resident 1x1-conv result
    y2p_ref: (4, hh+1, wh+1, l)       zero-padded, VMEM-resident 3x3/1 result
    """
    f32 = jnp.float32
    cin = xp_ref.shape[-1]
    hh = xp_ref.shape[2] - 1          # H // 2
    wh = xp_ref.shape[3] - 1          # W // 2
    p = hh * wh
    k_ch = w3a_ref.shape[-1]
    l_ch = w3b_ref.shape[-1]
    ctot = o_ref.shape[-1]
    ho, wo = o_ref.shape[1], o_ref.shape[2]

    def xwin(a, b, i0, j0):
        # (hh, wh, cin) window of parity grid (a, b), flattened for the MXU.
        w = xp_ref[0, 2 * a + b, i0:i0 + hh, j0:j0 + wh, :]
        return w.reshape(p, cin)

    # --- branch 1 (max-pool 3x3/2) and branch 2 (3x3/2 conv) share windows -----
    pool_wins = []
    acc2 = jnp.zeros((p, ctot), f32)
    for t, (di, dj) in enumerate(_TAPS):
        w = xwin(di % 2, dj % 2, di // 2, dj // 2)
        pool_wins.append(w)
        acc2 = acc2 + jnp.dot(w, w2_ref[t], preferred_element_type=f32)
    out2 = jnp.maximum(acc2 + b2_ref[...], 0.0)                       # (p, ctot)
    pool = jnp.dot(_tree_max(pool_wins), e1_ref[...],
                   preferred_element_type=f32)                        # (p, ctot)

    # --- branch 3a: 1x1 conv, kept resident in VMEM (padded parity layout) -----
    y1p_ref[...] = jnp.zeros_like(y1p_ref)
    for a in range(2):
        for b in range(2):
            y1 = jnp.maximum(
                jnp.dot(xwin(a, b, 0, 0), w3a_ref[...],
                        preferred_element_type=f32) + b3a_ref[...], 0.0)
            y1p_ref[2 * a + b, 1:hh + 1, _PAD:_PAD + wh, :] = y1.reshape(hh, wh, k_ch)

    # --- branch 3b: 3x3/1 (pad=1) conv on y1, per parity grid ------------------
    y2p_ref[...] = jnp.zeros_like(y2p_ref)
    for a in range(2):
        for b in range(2):
            acc = jnp.zeros((p, l_ch), f32)
            for t, (ei, ej) in enumerate(_TAPS):
                ri, rj = a + ei - 1, b + ej - 1
                pi, ci = ri % 2, ri // 2      # python floor-div: -1 -> (pi=1, ci=-1)
                pj, cj = rj % 2, rj // 2
                win = y1p_ref[2 * pi + pj, ci + 1:ci + 1 + hh,
                              _PAD + cj:_PAD + cj + wh, :]
                acc = acc + jnp.dot(win.reshape(p, k_ch), w3b_ref[t],
                                    preferred_element_type=f32)
            y2 = jnp.maximum(acc + b3b_ref[...], 0.0)
            y2p_ref[2 * a + b, 0:hh, 0:wh, :] = y2.reshape(hh, wh, l_ch)

    # --- branch 3c: 3x3/2 conv on y2 -------------------------------------------
    acc3 = jnp.zeros((p, ctot), f32)
    for t, (di, dj) in enumerate(_TAPS):
        win = y2p_ref[2 * (di % 2) + (dj % 2), di // 2:di // 2 + hh,
                      dj // 2:dj // 2 + wh, :]
        acc3 = acc3 + jnp.dot(win.reshape(p, l_ch), w3c_ref[t],
                              preferred_element_type=f32)
    out3 = jnp.maximum(acc3 + b3c_ref[...], 0.0)                      # (p, ctot)

    # --- branches already occupy disjoint channel ranges: add & single store ---
    out = (pool + out2 + out3).reshape(hh, wh, ctot)
    o_ref[0] = out[:ho, :wo, :].astype(o_ref.dtype)


# ------------------------------ wrapper / module ---------------------------- #

def _fold_scale(w, scale):
    """Fold the eval-mode BN per-channel scale into HWIO conv weights."""
    return (w * scale).astype(jnp.float32)


def reduction_a_forward(x_nchw, p2, p3a, p3b, p3c):
    """Fused Reduction_A forward.  x_nchw: (N, Cin, H, W), even H and W."""
    w2, s2, b2 = p2
    w3a, s3a, b3a = p3a
    w3b, s3b, b3b = p3b
    w3c, s3c, b3c = p3c

    N, C, H, W = x_nchw.shape
    # TODO(synk): odd spatial sizes (e.g. the real 35x35 Inception-v4 input) need an
    #             extra edge-row/col path; only even H/W is handled here.
    assert H % 2 == 0 and W % 2 == 0, "even spatial dims required"

    n_ch, k_ch, l_ch, m_ch = w2.shape[-1], w3a.shape[-1], w3b.shape[-1], w3c.shape[-1]
    ctot = C + n_ch + m_ch
    hh, wh = H // 2, W // 2
    ho, wo = hh - 1, wh - 1

    # Input: parity split (same total bytes as x, no 9x im2col blow-up), +1 end pad.
    x = jnp.transpose(x_nchw, (0, 2, 3, 1)).astype(jnp.float32)          # NHWC
    xp = x.reshape(N, hh, 2, wh, 2, C).transpose(0, 2, 4, 1, 3, 5)
    xp = xp.reshape(N, 4, hh, wh, C)
    xp = jnp.pad(xp, ((0, 0), (0, 0), (0, 1), (0, 1), (0, 0)))           # (N,4,hh+1,wh+1,C)

    # Weights: fold BN scale, per-tap matrices, pre-placed into the concatenated
    # channel range so the kernel writes one dense output block.
    w2m = _fold_scale(w2, s2).reshape(9, C, n_ch)
    w2w = jnp.zeros((9, C, ctot), jnp.float32).at[:, :, C:C + n_ch].set(w2m)
    b2w = jnp.zeros((1, ctot), jnp.float32).at[:, C:C + n_ch].set(b2[None, :])

    w3am = _fold_scale(w3a, s3a).reshape(C, k_ch)
    w3bm = _fold_scale(w3b, s3b).reshape(9, k_ch, l_ch)

    w3cm = _fold_scale(w3c, s3c).reshape(9, l_ch, m_ch)
    w3cw = jnp.zeros((9, l_ch, ctot), jnp.float32).at[:, :, C + n_ch:].set(w3cm)
    b3cw = jnp.zeros((1, ctot), jnp.float32).at[:, C + n_ch:].set(b3c[None, :])

    e1 = jnp.eye(C, ctot, dtype=jnp.float32)   # places the pool branch at channels [0:C)

    out = pl.pallas_call(
        _reduction_a_kernel,
        out_shape=jax.ShapeDtypeStruct((N, ho, wo, ctot), jnp.float32),
        grid=(N,),
        in_specs=[
            pl.BlockSpec((1, 4, hh + 1, wh + 1, C), lambda i: (i, 0, 0, 0, 0)),
            pl.BlockSpec((9, C, ctot), lambda i: (0, 0, 0)),
            pl.BlockSpec((1, ctot), lambda i: (0, 0)),
            pl.BlockSpec((C, k_ch), lambda i: (0, 0)),
            pl.BlockSpec((1, k_ch), lambda i: (0, 0)),
            pl.BlockSpec((9, k_ch, l_ch), lambda i: (0, 0, 0)),
            pl.BlockSpec((1, l_ch), lambda i: (0, 0)),
            pl.BlockSpec((9, l_ch, ctot), lambda i: (0, 0, 0)),
            pl.BlockSpec((1, ctot), lambda i: (0, 0)),
            pl.BlockSpec((C, ctot), lambda i: (0, 0)),
        ],
        out_specs=pl.BlockSpec((1, ho, wo, ctot), lambda i: (i, 0, 0, 0)),
        scratch_shapes=[
            pltpu.VMEM((4, hh + 2, _PAD + wh + 1, k_ch), jnp.float32),  # padded y1
            pltpu.VMEM((4, hh + 1, wh + 1, l_ch), jnp.float32),          # padded y2
        ],
        compiler_params=pltpu.CompilerParams(
            dimension_semantics=("parallel",)),
    )(xp, w2w, b2w, w3am, b3a.reshape(1, k_ch), w3bm, b3b.reshape(1, l_ch),
      w3cw, b3cw, e1)

    return jnp.transpose(out, (0, 3, 1, 2))      # NHWC -> NCHW


def _bn_conv_params(key, cin, cout, ksize):
    """Deterministic synthetic params for one BN_Conv2d (conv + folded eval-mode BN)."""
    wk, gk, bk = jax.random.split(key, 3)
    fan_in = cin * ksize * ksize
    w = jax.random.normal(wk, (ksize, ksize, cin, cout), jnp.float32) / jnp.sqrt(fan_in)
    gamma = 1.0 + 0.1 * jax.random.normal(gk, (cout,), jnp.float32)
    beta = 0.1 * jax.random.normal(bk, (cout,), jnp.float32)
    running_mean = jnp.zeros((cout,), jnp.float32)
    running_var = jnp.ones((cout,), jnp.float32)
    eps = 1e-5
    scale = gamma / jnp.sqrt(running_var + eps)
    bias = beta - running_mean * scale
    return w, scale, bias


class ReductionA:
    """Pallas implementation of Reduction_A. Input/output layout: NCHW."""

    def __init__(self, in_channels, k, l, m, n, key):
        keys = jax.random.split(key, 4)
        self.b2 = _bn_conv_params(keys[0], in_channels, n, 3)   # 3x3 s2 p0
        self.b3a = _bn_conv_params(keys[1], in_channels, k, 1)  # 1x1 s1 p0
        self.b3b = _bn_conv_params(keys[2], k, l, 3)            # 3x3 s1 p1
        self.b3c = _bn_conv_params(keys[3], l, m, 3)            # 3x3 s2 p0
        self._fwd = jax.jit(reduction_a_forward)

    def __call__(self, x_nchw):
        return self._fwd(x_nchw, self.b2, self.b3a, self.b3b, self.b3c)


# ----------------------------- pure-JAX reference --------------------------- #

def _ref_conv_bn_relu(x, w, scale, bias, stride, padding):
    y = jax.lax.conv_general_dilated(
        x, w, window_strides=(stride, stride),
        padding=((padding, padding), (padding, padding)),
        dimension_numbers=("NHWC", "HWIO", "NHWC"))
    return jnp.maximum(y * scale + bias, 0.0)


def _ref_maxpool(x, ksize, stride):
    return jax.lax.reduce_window(x, -jnp.inf, jax.lax.max,
                                 (1, ksize, ksize, 1), (1, stride, stride, 1), "VALID")


def reference_forward(mod, x_nchw):
    x = jnp.transpose(x_nchw, (0, 2, 3, 1))
    out1 = _ref_maxpool(x, 3, 2)
    w, s, b = mod.b2
    out2 = _ref_conv_bn_relu(x, w, s, b, 2, 0)
    w, s, b = mod.b3a
    y = _ref_conv_bn_relu(x, w, s, b, 1, 0)
    w, s, b = mod.b3b
    y = _ref_conv_bn_relu(y, w, s, b, 1, 1)
    w, s, b = mod.b3c
    out3 = _ref_conv_bn_relu(y, w, s, b, 2, 0)
    return jnp.transpose(jnp.concatenate([out1, out2, out3], axis=-1), (0, 3, 1, 2))


# ----------------------------------- main ------------------------------------ #

if __name__ == "__main__":
    key = jax.random.PRNGKey(0)
    x_key, p_key = jax.random.split(key)

    N, C, H, W = 2, 4, 16, 16                 # NCHW input, like PyTorch
    k, l, m, n = 4, 6, 8, 6
    x = jax.random.normal(x_key, (N, C, H, W), jnp.float32)

    mod = ReductionA(in_channels=C, k=k, l=l, m=m, n=n, key=p_key)

    out = jax.block_until_ready(mod(x))
    assert out.shape == (N, C + n + m, 7, 7), out.shape

    ref = jax.block_until_ready(reference_forward(mod, x))
    max_err = float(jnp.max(jnp.abs(out - ref)))
    assert jnp.allclose(out, ref, rtol=5e-2, atol=5e-2), max_err

    print("KERNEL_OK")
</pallas_src>

<mosaic_0001>
module attributes {stable_mosaic.version = 11 : i64} {
  func.func @_reduction_a_kernel(%arg0: i32, %arg1: memref<1x4x9x9x4xf32, #tpu.memory_space<vmem>>, %arg2: memref<9x4x18xf32, #tpu.memory_space<vmem>>, %arg3: memref<1x18xf32, #tpu.memory_space<vmem>>, %arg4: memref<4x4xf32, #tpu.memory_space<vmem>>, %arg5: memref<1x4xf32, #tpu.memory_space<vmem>>, %arg6: memref<9x4x6xf32, #tpu.memory_space<vmem>>, %arg7: memref<1x6xf32, #tpu.memory_space<vmem>>, %arg8: memref<9x6x18xf32, #tpu.memory_space<vmem>>, %arg9: memref<1x18xf32, #tpu.memory_space<vmem>>, %arg10: memref<4x18xf32, #tpu.memory_space<vmem>>, %arg11: memref<1x7x7x18xf32, #tpu.memory_space<vmem>>, %arg12: memref<4x10x17x4xf32, #tpu.memory_space<vmem>>, %arg13: memref<4x9x9x6xf32, #tpu.memory_space<vmem>>) attributes {dimension_semantics = [#tpu.dimension_semantics<parallel>], iteration_bounds = array<i64: 2>, scalar_prefetch = 0 : i64, scratch_operands = 2 : i64, tpu.core_type = #tpu.core_type<tc>, window_params = [{transform_indices = @transform_0, window_bounds = array<i64: 1, 4, 9, 9, 4>}, {pipeline_mode = #tpu.pipeline_mode<synchronous>, transform_indices = @transform_1, window_bounds = array<i64: 9, 4, 18>}, {pipeline_mode = #tpu.pipeline_mode<synchronous>, transform_indices = @transform_2, window_bounds = array<i64: 1, 18>}, {pipeline_mode = #tpu.pipeline_mode<synchronous>, transform_indices = @transform_3, window_bounds = array<i64: 4, 4>}, {pipeline_mode = #tpu.pipeline_mode<synchronous>, transform_indices = @transform_4, window_bounds = array<i64: 1, 4>}, {pipeline_mode = #tpu.pipeline_mode<synchronous>, transform_indices = @transform_5, window_bounds = array<i64: 9, 4, 6>}, {pipeline_mode = #tpu.pipeline_mode<synchronous>, transform_indices = @transform_6, window_bounds = array<i64: 1, 6>}, {pipeline_mode = #tpu.pipeline_mode<synchronous>, transform_indices = @transform_7, window_bounds = array<i64: 9, 6, 18>}, {pipeline_mode = #tpu.pipeline_mode<synchronous>, transform_indices = @transform_8, window_bounds = array<i64: 1, 18>}, {pipeline_mode = #tpu.pipeline_mode<synchronous>, transform_indices = @transform_9, window_bounds = array<i64: 4, 18>}, {transform_indices = @transform_10, window_bounds = array<i64: 1, 7, 7, 18>}]} {
    %cst = arith.constant 0.000000e+00 : f32
    %0 = vector.broadcast %cst : f32 to vector<64x18xf32>
    %c0 = arith.constant 0 : index
    %c0_0 = arith.constant 0 : index
    %c0_1 = arith.constant 0 : index
    %c0_2 = arith.constant 0 : index
    %c0_3 = arith.constant 0 : index
    %1 = vector.load %arg1[%c0, %c0_0, %c0_1, %c0_2, %c0_3] : memref<1x4x9x9x4xf32, #tpu.memory_space<vmem>>, vector<1x1x8x8x4xf32>
    %2 = vector.shape_cast %1 : vector<1x1x8x8x4xf32> to vector<8x8x4xf32>
    %3 = vector.shape_cast %2 : vector<8x8x4xf32> to vector<64x4xf32>
    %c0_4 = arith.constant 0 : index
    %c0_5 = arith.constant 0 : index
    %c0_6 = arith.constant 0 : index
    %4 = vector.load %arg2[%c0_4, %c0_5, %c0_6] : memref<9x4x18xf32, #tpu.memory_space<vmem>>, vector<1x4x18xf32>
    %5 = vector.shape_cast %4 : vector<1x4x18xf32> to vector<4x18xf32>
    %cst_7 = arith.constant dense<0.000000e+00> : vector<64x18xf32>
    %6 = tpu.matmul %3, %5, %cst_7 {dimension_numbers = #tpu.dot_dimension_numbers<[1], [0], [0], [1], [0, 0, 1, 1], [], []>} : vector<64x4xf32>, vector<4x18xf32>, vector<64x18xf32> -> vector<64x18xf32>
    %7 = arith.addf %0, %6 : vector<64x18xf32>
    %c0_8 = arith.constant 0 : index
    %c1 = arith.constant 1 : index
    %c0_9 = arith.constant 0 : index
    %c0_10 = arith.constant 0 : index
    %c0_11 = arith.constant 0 : index
    %8 = vector.load %arg1[%c0_8, %c1, %c0_9, %c0_10, %c0_11] : memref<1x4x9x9x4xf32, #tpu.memory_space<vmem>>, vector<1x1x8x8x4xf32>
    %9 = vector.shape_cast %8 : vector<1x1x8x8x4xf32> to vector<8x8x4xf32>
    %10 = vector.shape_cast %9 : vector<8x8x4xf32> to vector<64x4xf32>
    %c1_12 = arith.constant 1 : index
    %c0_13 = arith.constant 0 : index
    %c0_14 = arith.constant 0 : index
    %11 = vector.load %arg2[%c1_12, %c0_13, %c0_14] : memref<9x4x18xf32, #tpu.memory_space<vmem>>, vector<1x4x18xf32>
    %12 = vector.shape_cast %11 : vector<1x4x18xf32> to vector<4x18xf32>
    %cst_15 = arith.constant dense<0.000000e+00> : vector<64x18xf32>
    %13 = tpu.matmul %10, %12, %cst_15 {dimension_numbers = #tpu.dot_dimension_numbers<[1], [0], [0], [1], [0, 0, 1, 1], [], []>} : vector<64x4xf32>, vector<4x18xf32>, vector<64x18xf32> -> vector<64x18xf32>
    %14 = arith.addf %7, %13 : vector<64x18xf32>
    %c0_16 = arith.constant 0 : index
    %c0_17 = arith.constant 0 : index
    %c0_18 = arith.constant 0 : index
    %c1_19 = arith.constant 1 : index
    %c0_20 = arith.constant 0 : index
    %15 = vector.load %arg1[%c0_16, %c0_17, %c0_18, %c1_19, %c0_20] : memref<1x4x9x9x4xf32, #tpu.memory_space<vmem>>, vector<1x1x8x8x4xf32>
    %16 = vector.shape_cast %15 : vector<1x1x8x8x4xf32> to vector<8x8x4xf32>
    %17 = vector.shape_cast %16 : vector<8x8x4xf32> to vector<64x4xf32>
    %c2 = arith.constant 2 : index
    %c0_21 = arith.constant 0 : index
    %c0_22 = arith.constant 0 : index
    %18 = vector.load %arg2[%c2, %c0_21, %c0_22] : memref<9x4x18xf32, #tpu.memory_space<vmem>>, vector<1x4x18xf32>
    %19 = vector.shape_cast %18 : vector<1x4x18xf32> to vector<4x18xf32>
    %cst_23 = arith.constant dense<0.000000e+00> : vector<64x18xf32>
    %20 = tpu.matmul %17, %19, %cst_23 {dimension_numbers = #tpu.dot_dimension_numbers<[1], [0], [0], [1], [0, 0, 1, 1], [], []>} : vector<64x4xf32>, vector<4x18xf32>, vector<64x18xf32> -> vector<64x18xf32>
    %21 = arith.addf %14, %20 : vector<64x18xf32>
    %c0_24 = arith.constant 0 : index
    %c2_25 = arith.constant 2 : index
    %c0_26 = arith.constant 0 : index
    %c0_27 = arith.constant 0 : index
    %c0_28 = arith.constant 0 : index
    %22 = vector.load %arg1[%c0_24, %c2_25, %c0_26, %c0_27, %c0_28] : memref<1x4x9x9x4xf32, #tpu.memory_space<vmem>>, vector<1x1x8x8x4xf32>
    %23 = vector.shape_cast %22 : vector<1x1x8x8x4xf32> to vector<8x8x4xf32>
    %24 = vector.shape_cast %23 : vector<8x8x4xf32> to vector<64x4xf32>
    %c3 = arith.constant 3 : index
    %c0_29 = arith.constant 0 : index
    %c0_30 = arith.constant 0 : index
    %25 = vector.load %arg2[%c3, %c0_29, %c0_30] : memref<9x4x18xf32, #tpu.memory_space<vmem>>, vector<1x4x18xf32>
    %26 = vector.shape_cast %25 : vector<1x4x18xf32> to vector<4x18xf32>
    %cst_31 = arith.constant dense<0.000000e+00> : vector<64x18xf32>
    %27 = tpu.matmul %24, %26, %cst_31 {dimension_numbers = #tpu.dot_dimension_numbers<[1], [0], [0], [1], [0, 0, 1, 1], [], []>} : vector<64x4xf32>, vector<4x18xf32>, vector<64x18xf32> -> vector<64x18xf32>
    %28 = arith.addf %21, %27 : vector<64x18xf32>
    %c0_32 = arith.constant 0 : index
    %c3_33 = arith.constant 3 : index
    %c0_34 = arith.constant 0 : index
    %c0_35 = arith.constant 0 : index
    %c0_36 = arith.constant 0 : index
    %29 = vector.load %arg1[%c0_32, %c3_33, %c0_34, %c0_35, %c0_36] : memref<1x4x9x9x4xf32, #tpu.memory_space<vmem>>, vector<1x1x8x8x4xf32>
    %30 = vector.shape_cast %29 : vector<1x1x8x8x4xf32> to vector<8x8x4xf32>
    %31 = vector.shape_cast %30 : vector<8x8x4xf32> to vector<64x4xf32>
    %c4 = arith.constant 4 : index
    %c0_37 = arith.constant 0 : index
    %c0_38 = arith.constant 0 : index
    %32 = vector.load %arg2[%c4, %c0_37, %c0_38] : memref<9x4x18xf32, #tpu.memory_space<vmem>>, vector<1x4x18xf32>
    %33 = vector.shape_cast %32 : vector<1x4x18xf32> to vector<4x18xf32>
    %cst_39 = arith.constant dense<0.000000e+00> : vector<64x18xf32>
    %34 = tpu.matmul %31, %33, %cst_39 {dimension_numbers = #tpu.dot_dimension_numbers<[1], [0], [0], [1], [0, 0, 1, 1], [], []>} : vector<64x4xf32>, vector<4x18xf32>, vector<64x18xf32> -> vector<64x18xf32>
    %35 = arith.addf %28, %34 : vector<64x18xf32>
    %c0_40 = arith.constant 0 : index
    %c2_41 = arith.constant 2 : index
    %c0_42 = arith.constant 0 : index
    %c1_43 = arith.constant 1 : index
    %c0_44 = arith.constant 0 : index
    %36 = vector.load %arg1[%c0_40, %c2_41, %c0_42, %c1_43, %c0_44] : memref<1x4x9x9x4xf32, #tpu.memory_space<vmem>>, vector<1x1x8x8x4xf32>
    %37 = vector.shape_cast %36 : vector<1x1x8x8x4xf32> to vector<8x8x4xf32>
    %38 = vector.shape_cast %37 : vector<8x8x4xf32> to vector<64x4xf32>
    %c5 = arith.constant 5 : index
    %c0_45 = arith.constant 0 : index
    %c0_46 = arith.constant 0 : index
    %39 = vector.load %arg2[%c5, %c0_45, %c0_46] : memref<9x4x18xf32, #tpu.memory_space<vmem>>, vector<1x4x18xf32>
    %40 = vector.shape_cast %39 : vector<1x4x18xf32> to vector<4x18xf32>
    %cst_47 = arith.constant dense<0.000000e+00> : vector<64x18xf32>
    %41 = tpu.matmul %38, %40, %cst_47 {dimension_numbers = #tpu.dot_dimension_numbers<[1], [0], [0], [1], [0, 0, 1, 1], [], []>} : vector<64x4xf32>, vector<4x18xf32>, vector<64x18xf32> -> vector<64x18xf32>
    %42 = arith.addf %35, %41 : vector<64x18xf32>
    %c0_48 = arith.constant 0 : index
    %c0_49 = arith.constant 0 : index
    %c1_50 = arith.constant 1 : index
    %c0_51 = arith.constant 0 : index
    %c0_52 = arith.constant 0 : index
    %43 = vector.load %arg1[%c0_48, %c0_49, %c1_50, %c0_51, %c0_52] : memref<1x4x9x9x4xf32, #tpu.memory_space<vmem>>, vector<1x1x8x8x4xf32>
    %44 = vector.shape_cast %43 : vector<1x1x8x8x4xf32> to vector<8x8x4xf32>
    %45 = vector.shape_cast %44 : vector<8x8x4xf32> to vector<64x4xf32>
    %c6 = arith.constant 6 : index
    %c0_53 = arith.constant 0 : index
    %c0_54 = arith.constant 0 : index
    %46 = vector.load %arg2[%c6, %c0_53, %c0_54] : memref<9x4x18xf32, #tpu.memory_space<vmem>>, vector<1x4x18xf32>
    %47 = vector.shape_cast %46 : vector<1x4x18xf32> to vector<4x18xf32>
    %cst_55 = arith.constant dense<0.000000e+00> : vector<64x18xf32>
    %48 = tpu.matmul %45, %47, %cst_55 {dimension_numbers = #tpu.dot_dimension_numbers<[1], [0], [0], [1], [0, 0, 1, 1], [], []>} : vector<64x4xf32>, vector<4x18xf32>, vector<64x18xf32> -> vector<64x18xf32>
    %49 = arith.addf %42, %48 : vector<64x18xf32>
    %c0_56 = arith.constant 0 : index
    %c1_57 = arith.constant 1 : index
    %c1_58 = arith.constant 1 : index
    %c0_59 = arith.constant 0 : index
    %c0_60 = arith.constant 0 : index
    %50 = vector.load %arg1[%c0_56, %c1_57, %c1_58, %c0_59, %c0_60] : memref<1x4x9x9x4xf32, #tpu.memory_space<vmem>>, vector<1x1x8x8x4xf32>
    %51 = vector.shape_cast %50 : vector<1x1x8x8x4xf32> to vector<8x8x4xf32>
    %52 = vector.shape_cast %51 : vector<8x8x4xf32> to vector<64x4xf32>
    %c7 = arith.constant 7 : index
    %c0_61 = arith.constant 0 : index
    %c0_62 = arith.constant 0 : index
    %53 = vector.load %arg2[%c7, %c0_61, %c0_62] : memref<9x4x18xf32, #tpu.memory_space<vmem>>, vector<1x4x18xf32>
    %54 = vector.shape_cast %53 : vector<1x4x18xf32> to vector<4x18xf32>
    %cst_63 = arith.constant dense<0.000000e+00> : vector<64x18xf32>
    %55 = tpu.matmul %52, %54, %cst_63 {dimension_numbers = #tpu.dot_dimension_numbers<[1], [0], [0], [1], [0, 0, 1, 1], [], []>} : vector<64x4xf32>, vector<4x18xf32>, vector<64x18xf32> -> vector<64x18xf32>
    %56 = arith.addf %49, %55 : vector<64x18xf32>
    %c0_64 = arith.constant 0 : index
    %c0_65 = arith.constant 0 : index
    %c1_66 = arith.constant 1 : index
    %c1_67 = arith.constant 1 : index
    %c0_68 = arith.constant 0 : index
    %57 = vector.load %arg1[%c0_64, %c0_65, %c1_66, %c1_67, %c0_68] : memref<1x4x9x9x4xf32, #tpu.memory_space<vmem>>, vector<1x1x8x8x4xf32>
    %58 = vector.shape_cast %57 : vector<1x1x8x8x4xf32> to vector<8x8x4xf32>
    %59 = vector.shape_cast %58 : vector<8x8x4xf32> to vector<64x4xf32>
    %c8 = arith.constant 8 : index
    %c0_69 = arith.constant 0 : index
    %c0_70 = arith.constant 0 : index
    %60 = vector.load %arg2[%c8, %c0_69, %c0_70] : memref<9x4x18xf32, #tpu.memory_space<vmem>>, vector<1x4x18xf32>
    %61 = vector.shape_cast %60 : vector<1x4x18xf32> to vector<4x18xf32>
    %cst_71 = arith.constant dense<0.000000e+00> : vector<64x18xf32>
    %62 = tpu.matmul %59, %61, %cst_71 {dimension_numbers = #tpu.dot_dimension_numbers<[1], [0], [0], [1], [0, 0, 1, 1], [], []>} : vector<64x4xf32>, vector<4x18xf32>, vector<64x18xf32> -> vector<64x18xf32>
    %63 = arith.addf %56, %62 : vector<64x18xf32>
    %c0_72 = arith.constant 0 : index
    %c0_73 = arith.constant 0 : index
    %64 = vector.load %arg3[%c0_72, %c0_73] : memref<1x18xf32, #tpu.memory_space<vmem>>, vector<1x18xf32>
    %65 = vector.broadcast %64 : vector<1x18xf32> to vector<64x18xf32>
    %66 = arith.addf %63, %65 : vector<64x18xf32>
    %cst_74 = arith.constant 0.000000e+00 : f32
    %67 = vector.broadcast %cst_74 : f32 to vector<64x18xf32>
    %68 = arith.maximumf %66, %67 : vector<64x18xf32>
    %69 = arith.maximumf %3, %10 : vector<64x4xf32>
    %70 = arith.maximumf %17, %24 : vector<64x4xf32>
    %71 = arith.maximumf %31, %38 : vector<64x4xf32>
    %72 = arith.maximumf %45, %52 : vector<64x4xf32>
    %73 = arith.maximumf %69, %70 : vector<64x4xf32>
    %74 = arith.maximumf %71, %72 : vector<64x4xf32>
    %75 = arith.maximumf %73, %74 : vector<64x4xf32>
    %76 = arith.maximumf %75, %59 : vector<64x4xf32>
    %c0_75 = arith.constant 0 : index
    %c0_76 = arith.constant 0 : index
    %77 = vector.load %arg10[%c0_75, %c0_76] : memref<4x18xf32, #tpu.memory_space<vmem>>, vector<4x18xf32>
    %cst_77 = arith.constant dense<0.000000e+00> : vector<64x18xf32>
    %78 = tpu.matmul %76, %77, %cst_77 {dimension_numbers = #tpu.dot_dimension_numbers<[1], [0], [0], [1], [0, 0, 1, 1], [], []>} : vector<64x4xf32>, vector<4x18xf32>, vector<64x18xf32> -> vector<64x18xf32>
    %cst_78 = arith.constant 0.000000e+00 : f32
    %79 = vector.broadcast %cst_78 : f32 to vector<4x10x17x4xf32>
    %c0_79 = arith.constant 0 : index
    %c0_80 = arith.constant 0 : index
    %c0_81 = arith.constant 0 : index
    %c0_82 = arith.constant 0 : index
    %80 = vector.load %arg12[%c0_79, %c0_80, %c0_81, %c0_82] : memref<4x10x17x4xf32, #tpu.memory_space<vmem>>, vector<4x10x17x4xf32>
    tpu.vector_store %arg12[%c0_79, %c0_80, %c0_81, %c0_82], %79 {strides = array<i32>} : memref<4x10x17x4xf32, #tpu.memory_space<vmem>>, vector<4x10x17x4xf32>,
    %c0_83 = arith.constant 0 : index
    %c0_84 = arith.constant 0 : index
    %c0_85 = arith.constant 0 : index
    %c0_86 = arith.constant 0 : index
    %c0_87 = arith.constant 0 : index
    %81 = vector.load %arg1[%c0_83, %c0_84, %c0_85, %c0_86, %c0_87] : memref<1x4x9x9x4xf32, #tpu.memory_space<vmem>>, vector<1x1x8x8x4xf32>
    %82 = vector.shape_cast %81 : vector<1x1x8x8x4xf32> to vector<8x8x4xf32>
    %83 = vector.shape_cast %82 : vector<8x8x4xf32> to vector<64x4xf32>
    %c0_88 = arith.constant 0 : index
    %c0_89 = arith.constant 0 : index
    %84 = vector.load %arg4[%c0_88, %c0_89] : memref<4x4xf32, #tpu.memory_space<vmem>>, vector<4x4xf32>
    %cst_90 = arith.constant dense<0.000000e+00> : vector<64x4xf32>
    %85 = tpu.matmul %83, %84, %cst_90 {dimension_numbers = #tpu.dot_dimension_numbers<[1], [0], [0], [1], [0, 0, 1, 1], [], []>} : vector<64x4xf32>, vector<4x4xf32>, vector<64x4xf32> -> vector<64x4xf32>
    %c0_91 = arith.constant 0 : index
    %c0_92 = arith.constant 0 : index
    %86 = vector.load %arg5[%c0_91, %c0_92] : memref<1x4xf32, #tpu.memory_space<vmem>>, vector<1x4xf32>
    %87 = vector.broadcast %86 : vector<1x4xf32> to vector<64x4xf32>
    %88 = arith.addf %85, %87 : vector<64x4xf32>
    %cst_93 = arith.constant 0.000000e+00 : f32
    %89 = vector.broadcast %cst_93 : f32 to vector<64x4xf32>
    %90 = arith.maximumf %88, %89 : vector<64x4xf32>
    %91 = vector.shape_cast %90 : vector<64x4xf32> to vector<8x8x4xf32>
    %c0_94 = arith.constant 0 : index
    %c1_95 = arith.constant 1 : index
    %c8_96 = arith.constant 8 : index
    %c0_97 = arith.constant 0 : index
    %92 = vector.load %arg12[%c0_94, %c1_95, %c8_96, %c0_97] : memref<4x10x17x4xf32, #tpu.memory_space<vmem>>, vector<1x8x8x4xf32>
    %93 = vector.shape_cast %92 : vector<1x8x8x4xf32> to vector<8x8x4xf32>
    %94 = vector.shape_cast %91 : vector<8x8x4xf32> to vector<1x8x8x4xf32>
    tpu.vector_store %arg12[%c0_94, %c1_95, %c8_96, %c0_97], %94 {strides = array<i32>} : memref<4x10x17x4xf32, #tpu.memory_space<vmem>>, vector<1x8x8x4xf32>,
    %c0_98 = arith.constant 0 : index
    %c1_99 = arith.constant 1 : index
    %c0_100 = arith.constant 0 : index
    %c0_101 = arith.constant 0 : index
    %c0_102 = arith.constant 0 : index
    %95 = vector.load %arg1[%c0_98, %c1_99, %c0_100, %c0_101, %c0_102] : memref<1x4x9x9x4xf32, #tpu.memory_space<vmem>>, vector<1x1x8x8x4xf32>
    %96 = vector.shape_cast %95 : vector<1x1x8x8x4xf32> to vector<8x8x4xf32>
    %97 = vector.shape_cast %96 : vector<8x8x4xf32> to vector<64x4xf32>
    %c0_103 = arith.constant 0 : index
    %c0_104 = arith.constant 0 : index
    %98 = vector.load %arg4[%c0_103, %c0_104] : memref<4x4xf32, #tpu.memory_space<vmem>>, vector<4x4xf32>
    %cst_105 = arith.constant dense<0.000000e+00> : vector<64x4xf32>
    %99 = tpu.matmul %97, %98, %cst_105 {dimension_numbers = #tpu.dot_dimension_numbers<[1], [0], [0], [1], [0, 0, 1, 1], [], []>} : vector<64x4xf32>, vector<4x4xf32>, vector<64x4xf32> -> vector<64x4xf32>
    %c0_106 = arith.constant 0 : index
    %c0_107 = arith.constant 0 : index
    %100 = vector.load %arg5[%c0_106, %c0_107] : memref<1x4xf32, #tpu.memory_space<vmem>>, vector<1x4xf32>
    %101 = vector.broadcast %100 : vector<1x4xf32> to vector<64x4xf32>
    %102 = arith.addf %99, %101 : vector<64x4xf32>
    %cst_108 = arith.constant 0.000000e+00 : f32
    %103 = vector.broadcast %cst_108 : f32 to vector<64x4xf32>
    %104 = arith.maximumf %102, %103 : vector<64x4xf32>
    %105 = vector.shape_cast %104 : vector<64x4xf32> to vector<8x8x4xf32>
    %c1_109 = arith.constant 1 : index
    %c1_110 = arith.constant 1 : index
    %c8_111 = arith.constant 8 : index
    %c0_112 = arith.constant 0 : index
    %106 = vector.load %arg12[%c1_109, %c1_110, %c8_111, %c0_112] : memref<4x10x17x4xf32, #tpu.memory_space<vmem>>, vector<1x8x8x4xf32>
    %107 = vector.shape_cast %106 : vector<1x8x8x4xf32> to vector<8x8x4xf32>
    %108 = vector.shape_cast %105 : vector<8x8x4xf32> to vector<1x8x8x4xf32>
    tpu.vector_store %arg12[%c1_109, %c1_110, %c8_111, %c0_112], %108 {strides = array<i32>} : memref<4x10x17x4xf32, #tpu.memory_space<vmem>>, vector<1x8x8x4xf32>,
    %c0_113 = arith.constant 0 : index
    %c2_114 = arith.constant 2 : index
    %c0_115 = arith.constant 0 : index
    %c0_116 = arith.constant 0 : index
    %c0_117 = arith.constant 0 : index
    %109 = vector.load %arg1[%c0_113, %c2_114, %c0_115, %c0_116, %c0_117] : memref<1x4x9x9x4xf32, #tpu.memory_space<vmem>>, vector<1x1x8x8x4xf32>
    %110 = vector.shape_cast %109 : vector<1x1x8x8x4xf32> to vector<8x8x4xf32>
    %111 = vector.shape_cast %110 : vector<8x8x4xf32> to vector<64x4xf32>
    %c0_118 = arith.constant 0 : index
    %c0_119 = arith.constant 0 : index
    %112 = vector.load %arg4[%c0_118, %c0_119] : memref<4x4xf32, #tpu.memory_space<vmem>>, vector<4x4xf32>
    %cst_120 = arith.constant dense<0.000000e+00> : vector<64x4xf32>
    %113 = tpu.matmul %111, %112, %cst_120 {dimension_numbers = #tpu.dot_dimension_numbers<[1], [0], [0], [1], [0, 0, 1, 1], [], []>} : vector<64x4xf32>, vector<4x4xf32>, vector<64x4xf32> -> vector<64x4xf32>
    %c0_121 = arith.constant 0 : index
    %c0_122 = arith.constant 0 : index
    %114 = vector.load %arg5[%c0_121, %c0_122] : memref<1x4xf32, #tpu.memory_space<vmem>>, vector<1x4xf32>
    %115 = vector.broadcast %114 : vector<1x4xf32> to vector<64x4xf32>
    %116 = arith.addf %113, %115 : vector<64x4xf32>
    %cst_123 = arith.constant 0.000000e+00 : f32
    %117 = vector.broadcast %cst_123 : f32 to vector<64x4xf32>
    %118 = arith.maximumf %116, %117 : vector<64x4xf32>
    %119 = vector.shape_cast %118 : vector<64x4xf32> to vector<8x8x4xf32>
    %c2_124 = arith.constant 2 : index
    %c1_125 = arith.constant 1 : index
    %c8_126 = arith.constant 8 : index
    %c0_127 = arith.constant 0 : index
    %120 = vector.load %arg12[%c2_124, %c1_125, %c8_126, %c0_127] : memref<4x10x17x4xf32, #tpu.memory_space<vmem>>, vector<1x8x8x4xf32>
    %121 = vector.shape_cast %120 : vector<1x8x8x4xf32> to vector<8x8x4xf32>
    %122 = vector.shape_cast %119 : vector<8x8x4xf32> to vector<1x8x8x4xf32>
    tpu.vector_store %arg12[%c2_124, %c1_125, %c8_126, %c0_127], %122 {strides = array<i32>} : memref<4x10x17x4xf32, #tpu.memory_space<vmem>>, vector<1x8x8x4xf32>,
    %c0_128 = arith.constant 0 : index
    %c3_129 = arith.constant 3 : index
    %c0_130 = arith.constant 0 : index
    %c0_131 = arith.constant 0 : index
    %c0_132 = arith.constant 0 : index
    %123 = vector.load %arg1[%c0_128, %c3_129, %c0_130, %c0_131, %c0_132] : memref<1x4x9x9x4xf32, #tpu.memory_space<vmem>>, vector<1x1x8x8x4xf32>
    %124 = vector.shape_cast %123 : vector<1x1x8x8x4xf32> to vector<8x8x4xf32>
    %125 = vector.shape_cast %124 : vector<8x8x4xf32> to vector<64x4xf32>
    %c0_133 = arith.constant 0 : index
    %c0_134 = arith.constant 0 : index
    %126 = vector.load %arg4[%c0_133, %c0_134] : memref<4x4xf32, #tpu.memory_space<vmem>>, vector<4x4xf32>
    %cst_135 = arith.constant dense<0.000000e+00> : vector<64x4xf32>
    %127 = tpu.matmul %125, %126, %cst_135 {dimension_numbers = #tpu.dot_dimension_numbers<[1], [0], [0], [1], [0, 0, 1, 1], [], []>} : vector<64x4xf32>, vector<4x4xf32>, vector<64x4xf32> -> vector<64x4xf32>
    %c0_136 = arith.constant 0 : index
    %c0_137 = arith.constant 0 : index
    %128 = vector.load %arg5[%c0_136, %c0_137] : memref<1x4xf32, #tpu.memory_space<vmem>>, vector<1x4xf32>
    %129 = vector.broadcast %128 : vector<1x4xf32> to vector<64x4xf32>
    %130 = arith.addf %127, %129 : vector<64x4xf32>
    %cst_138 = arith.constant 0.000000e+00 : f32
    %131 = vector.broadcast %cst_138 : f32 to vector<64x4xf32>
    %132 = arith.maximumf %130, %131 : vector<64x4xf32>
    %133 = vector.shape_cast %132 : vector<64x4xf32> to vector<8x8x4xf32>
    %c3_139 = arith.constant 3 : index
    %c1_140 = arith.constant 1 : index
    %c8_141 = arith.constant 8 : index
    %c0_142 = arith.constant 0 : index
    %134 = vector.load %arg12[%c3_139, %c1_140, %c8_141, %c0_142] : memref<4x10x17x4xf32, #tpu.memory_space<vmem>>, vector<1x8x8x4xf32>
    %135 = vector.shape_cast %134 : vector<1x8x8x4xf32> to vector<8x8x4xf32>
    %136 = vector.shape_cast %133 : vector<8x8x4xf32> to vector<1x8x8x4xf32>
    tpu.vector_store %arg12[%c3_139, %c1_140, %c8_141, %c0_142], %136 {strides = array<i32>} : memref<4x10x17x4xf32, #tpu.memory_space<vmem>>, vector<1x8x8x4xf32>,
    %cst_143 = arith.constant 0.000000e+00 : f32
    %137 = vector.broadcast %cst_143 : f32 to vector<4x9x9x6xf32>
    %c0_144 = arith.constant 0 : index
    %c0_145 = arith.constant 0 : index
    %c0_146 = arith.constant 0 : index
    %c0_147 = arith.constant 0 : index
    %138 = vector.load %arg13[%c0_144, %c0_145, %c0_146, %c0_147] : memref<4x9x9x6xf32, #tpu.memory_space<vmem>>, vector<4x9x9x6xf32>
    tpu.vector_store %arg13[%c0_144, %c0_145, %c0_146, %c0_147], %137 {strides = array<i32>} : memref<4x9x9x6xf32, #tpu.memory_space<vmem>>, vector<4x9x9x6xf32>,
    %cst_148 = arith.constant 0.000000e+00 : f32
    %139 = vector.broadcast %cst_148 : f32 to vector<64x6xf32>
    %c3_149 = arith.constant 3 : index
    %c0_150 = arith.constant 0 : index
    %c7_151 = arith.constant 7 : index
    %c0_152 = arith.constant 0 : index
    %140 = vector.load %arg12[%c3_149, %c0_150, %c7_151, %c0_152] : memref<4x10x17x4xf32, #tpu.memory_space<vmem>>, vector<1x8x8x4xf32>
    %141 = vector.shape_cast %140 : vector<1x8x8x4xf32> to vector<8x8x4xf32>
    %142 = vector.shape_cast %141 : vector<8x8x4xf32> to vector<64x4xf32>
    %c0_153 = arith.constant 0 : index
    %c0_154 = arith.constant 0 : index
    %c0_155 = arith.constant 0 : index
    %143 = vector.load %arg6[%c0_153, %c0_154, %c0_155] : memref<9x4x6xf32, #tpu.memory_space<vmem>>, vector<1x4x6xf32>
    %144 = vector.shape_cast %143 : vector<1x4x6xf32> to vector<4x6xf32>
    %cst_156 = arith.constant dense<0.000000e+00> : vector<64x6xf32>
    %145 = tpu.matmul %142, %144, %cst_156 {dimension_numbers = #tpu.dot_dimension_numbers<[1], [0], [0], [1], [0, 0, 1, 1], [], []>} : vector<64x4xf32>, vector<4x6xf32>, vector<64x6xf32> -> vector<64x6xf32>
    %146 = arith.addf %139, %145 : vector<64x6xf32>
    %c2_157 = arith.constant 2 : index
    %c0_158 = arith.constant 0 : index
    %c8_159 = arith.constant 8 : index
    %c0_160 = arith.constant 0 : index
    %147 = vector.load %arg12[%c2_157, %c0_158, %c8_159, %c0_160] : memref<4x10x17x4xf32, #tpu.memory_space<vmem>>, vector<1x8x8x4xf32>
    %148 = vector.shape_cast %147 : vector<1x8x8x4xf32> to vector<8x8x4xf32>
    %149 = vector.shape_cast %148 : vector<8x8x4xf32> to vector<64x4xf32>
    %c1_161 = arith.constant 1 : index
    %c0_162 = arith.constant 0 : index
    %c0_163 = arith.constant 0 : index
    %150 = vector.load %arg6[%c1_161, %c0_162, %c0_163] : memref<9x4x6xf32, #tpu.memory_space<vmem>>, vector<1x4x6xf32>
    %151 = vector.shape_cast %150 : vector<1x4x6xf32> to vector<4x6xf32>
    %cst_164 = arith.constant dense<0.000000e+00> : vector<64x6xf32>
    %152 = tpu.matmul %149, %151, %cst_164 {dimension_numbers = #tpu.dot_dimension_numbers<[1], [0], [0], [1], [0, 0, 1, 1], [], []>} : vector<64x4xf32>, vector<4x6xf32>, vector<64x6xf32> -> vector<64x6xf32>
    %153 = arith.addf %146, %152 : vector<64x6xf32>
    %c3_165 = arith.constant 3 : index
    %c0_166 = arith.constant 0 : index
    %c8_167 = arith.constant 8 : index
    %c0_168 = arith.constant 0 : index
    %154 = vector.load %arg12[%c3_165, %c0_166, %c8_167, %c0_168] : memref<4x10x17x4xf32, #tpu.memory_space<vmem>>, vector<1x8x8x4xf32>
    %155 = vector.shape_cast %154 : vector<1x8x8x4xf32> to vector<8x8x4xf32>
    %156 = vector.shape_cast %155 : vector<8x8x4xf32> to vector<64x4xf32>
    %c2_169 = arith.constant 2 : index
    %c0_170 = arith.constant 0 : index
    %c0_171 = arith.constant 0 : index
    %157 = vector.load %arg6[%c2_169, %c0_170, %c0_171] : memref<9x4x6xf32, #tpu.memory_space<vmem>>, vector<1x4x6xf32>
    %158 = vector.shape_cast %157 : vector<1x4x6xf32> to vector<4x6xf32>
    %cst_172 = arith.constant dense<0.000000e+00> : vector<64x6xf32>
    %159 = tpu.matmul %156, %158, %cst_172 {dimension_numbers = #tpu.dot_dimension_numbers<[1], [0], [0], [1], [0, 0, 1, 1], [], []>} : vector<64x4xf32>, vector<4x6xf32>, vector<64x6xf32> -> vector<64x6xf32>
    %160 = arith.addf %153, %159 : vector<64x6xf32>
    %c1_173 = arith.constant 1 : index
    %c1_174 = arith.constant 1 : index
    %c7_175 = arith.constant 7 : index
    %c0_176 = arith.constant 0 : index
    %161 = vector.load %arg12[%c1_173, %c1_174, %c7_175, %c0_176] : memref<4x10x17x4xf32, #tpu.memory_space<vmem>>, vector<1x8x8x4xf32>
    %162 = vector.shape_cast %161 : vector<1x8x8x4xf32> to vector<8x8x4xf32>
    %163 = vector.shape_cast %162 : vector<8x8x4xf32> to vector<64x4xf32>
    %c3_177 = arith.constant 3 : index
    %c0_178 = arith.constant 0 : index
    %c0_179 = arith.constant 0 : index
    %164 = vector.load %arg6[%c3_177, %c0_178, %c0_179] : memref<9x4x6xf32, #tpu.memory_space<vmem>>, vector<1x4x6xf32>
    %165 = vector.shape_cast %164 : vector<1x4x6xf32> to vector<4x6xf32>
    %cst_180 = arith.constant dense<0.000000e+00> : vector<64x6xf32>
    %166 = tpu.matmul %163, %165, %cst_180 {dimension_numbers = #tpu.dot_dimension_numbers<[1], [0], [0], [1], [0, 0, 1, 1], [], []>} : vector<64x4xf32>, vector<4x6xf32>, vector<64x6xf32> -> vector<64x6xf32>
    %167 = arith.addf %160, %166 : vector<64x6xf32>
    %c0_181 = arith.constant 0 : index
    %c1_182 = arith.constant 1 : index
    %c8_183 = arith.constant 8 : index
    %c0_184 = arith.constant 0 : index
    %168 = vector.load %arg12[%c0_181, %c1_182, %c8_183, %c0_184] : memref<4x10x17x4xf32, #tpu.memory_space<vmem>>, vector<1x8x8x4xf32>
    %169 = vector.shape_cast %168 : vector<1x8x8x4xf32> to vector<8x8x4xf32>
    %170 = vector.shape_cast %169 : vector<8x8x4xf32> to vector<64x4xf32>
    %c4_185 = arith.constant 4 : index
    %c0_186 = arith.constant 0 : index
    %c0_187 = arith.constant 0 : index
    %171 = vector.load %arg6[%c4_185, %c0_186, %c0_187] : memref<9x4x6xf32, #tpu.memory_space<vmem>>, vector<1x4x6xf32>
    %172 = vector.shape_cast %171 : vector<1x4x6xf32> to vector<4x6xf32>
    %cst_188 = arith.constant dense<0.000000e+00> : vector<64x6xf32>
    %173 = tpu.matmul %170, %172, %cst_188 {dimension_numbers = #tpu.dot_dimension_numbers<[1], [0], [0], [1], [0, 0, 1, 1], [], []>} : vector<64x4xf32>, vector<4x6xf32>, vector<64x6xf32> -> vector<64x6xf32>
    %174 = arith.addf %167, %173 : vector<64x6xf32>
    %c1_189 = arith.constant 1 : index
    %c1_190 = arith.constant 1 : index
    %c8_191 = arith.constant 8 : index
    %c0_192 = arith.constant 0 : index
    %175 = vector.load %arg12[%c1_189, %c1_190, %c8_191, %c0_192] : memref<4x10x17x4xf32, #tpu.memory_space<vmem>>, vector<1x8x8x4xf32>
    %176 = vector.shape_cast %175 : vector<1x8x8x4xf32> to vector<8x8x4xf32>
    %177 = vector.shape_cast %176 : vector<8x8x4xf32> to vector<64x4xf32>
    %c5_193 = arith.constant 5 : index
    %c0_194 = arith.constant 0 : index
    %c0_195 = arith.constant 0 : index
    %178 = vector.load %arg6[%c5_193, %c0_194, %c0_195] : memref<9x4x6xf32, #tpu.memory_space<vmem>>, vector<1x4x6xf32>
    %179 = vector.shape_cast %178 : vector<1x4x6xf32> to vector<4x6xf32>
    %cst_196 = arith.constant dense<0.000000e+00> : vector<64x6xf32>
    %180 = tpu.matmul %177, %179, %cst_196 {dimension_numbers = #tpu.dot_dimension_numbers<[1], [0], [0], [1], [0, 0, 1, 1], [], []>} : vector<64x4xf32>, vector<4x6xf32>, vector<64x6xf32> -> vector<64x6xf32>
    %181 = arith.addf %174, %180 : vector<64x6xf32>
    %c3_197 = arith.constant 3 : index
    %c1_198 = arith.constant 1 : index
    %c7_199 = arith.constant 7 : index
    %c0_200 = arith.constant 0 : index
    %182 = vector.load %arg12[%c3_197, %c1_198, %c7_199, %c0_200] : memref<4x10x17x4xf32, #tpu.memory_space<vmem>>, vector<1x8x8x4xf32>
    %183 = vector.shape_cast %182 : vector<1x8x8x4xf32> to vector<8x8x4xf32>
    %184 = vector.shape_cast %183 : vector<8x8x4xf32> to vector<64x4xf32>
    %c6_201 = arith.constant 6 : index
    %c0_202 = arith.constant 0 : index
    %c0_203 = arith.constant 0 : index
    %185 = vector.load %arg6[%c6_201, %c0_202, %c0_203] : memref<9x4x6xf32, #tpu.memory_space<vmem>>, vector<1x4x6xf32>
    %186 = vector.shape_cast %185 : vector<1x4x6xf32> to vector<4x6xf32>
    %cst_204 = arith.constant dense<0.000000e+00> : vector<64x6xf32>
    %187 = tpu.matmul %184, %186, %cst_204 {dimension_numbers = #tpu.dot_dimension_numbers<[1], [0], [0], [1], [0, 0, 1, 1], [], []>} : vector<64x4xf32>, vector<4x6xf32>, vector<64x6xf32> -> vector<64x6xf32>
    %188 = arith.addf %181, %187 : vector<64x6xf32>
    %c2_205 = arith.constant 2 : index
    %c1_206 = arith.constant 1 : index
    %c8_207 = arith.constant 8 : index
    %c0_208 = arith.constant 0 : index
    %189 = vector.load %arg12[%c2_205, %c1_206, %c8_207, %c0_208] : memref<4x10x17x4xf32, #tpu.memory_space<vmem>>, vector<1x8x8x4xf32>
    %190 = vector.shape_cast %189 : vector<1x8x8x4xf32> to vector<8x8x4xf32>
    %191 = vector.shape_cast %190 : vector<8x8x4xf32> to vector<64x4xf32>
    %c7_209 = arith.constant 7 : index
    %c0_210 = arith.constant 0 : index
    %c0_211 = arith.constant 0 : index
    %192 = vector.load %arg6[%c7_209, %c0_210, %c0_211] : memref<9x4x6xf32, #tpu.memory_space<vmem>>, vector<1x4x6xf32>
    %193 = vector.shape_cast %192 : vector<1x4x6xf32> to vector<4x6xf32>
    %cst_212 = arith.constant dense<0.000000e+00> : vector<64x6xf32>
    %194 = tpu.matmul %191, %193, %cst_212 {dimension_numbers = #tpu.dot_dimension_numbers<[1], [0], [0], [1], [0, 0, 1, 1], [], []>} : vector<64x4xf32>, vector<4x6xf32>, vector<64x6xf32> -> vector<64x6xf32>
    %195 = arith.addf %188, %194 : vector<64x6xf32>
    %c3_213 = arith.constant 3 : index
    %c1_214 = arith.constant 1 : index
    %c8_215 = arith.constant 8 : index
    %c0_216 = arith.constant 0 : index
    %196 = vector.load %arg12[%c3_213, %c1_214, %c8_215, %c0_216] : memref<4x10x17x4xf32, #tpu.memory_space<vmem>>, vector<1x8x8x4xf32>
    %197 = vector.shape_cast %196 : vector<1x8x8x4xf32> to vector<8x8x4xf32>
    %198 = vector.shape_cast %197 : vector<8x8x4xf32> to vector<64x4xf32>
    %c8_217 = arith.constant 8 : index
    %c0_218 = arith.constant 0 : index
    %c0_219 = arith.constant 0 : index
    %199 = vector.load %arg6[%c8_217, %c0_218, %c0_219] : memref<9x4x6xf32, #tpu.memory_space<vmem>>, vector<1x4x6xf32>
    %200 = vector.shape_cast %199 : vector<1x4x6xf32> to vector<4x6xf32>
    %cst_220 = arith.constant dense<0.000000e+00> : vector<64x6xf32>
    %201 = tpu.matmul %198, %200, %cst_220 {dimension_numbers = #tpu.dot_dimension_numbers<[1], [0], [0], [1], [0, 0, 1, 1], [], []>} : vector<64x4xf32>, vector<4x6xf32>, vector<64x6xf32> -> vector<64x6xf32>
    %202 = arith.addf %195, %201 : vector<64x6xf32>
    %c0_221 = arith.constant 0 : index
    %c0_222 = arith.constant 0 : index
    %203 = vector.load %arg7[%c0_221, %c0_222] : memref<1x6xf32, #tpu.memory_space<vmem>>, vector<1x6xf32>
    %204 = vector.broadcast %203 : vector<1x6xf32> to vector<64x6xf32>
    %205 = arith.addf %202, %204 : vector<64x6xf32>
    %cst_223 = arith.constant 0.000000e+00 : f32
    %206 = vector.broadcast %cst_223 : f32 to vector<64x6xf32>
    %207 = arith.maximumf %205, %206 : vector<64x6xf32>
    %208 = vector.shape_cast %207 : vector<64x6xf32> to vector<8x8x6xf32>
    %c0_224 = arith.constant 0 : index
    %c0_225 = arith.constant 0 : index
    %c0_226 = arith.constant 0 : index
    %c0_227 = arith.constant 0 : index
    %209 = vector.load %arg13[%c0_224, %c0_225, %c0_226, %c0_227] : memref<4x9x9x6xf32, #tpu.memory_space<vmem>>, vector<1x8x8x6xf32>
    %210 = vector.shape_cast %209 : vector<1x8x8x6xf32> to vector<8x8x6xf32>
    %211 = vector.shape_cast %208 : vector<8x8x6xf32> to vector<1x8x8x6xf32>
    tpu.vector_store %arg13[%c0_224, %c0_225, %c0_226, %c0_227], %211 {strides = array<i32>} : memref<4x9x9x6xf32, #tpu.memory_space<vmem>>, vector<1x8x8x6xf32>,
    %cst_228 = arith.constant 0.000000e+00 : f32
    %212 = vector.broadcast %cst_228 : f32 to vector<64x6xf32>
    %c2_229 = arith.constant 2 : index
    %c0_230 = arith.constant 0 : index
    %c8_231 = arith.constant 8 : index
    %c0_232 = arith.constant 0 : index
    %213 = vector.load %arg12[%c2_229, %c0_230, %c8_231, %c0_232] : memref<4x10x17x4xf32, #tpu.memory_space<vmem>>, vector<1x8x8x4xf32>
    %214 = vector.shape_cast %213 : vector<1x8x8x4xf32> to vector<8x8x4xf32>
    %215 = vector.shape_cast %214 : vector<8x8x4xf32> to vector<64x4xf32>
    %c0_233 = arith.constant 0 : index
    %c0_234 = arith.constant 0 : index
    %c0_235 = arith.constant 0 : index
    %216 = vector.load %arg6[%c0_233, %c0_234, %c0_235] : memref<9x4x6xf32, #tpu.memory_space<vmem>>, vector<1x4x6xf32>
    %217 = vector.shape_cast %216 : vector<1x4x6xf32> to vector<4x6xf32>
    %cst_236 = arith.constant dense<0.000000e+00> : vector<64x6xf32>
    %218 = tpu.matmul %215, %217, %cst_236 {dimension_numbers = #tpu.dot_dimension_numbers<[1], [0], [0], [1], [0, 0, 1, 1], [], []>} : vector<64x4xf32>, vector<4x6xf32>, vector<64x6xf32> -> vector<64x6xf32>
    %219 = arith.addf %212, %218 : vector<64x6xf32>
    %c3_237 = arith.constant 3 : index
    %c0_238 = arith.constant 0 : index
    %c8_239 = arith.constant 8 : index
    %c0_240 = arith.constant 0 : index
    %220 = vector.load %arg12[%c3_237, %c0_238, %c8_239, %c0_240] : memref<4x10x17x4xf32, #tpu.memory_space<vmem>>, vector<1x8x8x4xf32>
    %221 = vector.shape_cast %220 : vector<1x8x8x4xf32> to vector<8x8x4xf32>
    %222 = vector.shape_cast %221 : vector<8x8x4xf32> to vector<64x4xf32>
    %c1_241 = arith.constant 1 : index
    %c0_242 = arith.constant 0 : index
    %c0_243 = arith.constant 0 : index
    %223 = vector.load %arg6[%c1_241, %c0_242, %c0_243] : memref<9x4x6xf32, #tpu.memory_space<vmem>>, vector<1x4x6xf32>
    %224 = vector.shape_cast %223 : vector<1x4x6xf32> to vector<4x6xf32>
    %cst_244 = arith.constant dense<0.000000e+00> : vector<64x6xf32>
    %225 = tpu.matmul %222, %224, %cst_244 {dimension_numbers = #tpu.dot_dimension_numbers<[1], [0], [0], [1], [0, 0, 1, 1], [], []>} : vector<64x4xf32>, vector<4x6xf32>, vector<64x6xf32> -> vector<64x6xf32>
    %226 = arith.addf %219, %225 : vector<64x6xf32>
    %c2_245 = arith.constant 2 : index
    %c0_246 = arith.constant 0 : index
    %c9 = arith.constant 9 : index
    %c0_247 = arith.constant 0 : index
    %227 = vector.load %arg12[%c2_245, %c0_246, %c9, %c0_247] : memref<4x10x17x4xf32, #tpu.memory_space<vmem>>, vector<1x8x8x4xf32>
    %228 = vector.shape_cast %227 : vector<1x8x8x4xf32> to vector<8x8x4xf32>
    %229 = vector.shape_cast %228 : vector<8x8x4xf32> to vector<64x4xf32>
    %c2_248 = arith.constant 2 : index
    %c0_249 = arith.constant 0 : index
    %c0_250 = arith.constant 0 : index
    %230 = vector.load %arg6[%c2_248, %c0_249, %c0_250] : memref<9x4x6xf32, #tpu.memory_space<vmem>>, vector<1x4x6xf32>
    %231 = vector.shape_cast %230 : vector<1x4x6xf32> to vector<4x6xf32>
    %cst_251 = arith.constant dense<0.000000e+00> : vector<64x6xf32>
    %232 = tpu.matmul %229, %231, %cst_251 {dimension_numbers = #tpu.dot_dimension_numbers<[1], [0], [0], [1], [0, 0, 1, 1], [], []>} : vector<64x4xf32>, vector<4x6xf32>, vector<64x6xf32> -> vector<64x6xf32>
    %233 = arith.addf %226, %232 : vector<64x6xf32>
    %c0_252 = arith.constant 0 : index
    %c1_253 = arith.constant 1 : index
    %c8_254 = arith.constant 8 : index
    %c0_255 = arith.constant 0 : index
    %234 = vector.load %arg12[%c0_252, %c1_253, %c8_254, %c0_255] : memref<4x10x17x4xf32, #tpu.memory_space<vmem>>, vector<1x8x8x4xf32>
    %235 = vector.shape_cast %234 : vector<1x8x8x4xf32> to vector<8x8x4xf32>
    %236 = vector.shape_cast %235 : vector<8x8x4xf32> to vector<64x4xf32>
    %c3_256 = arith.constant 3 : index
    %c0_257 = arith.constant 0 : index
    %c0_258 = arith.constant 0 : index
    %237 = vector.load %arg6[%c3_256, %c0_257, %c0_258] : memref<9x4x6xf32, #tpu.memory_space<vmem>>, vector<1x4x6xf32>
    %238 = vector.shape_cast %237 : vector<1x4x6xf32> to vector<4x6xf32>
    %cst_259 = arith.constant dense<0.000000e+00> : vector<64x6xf32>
    %239 = tpu.matmul %236, %238, %cst_259 {dimension_numbers = #tpu.dot_dimension_numbers<[1], [0], [0], [1], [0, 0, 1, 1], [], []>} : vector<64x4xf32>, vector<4x6xf32>, vector<64x6xf32> -> vector<64x6xf32>
    %240 = arith.addf %233, %239 : vector<64x6xf32>
    %c1_260 = arith.constant 1 : index
    %c1_261 = arith.constant 1 : index
    %c8_262 = arith.constant 8 : index
    %c0_263 = arith.constant 0 : index
    %241 = vector.load %arg12[%c1_260, %c1_261, %c8_262, %c0_263] : memref<4x10x17x4xf32, #tpu.memory_space<vmem>>, vector<1x8x8x4xf32>
    %242 = vector.shape_cast %241 : vector<1x8x8x4xf32> to vector<8x8x4xf32>
    %243 = vector.shape_cast %242 : vector<8x8x4xf32> to vector<64x4xf32>
    %c4_264 = arith.constant 4 : index
    %c0_265 = arith.constant 0 : index
    %c0_266 = arith.constant 0 : index
    %244 = vector.load %arg6[%c4_264, %c0_265, %c0_266] : memref<9x4x6xf32, #tpu.memory_space<vmem>>, vector<1x4x6xf32>
    %245 = vector.shape_cast %244 : vector<1x4x6xf32> to vector<4x6xf32>
    %cst_267 = arith.constant dense<0.000000e+00> : vector<64x6xf32>
    %246 = tpu.matmul %243, %245, %cst_267 {dimension_numbers = #tpu.dot_dimension_numbers<[1], [0], [0], [1], [0, 0, 1, 1], [], []>} : vector<64x4xf32>, vector<4x6xf32>, vector<64x6xf32> -> vector<64x6xf32>
    %247 = arith.addf %240, %246 : vector<64x6xf32>
    %c0_268 = arith.constant 0 : index
    %c1_269 = arith.constant 1 : index
    %c9_270 = arith.constant 9 : index
    %c0_271 = arith.constant 0 : index
    %248 = vector.load %arg12[%c0_268, %c1_269, %c9_270, %c0_271] : memref<4x10x17x4xf32, #tpu.memory_space<vmem>>, vector<1x8x8x4xf32>
    %249 = vector.shape_cast %248 : vector<1x8x8x4xf32> to vector<8x8x4xf32>
    %250 = vector.shape_cast %249 : vector<8x8x4xf32> to vector<64x4xf32>
    %c5_272 = arith.constant 5 : index
    %c0_273 = arith.constant 0 : index
    %c0_274 = arith.constant 0 : index
    %251 = vector.load %arg6[%c5_272, %c0_273, %c0_274] : memref<9x4x6xf32, #tpu.memory_space<vmem>>, vector<1x4x6xf32>
    %252 = vector.shape_cast %251 : vector<1x4x6xf32> to vector<4x6xf32>
    %cst_275 = arith.constant dense<0.000000e+00> : vector<64x6xf32>
    %253 = tpu.matmul %250, %252, %cst_275 {dimension_numbers = #tpu.dot_dimension_numbers<[1], [0], [0], [1], [0, 0, 1, 1], [], []>} : vector<64x4xf32>, vector<4x6xf32>, vector<64x6xf32> -> vector<64x6xf32>
    %254 = arith.addf %247, %253 : vector<64x6xf32>
    %c2_276 = arith.constant 2 : index
    %c1_277 = arith.constant 1 : index
    %c8_278 = arith.constant 8 : index
    %c0_279 = arith.constant 0 : index
    %255 = vector.load %arg12[%c2_276, %c1_277, %c8_278, %c0_279] : memref<4x10x17x4xf32, #tpu.memory_space<vmem>>, vector<1x8x8x4xf32>
    %256 = vector.shape_cast %255 : vector<1x8x8x4xf32> to vector<8x8x4xf32>
    %257 = vector.shape_cast %256 : vector<8x8x4xf32> to vector<64x4xf32>
    %c6_280 = arith.constant 6 : index
    %c0_281 = arith.constant 0 : index
    %c0_282 = arith.constant 0 : index
    %258 = vector.load %arg6[%c6_280, %c0_281, %c0_282] : memref<9x4x6xf32, #tpu.memory_space<vmem>>, vector<1x4x6xf32>
    %259 = vector.shape_cast %258 : vector<1x4x6xf32> to vector<4x6xf32>
    %cst_283 = arith.constant dense<0.000000e+00> : vector<64x6xf32>
    %260 = tpu.matmul %257, %259, %cst_283 {dimension_numbers = #tpu.dot_dimension_numbers<[1], [0], [0], [1], [0, 0, 1, 1], [], []>} : vector<64x4xf32>, vector<4x6xf32>, vector<64x6xf32> -> vector<64x6xf32>
    %261 = arith.addf %254, %260 : vector<64x6xf32>
    %c3_284 = arith.constant 3 : index
    %c1_285 = arith.constant 1 : index
    %c8_286 = arith.constant 8 : index
    %c0_287 = arith.constant 0 : index
    %262 = vector.load %arg12[%c3_284, %c1_285, %c8_286, %c0_287] : memref<4x10x17x4xf32, #tpu.memory_space<vmem>>, vector<1x8x8x4xf32>
    %263 = vector.shape_cast %262 : vector<1x8x8x4xf32> to vector<8x8x4xf32>
    %264 = vector.shape_cast %263 : vector<8x8x4xf32> to vector<64x4xf32>
    %c7_288 = arith.constant 7 : index
    %c0_289 = arith.constant 0 : index
    %c0_290 = arith.constant 0 : index
    %265 = vector.load %arg6[%c7_288, %c0_289, %c0_290] : memref<9x4x6xf32, #tpu.memory_space<vmem>>, vector<1x4x6xf32>
    %266 = vector.shape_cast %265 : vector<1x4x6xf32> to vector<4x6xf32>
    %cst_291 = arith.constant dense<0.000000e+00> : vector<64x6xf32>
    %267 = tpu.matmul %264, %266, %cst_291 {dimension_numbers = #tpu.dot_dimension_numbers<[1], [0], [0], [1], [0, 0, 1, 1], [], []>} : vector<64x4xf32>, vector<4x6xf32>, vector<64x6xf32> -> vector<64x6xf32>
    %268 = arith.addf %261, %267 : vector<64x6xf32>
    %c2_292 = arith.constant 2 : index
    %c1_293 = arith.constant 1 : index
    %c9_294 = arith.constant 9 : index
    %c0_295 = arith.constant 0 : index
    %269 = vector.load %arg12[%c2_292, %c1_293, %c9_294, %c0_295] : memref<4x10x17x4xf32, #tpu.memory_space<vmem>>, vector<1x8x8x4xf32>
    %270 = vector.shape_cast %269 : vector<1x8x8x4xf32> to vector<8x8x4xf32>
    %271 = vector.shape_cast %270 : vector<8x8x4xf32> to vector<64x4xf32>
    %c8_296 = arith.constant 8 : index
    %c0_297 = arith.constant 0 : index
    %c0_298 = arith.constant 0 : index
    %272 = vector.load %arg6[%c8_296, %c0_297, %c0_298] : memref<9x4x6xf32, #tpu.memory_space<vmem>>, vector<1x4x6xf32>
    %273 = vector.shape_cast %272 : vector<1x4x6xf32> to vector<4x6xf32>
    %cst_299 = arith.constant dense<0.000000e+00> : vector<64x6xf32>
    %274 = tpu.matmul %271, %273, %cst_299 {dimension_numbers = #tpu.dot_dimension_numbers<[1], [0], [0], [1], [0, 0, 1, 1], [], []>} : vector<64x4xf32>, vector<4x6xf32>, vector<64x6xf32> -> vector<64x6xf32>
    %275 = arith.addf %268, %274 : vector<64x6xf32>
    %c0_300 = arith.constant 0 : index
    %c0_301 = arith.constant 0 : index
    %276 = vector.load %arg7[%c0_300, %c0_301] : memref<1x6xf32, #tpu.memory_space<vmem>>, vector<1x6xf32>
    %277 = vector.broadcast %276 : vector<1x6xf32> to vector<64x6xf32>
    %278 = arith.addf %275, %277 : vector<64x6xf32>
    %cst_302 = arith.constant 0.000000e+00 : f32
    %279 = vector.broadcast %cst_302 : f32 to vector<64x6xf32>
    %280 = arith.maximumf %278, %279 : vector<64x6xf32>
    %281 = vector.shape_cast %280 : vector<64x6xf32> to vector<8x8x6xf32>
    %c1_303 = arith.constant 1 : index
    %c0_304 = arith.constant 0 : index
    %c0_305 = arith.constant 0 : index
    %c0_306 = arith.constant 0 : index
    %282 = vector.load %arg13[%c1_303, %c0_304, %c0_305, %c0_306] : memref<4x9x9x6xf32, #tpu.memory_space<vmem>>, vector<1x8x8x6xf32>
    %283 = vector.shape_cast %282 : vector<1x8x8x6xf32> to vector<8x8x6xf32>
    %284 = vector.shape_cast %281 : vector<8x8x6xf32> to vector<1x8x8x6xf32>
    tpu.vector_store %arg13[%c1_303, %c0_304, %c0_305, %c0_306], %284 {strides = array<i32>} : memref<4x9x9x6xf32, #tpu.memory_space<vmem>>, vector<1x8x8x6xf32>,
    %cst_307 = arith.constant 0.000000e+00 : f32
    %285 = vector.broadcast %cst_307 : f32 to vector<64x6xf32>
    %c1_308 = arith.constant 1 : index
    %c1_309 = arith.constant 1 : index
    %c7_310 = arith.constant 7 : index
    %c0_311 = arith.constant 0 : index
    %286 = vector.load %arg12[%c1_308, %c1_309, %c7_310, %c0_311] : memref<4x10x17x4xf32, #tpu.memory_space<vmem>>, vector<1x8x8x4xf32>
    %287 = vector.shape_cast %286 : vector<1x8x8x4xf32> to vector<8x8x4xf32>
    %288 = vector.shape_cast %287 : vector<8x8x4xf32> to vector<64x4xf32>
    %c0_312 = arith.constant 0 : index
    %c0_313 = arith.constant 0 : index
    %c0_314 = arith.constant 0 : index
    %289 = vector.load %arg6[%c0_312, %c0_313, %c0_314] : memref<9x4x6xf32, #tpu.memory_space<vmem>>, vector<1x4x6xf32>
    %290 = vector.shape_cast %289 : vector<1x4x6xf32> to vector<4x6xf32>
    %cst_315 = arith.constant dense<0.000000e+00> : vector<64x6xf32>
    %291 = tpu.matmul %288, %290, %cst_315 {dimension_numbers = #tpu.dot_dimension_numbers<[1], [0], [0], [1], [0, 0, 1, 1], [], []>} : vector<64x4xf32>, vector<4x6xf32>, vector<64x6xf32> -> vector<64x6xf32>
    %292 = arith.addf %285, %291 : vector<64x6xf32>
    %c0_316 = arith.constant 0 : index
    %c1_317 = arith.constant 1 : index
    %c8_318 = arith.constant 8 : index
    %c0_319 = arith.constant 0 : index
    %293 = vector.load %arg12[%c0_316, %c1_317, %c8_318, %c0_319] : memref<4x10x17x4xf32, #tpu.memory_space<vmem>>, vector<1x8x8x4xf32>
    %294 = vector.shape_cast %293 : vector<1x8x8x4xf32> to vector<8x8x4xf32>
    %295 = vector.shape_cast %294 : vector<8x8x4xf32> to vector<64x4xf32>
    %c1_320 = arith.constant 1 : index
    %c0_321 = arith.constant 0 : index
    %c0_322 = arith.constant 0 : index
    %296 = vector.load %arg6[%c1_320, %c0_321, %c0_322] : memref<9x4x6xf32, #tpu.memory_space<vmem>>, vector<1x4x6xf32>
    %297 = vector.shape_cast %296 : vector<1x4x6xf32> to vector<4x6xf32>
    %cst_323 = arith.constant dense<0.000000e+00> : vector<64x6xf32>
    %298 = tpu.matmul %295, %297, %cst_323 {dimension_numbers = #tpu.dot_dimension_numbers<[1], [0], [0], [1], [0, 0, 1, 1], [], []>} : vector<64x4xf32>, vector<4x6xf32>, vector<64x6xf32> -> vector<64x6xf32>
    %299 = arith.addf %292, %298 : vector<64x6xf32>
    %c1_324 = arith.constant 1 : index
    %c1_325 = arith.constant 1 : index
    %c8_326 = arith.constant 8 : index
    %c0_327 = arith.constant 0 : index
    %300 = vector.load %arg12[%c1_324, %c1_325, %c8_326, %c0_327] : memref<4x10x17x4xf32, #tpu.memory_space<vmem>>, vector<1x8x8x4xf32>
    %301 = vector.shape_cast %300 : vector<1x8x8x4xf32> to vector<8x8x4xf32>
    %302 = vector.shape_cast %301 : vector<8x8x4xf32> to vector<64x4xf32>
    %c2_328 = arith.constant 2 : index
    %c0_329 = arith.constant 0 : index
    %c0_330 = arith.constant 0 : index
    %303 = vector.load %arg6[%c2_328, %c0_329, %c0_330] : memref<9x4x6xf32, #tpu.memory_space<vmem>>, vector<1x4x6xf32>
    %304 = vector.shape_cast %303 : vector<1x4x6xf32> to vector<4x6xf32>
    %cst_331 = arith.constant dense<0.000000e+00> : vector<64x6xf32>
    %305 = tpu.matmul %302, %304, %cst_331 {dimension_numbers = #tpu.dot_dimension_numbers<[1], [0], [0], [1], [0, 0, 1, 1], [], []>} : vector<64x4xf32>, vector<4x6xf32>, vector<64x6xf32> -> vector<64x6xf32>
    %306 = arith.addf %299, %305 : vector<64x6xf32>
    %c3_332 = arith.constant 3 : index
    %c1_333 = arith.constant 1 : index
    %c7_334 = arith.constant 7 : index
    %c0_335 = arith.constant 0 : index
    %307 = vector.load %arg12[%c3_332, %c1_333, %c7_334, %c0_335] : memref<4x10x17x4xf32, #tpu.memory_space<vmem>>, vector<1x8x8x4xf32>
    %308 = vector.shape_cast %307 : vector<1x8x8x4xf32> to vector<8x8x4xf32>
    %309 = vector.shape_cast %308 : vector<8x8x4xf32> to vector<64x4xf32>
    %c3_336 = arith.constant 3 : index
    %c0_337 = arith.constant 0 : index
    %c0_338 = arith.constant 0 : index
    %310 = vector.load %arg6[%c3_336, %c0_337, %c0_338] : memref<9x4x6xf32, #tpu.memory_space<vmem>>, vector<1x4x6xf32>
    %311 = vector.shape_cast %310 : vector<1x4x6xf32> to vector<4x6xf32>
    %cst_339 = arith.constant dense<0.000000e+00> : vector<64x6xf32>
    %312 = tpu.matmul %309, %311, %cst_339 {dimension_numbers = #tpu.dot_dimension_numbers<[1], [0], [0], [1], [0, 0, 1, 1], [], []>} : vector<64x4xf32>, vector<4x6xf32>, vector<64x6xf32> -> vector<64x6xf32>
    %313 = arith.addf %306, %312 : vector<64x6xf32>
    %c2_340 = arith.constant 2 : index
    %c1_341 = arith.constant 1 : index
    %c8_342 = arith.constant 8 : index
    %c0_343 = arith.constant 0 : index
    %314 = vector.load %arg12[%c2_340, %c1_341, %c8_342, %c0_343] : memref<4x10x17x4xf32, #tpu.memory_space<vmem>>, vector<1x8x8x4xf32>
    %315 = vector.shape_cast %314 : vector<1x8x8x4xf32> to vector<8x8x4xf32>
    %316 = vector.shape_cast %315 : vector<8x8x4xf32> to vector<64x4xf32>
    %c4_344 = arith.constant 4 : index
    %c0_345 = arith.constant 0 : index
    %c0_346 = arith.constant 0 : index
    %317 = vector.load %arg6[%c4_344, %c0_345, %c0_346] : memref<9x4x6xf32, #tpu.memory_space<vmem>>, vector<1x4x6xf32>
    %318 = vector.shape_cast %317 : vector<1x4x6xf32> to vector<4x6xf32>
    %cst_347 = arith.constant dense<0.000000e+00> : vector<64x6xf32>
    %319 = tpu.matmul %316, %318, %cst_347 {dimension_numbers = #tpu.dot_dimension_numbers<[1], [0], [0], [1], [0, 0, 1, 1], [], []>} : vector<64x4xf32>, vector<4x6xf32>, vector<64x6xf32> -> vector<64x6xf32>
    %320 = arith.addf %313, %319 : vector<64x6xf32>
    %c3_348 = arith.constant 3 : index
    %c1_349 = arith.constant 1 : index
    %c8_350 = arith.constant 8 : index
    %c0_351 = arith.constant 0 : index
    %321 = vector.load %arg12[%c3_348, %c1_349, %c8_350, %c0_351] : memref<4x10x17x4xf32, #tpu.memory_space<vmem>>, vector<1x8x8x4xf32>
    %322 = vector.shape_cast %321 : vector<1x8x8x4xf32> to vector<8x8x4xf32>
    %323 = vector.shape_cast %322 : vector<8x8x4xf32> to vector<64x4xf32>
    %c5_352 = arith.constant 5 : index
    %c0_353 = arith.constant 0 : index
    %c0_354 = arith.constant 0 : index
    %324 = vector.load %arg6[%c5_352, %c0_353, %c0_354] : memref<9x4x6xf32, #tpu.memory_space<vmem>>, vector<1x4x6xf32>
    %325 = vector.shape_cast %324 : vector<1x4x6xf32> to vector<4x6xf32>
    %cst_355 = arith.constant dense<0.000000e+00> : vector<64x6xf32>
    %326 = tpu.matmul %323, %325, %cst_355 {dimension_numbers = #tpu.dot_dimension_numbers<[1], [0], [0], [1], [0, 0, 1, 1], [], []>} : vector<64x4xf32>, vector<4x6xf32>, vector<64x6xf32> -> vector<64x6xf32>
    %327 = arith.addf %320, %326 : vector<64x6xf32>
    %c1_356 = arith.constant 1 : index
    %c2_357 = arith.constant 2 : index
    %c7_358 = arith.constant 7 : index
    %c0_359 = arith.constant 0 : index
    %328 = vector.load %arg12[%c1_356, %c2_357, %c7_358, %c0_359] : memref<4x10x17x4xf32, #tpu.memory_space<vmem>>, vector<1x8x8x4xf32>
    %329 = vector.shape_cast %328 : vector<1x8x8x4xf32> to vector<8x8x4xf32>
    %330 = vector.shape_cast %329 : vector<8x8x4xf32> to vector<64x4xf32>
    %c6_360 = arith.constant 6 : index
    %c0_361 = arith.constant 0 : index
    %c0_362 = arith.constant 0 : index
    %331 = vector.load %arg6[%c6_360, %c0_361, %c0_362] : memref<9x4x6xf32, #tpu.memory_space<vmem>>, vector<1x4x6xf32>
    %332 = vector.shape_cast %331 : vector<1x4x6xf32> to vector<4x6xf32>
    %cst_363 = arith.constant dense<0.000000e+00> : vector<64x6xf32>
    %333 = tpu.matmul %330, %332, %cst_363 {dimension_numbers = #tpu.dot_dimension_numbers<[1], [0], [0], [1], [0, 0, 1, 1], [], []>} : vector<64x4xf32>, vector<4x6xf32>, vector<64x6xf32> -> vector<64x6xf32>
    %334 = arith.addf %327, %333 : vector<64x6xf32>
    %c0_364 = arith.constant 0 : index
    %c2_365 = arith.constant 2 : index
    %c8_366 = arith.constant 8 : index
    %c0_367 = arith.constant 0 : index
    %335 = vector.load %arg12[%c0_364, %c2_365, %c8_366, %c0_367] : memref<4x10x17x4xf32, #tpu.memory_space<vmem>>, vector<1x8x8x4xf32>
    %336 = vector.shape_cast %335 : vector<1x8x8x4xf32> to vector<8x8x4xf32>
    %337 = vector.shape_cast %336 : vector<8x8x4xf32> to vector<64x4xf32>
    %c7_368 = arith.constant 7 : index
    %c0_369 = arith.constant 0 : index
    %c0_370 = arith.constant 0 : index
    %338 = vector.load %arg6[%c7_368, %c0_369, %c0_370] : memref<9x4x6xf32, #tpu.memory_space<vmem>>, vector<1x4x6xf32>
    %339 = vector.shape_cast %338 : vector<1x4x6xf32> to vector<4x6xf32>
    %cst_371 = arith.constant dense<0.000000e+00> : vector<64x6xf32>
    %340 = tpu.matmul %337, %339, %cst_371 {dimension_numbers = #tpu.dot_dimension_numbers<[1], [0], [0], [1], [0, 0, 1, 1], [], []>} : vector<64x4xf32>, vector<4x6xf32>, vector<64x6xf32> -> vector<64x6xf32>
    %341 = arith.addf %334, %340 : vector<64x6xf32>
    %c1_372 = arith.constant 1 : index
    %c2_373 = arith.constant 2 : index
    %c8_374 = arith.constant 8 : index
    %c0_375 = arith.constant 0 : index
    %342 = vector.load %arg12[%c1_372, %c2_373, %c8_374, %c0_375] : memref<4x10x17x4xf32, #tpu.memory_space<vmem>>, vector<1x8x8x4xf32>
    %343 = vector.shape_cast %342 : vector<1x8x8x4xf32> to vector<8x8x4xf32>
    %344 = vector.shape_cast %343 : vector<8x8x4xf32> to vector<64x4xf32>
    %c8_376 = arith.constant 8 : index
    %c0_377 = arith.constant 0 : index
    %c0_378 = arith.constant 0 : index
    %345 = vector.load %arg6[%c8_376, %c0_377, %c0_378] : memref<9x4x6xf32, #tpu.memory_space<vmem>>, vector<1x4x6xf32>
    %346 = vector.shape_cast %345 : vector<1x4x6xf32> to vector<4x6xf32>
    %cst_379 = arith.constant dense<0.000000e+00> : vector<64x6xf32>
    %347 = tpu.matmul %344, %346, %cst_379 {dimension_numbers = #tpu.dot_dimension_numbers<[1], [0], [0], [1], [0, 0, 1, 1], [], []>} : vector<64x4xf32>, vector<4x6xf32>, vector<64x6xf32> -> vector<64x6xf32>
    %348 = arith.addf %341, %347 : vector<64x6xf32>
    %c0_380 = arith.constant 0 : index
    %c0_381 = arith.constant 0 : index
    %349 = vector.load %arg7[%c0_380, %c0_381] : memref<1x6xf32, #tpu.memory_space<vmem>>, vector<1x6xf32>
    %350 = vector.broadcast %349 : vector<1x6xf32> to vector<64x6xf32>
    %351 = arith.addf %348, %350 : vector<64x6xf32>
    %cst_382 = arith.constant 0.000000e+00 : f32
    %352 = vector.broadcast %cst_382 : f32 to vector<64x6xf32>
    %353 = arith.maximumf %351, %352 : vector<64x6xf32>
    %354 = vector.shape_cast %353 : vector<64x6xf32> to vector<8x8x6xf32>
    %c2_383 = arith.constant 2 : index
    %c0_384 = arith.constant 0 : index
    %c0_385 = arith.constant 0 : index
    %c0_386 = arith.constant 0 : index
    %355 = vector.load %arg13[%c2_383, %c0_384, %c0_385, %c0_386] : memref<4x9x9x6xf32, #tpu.memory_space<vmem>>, vector<1x8x8x6xf32>
    %356 = vector.shape_cast %355 : vector<1x8x8x6xf32> to vector<8x8x6xf32>
    %357 = vector.shape_cast %354 : vector<8x8x6xf32> to vector<1x8x8x6xf32>
    tpu.vector_store %arg13[%c2_383, %c0_384, %c0_385, %c0_386], %357 {strides = array<i32>} : memref<4x9x9x6xf32, #tpu.memory_space<vmem>>, vector<1x8x8x6xf32>,
    %cst_387 = arith.constant 0.000000e+00 : f32
    %358 = vector.broadcast %cst_387 : f32 to vector<64x6xf32>
    %c0_388 = arith.constant 0 : index
    %c1_389 = arith.constant 1 : index
    %c8_390 = arith.constant 8 : index
    %c0_391 = arith.constant 0 : index
    %359 = vector.load %arg12[%c0_388, %c1_389, %c8_390, %c0_391] : memref<4x10x17x4xf32, #tpu.memory_space<vmem>>, vector<1x8x8x4xf32>
    %360 = vector.shape_cast %359 : vector<1x8x8x4xf32> to vector<8x8x4xf32>
    %361 = vector.shape_cast %360 : vector<8x8x4xf32> to vector<64x4xf32>
    %c0_392 = arith.constant 0 : index
    %c0_393 = arith.constant 0 : index
    %c0_394 = arith.constant 0 : index
    %362 = vector.load %arg6[%c0_392, %c0_393, %c0_394] : memref<9x4x6xf32, #tpu.memory_space<vmem>>, vector<1x4x6xf32>
    %363 = vector.shape_cast %362 : vector<1x4x6xf32> to vector<4x6xf32>
    %cst_395 = arith.constant dense<0.000000e+00> : vector<64x6xf32>
    %364 = tpu.matmul %361, %363, %cst_395 {dimension_numbers = #tpu.dot_dimension_numbers<[1], [0], [0], [1], [0, 0, 1, 1], [], []>} : vector<64x4xf32>, vector<4x6xf32>, vector<64x6xf32> -> vector<64x6xf32>
    %365 = arith.addf %358, %364 : vector<64x6xf32>
    %c1_396 = arith.constant 1 : index
    %c1_397 = arith.constant 1 : index
    %c8_398 = arith.constant 8 : index
    %c0_399 = arith.constant 0 : index
    %366 = vector.load %arg12[%c1_396, %c1_397, %c8_398, %c0_399] : memref<4x10x17x4xf32, #tpu.memory_space<vmem>>, vector<1x8x8x4xf32>
    %367 = vector.shape_cast %366 : vector<1x8x8x4xf32> to vector<8x8x4xf32>
    %368 = vector.shape_cast %367 : vector<8x8x4xf32> to vector<64x4xf32>
    %c1_400 = arith.constant 1 : index
    %c0_401 = arith.constant 0 : index
    %c0_402 = arith.constant 0 : index
    %369 = vector.load %arg6[%c1_400, %c0_401, %c0_402] : memref<9x4x6xf32, #tpu.memory_space<vmem>>, vector<1x4x6xf32>
    %370 = vector.shape_cast %369 : vector<1x4x6xf32> to vector<4x6xf32>
    %cst_403 = arith.constant dense<0.000000e+00> : vector<64x6xf32>
    %371 = tpu.matmul %368, %370, %cst_403 {dimension_numbers = #tpu.dot_dimension_numbers<[1], [0], [0], [1], [0, 0, 1, 1], [], []>} : vector<64x4xf32>, vector<4x6xf32>, vector<64x6xf32> -> vector<64x6xf32>
    %372 = arith.addf %365, %371 : vector<64x6xf32>
    %c0_404 = arith.constant 0 : index
    %c1_405 = arith.constant 1 : index
    %c9_406 = arith.constant 9 : index
    %c0_407 = arith.constant 0 : index
    %373 = vector.load %arg12[%c0_404, %c1_405, %c9_406, %c0_407] : memref<4x10x17x4xf32, #tpu.memory_space<vmem>>, vector<1x8x8x4xf32>
    %374 = vector.shape_cast %373 : vector<1x8x8x4xf32> to vector<8x8x4xf32>
    %375 = vector.shape_cast %374 : vector<8x8x4xf32> to vector<64x4xf32>
    %c2_408 = arith.constant 2 : index
    %c0_409 = arith.constant 0 : index
    %c0_410 = arith.constant 0 : index
    %376 = vector.load %arg6[%c2_408, %c0_409, %c0_410] : memref<9x4x6xf32, #tpu.memory_space<vmem>>, vector<1x4x6xf32>
    %377 = vector.shape_cast %376 : vector<1x4x6xf32> to vector<4x6xf32>
    %cst_411 = arith.constant dense<0.000000e+00> : vector<64x6xf32>
    %378 = tpu.matmul %375, %377, %cst_411 {dimension_numbers = #tpu.dot_dimension_numbers<[1], [0], [0], [1], [0, 0, 1, 1], [], []>} : vector<64x4xf32>, vector<4x6xf32>, vector<64x6xf32> -> vector<64x6xf32>
    %379 = arith.addf %372, %378 : vector<64x6xf32>
    %c2_412 = arith.constant 2 : index
    %c1_413 = arith.constant 1 : index
    %c8_414 = arith.constant 8 : index
    %c0_415 = arith.constant 0 : index
    %380 = vector.load %arg12[%c2_412, %c1_413, %c8_414, %c0_415] : memref<4x10x17x4xf32, #tpu.memory_space<vmem>>, vector<1x8x8x4xf32>
    %381 = vector.shape_cast %380 : vector<1x8x8x4xf32> to vector<8x8x4xf32>
    %382 = vector.shape_cast %381 : vector<8x8x4xf32> to vector<64x4xf32>
    %c3_416 = arith.constant 3 : index
    %c0_417 = arith.constant 0 : index
    %c0_418 = arith.constant 0 : index
    %383 = vector.load %arg6[%c3_416, %c0_417, %c0_418] : memref<9x4x6xf32, #tpu.memory_space<vmem>>, vector<1x4x6xf32>
    %384 = vector.shape_cast %383 : vector<1x4x6xf32> to vector<4x6xf32>
    %cst_419 = arith.constant dense<0.000000e+00> : vector<64x6xf32>
    %385 = tpu.matmul %382, %384, %cst_419 {dimension_numbers = #tpu.dot_dimension_numbers<[1], [0], [0], [1], [0, 0, 1, 1], [], []>} : vector<64x4xf32>, vector<4x6xf32>, vector<64x6xf32> -> vector<64x6xf32>
    %386 = arith.addf %379, %385 : vector<64x6xf32>
    %c3_420 = arith.constant 3 : index
    %c1_421 = arith.constant 1 : index
    %c8_422 = arith.constant 8 : index
    %c0_423 = arith.constant 0 : index
    %387 = vector.load %arg12[%c3_420, %c1_421, %c8_422, %c0_423] : memref<4x10x17x4xf32, #tpu.memory_space<vmem>>, vector<1x8x8x4xf32>
    %388 = vector.shape_cast %387 : vector<1x8x8x4xf32> to vector<8x8x4xf32>
    %389 = vector.shape_cast %388 : vector<8x8x4xf32> to vector<64x4xf32>
    %c4_424 = arith.constant 4 : index
    %c0_425 = arith.constant 0 : index
    %c0_426 = arith.constant 0 : index
    %390 = vector.load %arg6[%c4_424, %c0_425, %c0_426] : memref<9x4x6xf32, #tpu.memory_space<vmem>>, vector<1x4x6xf32>
    %391 = vector.shape_cast %390 : vector<1x4x6xf32> to vector<4x6xf32>
    %cst_427 = arith.constant dense<0.000000e+00> : vector<64x6xf32>
    %392 = tpu.matmul %389, %391, %cst_427 {dimension_numbers = #tpu.dot_dimension_numbers<[1], [0], [0], [1], [0, 0, 1, 1], [], []>} : vector<64x4xf32>, vector<4x6xf32>, vector<64x6xf32> -> vector<64x6xf32>
    %393 = arith.addf %386, %392 : vector<64x6xf32>
    %c2_428 = arith.constant 2 : index
    %c1_429 = arith.constant 1 : index
    %c9_430 = arith.constant 9 : index
    %c0_431 = arith.constant 0 : index
    %394 = vector.load %arg12[%c2_428, %c1_429, %c9_430, %c0_431] : memref<4x10x17x4xf32, #tpu.memory_space<vmem>>, vector<1x8x8x4xf32>
    %395 = vector.shape_cast %394 : vector<1x8x8x4xf32> to vector<8x8x4xf32>
    %396 = vector.shape_cast %395 : vector<8x8x4xf32> to vector<64x4xf32>
    %c5_432 = arith.constant 5 : index
    %c0_433 = arith.constant 0 : index
    %c0_434 = arith.constant 0 : index
    %397 = vector.load %arg6[%c5_432, %c0_433, %c0_434] : memref<9x4x6xf32, #tpu.memory_space<vmem>>, vector<1x4x6xf32>
    %398 = vector.shape_cast %397 : vector<1x4x6xf32> to vector<4x6xf32>
    %cst_435 = arith.constant dense<0.000000e+00> : vector<64x6xf32>
    %399 = tpu.matmul %396, %398, %cst_435 {dimension_numbers = #tpu.dot_dimension_numbers<[1], [0], [0], [1], [0, 0, 1, 1], [], []>} : vector<64x4xf32>, vector<4x6xf32>, vector<64x6xf32> -> vector<64x6xf32>
    %400 = arith.addf %393, %399 : vector<64x6xf32>
    %c0_436 = arith.constant 0 : index
    %c2_437 = arith.constant 2 : index
    %c8_438 = arith.constant 8 : index
    %c0_439 = arith.constant 0 : index
    %401 = vector.load %arg12[%c0_436, %c2_437, %c8_438, %c0_439] : memref<4x10x17x4xf32, #tpu.memory_space<vmem>>, vector<1x8x8x4xf32>
    %402 = vector.shape_cast %401 : vector<1x8x8x4xf32> to vector<8x8x4xf32>
    %403 = vector.shape_cast %402 : vector<8x8x4xf32> to vector<64x4xf32>
    %c6_440 = arith.constant 6 : index
    %c0_441 = arith.constant 0 : index
    %c0_442 = arith.constant 0 : index
    %404 = vector.load %arg6[%c6_440, %c0_441, %c0_442] : memref<9x4x6xf32, #tpu.memory_space<vmem>>, vector<1x4x6xf32>
    %405 = vector.shape_cast %404 : vector<1x4x6xf32> to vector<4x6xf32>
    %cst_443 = arith.constant dense<0.000000e+00> : vector<64x6xf32>
    %406 = tpu.matmul %403, %405, %cst_443 {dimension_numbers = #tpu.dot_dimension_numbers<[1], [0], [0], [1], [0, 0, 1, 1], [], []>} : vector<64x4xf32>, vector<4x6xf32>, vector<64x6xf32> -> vector<64x6xf32>
    %407 = arith.addf %400, %406 : vector<64x6xf32>
    %c1_444 = arith.constant 1 : index
    %c2_445 = arith.constant 2 : index
    %c8_446 = arith.constant 8 : index
    %c0_447 = arith.constant 0 : index
    %408 = vector.load %arg12[%c1_444, %c2_445, %c8_446, %c0_447] : memref<4x10x17x4xf32, #tpu.memory_space<vmem>>, vector<1x8x8x4xf32>
    %409 = vector.shape_cast %408 : vector<1x8x8x4xf32> to vector<8x8x4xf32>
    %410 = vector.shape_cast %409 : vector<8x8x4xf32> to vector<64x4xf32>
    %c7_448 = arith.constant 7 : index
    %c0_449 = arith.constant 0 : index
    %c0_450 = arith.constant 0 : index
    %411 = vector.load %arg6[%c7_448, %c0_449, %c0_450] : memref<9x4x6xf32, #tpu.memory_space<vmem>>, vector<1x4x6xf32>
    %412 = vector.shape_cast %411 : vector<1x4x6xf32> to vector<4x6xf32>
    %cst_451 = arith.constant dense<0.000000e+00> : vector<64x6xf32>
    %413 = tpu.matmul %410, %412, %cst_451 {dimension_numbers = #tpu.dot_dimension_numbers<[1], [0], [0], [1], [0, 0, 1, 1], [], []>} : vector<64x4xf32>, vector<4x6xf32>, vector<64x6xf32> -> vector<64x6xf32>
    %414 = arith.addf %407, %413 : vector<64x6xf32>
    %c0_452 = arith.constant 0 : index
    %c2_453 = arith.constant 2 : index
    %c9_454 = arith.constant 9 : index
    %c0_455 = arith.constant 0 : index
    %415 = vector.load %arg12[%c0_452, %c2_453, %c9_454, %c0_455] : memref<4x10x17x4xf32, #tpu.memory_space<vmem>>, vector<1x8x8x4xf32>
    %416 = vector.shape_cast %415 : vector<1x8x8x4xf32> to vector<8x8x4xf32>
    %417 = vector.shape_cast %416 : vector<8x8x4xf32> to vector<64x4xf32>
    %c8_456 = arith.constant 8 : index
    %c0_457 = arith.constant 0 : index
    %c0_458 = arith.constant 0 : index
    %418 = vector.load %arg6[%c8_456, %c0_457, %c0_458] : memref<9x4x6xf32, #tpu.memory_space<vmem>>, vector<1x4x6xf32>
    %419 = vector.shape_cast %418 : vector<1x4x6xf32> to vector<4x6xf32>
    %cst_459 = arith.constant dense<0.000000e+00> : vector<64x6xf32>
    %420 = tpu.matmul %417, %419, %cst_459 {dimension_numbers = #tpu.dot_dimension_numbers<[1], [0], [0], [1], [0, 0, 1, 1], [], []>} : vector<64x4xf32>, vector<4x6xf32>, vector<64x6xf32> -> vector<64x6xf32>
    %421 = arith.addf %414, %420 : vector<64x6xf32>
    %c0_460 = arith.constant 0 : index
    %c0_461 = arith.constant 0 : index
    %422 = vector.load %arg7[%c0_460, %c0_461] : memref<1x6xf32, #tpu.memory_space<vmem>>, vector<1x6xf32>
    %423 = vector.broadcast %422 : vector<1x6xf32> to vector<64x6xf32>
    %424 = arith.addf %421, %423 : vector<64x6xf32>
    %cst_462 = arith.constant 0.000000e+00 : f32
    %425 = vector.broadcast %cst_462 : f32 to vector<64x6xf32>
    %426 = arith.maximumf %424, %425 : vector<64x6xf32>
    %427 = vector.shape_cast %426 : vector<64x6xf32> to vector<8x8x6xf32>
    %c3_463 = arith.constant 3 : index
    %c0_464 = arith.constant 0 : index
    %c0_465 = arith.constant 0 : index
    %c0_466 = arith.constant 0 : index
    %428 = vector.load %arg13[%c3_463, %c0_464, %c0_465, %c0_466] : memref<4x9x9x6xf32, #tpu.memory_space<vmem>>, vector<1x8x8x6xf32>
    %429 = vector.shape_cast %428 : vector<1x8x8x6xf32> to vector<8x8x6xf32>
    %430 = vector.shape_cast %427 : vector<8x8x6xf32> to vector<1x8x8x6xf32>
    tpu.vector_store %arg13[%c3_463, %c0_464, %c0_465, %c0_466], %430 {strides = array<i32>} : memref<4x9x9x6xf32, #tpu.memory_space<vmem>>, vector<1x8x8x6xf32>,
    %cst_467 = arith.constant 0.000000e+00 : f32
    %431 = vector.broadcast %cst_467 : f32 to vector<64x18xf32>
    %c0_468 = arith.constant 0 : index
    %c0_469 = arith.constant 0 : index
    %c0_470 = arith.constant 0 : index
    %c0_471 = arith.constant 0 : index
    %432 = vector.load %arg13[%c0_468, %c0_469, %c0_470, %c0_471] : memref<4x9x9x6xf32, #tpu.memory_space<vmem>>, vector<1x8x8x6xf32>
    %433 = vector.shape_cast %432 : vector<1x8x8x6xf32> to vector<8x8x6xf32>
    %434 = vector.shape_cast %433 : vector<8x8x6xf32> to vector<64x6xf32>
    %c0_472 = arith.constant 0 : index
    %c0_473 = arith.constant 0 : index
    %c0_474 = arith.constant 0 : index
    %435 = vector.load %arg8[%c0_472, %c0_473, %c0_474] : memref<9x6x18xf32, #tpu.memory_space<vmem>>, vector<1x6x18xf32>
    %436 = vector.shape_cast %435 : vector<1x6x18xf32> to vector<6x18xf32>
    %cst_475 = arith.constant dense<0.000000e+00> : vector<64x18xf32>
    %437 = tpu.matmul %434, %436, %cst_475 {dimension_numbers = #tpu.dot_dimension_numbers<[1], [0], [0], [1], [0, 0, 1, 1], [], []>} : vector<64x6xf32>, vector<6x18xf32>, vector<64x18xf32> -> vector<64x18xf32>
    %438 = arith.addf %431, %437 : vector<64x18xf32>
    %c1_476 = arith.constant 1 : index
    %c0_477 = arith.constant 0 : index
    %c0_478 = arith.constant 0 : index
    %c0_479 = arith.constant 0 : index
    %439 = vector.load %arg13[%c1_476, %c0_477, %c0_478, %c0_479] : memref<4x9x9x6xf32, #tpu.memory_space<vmem>>, vector<1x8x8x6xf32>
    %440 = vector.shape_cast %439 : vector<1x8x8x6xf32> to vector<8x8x6xf32>
    %441 = vector.shape_cast %440 : vector<8x8x6xf32> to vector<64x6xf32>
    %c1_480 = arith.constant 1 : index
    %c0_481 = arith.constant 0 : index
    %c0_482 = arith.constant 0 : index
    %442 = vector.load %arg8[%c1_480, %c0_481, %c0_482] : memref<9x6x18xf32, #tpu.memory_space<vmem>>, vector<1x6x18xf32>
    %443 = vector.shape_cast %442 : vector<1x6x18xf32> to vector<6x18xf32>
    %cst_483 = arith.constant dense<0.000000e+00> : vector<64x18xf32>
    %444 = tpu.matmul %441, %443, %cst_483 {dimension_numbers = #tpu.dot_dimension_numbers<[1], [0], [0], [1], [0, 0, 1, 1], [], []>} : vector<64x6xf32>, vector<6x18xf32>, vector<64x18xf32> -> vector<64x18xf32>
    %445 = arith.addf %438, %444 : vector<64x18xf32>
    %c0_484 = arith.constant 0 : index
    %c0_485 = arith.constant 0 : index
    %c1_486 = arith.constant 1 : index
    %c0_487 = arith.constant 0 : index
    %446 = vector.load %arg13[%c0_484, %c0_485, %c1_486, %c0_487] : memref<4x9x9x6xf32, #tpu.memory_space<vmem>>, vector<1x8x8x6xf32>
    %447 = vector.shape_cast %446 : vector<1x8x8x6xf32> to vector<8x8x6xf32>
    %448 = vector.shape_cast %447 : vector<8x8x6xf32> to vector<64x6xf32>
    %c2_488 = arith.constant 2 : index
    %c0_489 = arith.constant 0 : index
    %c0_490 = arith.constant 0 : index
    %449 = vector.load %arg8[%c2_488, %c0_489, %c0_490] : memref<9x6x18xf32, #tpu.memory_space<vmem>>, vector<1x6x18xf32>
    %450 = vector.shape_cast %449 : vector<1x6x18xf32> to vector<6x18xf32>
    %cst_491 = arith.constant dense<0.000000e+00> : vector<64x18xf32>
    %451 = tpu.matmul %448, %450, %cst_491 {dimension_numbers = #tpu.dot_dimension_numbers<[1], [0], [0], [1], [0, 0, 1, 1], [], []>} : vector<64x6xf32>, vector<6x18xf32>, vector<64x18xf32> -> vector<64x18xf32>
    %452 = arith.addf %445, %451 : vector<64x18xf32>
    %c2_492 = arith.constant 2 : index
    %c0_493 = arith.constant 0 : index
    %c0_494 = arith.constant 0 : index
    %c0_495 = arith.constant 0 : index
    %453 = vector.load %arg13[%c2_492, %c0_493, %c0_494, %c0_495] : memref<4x9x9x6xf32, #tpu.memory_space<vmem>>, vector<1x8x8x6xf32>
    %454 = vector.shape_cast %453 : vector<1x8x8x6xf32> to vector<8x8x6xf32>
    %455 = vector.shape_cast %454 : vector<8x8x6xf32> to vector<64x6xf32>
    %c3_496 = arith.constant 3 : index
    %c0_497 = arith.constant 0 : index
    %c0_498 = arith.constant 0 : index
    %456 = vector.load %arg8[%c3_496, %c0_497, %c0_498] : memref<9x6x18xf32, #tpu.memory_space<vmem>>, vector<1x6x18xf32>
    %457 = vector.shape_cast %456 : vector<1x6x18xf32> to vector<6x18xf32>
    %cst_499 = arith.constant dense<0.000000e+00> : vector<64x18xf32>
    %458 = tpu.matmul %455, %457, %cst_499 {dimension_numbers = #tpu.dot_dimension_numbers<[1], [0], [0], [1], [0, 0, 1, 1], [], []>} : vector<64x6xf32>, vector<6x18xf32>, vector<64x18xf32> -> vector<64x18xf32>
    %459 = arith.addf %452, %458 : vector<64x18xf32>
    %c3_500 = arith.constant 3 : index
    %c0_501 = arith.constant 0 : index
    %c0_502 = arith.constant 0 : index
    %c0_503 = arith.constant 0 : index
    %460 = vector.load %arg13[%c3_500, %c0_501, %c0_502, %c0_503] : memref<4x9x9x6xf32, #tpu.memory_space<vmem>>, vector<1x8x8x6xf32>
    %461 = vector.shape_cast %460 : vector<1x8x8x6xf32> to vector<8x8x6xf32>
    %462 = vector.shape_cast %461 : vector<8x8x6xf32> to vector<64x6xf32>
    %c4_504 = arith.constant 4 : index
    %c0_505 = arith.constant 0 : index
    %c0_506 = arith.constant 0 : index
    %463 = vector.load %arg8[%c4_504, %c0_505, %c0_506] : memref<9x6x18xf32, #tpu.memory_space<vmem>>, vector<1x6x18xf32>
    %464 = vector.shape_cast %463 : vector<1x6x18xf32> to vector<6x18xf32>
    %cst_507 = arith.constant dense<0.000000e+00> : vector<64x18xf32>
    %465 = tpu.matmul %462, %464, %cst_507 {dimension_numbers = #tpu.dot_dimension_numbers<[1], [0], [0], [1], [0, 0, 1, 1], [], []>} : vector<64x6xf32>, vector<6x18xf32>, vector<64x18xf32> -> vector<64x18xf32>
    %466 = arith.addf %459, %465 : vector<64x18xf32>
    %c2_508 = arith.constant 2 : index
    %c0_509 = arith.constant 0 : index
    %c1_510 = arith.constant 1 : index
    %c0_511 = arith.constant 0 : index
    %467 = vector.load %arg13[%c2_508, %c0_509, %c1_510, %c0_511] : memref<4x9x9x6xf32, #tpu.memory_space<vmem>>, vector<1x8x8x6xf32>
    %468 = vector.shape_cast %467 : vector<1x8x8x6xf32> to vector<8x8x6xf32>
    %469 = vector.shape_cast %468 : vector<8x8x6xf32> to vector<64x6xf32>
    %c5_512 = arith.constant 5 : index
    %c0_513 = arith.constant 0 : index
    %c0_514 = arith.constant 0 : index
    %470 = vector.load %arg8[%c5_512, %c0_513, %c0_514] : memref<9x6x18xf32, #tpu.memory_space<vmem>>, vector<1x6x18xf32>
    %471 = vector.shape_cast %470 : vector<1x6x18xf32> to vector<6x18xf32>
    %cst_515 = arith.constant dense<0.000000e+00> : vector<64x18xf32>
    %472 = tpu.matmul %469, %471, %cst_515 {dimension_numbers = #tpu.dot_dimension_numbers<[1], [0], [0], [1], [0, 0, 1, 1], [], []>} : vector<64x6xf32>, vector<6x18xf32>, vector<64x18xf32> -> vector<64x18xf32>
    %473 = arith.addf %466, %472 : vector<64x18xf32>
    %c0_516 = arith.constant 0 : index
    %c1_517 = arith.constant 1 : index
    %c0_518 = arith.constant 0 : index
    %c0_519 = arith.constant 0 : index
    %474 = vector.load %arg13[%c0_516, %c1_517, %c0_518, %c0_519] : memref<4x9x9x6xf32, #tpu.memory_space<vmem>>, vector<1x8x8x6xf32>
    %475 = vector.shape_cast %474 : vector<1x8x8x6xf32> to vector<8x8x6xf32>
    %476 = vector.shape_cast %475 : vector<8x8x6xf32> to vector<64x6xf32>
    %c6_520 = arith.constant 6 : index
    %c0_521 = arith.constant 0 : index
    %c0_522 = arith.constant 0 : index
    %477 = vector.load %arg8[%c6_520, %c0_521, %c0_522] : memref<9x6x18xf32, #tpu.memory_space<vmem>>, vector<1x6x18xf32>
    %478 = vector.shape_cast %477 : vector<1x6x18xf32> to vector<6x18xf32>
    %cst_523 = arith.constant dense<0.000000e+00> : vector<64x18xf32>
    %479 = tpu.matmul %476, %478, %cst_523 {dimension_numbers = #tpu.dot_dimension_numbers<[1], [0], [0], [1], [0, 0, 1, 1], [], []>} : vector<64x6xf32>, vector<6x18xf32>, vector<64x18xf32> -> vector<64x18xf32>
    %480 = arith.addf %473, %479 : vector<64x18xf32>
    %c1_524 = arith.constant 1 : index
    %c1_525 = arith.constant 1 : index
    %c0_526 = arith.constant 0 : index
    %c0_527 = arith.constant 0 : index
    %481 = vector.load %arg13[%c1_524, %c1_525, %c0_526, %c0_527] : memref<4x9x9x6xf32, #tpu.memory_space<vmem>>, vector<1x8x8x6xf32>
    %482 = vector.shape_cast %481 : vector<1x8x8x6xf32> to vector<8x8x6xf32>
    %483 = vector.shape_cast %482 : vector<8x8x6xf32> to vector<64x6xf32>
    %c7_528 = arith.constant 7 : index
    %c0_529 = arith.constant 0 : index
    %c0_530 = arith.constant 0 : index
    %484 = vector.load %arg8[%c7_528, %c0_529, %c0_530] : memref<9x6x18xf32, #tpu.memory_space<vmem>>, vector<1x6x18xf32>
    %485 = vector.shape_cast %484 : vector<1x6x18xf32> to vector<6x18xf32>
    %cst_531 = arith.constant dense<0.000000e+00> : vector<64x18xf32>
    %486 = tpu.matmul %483, %485, %cst_531 {dimension_numbers = #tpu.dot_dimension_numbers<[1], [0], [0], [1], [0, 0, 1, 1], [], []>} : vector<64x6xf32>, vector<6x18xf32>, vector<64x18xf32> -> vector<64x18xf32>
    %487 = arith.addf %480, %486 : vector<64x18xf32>
    %c0_532 = arith.constant 0 : index
    %c1_533 = arith.constant 1 : index
    %c1_534 = arith.constant 1 : index
    %c0_535 = arith.constant 0 : index
    %488 = vector.load %arg13[%c0_532, %c1_533, %c1_534, %c0_535] : memref<4x9x9x6xf32, #tpu.memory_space<vmem>>, vector<1x8x8x6xf32>
    %489 = vector.shape_cast %488 : vector<1x8x8x6xf32> to vector<8x8x6xf32>
    %490 = vector.shape_cast %489 : vector<8x8x6xf32> to vector<64x6xf32>
    %c8_536 = arith.constant 8 : index
    %c0_537 = arith.constant 0 : index
    %c0_538 = arith.constant 0 : index
    %491 = vector.load %arg8[%c8_536, %c0_537, %c0_538] : memref<9x6x18xf32, #tpu.memory_space<vmem>>, vector<1x6x18xf32>
    %492 = vector.shape_cast %491 : vector<1x6x18xf32> to vector<6x18xf32>
    %cst_539 = arith.constant dense<0.000000e+00> : vector<64x18xf32>
    %493 = tpu.matmul %490, %492, %cst_539 {dimension_numbers = #tpu.dot_dimension_numbers<[1], [0], [0], [1], [0, 0, 1, 1], [], []>} : vector<64x6xf32>, vector<6x18xf32>, vector<64x18xf32> -> vector<64x18xf32>
    %494 = arith.addf %487, %493 : vector<64x18xf32>
    %c0_540 = arith.constant 0 : index
    %c0_541 = arith.constant 0 : index
    %495 = vector.load %arg9[%c0_540, %c0_541] : memref<1x18xf32, #tpu.memory_space<vmem>>, vector<1x18xf32>
    %496 = vector.broadcast %495 : vector<1x18xf32> to vector<64x18xf32>
    %497 = arith.addf %494, %496 : vector<64x18xf32>
    %cst_542 = arith.constant 0.000000e+00 : f32
    %498 = vector.broadcast %cst_542 : f32 to vector<64x18xf32>
    %499 = arith.maximumf %497, %498 : vector<64x18xf32>
    %500 = arith.addf %78, %68 : vector<64x18xf32>
    %501 = arith.addf %500, %499 : vector<64x18xf32>
    %502 = vector.shape_cast %501 : vector<64x18xf32> to vector<8x8x18xf32>
    %503 = vector.extract_strided_slice %502 {offsets = [0, 0, 0], sizes = [7, 7, 18], strides = [1, 1, 1]} : vector<8x8x18xf32> to vector<7x7x18xf32>
    %c0_543 = arith.constant 0 : index
    %c0_544 = arith.constant 0 : index
    %c0_545 = arith.constant 0 : index
    %c0_546 = arith.constant 0 : index
    %504 = vector.load %arg11[%c0_543, %c0_544, %c0_545, %c0_546] : memref<1x7x7x18xf32, #tpu.memory_space<vmem>>, vector<1x7x7x18xf32>
    %505 = vector.shape_cast %504 : vector<1x7x7x18xf32> to vector<7x7x18xf32>
    %506 = vector.shape_cast %503 : vector<7x7x18xf32> to vector<1x7x7x18xf32>
    tpu.vector_store %arg11[%c0_543, %c0_544, %c0_545, %c0_546], %506 {strides = array<i32>} : memref<1x7x7x18xf32, #tpu.memory_space<vmem>>, vector<1x7x7x18xf32>,
    return
  }
  func.func @transform_0(%arg0: i32) -> (i32, i32, i32, i32, i32) {
    %c0_i32 = arith.constant 0 : i32
    %c0_i32_0 = arith.constant 0 : i32
    %c0_i32_1 = arith.constant 0 : i32
    %c0_i32_2 = arith.constant 0 : i32
    %c0_i32_3 = arith.constant 0 : i32
    return %arg0, %c0_i32, %c0_i32_0, %c0_i32_1, %c0_i32_2 : i32, i32, i32, i32, i32
  }
  func.func @transform_1(%arg0: i32) -> (i32, i32, i32) {
    %c0_i32 = arith.constant 0 : i32
    %c0_i32_0 = arith.constant 0 : i32
    %c0_i32_1 = arith.constant 0 : i32
    %c0_i32_2 = arith.constant 0 : i32
    return %c0_i32, %c0_i32_0, %c0_i32_1 : i32, i32, i32
  }
  func.func @transform_2(%arg0: i32) -> (i32, i32) {
    %c0_i32 = arith.constant 0 : i32
    %c0_i32_0 = arith.constant 0 : i32
    %c0_i32_1 = arith.constant 0 : i32
    return %c0_i32, %c0_i32_0 : i32, i32
  }
  func.func @transform_3(%arg0: i32) -> (i32, i32) {
    %c0_i32 = arith.constant 0 : i32
    %c0_i32_0 = arith.constant 0 : i32
    %c0_i32_1 = arith.constant 0 : i32
    return %c0_i32, %c0_i32_0 : i32, i32
  }
  func.func @transform_4(%arg0: i32) -> (i32, i32) {
    %c0_i32 = arith.constant 0 : i32
    %c0_i32_0 = arith.constant 0 : i32
    %c0_i32_1 = arith.constant 0 : i32
    return %c0_i32, %c0_i32_0 : i32, i32
  }
  func.func @transform_5(%arg0: i32) -> (i32, i32, i32) {
    %c0_i32 = arith.constant 0 : i32
    %c0_i32_0 = arith.constant 0 : i32
    %c0_i32_1 = arith.constant 0 : i32
    %c0_i32_2 = arith.constant 0 : i32
    return %c0_i32, %c0_i32_0, %c0_i32_1 : i32, i32, i32
  }
  func.func @transform_6(%arg0: i32) -> (i32, i32) {
    %c0_i32 = arith.constant 0 : i32
    %c0_i32_0 = arith.constant 0 : i32
    %c0_i32_1 = arith.constant 0 : i32
    return %c0_i32, %c0_i32_0 : i32, i32
  }
  func.func @transform_7(%arg0: i32) -> (i32, i32, i32) {
    %c0_i32 = arith.constant 0 : i32
    %c0_i32_0 = arith.constant 0 : i32
    %c0_i32_1 = arith.constant 0 : i32
    %c0_i32_2 = arith.constant 0 : i32
    return %c0_i32, %c0_i32_0, %c0_i32_1 : i32, i32, i32
  }
  func.func @transform_8(%arg0: i32) -> (i32, i32) {
    %c0_i32 = arith.constant 0 : i32
    %c0_i32_0 = arith.constant 0 : i32
    %c0_i32_1 = arith.constant 0 : i32
    return %c0_i32, %c0_i32_0 : i32, i32
  }
  func.func @transform_9(%arg0: i32) -> (i32, i32) {
    %c0_i32 = arith.constant 0 : i32
    %c0_i32_0 = arith.constant 0 : i32
    %c0_i32_1 = arith.constant 0 : i32
    return %c0_i32, %c0_i32_0 : i32, i32
  }
  func.func @transform_10(%arg0: i32) -> (i32, i32, i32, i32) {
    %c0_i32 = arith.constant 0 : i32
    %c0_i32_0 = arith.constant 0 : i32
    %c0_i32_1 = arith.constant 0 : i32
    %c0_i32_2 = arith.constant 0 : i32
    return %arg0, %c0_i32, %c0_i32_0, %c0_i32_1 : i32, i32, i32, i32
  }
}

</mosaic_0001>

<llo_original>
// kernel: reduction_a_forward.1
$region0: #{reduction_a_forward.1}
  #allocation0 [shape = 'u32[]', space=smem, size = 0x4, offset = 0x4, fixed_abs, tag = 'smem constant byte address 0x4 - core index']
  #allocation1 [shape = 'u32[144,128]{1,0:T(1,128)}', space=vmem, size = 0x12000, scoped, tag = 'internal scratch']
  #allocation2 [shape = 'f32[4,10,17,4]{3,2,1,0:T(8,128)}', space=vmem, size = 0x78000, scoped, tag = 'scratch operand']
  #allocation3 [shape = 'f32[4,9,9,6]{3,2,1,0:T(8,128)}', space=vmem, size = 0x48000, scoped, tag = 'scratch operand']
  %s0 = inlined_call_operand.vmem [shape: f32[2,4,9,9,4], index: 0, kind: input, shape index: {}]
  %s1 = inlined_call_operand.vmem [shape: f32[9,4,18], index: 1, kind: input, shape index: {}]
  %s2 = inlined_call_operand.vmem [shape: f32[1,18], index: 2, kind: input, shape index: {}]
  %s3 = inlined_call_operand.vmem [shape: f32[4,4], index: 3, kind: input, shape index: {}]
  %s4 = inlined_call_operand.vmem [shape: f32[1,4], index: 4, kind: input, shape index: {}]
  %s5 = inlined_call_operand.vmem [shape: f32[9,4,6], index: 5, kind: input, shape index: {}]
  %s6 = inlined_call_operand.vmem [shape: f32[1,6], index: 6, kind: input, shape index: {}]
  %s7 = inlined_call_operand.vmem [shape: f32[9,6,18], index: 7, kind: input, shape index: {}]
  %s8 = inlined_call_operand.vmem [shape: f32[1,18], index: 8, kind: input, shape index: {}]
  %s9 = inlined_call_operand.vmem [shape: f32[4,18], index: 9, kind: input, shape index: {}]
  %s10 = inlined_call_operand.vmem [shape: f32[2,7,7,18], index: 10, kind: output, shape index: {}]
  %s11 = sld [smem:[#allocation0]]
  $region73: #{reduction_a_forward.1} parent=0
    _
  %s13 = ssub.s32 1, %s11
  %s14 = scalar_select 0, %s13, %s11
  loop: start=0, step=1, limit=4
  $region2: #{reduction_a_forward.1} parent=0 // loop_pre_header
    _
  $region3: #{reduction_a_forward.1} parent=0 // loop_header
    %s16 = sphi 0, %s20
    %p17 = scmp.ge.s32.totalorder %s16, 4
    %s26 = sphi 0, %s28
    %s29 = sphi 0, %s26
    %s30 = sphi 0, %s29
    %s46 = sphi 0, %s30
    %s50 = sphi 0, %s50
    %s52 = sphi 0, %s50
    %s53 = sphi 0, %s52
    %s67 = sphi 0, %s53
    %s71 = sphi 0, %s71
    %s73 = sphi 0, %s71
    %s74 = sphi 0, %s73
    %s88 = sphi 0, %s74
    %s92 = sphi 0, %s92
    %s94 = sphi 0, %s92
    %s95 = sphi 0, %s94
    %s109 = sphi 0, %s95
    %s113 = sphi 0, %s113
    %s115 = sphi 0, %s113
    %s116 = sphi 0, %s115
    %s130 = sphi 0, %s116
    %s134 = sphi 0, %s134
    %s136 = sphi 0, %s134
    %s137 = sphi 0, %s136
    %s151 = sphi 0, %s137
    %s155 = sphi 0, %s155
    %s157 = sphi 0, %s155
    %s158 = sphi 0, %s157
    %s172 = sphi 0, %s158
    %s176 = sphi 0, %s176
    %s178 = sphi 0, %s176
    %s179 = sphi 0, %s178
    %s193 = sphi 0, %s179
    %s197 = sphi 0, %s197
    %s199 = sphi 0, %s197
    %s200 = sphi 0, %s199
    %s214 = sphi 0, %s200
    %s218 = sphi 0, %s218
    %s220 = sphi 0, %s218
    %s221 = sphi 0, %s220
    %s235 = sphi 0, %s221
    %s241 = sphi 0, %s243
    %s244 = sphi 0, %s241
    %s245 = sphi 0, %s244
    %s261 = sphi 0, %s245
  $region4: #{reduction_a_forward.1} parent=0 // loop_header_branch
    %19 = sbr.rel (%p17) target = $region8
  $region5: #{reduction_a_forward.1} parent=0 // loop_body
    %s21 = ssub.s32 %s16, 1
    %s22 = ssub.s32 %s16, 2
    %s23 = sadd.s32 %s16, 1
    %s24 = ssub.s32 %s16, %s23
    %p25 = scmp.eq.s32.totalorder %s24, 0
    %s27 = sadd.s32 %s26, 1
    %s28 = scalar_select %p25, %s26, %s27
    %p31 = pneg %p25
    %p32 = scmp.eq.s32.totalorder %s16, 1
    %p33 = por %p31, %p32
    %p34 = scmp.ne.s32.totalorder %s26, %s29
    %p35 = scmp.eq.s32.totalorder %s16, 0
    %p36 = por %p34, %p35
    %p37 = scmp.ne.s32.totalorder %s26, %s29
    %p38 = scmp.eq.s32.totalorder %s21, 1
    %p39 = por %p37, %p38
    %p40 = scmp.ne.s32.totalorder %s29, %s30
    %p41 = scmp.eq.s32.totalorder %s21, 0
    %p42 = por %p40, %p41
    %p43 = scmp.ne.s32.totalorder %s29, %s30
    %p44 = scmp.eq.s32.totalorder %s22, 1
    %p45 = por %p43, %p44
    %p47 = scmp.ne.s32.totalorder %s30, %s46
    %p48 = scmp.eq.s32.totalorder %s22, 0
    %p49 = por %p47, %p48
    %s51 = sadd.s32 %s50, 1
    %p54 = scmp.eq.s32.totalorder %s16, 1
    %p55 = scmp.ne.s32.totalorder %s50, %s52
    %p56 = scmp.eq.s32.totalorder %s16, 0
    %p57 = por %p55, %p56
    %p58 = scmp.ne.s32.totalorder %s50, %s52
    %p59 = scmp.eq.s32.totalorder %s21, 1
    %p60 = por %p58, %p59
    %p61 = scmp.ne.s32.totalorder %s52, %s53
    %p62 = scmp.eq.s32.totalorder %s21, 0
    %p63 = por %p61, %p62
    %p64 = scmp.ne.s32.totalorder %s52, %s53
    %p65 = scmp.eq.s32.totalorder %s22, 1
    %p66 = por %p64, %p65
    %p68 = scmp.ne.s32.totalorder %s53, %s67
    %p69 = scmp.eq.s32.totalorder %s22, 0
    %p70 = por %p68, %p69
    %s72 = sadd.s32 %s71, 1
    %p75 = scmp.eq.s32.totalorder %s16, 1
    %p76 = scmp.ne.s32.totalorder %s71, %s73
    %p77 = scmp.eq.s32.totalorder %s16, 0
    %p78 = por %p76, %p77
    %p79 = scmp.ne.s32.totalorder %s71, %s73
    %p80 = scmp.eq.s32.totalorder %s21, 1
    %p81 = por %p79, %p80
    %p82 = scmp.ne.s32.totalorder %s73, %s74
    %p83 = scmp.eq.s32.totalorder %s21, 0
    %p84 = por %p82, %p83
    %p85 = scmp.ne.s32.totalorder %s73, %s74
    %p86 = scmp.eq.s32.totalorder %s22, 1
    %p87 = por %p85, %p86
    %p89 = scmp.ne.s32.totalorder %s74, %s88
    %p90 = scmp.eq.s32.totalorder %s22, 0
    %p91 = por %p89, %p90
    %s93 = sadd.s32 %s92, 1
    %p96 = scmp.eq.s32.totalorder %s16, 1
    %p97 = scmp.ne.s32.totalorder %s92, %s94
    %p98 = scmp.eq.s32.totalorder %s16, 0
    %p99 = por %p97, %p98
    %p100 = scmp.ne.s32.totalorder %s92, %s94
    %p101 = scmp.eq.s32.totalorder %s21, 1
    %p102 = por %p100, %p101
    %p103 = scmp.ne.s32.totalorder %s94, %s95
    %p104 = scmp.eq.s32.totalorder %s21, 0
    %p105 = por %p103, %p104
    %p106 = scmp.ne.s32.totalorder %s94, %s95
    %p107 = scmp.eq.s32.totalorder %s22, 1
    %p108 = por %p106, %p107
    %p110 = scmp.ne.s32.totalorder %s95, %s109
    %p111 = scmp.eq.s32.totalorder %s22, 0
    %p112 = por %p110, %p111
    %s114 = sadd.s32 %s113, 1
    %p117 = scmp.eq.s32.totalorder %s16, 1
    %p118 = scmp.ne.s32.totalorder %s113, %s115
    %p119 = scmp.eq.s32.totalorder %s16, 0
    %p120 = por %p118, %p119
    %p121 = scmp.ne.s32.totalorder %s113, %s115
    %p122 = scmp.eq.s32.totalorder %s21, 1
    %p123 = por %p121, %p122
    %p124 = scmp.ne.s32.totalorder %s115, %s116
    %p125 = scmp.eq.s32.totalorder %s21, 0
    %p126 = por %p124, %p125
    %p127 = scmp.ne.s32.totalorder %s115, %s116
    %p128 = scmp.eq.s32.totalorder %s22, 1
    %p129 = por %p127, %p128
    %p131 = scmp.ne.s32.totalorder %s116, %s130
    %p132 = scmp.eq.s32.totalorder %s22, 0
    %p133 = por %p131, %p132
    %s135 = sadd.s32 %s134, 1
    %p138 = scmp.eq.s32.totalorder %s16, 1
    %p139 = scmp.ne.s32.totalorder %s134, %s136
    %p140 = scmp.eq.s32.totalorder %s16, 0
    %p141 = por %p139, %p140
    %p142 = scmp.ne.s32.totalorder %s134, %s136
    %p143 = scmp.eq.s32.totalorder %s21, 1
    %p144 = por %p142, %p143
    %p145 = scmp.ne.s32.totalorder %s136, %s137
    %p146 = scmp.eq.s32.totalorder %s21, 0
    %p147 = por %p145, %p146
    %p148 = scmp.ne.s32.totalorder %s136, %s137
    %p149 = scmp.eq.s32.totalorder %s22, 1
    %p150 = por %p148, %p149
    %p152 = scmp.ne.s32.totalorder %s137, %s151
    %p153 = scmp.eq.s32.totalorder %s22, 0
    %p154 = por %p152, %p153
    %s156 = sadd.s32 %s155, 1
    %p159 = scmp.eq.s32.totalorder %s16, 1
    %p160 = scmp.ne.s32.totalorder %s155, %s157
    %p161 = scmp.eq.s32.totalorder %s16, 0
    %p162 = por %p160, %p161
    %p163 = scmp.ne.s32.totalorder %s155, %s157
    %p164 = scmp.eq.s32.totalorder %s21, 1
    %p165 = por %p163, %p164
    %p166 = scmp.ne.s32.totalorder %s157, %s158
    %p167 = scmp.eq.s32.totalorder %s21, 0
    %p168 = por %p166, %p167
    %p169 = scmp.ne.s32.totalorder %s157, %s158
    %p170 = scmp.eq.s32.totalorder %s22, 1
    %p171 = por %p169, %p170
    %p173 = scmp.ne.s32.totalorder %s158, %s172
    %p174 = scmp.eq.s32.totalorder %s22, 0
    %p175 = por %p173, %p174
    %s177 = sadd.s32 %s176, 1
    %p180 = scmp.eq.s32.totalorder %s16, 1
    %p181 = scmp.ne.s32.totalorder %s176, %s178
    %p182 = scmp.eq.s32.totalorder %s16, 0
    %p183 = por %p181, %p182
    %p184 = scmp.ne.s32.totalorder %s176, %s178
    %p185 = scmp.eq.s32.totalorder %s21, 1
    %p186 = por %p184, %p185
    %p187 = scmp.ne.s32.totalorder %s178, %s179
    %p188 = scmp.eq.s32.totalorder %s21, 0
    %p189 = por %p187, %p188
    %p190 = scmp.ne.s32.totalorder %s178, %s179
    %p191 = scmp.eq.s32.totalorder %s22, 1
    %p192 = por %p190, %p191
    %p194 = scmp.ne.s32.totalorder %s179, %s193
    %p195 = scmp.eq.s32.totalorder %s22, 0
    %p196 = por %p194, %p195
    %s198 = sadd.s32 %s197, 1
    %p201 = scmp.eq.s32.totalorder %s16, 1
    %p202 = scmp.ne.s32.totalorder %s197, %s199
    %p203 = scmp.eq.s32.totalorder %s16, 0
    %p204 = por %p202, %p203
    %p205 = scmp.ne.s32.totalorder %s197, %s199
    %p206 = scmp.eq.s32.totalorder %s21, 1
    %p207 = por %p205, %p206
    %p208 = scmp.ne.s32.totalorder %s199, %s200
    %p209 = scmp.eq.s32.totalorder %s21, 0
    %p210 = por %p208, %p209
    %p211 = scmp.ne.s32.totalorder %s199, %s200
    %p212 = scmp.eq.s32.totalorder %s22, 1
    %p213 = por %p211, %p212
    %p215 = scmp.ne.s32.totalorder %s200, %s214
    %p216 = scmp.eq.s32.totalorder %s22, 0
    %p217 = por %p215, %p216
    %s219 = sadd.s32 %s218, 1
    %p222 = scmp.eq.s32.totalorder %s16, 1
    %p223 = scmp.ne.s32.totalorder %s218, %s220
    %p224 = scmp.eq.s32.totalorder %s16, 0
    %p225 = por %p223, %p224
    %p226 = scmp.ne.s32.totalorder %s218, %s220
    %p227 = scmp.eq.s32.totalorder %s21, 1
    %p228 = por %p226, %p227
    %p229 = scmp.ne.s32.totalorder %s220, %s221
    %p230 = scmp.eq.s32.totalorder %s21, 0
    %p231 = por %p229, %p230
    %p232 = scmp.ne.s32.totalorder %s220, %s221
    %p233 = scmp.eq.s32.totalorder %s22, 1
    %p234 = por %p232, %p233
    %p236 = scmp.ne.s32.totalorder %s221, %s235
    %p237 = scmp.eq.s32.totalorder %s22, 0
    %p238 = por %p236, %p237
    %s239 = ssub.s32 %s16, %s23
    %p240 = scmp.eq.s32.totalorder %s239, 0
    %s242 = sadd.s32 %s241, 1
    %s243 = scalar_select %p240, %s241, %s242
    %p246 = pneg %p240
    %p247 = scmp.eq.s32.totalorder %s16, 1
    %p248 = por %p246, %p247
    %p249 = scmp.ne.s32.totalorder %s241, %s244
    %p250 = scmp.eq.s32.totalorder %s16, 0
    %p251 = por %p249, %p250
    %p252 = scmp.ne.s32.totalorder %s241, %s244
    %p253 = scmp.eq.s32.totalorder %s21, 1
    %p254 = por %p252, %p253
    %p255 = scmp.ne.s32.totalorder %s244, %s245
    %p256 = scmp.eq.s32.totalorder %s21, 0
    %p257 = por %p255, %p256
    %p258 = scmp.ne.s32.totalorder %s244, %s245
    %p259 = scmp.eq.s32.totalorder %s22, 1
    %p260 = por %p258, %p259
    %p262 = scmp.ne.s32.totalorder %s245, %s261
    %p263 = scmp.eq.s32.totalorder %s22, 0
    %p264 = por %p262, %p263
    %p265 = scmp.le.s32.totalorder 1, %s16
    %p266 = scmp.lt.s32.totalorder %s16, 3
    %p267 = pnand %p265, %p266
    %p268 = pneg %p267
    // Predicated region
    $region9: #{reduction_a_forward.1} parent=5 // pred_check
      _
    $region10: #{reduction_a_forward.1} parent=5 // pred_check_branch
      %270 = sbr.rel (%p267) target = $region12
    $region11: #{reduction_a_forward.1} parent=5 // pred_region
      %s271 = ssub.s32 %s16, 1
      // Predicated region
      $region13: #{reduction_a_forward.1} parent=11 // pred_check
        %p272 = pneg %p63
      $region14: #{reduction_a_forward.1} parent=11 // pred_check_branch
        %274 = sbr.rel (%p272) target = $region16
      $region15: #{reduction_a_forward.1} parent=11 // pred_region
        _
      $region16: #{reduction_a_forward.1} parent=11 // pred_fallthru
        _
      // Predicated region
      $region17: #{reduction_a_forward.1} parent=11 // pred_check
        %p275 = pneg %p84
      $region18: #{reduction_a_forward.1} parent=11 // pred_check_branch
        %277 = sbr.rel (%p275) target = $region20
      $region19: #{reduction_a_forward.1} parent=11 // pred_region
        _
      $region20: #{reduction_a_forward.1} parent=11 // pred_fallthru
        _
      // Predicated region
      $region21: #{reduction_a_forward.1} parent=11 // pred_check
        %p278 = pneg %p105
      $region22: #{reduction_a_forward.1} parent=11 // pred_check_branch
        %280 = sbr.rel (%p278) target = $region24
      $region23: #{reduction_a_forward.1} parent=11 // pred_region
        _
      $region24: #{reduction_a_forward.1} parent=11 // pred_fallthru
        _
      // Predicated region
      $region25: #{reduction_a_forward.1} parent=11 // pred_check
        %p281 = pneg %p126
      $region26: #{reduction_a_forward.1} parent=11 // pred_check_branch
        %283 = sbr.rel (%p281) target = $region28
      $region27: #{reduction_a_forward.1} parent=11 // pred_region
        _
      $region28: #{reduction_a_forward.1} parent=11 // pred_fallthru
        _
      // Predicated region
      $region29: #{reduction_a_forward.1} parent=11 // pred_check
        %p284 = pneg %p147
      $region30: #{reduction_a_forward.1} parent=11 // pred_check_branch
        %286 = sbr.rel (%p284) target = $region32
      $region31: #{reduction_a_forward.1} parent=11 // pred_region
        _
      $region32: #{reduction_a_forward.1} parent=11 // pred_fallthru
        _
      // Predicated region
      $region33: #{reduction_a_forward.1} parent=11 // pred_check
        %p287 = pneg %p168
      $region34: #{reduction_a_forward.1} parent=11 // pred_check_branch
        %289 = sbr.rel (%p287) target = $region36
      $region35: #{reduction_a_forward.1} parent=11 // pred_region
        _
      $region36: #{reduction_a_forward.1} parent=11 // pred_fallthru
        _
      // Predicated region
      $region37: #{reduction_a_forward.1} parent=11 // pred_check
        %p290 = pneg %p189
      $region38: #{reduction_a_forward.1} parent=11 // pred_check_branch
        %292 = sbr.rel (%p290) target = $region40
      $region39: #{reduction_a_forward.1} parent=11 // pred_region
        _
      $region40: #{reduction_a_forward.1} parent=11 // pred_fallthru
        _
      // Predicated region
      $region41: #{reduction_a_forward.1} parent=11 // pred_check
        %p293 = pneg %p210
      $region42: #{reduction_a_forward.1} parent=11 // pred_check_branch
        %295 = sbr.rel (%p293) target = $region44
      $region43: #{reduction_a_forward.1} parent=11 // pred_region
        _
      $region44: #{reduction_a_forward.1} parent=11 // pred_fallthru
        _
      // Predicated region
      $region45: #{reduction_a_forward.1} parent=11 // pred_check
        %p296 = pneg %p231
      $region46: #{reduction_a_forward.1} parent=11 // pred_check_branch
        %298 = sbr.rel (%p296) target = $region48
      $region47: #{reduction_a_forward.1} parent=11 // pred_region
        _
      $region48: #{reduction_a_forward.1} parent=11 // pred_fallthru
        _
    $region12: #{reduction_a_forward.1} parent=5 // pred_fallthru
      _
    %p299 = scmp.lt.s32.totalorder %s16, 2
    // Predicated region
    $region49: #{reduction_a_forward.1} parent=5 // pred_check
      %p300 = pneg %p299
    $region50: #{reduction_a_forward.1} parent=5 // pred_check_branch
      %302 = sbr.rel (%p300) target = $region52
    $region51: #{reduction_a_forward.1} parent=5 // pred_region
      // Predicated region
      $region53: #{reduction_a_forward.1} parent=51 // pred_check
        %p303 = pneg %p36
      $region54: #{reduction_a_forward.1} parent=51 // pred_check_branch
        %305 = sbr.rel (%p303) target = $region56
      $region55: #{reduction_a_forward.1} parent=51 // pred_region
        %p306 = scmp.lt.s32.totalorder %s16, 1
        %s307 = scalar_select %p306, %s16, 1
        %s308 = smul.addr %s307, 72
        %s309 = smul.addr %s308, 8
        %s310 = scalar_lea.vmem %s0, %s309
      $region56: #{reduction_a_forward.1} parent=51 // pred_fallthru
        _
    $region52: #{reduction_a_forward.1} parent=5 // pred_fallthru
      _
    %p311 = scmp.le.s32.totalorder 1, %s16
    %p312 = scmp.lt.s32.totalorder %s16, 3
    %p313 = pnand %p311, %p312
    %p314 = pneg %p313
    // Predicated region
    $region57: #{reduction_a_forward.1} parent=5 // pred_check
      _
    $region58: #{reduction_a_forward.1} parent=5 // pred_check_branch
      %316 = sbr.rel (%p313) target = $region60
    $region59: #{reduction_a_forward.1} parent=5 // pred_region
      %s317 = ssub.s32 %s16, 1
      %p318 = scmp.lt.s32.totalorder %s21, 1
      %s319 = scalar_select %p318, %s21, 1
      %s320 = smul.addr %s319, 72
      %s321 = smul.addr %s320, 8
      %s322 = scalar_lea.vmem %s0, %s321
      %p323 = pneg %p42
      %p324 = pneg %p39
      %p325 = pneg %p63
      %p326 = pneg %p60
      %p327 = pneg %p84
      %p328 = pneg %p81
      %p329 = pneg %p105
      %p330 = pneg %p102
      %p331 = pneg %p126
      %p332 = pneg %p123
      %p333 = pneg %p147
      %p334 = pneg %p144
      %p335 = pneg %p168
      %p336 = pneg %p165
      %p337 = pneg %p189
      %p338 = pneg %p186
      %p339 = pneg %p210
      %p340 = pneg %p207
      %p341 = pneg %p231
      %p342 = pneg %p228
      %p343 = pneg %p257
      %p344 = pneg %p254
      %p345 = scmp.lt.s32.totalorder %s21, 1
      %s346 = scalar_select %p345, %s21, 1
      %s347 = smul.addr %s346, 7
      %s348 = smul.addr %s347, 8
      %s349 = scalar_lea.vmem %s10, %s348
      %p350 = scmp.lt.s32.totalorder %s21, 1
      %s351 = scalar_select %p350, %s21, 1
      %s352 = smul.addr %s351, 72
      %s353 = smul.addr %s352, 8
      %s354 = scalar_lea.vmem %s0, %s353
      %p355 = scmp.lt.s32.totalorder %s21, 1
      %s356 = scalar_select %p355, %s21, 1
      %s357 = smul.addr %s356, 7
      %s358 = smul.addr %s357, 8
      %s359 = scalar_lea.vmem %s10, %s358
      %v360 = vld [vmem:[%s354] sm:$0xff]
      %v361 = vld [vmem:[%s354 + $0x10] sm:$0xff]
      %v362 = vld [vmem:[%s354 + $0x20] sm:$0xff]
      %v363 = vld [vmem:[%s354 + $0x30] sm:$0xff]
      %v364 = vld [vmem:[%s354 + $0x40] sm:$0xff]
      %v365 = vld [vmem:[%s354 + $0x50] sm:$0xff]
      %v366 = vld [vmem:[%s354 + $0x60] sm:$0xff]
      %v367 = vld [vmem:[%s354 + $0x70] sm:$0xff]
      %v368 = vld [vmem:[%s1] sm:$0xf]
      %s369 = scalar_lea.vmem %s354, 144
      %v370 = vld [vmem:[%s369] sm:$0xff]
      %v371 = vld [vmem:[%s369 + $0x10] sm:$0xff]
      %v372 = vld [vmem:[%s369 + $0x20] sm:$0xff]
      %v373 = vld [vmem:[%s369 + $0x30] sm:$0xff]
      %v374 = vld [vmem:[%s369 + $0x40] sm:$0xff]
      %v375 = vld [vmem:[%s369 + $0x50] sm:$0xff]
      %v376 = vld [vmem:[%s369 + $0x60] sm:$0xff]
      %v377 = vld [vmem:[%s369 + $0x70] sm:$0xff]
      %s378 = scalar_lea.vmem %s1, 4
      %v379 = vld [vmem:[%s378] sm:$0xf]
      %vm380 = vcmask 31744
      %v382 = vsel %vm380, %v370, 0
      %v385 = vsel %vm380, %v371, 0
      %v388 = vsel %vm380, %v372, 0
      %v391 = vsel %vm380, %v373, 0
      %v394 = vsel %vm380, %v374, 0
      %v397 = vsel %vm380, %v375, 0
      %v400 = vsel %vm380, %v376, 0
      %v403 = vsel %vm380, %v377, 0
      %vm405 = vcmask 1043456
      %v407 = vsel %vm405, %v379, 0
      %409 = vmatprep.subr.mxu0 0.0
      %410 = vmatpush1.msra.mxu0 0.0
      %411 = vmatprep.subr.mxu0 0.0
      %412 = vmatpush1.msra.mxu0 0.0
      %413 = vmatprep.subr.mxu0 0.0
      %414 = vmatpush1.msra.mxu0 0.0
      %415 = vmatprep.subr.mxu0 0.0
      %416 = vmatpush1.msra.mxu0 0.0
      %417 = vmatprep.subr.mxu0 0.0
      %418 = vmatpush1.msra.mxu0 0.0
      %419 = vmatprep.subr.mxu0 0.0
      %420 = vmatpush1.msra.mxu0 0.0
      %421 = vmatprep.subr.mxu0 0.0
      %422 = vmatpush1.msra.mxu0 0.0
      %423 = vmatprep.subr.mxu0 0.0
      %424 = vmatpush1.msra.mxu0 0.0
      %425 = vmatprep.subr.mxu0 0.0
      %426 = vmatpush1.msra.mxu0 0.0
      %427 = vmatprep.subr.mxu0 0.0
      %428 = vmatpush1.msra.mxu0 0.0
      %429 = vmatprep.subr.mxu0 0.0
      %430 = vmatpush1.msra.mxu0 0.0
      %431 = vmatprep.subr.mxu0 0.0
      %432 = vmatpush1.msra.mxu0 0.0
      %433 = vmatprep.subr.mxu0 0.0
      %434 = vmatpush1.msra.mxu0 0.0
      %435 = vmatprep.subr.mxu0 0.0
      %436 = vmatpush1.msra.mxu0 0.0
      %437 = vmatprep.subr.mxu0 0.0
      %438 = vmatpush1.msra.mxu0 0.0
      %439 = vmatprep.subr.mxu0 0.0
      %440 = vmatpush1.msra.mxu0 %v407
      %441 = vmatprep.subr.mxu0 0.0
      %442 = vmatpush2.msra.mxu0 0.0
      %443 = vmatprep.subr.mxu0 0.0
      %444 = vmatpush2.msra.mxu0 0.0
      %445 = vmatprep.subr.mxu0 0.0
      %446 = vmatpush2.msra.mxu0 0.0
      %447 = vmatprep.subr.mxu0 0.0
      %448 = vmatpush2.msra.mxu0 0.0
      %449 = vmatprep.subr.mxu0 0.0
      %450 = vmatpush2.msra.mxu0 0.0
      %451 = vmatprep.subr.mxu0 0.0
      %452 = vmatpush2.msra.mxu0 0.0
      %453 = vmatprep.subr.mxu0 0.0
      %454 = vmatpush2.msra.mxu0 0.0
      %455 = vmatprep.subr.mxu0 0.0
      %456 = vmatpush2.msra.mxu0 0.0
      %457 = vmatprep.subr.mxu0 0.0
      %458 = vmatpush2.msra.mxu0 0.0
      %459 = vmatprep.subr.mxu0 0.0
      %460 = vmatpush2.msra.mxu0 0.0
      %461 = vmatprep.subr.mxu0 0.0
      %462 = vmatpush2.msra.mxu0 0.0
      %463 = vmatprep.subr.mxu0 0.0
      %464 = vmatpush2.msra.mxu0 0.0
      %465 = vmatprep.subr.mxu0 0.0
      %466 = vmatpush2.msra.mxu0 0.0
      %467 = vmatprep.subr.mxu0 0.0
      %468 = vmatpush2.msra.mxu0 0.0
      %469 = vmatprep.subr.mxu0 0.0
      %470 = vmatpush2.msra.mxu0 0.0
      %471 = vmatprep.subr.mxu0 0.0
      %472 = vmatpush2.msra.mxu0 0.0
      %473 = vmatprep.mubr.f32.mxu0 0.0
      %474 = vmatmul.mubr.f32.gmra.mxu0 %v382
      %v475 = vpop.f32.mrf.mxu0
      %v476 = vadd.f32 0.0, %v475
      %v477 = vpop.f32.mrf.mxu0
      %478 = vmatprep.mubr.f32.mxu0 0.0
      %479 = vmatmul.mubr.f32.gmra.mxu0 %v385
      %v480 = vpop.f32.mrf.mxu0
      %v481 = vadd.f32 0.0, %v480
      %v482 = vpop.f32.mrf.mxu0
      %483 = vmatprep.mubr.f32.mxu0 0.0
      %484 = vmatmul.mubr.f32.gmra.mxu0 %v388
      %v485 = vpop.f32.mrf.mxu0
      %v486 = vadd.f32 0.0, %v485
      %v487 = vpop.f32.mrf.mxu0
      %488 = vmatprep.mubr.f32.mxu0 0.0
      %489 = vmatmul.mubr.f32.gmra.mxu0 %v391
      %v490 = vpop.f32.mrf.mxu0
      %v491 = vadd.f32 0.0, %v490
      %v492 = vpop.f32.mrf.mxu0
      %493 = vmatprep.mubr.f32.mxu0 0.0
      %494 = vmatmul.mubr.f32.gmra.mxu0 %v394
      %v495 = vpop.f32.mrf.mxu0
      %v496 = vadd.f32 0.0, %v495
      %v497 = vpop.f32.mrf.mxu0
      %498 = vmatprep.mubr.f32.mxu0 0.0
      %499 = vmatmul.mubr.f32.gmra.mxu0 %v397
      %v500 = vpop.f32.mrf.mxu0
      %v501 = vadd.f32 0.0, %v500
      %v502 = vpop.f32.mrf.mxu0
      %503 = vmatprep.mubr.f32.mxu0 0.0
      %504 = vmatmul.mubr.f32.gmra.mxu0 %v400
      %v505 = vpop.f32.mrf.mxu0
      %v506 = vadd.f32 0.0, %v505
      %v507 = vpop.f32.mrf.mxu0
      %508 = vmatprep.mubr.f32.mxu0 0.0
      %509 = vmatmul.mubr.f32.gmra.mxu0 %v403
      %v510 = vpop.f32.mrf.mxu0
      %v511 = vpop.f32.mrf.mxu0
      %512 = vdwg.mxu0
      %v514 = vsel %vm380, %v360, 0
      %v517 = vsel %vm380, %v361, 0
      %v520 = vsel %vm380, %v362, 0
      %v523 = vsel %vm380, %v363, 0
      %v526 = vsel %vm380, %v364, 0
      %v529 = vsel %vm380, %v365, 0
      %v532 = vsel %vm380, %v366, 0
      %v535 = vsel %vm380, %v367, 0
      %v538 = vsel %vm405, %v368, 0
      %540 = vmatprep.subr.mxu0 0.0
      %541 = vmatpush1.msra.mxu0 0.0
      %542 = vmatprep.subr.mxu0 0.0
      %543 = vmatpush1.msra.mxu0 0.0
      %544 = vmatprep.subr.mxu0 0.0
      %545 = vmatpush1.msra.mxu0 0.0
      %546 = vmatprep.subr.mxu0 0.0
      %547 = vmatpush1.msra.mxu0 0.0
      %548 = vmatprep.subr.mxu0 0.0
      %549 = vmatpush1.msra.mxu0 0.0
      %550 = vmatprep.subr.mxu0 0.0
      %551 = vmatpush1.msra.mxu0 0.0
      %552 = vmatprep.subr.mxu0 0.0
      %553 = vmatpush1.msra.mxu0 0.0
      %554 = vmatprep.subr.mxu0 0.0
      %555 = vmatpush1.msra.mxu0 0.0
      %556 = vmatprep.subr.mxu0 0.0
      %557 = vmatpush1.msra.mxu0 0.0
      %558 = vmatprep.subr.mxu0 0.0
      %559 = vmatpush1.msra.mxu0 0.0
      %560 = vmatprep.subr.mxu0 0.0
      %561 = vmatpush1.msra.mxu0 0.0
      %562 = vmatprep.subr.mxu0 0.0
      %563 = vmatpush1.msra.mxu0 0.0
      %564 = vmatprep.subr.mxu0 0.0
      %565 = vmatpush1.msra.mxu0 0.0
      %566 = vmatprep.subr.mxu0 0.0
      %567 = vmatpush1.msra.mxu0 0.0
      %568 = vmatprep.subr.mxu0 0.0
      %569 = vmatpush1.msra.mxu0 0.0
      %570 = vmatprep.subr.mxu0 0.0
      %571 = vmatpush1.msra.mxu0 %v538
      %572 = vmatprep.subr.mxu0 0.0
      %573 = vmatpush2.msra.mxu0 0.0
      %574 = vmatprep.subr.mxu0 0.0
      %575 = vmatpush2.msra.mxu0 0.0
      %576 = vmatprep.subr.mxu0 0.0
      %577 = vmatpush2.msra.mxu0 0.0
      %578 = vmatprep.subr.mxu0 0.0
      %579 = vmatpush2.msra.mxu0 0.0
      %580 = vmatprep.subr.mxu0 0.0
      %581 = vmatpush2.msra.mxu0 0.0
      %582 = vmatprep.subr.mxu0 0.0
      %583 = vmatpush2.msra.mxu0 0.0
      %584 = vmatprep.subr.mxu0 0.0
      %585 = vmatpush2.msra.mxu0 0.0
      %586 = vmatprep.subr.mxu0 0.0
      %587 = vmatpush2.msra.mxu0 0.0
      %588 = vmatprep.subr.mxu0 0.0
      %589 = vmatpush2.msra.mxu0 0.0
      %590 = vmatprep.subr.mxu0 0.0
      %591 = vmatpush2.msra.mxu0 0.0
      %592 = vmatprep.subr.mxu0 0.0
      %593 = vmatpush2.msra.mxu0 0.0
      %594 = vmatprep.subr.mxu0 0.0
      %595 = vmatpush2.msra.mxu0 0.0
      %596 = vmatprep.subr.mxu0 0.0
      %597 = vmatpush2.msra.mxu0 0.0
      %598 = vmatprep.subr.mxu0 0.0
      %599 = vmatpush2.msra.mxu0 0.0
      %600 = vmatprep.subr.mxu0 0.0
      %601 = vmatpush2.msra.mxu0 0.0
      %602 = vmatprep.subr.mxu0 0.0
      %603 = vmatpush2.msra.mxu0 0.0
      %604 = vmatprep.mubr.f32.mxu0 0.0
      %605 = vmatmul.mubr.f32.gmra.mxu0 %v514
      %v606 = vpop.f32.mrf.mxu0
      %v607 = vadd.f32 %v476, %v606
      %v608 = vpop.f32.mrf.mxu0
      %609 = vmatprep.mubr.f32.mxu0 0.0
      %610 = vmatmul.mubr.f32.gmra.mxu0 %v517
      %v611 = vpop.f32.mrf.mxu0
      %v612 = vadd.f32 %v481, %v611
      %v613 = vpop.f32.mrf.mxu0
      %614 = vmatprep.mubr.f32.mxu0 0.0
      %615 = vmatmul.mubr.f32.gmra.mxu0 %v520
      %v616 = vpop.f32.mrf.mxu0
      %v617 = vadd.f32 %v486, %v616
      %v618 = vpop.f32.mrf.mxu0
      %619 = vmatprep.mubr.f32.mxu0 0.0
      %620 = vmatmul.mubr.f32.gmra.mxu0 %v523
      %v621 = vpop.f32.mrf.mxu0
      %v622 = vadd.f32 %v491, %v621
      %v623 = vpop.f32.mrf.mxu0
      %624 = vmatprep.mubr.f32.mxu0 0.0
      %625 = vmatmul.mubr.f32.gmra.mxu0 %v526
      %v626 = vpop.f32.mrf.mxu0
      %v627 = vadd.f32 %v496, %v626
      %v628 = vpop.f32.mrf.mxu0
      %629 = vmatprep.mubr.f32.mxu0 0.0
      %630 = vmatmul.mubr.f32.gmra.mxu0 %v529
      %v631 = vpop.f32.mrf.mxu0
      %v632 = vadd.f32 %v501, %v631
      %v633 = vpop.f32.mrf.mxu0
      %634 = vmatprep.mubr.f32.mxu0 0.0
      %635 = vmatmul.mubr.f32.gmra.mxu0 %v532
      %v636 = vpop.f32.mrf.mxu0
      %v637 = vadd.f32 %v506, %v636
      %v638 = vpop.f32.mrf.mxu0
      %639 = vmatprep.mubr.f32.mxu0 0.0
      %640 = vmatmul.mubr.f32.gmra.mxu0 %v535
      %v641 = vpop.f32.mrf.mxu0
      %v642 = vpop.f32.mrf.mxu0
      %643 = vdwg.mxu0
      %v644 = vld [vmem:[%s354 + $0x1] sm:$0xff]
      %v645 = vld [vmem:[%s354 + $0x11] sm:$0xff]
      %v646 = vld [vmem:[%s354 + $0x21] sm:$0xff]
      %v647 = vld [vmem:[%s354 + $0x31] sm:$0xff]
      %v648 = vld [vmem:[%s354 + $0x41] sm:$0xff]
      %v649 = vld [vmem:[%s354 + $0x51] sm:$0xff]
      %v650 = vld [vmem:[%s354 + $0x61] sm:$0xff]
      %v651 = vld [vmem:[%s354 + $0x71] sm:$0xff]
      %s652 = scalar_lea.vmem %s1, 8
      %v653 = vld [vmem:[%s652] sm:$0xf]
      %v655 = vsel %vm380, %v644, 0
      %v658 = vsel %vm380, %v645, 0
      %v661 = vsel %vm380, %v646, 0
      %v664 = vsel %vm380, %v647, 0
      %v667 = vsel %vm380, %v648, 0
      %v670 = vsel %vm380, %v649, 0
      %v673 = vsel %vm380, %v650, 0
      %v676 = vsel %vm380, %v651, 0
      %v679 = vsel %vm405, %v653, 0
      %681 = vmatprep.subr.mxu0 0.0
      %682 = vmatpush1.msra.mxu0 0.0
      %683 = vmatprep.subr.mxu0 0.0
      %684 = vmatpush1.msra.mxu0 0.0
      %685 = vmatprep.subr.mxu0 0.0
      %686 = vmatpush1.msra.mxu0 0.0
      %687 = vmatprep.subr.mxu0 0.0
      %688 = vmatpush1.msra.mxu0 0.0
      %689 = vmatprep.subr.mxu0 0.0
      %690 = vmatpush1.msra.mxu0 0.0
      %691 = vmatprep.subr.mxu0 0.0
      %692 = vmatpush1.msra.mxu0 0.0
      %693 = vmatprep.subr.mxu0 0.0
      %694 = vmatpush1.msra.mxu0 0.0
      %695 = vmatprep.subr.mxu0 0.0
      %696 = vmatpush1.msra.mxu0 0.0
      %697 = vmatprep.subr.mxu0 0.0
      %698 = vmatpush1.msra.mxu0 0.0
      %699 = vmatprep.subr.mxu0 0.0
      %700 = vmatpush1.msra.mxu0 0.0
      %701 = vmatprep.subr.mxu0 0.0
      %702 = vmatpush1.msra.mxu0 0.0
      %703 = vmatprep.subr.mxu0 0.0
      %704 = vmatpush1.msra.mxu0 0.0
      %705 = vmatprep.subr.mxu0 0.0
      %706 = vmatpush1.msra.mxu0 0.0
      %707 = vmatprep.subr.mxu0 0.0
      %708 = vmatpush1.msra.mxu0 0.0
      %709 = vmatprep.subr.mxu0 0.0
      %710 = vmatpush1.msra.mxu0 0.0
      %711 = vmatprep.subr.mxu0 0.0
      %712 = vmatpush1.msra.mxu0 %v679
      %713 = vmatprep.subr.mxu0 0.0
      %714 = vmatpush2.msra.mxu0 0.0
      %715 = vmatprep.subr.mxu0 0.0
      %716 = vmatpush2.msra.mxu0 0.0
      %717 = vmatprep.subr.mxu0 0.0
      %718 = vmatpush2.msra.mxu0 0.0
      %719 = vmatprep.subr.mxu0 0.0
      %720 = vmatpush2.msra.mxu0 0.0
      %721 = vmatprep.subr.mxu0 0.0
      %722 = vmatpush2.msra.mxu0 0.0
      %723 = vmatprep.subr.mxu0 0.0
      %724 = vmatpush2.msra.mxu0 0.0
      %725 = vmatprep.subr.mxu0 0.0
      %726 = vmatpush2.msra.mxu0 0.0
      %727 = vmatprep.subr.mxu0 0.0
      %728 = vmatpush2.msra.mxu0 0.0
      %729 = vmatprep.subr.mxu0 0.0
      %730 = vmatpush2.msra.mxu0 0.0
      %731 = vmatprep.subr.mxu0 0.0
      %732 = vmatpush2.msra.mxu0 0.0
      %733 = vmatprep.subr.mxu0 0.0
      %734 = vmatpush2.msra.mxu0 0.0
      %735 = vmatprep.subr.mxu0 0.0
      %736 = vmatpush2.msra.mxu0 0.0
      %737 = vmatprep.subr.mxu0 0.0
      %738 = vmatpush2.msra.mxu0 0.0
      %739 = vmatprep.subr.mxu0 0.0
      %740 = vmatpush2.msra.mxu0 0.0
      %741 = vmatprep.subr.mxu0 0.0
      %742 = vmatpush2.msra.mxu0 0.0
      %743 = vmatprep.subr.mxu0 0.0
      %744 = vmatpush2.msra.mxu0 0.0
      %745 = vmatprep.mubr.f32.mxu0 0.0
      %746 = vmatmul.mubr.f32.gmra.mxu0 %v655
      %v747 = vpop.f32.mrf.mxu0
      %v748 = vadd.f32 0.0, %v747
      %v749 = vpop.f32.mrf.mxu0
      %750 = vmatprep.mubr.f32.mxu0 0.0
      %751 = vmatmul.mubr.f32.gmra.mxu0 %v658
      %v752 = vpop.f32.mrf.mxu0
      %v753 = vadd.f32 0.0, %v752
      %v754 = vpop.f32.mrf.mxu0
      %755 = vmatprep.mubr.f32.mxu0 0.0
      %756 = vmatmul.mubr.f32.gmra.mxu0 %v661
      %v757 = vpop.f32.mrf.mxu0
      %v758 = vadd.f32 0.0, %v757
      %v759 = vpop.f32.mrf.mxu0
      %760 = vmatprep.mubr.f32.mxu0 0.0
      %761 = vmatmul.mubr.f32.gmra.mxu0 %v664
      %v762 = vpop.f32.mrf.mxu0
      %v763 = vadd.f32 0.0, %v762
      %v764 = vpop.f32.mrf.mxu0
      %765 = vmatprep.mubr.f32.mxu0 0.0
      %766 = vmatmul.mubr.f32.gmra.mxu0 %v667
      %v767 = vpop.f32.mrf.mxu0
      %v768 = vadd.f32 0.0, %v767
      %v769 = vpop.f32.mrf.mxu0
      %770 = vmatprep.mubr.f32.mxu0 0.0
      %771 = vmatmul.mubr.f32.gmra.mxu0 %v670
      %v772 = vpop.f32.mrf.mxu0
      %v773 = vadd.f32 0.0, %v772
      %v774 = vpop.f32.mrf.mxu0
      %775 = vmatprep.mubr.f32.mxu0 0.0
      %776 = vmatmul.mubr.f32.gmra.mxu0 %v673
      %v777 = vpop.f32.mrf.mxu0
      %v778 = vadd.f32 0.0, %v777
      %v779 = vpop.f32.mrf.mxu0
      %780 = vmatprep.mubr.f32.mxu0 0.0
      %781 = vmatmul.mubr.f32.gmra.mxu0 %v676
      %v782 = vpop.f32.mrf.mxu0
      %v783 = vpop.f32.mrf.mxu0
      %784 = vdwg.mxu0
      %v785 = vadd.f32 %v607, %v748
      %v786 = vadd.f32 %v612, %v753
      %v787 = vadd.f32 %v617, %v758
      %v788 = vadd.f32 %v622, %v763
      %v789 = vadd.f32 %v627, %v768
      %v790 = vadd.f32 %v632, %v773
      %v791 = vadd.f32 %v637, %v778
      %s792 = scalar_lea.vmem %s354, 288
      %v793 = vld [vmem:[%s792] sm:$0xff]
      %v794 = vld [vmem:[%s792 + $0x10] sm:$0xff]
      %v795 = vld [vmem:[%s792 + $0x20] sm:$0xff]
      %v796 = vld [vmem:[%s792 + $0x30] sm:$0xff]
      %v797 = vld [vmem:[%s792 + $0x40] sm:$0xff]
      %v798 = vld [vmem:[%s792 + $0x50] sm:$0xff]
      %v799 = vld [vmem:[%s792 + $0x60] sm:$0xff]
      %v800 = vld [vmem:[%s792 + $0x70] sm:$0xff]
      %s801 = scalar_lea.vmem %s1, 12
      %v802 = vld [vmem:[%s801] sm:$0xf]
      %v804 = vsel %vm380, %v793, 0
      %v807 = vsel %vm380, %v794, 0
      %v810 = vsel %vm380, %v795, 0
      %v813 = vsel %vm380, %v796, 0
      %v816 = vsel %vm380, %v797, 0
      %v819 = vsel %vm380, %v798, 0
      %v822 = vsel %vm380, %v799, 0
      %v825 = vsel %vm380, %v800, 0
      %v828 = vsel %vm405, %v802, 0
      %830 = vmatprep.subr.mxu0 0.0
      %831 = vmatpush1.msra.mxu0 0.0
      %832 = vmatprep.subr.mxu0 0.0
      %833 = vmatpush1.msra.mxu0 0.0
      %834 = vmatprep.subr.mxu0 0.0
      %835 = vmatpush1.msra.mxu0 0.0
      %836 = vmatprep.subr.mxu0 0.0
      %837 = vmatpush1.msra.mxu0 0.0
      %838 = vmatprep.subr.mxu0 0.0
      %839 = vmatpush1.msra.mxu0 0.0
      %840 = vmatprep.subr.mxu0 0.0
      %841 = vmatpush1.msra.mxu0 0.0
      %842 = vmatprep.subr.mxu0 0.0
      %843 = vmatpush1.msra.mxu0 0.0
      %844 = vmatprep.subr.mxu0 0.0
      %845 = vmatpush1.msra.mxu0 0.0
      %846 = vmatprep.subr.mxu0 0.0
      %847 = vmatpush1.msra.mxu0 0.0
      %848 = vmatprep.subr.mxu0 0.0
      %849 = vmatpush1.msra.mxu0 0.0
      %850 = vmatprep.subr.mxu0 0.0
      %851 = vmatpush1.msra.mxu0 0.0
      %852 = vmatprep.subr.mxu0 0.0
      %853 = vmatpush1.msra.mxu0 0.0
      %854 = vmatprep.subr.mxu0 0.0
      %855 = vmatpush1.msra.mxu0 0.0
      %856 = vmatprep.subr.mxu0 0.0
      %857 = vmatpush1.msra.mxu0 0.0
      %858 = vmatprep.subr.mxu0 0.0
      %859 = vmatpush1.msra.mxu0 0.0
      %860 = vmatprep.subr.mxu0 0.0
      %861 = vmatpush1.msra.mxu0 %v828
      %862 = vmatprep.subr.mxu0 0.0
      %863 = vmatpush2.msra.mxu0 0.0
      %864 = vmatprep.subr.mxu0 0.0
      %865 = vmatpush2.msra.mxu0 0.0
      %866 = vmatprep.subr.mxu0 0.0
      %867 = vmatpush2.msra.mxu0 0.0
      %868 = vmatprep.subr.mxu0 0.0
      %869 = vmatpush2.msra.mxu0 0.0
      %870 = vmatprep.subr.mxu0 0.0
      %871 = vmatpush2.msra.mxu0 0.0
      %872 = vmatprep.subr.mxu0 0.0
      %873 = vmatpush2.msra.mxu0 0.0
      %874 = vmatprep.subr.mxu0 0.0
      %875 = vmatpush2.msra.mxu0 0.0
      %876 = vmatprep.subr.mxu0 0.0
      %877 = vmatpush2.msra.mxu0 0.0
      %878 = vmatprep.subr.mxu0 0.0
      %879 = vmatpush2.msra.mxu0 0.0
      %880 = vmatprep.subr.mxu0 0.0
      %881 = vmatpush2.msra.mxu0 0.0
      %882 = vmatprep.subr.mxu0 0.0
      %883 = vmatpush2.msra.mxu0 0.0
      %884 = vmatprep.subr.mxu0 0.0
      %885 = vmatpush2.msra.mxu0 0.0
      %886 = vmatprep.subr.mxu0 0.0
      %887 = vmatpush2.msra.mxu0 0.0
      %888 = vmatprep.subr.mxu0 0.0
      %889 = vmatpush2.msra.mxu0 0.0
      %890 = vmatprep.subr.mxu0 0.0
      %891 = vmatpush2.msra.mxu0 0.0
      %892 = vmatprep.subr.mxu0 0.0
      %893 = vmatpush2.msra.mxu0 0.0
      %894 = vmatprep.mubr.f32.mxu0 0.0
      %895 = vmatmul.mubr.f32.gmra.mxu0 %v804
      %v896 = vpop.f32.mrf.mxu0
      %v897 = vadd.f32 0.0, %v896
      %v898 = vpop.f32.mrf.mxu0
      %899 = vmatprep.mubr.f32.mxu0 0.0
      %900 = vmatmul.mubr.f32.gmra.mxu0 %v807
      %v901 = vpop.f32.mrf.mxu0
      %v902 = vadd.f32 0.0, %v901
      %v903 = vpop.f32.mrf.mxu0
      %904 = vmatprep.mubr.f32.mxu0 0.0
      %905 = vmatmul.mubr.f32.gmra.mxu0 %v810
      %v906 = vpop.f32.mrf.mxu0
      %v907 = vadd.f32 0.0, %v906
      %v908 = vpop.f32.mrf.mxu0
      %909 = vmatprep.mubr.f32.mxu0 0.0
      %910 = vmatmul.mubr.f32.gmra.mxu0 %v813
      %v911 = vpop.f32.mrf.mxu0
      %v912 = vadd.f32 0.0, %v911
      %v913 = vpop.f32.mrf.mxu0
      %914 = vmatprep.mubr.f32.mxu0 0.0
      %915 = vmatmul.mubr.f32.gmra.mxu0 %v816
      %v916 = vpop.f32.mrf.mxu0
      %v917 = vadd.f32 0.0, %v916
      %v918 = vpop.f32.mrf.mxu0
      %919 = vmatprep.mubr.f32.mxu0 0.0
      %920 = vmatmul.mubr.f32.gmra.mxu0 %v819
      %v921 = vpop.f32.mrf.mxu0
      %v922 = vadd.f32 0.0, %v921
      %v923 = vpop.f32.mrf.mxu0
      %924 = vmatprep.mubr.f32.mxu0 0.0
      %925 = vmatmul.mubr.f32.gmra.mxu0 %v822
      %v926 = vpop.f32.mrf.mxu0
      %v927 = vadd.f32 0.0, %v926
      %v928 = vpop.f32.mrf.mxu0
      %929 = vmatprep.mubr.f32.mxu0 0.0
      %930 = vmatmul.mubr.f32.gmra.mxu0 %v825
      %v931 = vpop.f32.mrf.mxu0
      %v932 = vpop.f32.mrf.mxu0
      %933 = vdwg.mxu0
      %v934 = vadd.f32 %v785, %v897
      %v935 = vadd.f32 %v786, %v902
      %v936 = vadd.f32 %v787, %v907
      %v937 = vadd.f32 %v788, %v912
      %v938 = vadd.f32 %v789, %v917
      %v939 = vadd.f32 %v790, %v922
      %v940 = vadd.f32 %v791, %v927
      %s941 = scalar_lea.vmem %s354, 432
      %v942 = vld [vmem:[%s941] sm:$0xff]
      %v943 = vld [vmem:[%s941 + $0x10] sm:$0xff]
      %v944 = vld [vmem:[%s941 + $0x20] sm:$0xff]
      %v945 = vld [vmem:[%s941 + $0x30] sm:$0xff]
      %v946 = vld [vmem:[%s941 + $0x40] sm:$0xff]
      %v947 = vld [vmem:[%s941 + $0x50] sm:$0xff]
      %v948 = vld [vmem:[%s941 + $0x60] sm:$0xff]
      %v949 = vld [vmem:[%s941 + $0x70] sm:$0xff]
      %s950 = scalar_lea.vmem %s1, 16
      %v951 = vld [vmem:[%s950] sm:$0xf]
      %v953 = vsel %vm380, %v942, 0
      %v956 = vsel %vm380, %v943, 0
      %v959 = vsel %vm380, %v944, 0
      %v962 = vsel %vm380, %v945, 0
      %v965 = vsel %vm380, %v946, 0
      %v968 = vsel %vm380, %v947, 0
      %v971 = vsel %vm380, %v948, 0
      %v974 = vsel %vm380, %v949, 0
      %v977 = vsel %vm405, %v951, 0
      %979 = vmatprep.subr.mxu0 0.0
      %980 = vmatpush1.msra.mxu0 0.0
      %981 = vmatprep.subr.mxu0 0.0
      %982 = vmatpush1.msra.mxu0 0.0
      %983 = vmatprep.subr.mxu0 0.0
      %984 = vmatpush1.msra.mxu0 0.0
      %985 = vmatprep.subr.mxu0 0.0
      %986 = vmatpush1.msra.mxu0 0.0
      %987 = vmatprep.subr.mxu0 0.0
      %988 = vmatpush1.msra.mxu0 0.0
      %989 = vmatprep.subr.mxu0 0.0
      %990 = vmatpush1.msra.mxu0 0.0
      %991 = vmatprep.subr.mxu0 0.0
      %992 = vmatpush1.msra.mxu0 0.0
      %993 = vmatprep.subr.mxu0 0.0
      %994 = vmatpush1.msra.mxu0 0.0
      %995 = vmatprep.subr.mxu0 0.0
      %996 = vmatpush1.msra.mxu0 0.0
      %997 = vmatprep.subr.mxu0 0.0
      %998 = vmatpush1.msra.mxu0 0.0
      %999 = vmatprep.subr.mxu0 0.0
      %1000 = vmatpush1.msra.mxu0 0.0
      %1001 = vmatprep.subr.mxu0 0.0
      %1002 = vmatpush1.msra.mxu0 0.0
      %1003 = vmatprep.subr.mxu0 0.0
      %1004 = vmatpush1.msra.mxu0 0.0
      %1005 = vmatprep.subr.mxu0 0.0
      %1006 = vmatpush1.msra.mxu0 0.0
      %1007 = vmatprep.subr.mxu0 0.0
      %1008 = vmatpush1.msra.mxu0 0.0
      %1009 = vmatprep.subr.mxu0 0.0
      %1010 = vmatpush1.msra.mxu0 %v977
      %1011 = vmatprep.subr.mxu0 0.0
      %1012 = vmatpush2.msra.mxu0 0.0
      %1013 = vmatprep.subr.mxu0 0.0
      %1014 = vmatpush2.msra.mxu0 0.0
      %1015 = vmatprep.subr.mxu0 0.0
      %1016 = vmatpush2.msra.mxu0 0.0
      %1017 = vmatprep.subr.mxu0 0.0
      %1018 = vmatpush2.msra.mxu0 0.0
      %1019 = vmatprep.subr.mxu0 0.0
      %1020 = vmatpush2.msra.mxu0 0.0
      %1021 = vmatprep.subr.mxu0 0.0
      %1022 = vmatpush2.msra.mxu0 0.0
      %1023 = vmatprep.subr.mxu0 0.0
      %1024 = vmatpush2.msra.mxu0 0.0
      %1025 = vmatprep.subr.mxu0 0.0
      %1026 = vmatpush2.msra.mxu0 0.0
      %1027 = vmatprep.subr.mxu0 0.0
      %1028 = vmatpush2.msra.mxu0 0.0
      %1029 = vmatprep.subr.mxu0 0.0
      %1030 = vmatpush2.msra.mxu0 0.0
      %1031 = vmatprep.subr.mxu0 0.0
      %1032 = vmatpush2.msra.mxu0 0.0
      %1033 = vmatprep.subr.mxu0 0.0
      %1034 = vmatpush2.msra.mxu0 0.0
      %1035 = vmatprep.subr.mxu0 0.0
      %1036 = vmatpush2.msra.mxu0 0.0
      %1037 = vmatprep.subr.mxu0 0.0
      %1038 = vmatpush2.msra.mxu0 0.0
      %1039 = vmatprep.subr.mxu0 0.0
      %1040 = vmatpush2.msra.mxu0 0.0
      %1041 = vmatprep.subr.mxu0 0.0
      %1042 = vmatpush2.msra.mxu0 0.0
      %1043 = vmatprep.mubr.f32.mxu0 0.0
      %1044 = vmatmul.mubr.f32.gmra.mxu0 %v953
      %v1045 = vpop.f32.mrf.mxu0
      %v1046 = vadd.f32 0.0, %v1045
      %v1047 = vpop.f32.mrf.mxu0
      %1048 = vmatprep.mubr.f32.mxu0 0.0
      %1049 = vmatmul.mubr.f32.gmra.mxu0 %v956
      %v1050 = vpop.f32.mrf.mxu0
      %v1051 = vadd.f32 0.0, %v1050
      %v1052 = vpop.f32.mrf.mxu0
      %1053 = vmatprep.mubr.f32.mxu0 0.0
      %1054 = vmatmul.mubr.f32.gmra.mxu0 %v959
      %v1055 = vpop.f32.mrf.mxu0
      %v1056 = vadd.f32 0.0, %v1055
      %v1057 = vpop.f32.mrf.mxu0
      %1058 = vmatprep.mubr.f32.mxu0 0.0
      %1059 = vmatmul.mubr.f32.gmra.mxu0 %v962
      %v1060 = vpop.f32.mrf.mxu0
      %v1061 = vadd.f32 0.0, %v1060
      %v1062 = vpop.f32.mrf.mxu0
      %1063 = vmatprep.mubr.f32.mxu0 0.0
      %1064 = vmatmul.mubr.f32.gmra.mxu0 %v965
      %v1065 = vpop.f32.mrf.mxu0
      %v1066 = vadd.f32 0.0, %v1065
      %v1067 = vpop.f32.mrf.mxu0
      %1068 = vmatprep.mubr.f32.mxu0 0.0
      %1069 = vmatmul.mubr.f32.gmra.mxu0 %v968
      %v1070 = vpop.f32.mrf.mxu0
      %v1071 = vadd.f32 0.0, %v1070
      %v1072 = vpop.f32.mrf.mxu0
      %1073 = vmatprep.mubr.f32.mxu0 0.0
      %1074 = vmatmul.mubr.f32.gmra.mxu0 %v971
      %v1075 = vpop.f32.mrf.mxu0
      %v1076 = vadd.f32 0.0, %v1075
      %v1077 = vpop.f32.mrf.mxu0
      %1078 = vmatprep.mubr.f32.mxu0 0.0
      %1079 = vmatmul.mubr.f32.gmra.mxu0 %v974
      %v1080 = vpop.f32.mrf.mxu0
      %v1081 = vpop.f32.mrf.mxu0
      %1082 = vdwg.mxu0
      %v1083 = vadd.f32 %v934, %v1046
      %v1084 = vadd.f32 %v935, %v1051
      %v1085 = vadd.f32 %v936, %v1056
      %v1086 = vadd.f32 %v937, %v1061
      %v1087 = vadd.f32 %v938, %v1066
      %v1088 = vadd.f32 %v939, %v1071
      %v1089 = vadd.f32 %v940, %v1076
      %v1090 = vld [vmem:[%s792 + $0x1] sm:$0xff]
      %v1091 = vld [vmem:[%s792 + $0x11] sm:$0xff]
      %v1092 = vld [vmem:[%s792 + $0x21] sm:$0xff]
      %v1093 = vld [vmem:[%s792 + $0x31] sm:$0xff]
      %v1094 = vld [vmem:[%s792 + $0x41] sm:$0xff]
      %v1095 = vld [vmem:[%s792 + $0x51] sm:$0xff]
      %v1096 = vld [vmem:[%s792 + $0x61] sm:$0xff]
      %v1097 = vld [vmem:[%s792 + $0x71] sm:$0xff]
      %s1098 = scalar_lea.vmem %s1, 20
      %v1099 = vld [vmem:[%s1098] sm:$0xf]
      %v1101 = vsel %vm380, %v1090, 0
      %v1104 = vsel %vm380, %v1091, 0
      %v1107 = vsel %vm380, %v1092, 0
      %v1110 = vsel %vm380, %v1093, 0
      %v1113 = vsel %vm380, %v1094, 0
      %v1116 = vsel %vm380, %v1095, 0
      %v1119 = vsel %vm380, %v1096, 0
      %v1122 = vsel %vm380, %v1097, 0
      %v1125 = vsel %vm405, %v1099, 0
      %1127 = vmatprep.subr.mxu0 0.0
      %1128 = vmatpush1.msra.mxu0 0.0
      %1129 = vmatprep.subr.mxu0 0.0
      %1130 = vmatpush1.msra.mxu0 0.0
      %1131 = vmatprep.subr.mxu0 0.0
      %1132 = vmatpush1.msra.mxu0 0.0
      %1133 = vmatprep.subr.mxu0 0.0
      %1134 = vmatpush1.msra.mxu0 0.0
      %1135 = vmatprep.subr.mxu0 0.0
      %1136 = vmatpush1.msra.mxu0 0.0
      %1137 = vmatprep.subr.mxu0 0.0
      %1138 = vmatpush1.msra.mxu0 0.0
      %1139 = vmatprep.subr.mxu0 0.0
      %1140 = vmatpush1.msra.mxu0 0.0
      %1141 = vmatprep.subr.mxu0 0.0
      %1142 = vmatpush1.msra.mxu0 0.0
      %1143 = vmatprep.subr.mxu0 0.0
      %1144 = vmatpush1.msra.mxu0 0.0
      %1145 = vmatprep.subr.mxu0 0.0
      %1146 = vmatpush1.msra.mxu0 0.0
      %1147 = vmatprep.subr.mxu0 0.0
      %1148 = vmatpush1.msra.mxu0 0.0
      %1149 = vmatprep.subr.mxu0 0.0
      %1150 = vmatpush1.msra.mxu0 0.0
      %1151 = vmatprep.subr.mxu0 0.0
      %1152 = vmatpush1.msra.mxu0 0.0
      %1153 = vmatprep.subr.mxu0 0.0
      %1154 = vmatpush1.msra.mxu0 0.0
      %1155 = vmatprep.subr.mxu0 0.0
      %1156 = vmatpush1.msra.mxu0 0.0
      %1157 = vmatprep.subr.mxu0 0.0
      %1158 = vmatpush1.msra.mxu0 %v1125
      %1159 = vmatprep.subr.mxu0 0.0
      %1160 = vmatpush2.msra.mxu0 0.0
      %1161 = vmatprep.subr.mxu0 0.0
      %1162 = vmatpush2.msra.mxu0 0.0
      %1163 = vmatprep.subr.mxu0 0.0
      %1164 = vmatpush2.msra.mxu0 0.0
      %1165 = vmatprep.subr.mxu0 0.0
      %1166 = vmatpush2.msra.mxu0 0.0
      %1167 = vmatprep.subr.mxu0 0.0
      %1168 = vmatpush2.msra.mxu0 0.0
      %1169 = vmatprep.subr.mxu0 0.0
      %1170 = vmatpush2.msra.mxu0 0.0
      %1171 = vmatprep.subr.mxu0 0.0
      %1172 = vmatpush2.msra.mxu0 0.0
      %1173 = vmatprep.subr.mxu0 0.0
      %1174 = vmatpush2.msra.mxu0 0.0
      %1175 = vmatprep.subr.mxu0 0.0
      %1176 = vmatpush2.msra.mxu0 0.0
      %1177 = vmatprep.subr.mxu0 0.0
      %1178 = vmatpush2.msra.mxu0 0.0
      %1179 = vmatprep.subr.mxu0 0.0
      %1180 = vmatpush2.msra.mxu0 0.0
      %1181 = vmatprep.subr.mxu0 0.0
      %1182 = vmatpush2.msra.mxu0 0.0
      %1183 = vmatprep.subr.mxu0 0.0
      %1184 = vmatpush2.msra.mxu0 0.0
      %1185 = vmatprep.subr.mxu0 0.0
      %1186 = vmatpush2.msra.mxu0 0.0
      %1187 = vmatprep.subr.mxu0 0.0
      %1188 = vmatpush2.msra.mxu0 0.0
      %1189 = vmatprep.subr.mxu0 0.0
      %1190 = vmatpush2.msra.mxu0 0.0
      %1191 = vmatprep.mubr.f32.mxu0 0.0
      %1192 = vmatmul.mubr.f32.gmra.mxu0 %v1101
      %v1193 = vpop.f32.mrf.mxu0
      %v1194 = vadd.f32 0.0, %v1193
      %v1195 = vpop.f32.mrf.mxu0
      %1196 = vmatprep.mubr.f32.mxu0 0.0
      %1197 = vmatmul.mubr.f32.gmra.mxu0 %v1104
      %v1198 = vpop.f32.mrf.mxu0
      %v1199 = vadd.f32 0.0, %v1198
      %v1200 = vpop.f32.mrf.mxu0
      %1201 = vmatprep.mubr.f32.mxu0 0.0
      %1202 = vmatmul.mubr.f32.gmra.mxu0 %v1107
      %v1203 = vpop.f32.mrf.mxu0
      %v1204 = vadd.f32 0.0, %v1203
      %v1205 = vpop.f32.mrf.mxu0
      %1206 = vmatprep.mubr.f32.mxu0 0.0
      %1207 = vmatmul.mubr.f32.gmra.mxu0 %v1110
      %v1208 = vpop.f32.mrf.mxu0
      %v1209 = vadd.f32 0.0, %v1208
      %v1210 = vpop.f32.mrf.mxu0
      %1211 = vmatprep.mubr.f32.mxu0 0.0
      %1212 = vmatmul.mubr.f32.gmra.mxu0 %v1113
      %v1213 = vpop.f32.mrf.mxu0
      %v1214 = vadd.f32 0.0, %v1213
      %v1215 = vpop.f32.mrf.mxu0
      %1216 = vmatprep.mubr.f32.mxu0 0.0
      %1217 = vmatmul.mubr.f32.gmra.mxu0 %v1116
      %v1218 = vpop.f32.mrf.mxu0
      %v1219 = vadd.f32 0.0, %v1218
      %v1220 = vpop.f32.mrf.mxu0
      %1221 = vmatprep.mubr.f32.mxu0 0.0
      %1222 = vmatmul.mubr.f32.gmra.mxu0 %v1119
      %v1223 = vpop.f32.mrf.mxu0
      %v1224 = vadd.f32 0.0, %v1223
      %v1225 = vpop.f32.mrf.mxu0
      %1226 = vmatprep.mubr.f32.mxu0 0.0
      %1227 = vmatmul.mubr.f32.gmra.mxu0 %v1122
      %v1228 = vpop.f32.mrf.mxu0
      %v1229 = vpop.f32.mrf.mxu0
      %1230 = vdwg.mxu0
      %v1231 = vadd.f32 %v1083, %v1194
      %v1232 = vadd.f32 %v1084, %v1199
      %v1233 = vadd.f32 %v1085, %v1204
      %v1234 = vadd.f32 %v1086, %v1209
      %v1235 = vadd.f32 %v1087, %v1214
      %v1236 = vadd.f32 %v1088, %v1219
      %v1237 = vadd.f32 %v1089, %v1224
      %s1238 = scalar_lea.vmem %s354, 16
      %v1239 = vld [vmem:[%s1238] sm:$0xff]
      %v1240 = vld [vmem:[%s1238 + $0x10] sm:$0xff]
      %v1241 = vld [vmem:[%s1238 + $0x20] sm:$0xff]
      %v1242 = vld [vmem:[%s1238 + $0x30] sm:$0xff]
      %v1243 = vld [vmem:[%s1238 + $0x40] sm:$0xff]
      %v1244 = vld [vmem:[%s1238 + $0x50] sm:$0xff]
      %v1245 = vld [vmem:[%s1238 + $0x60] sm:$0xff]
      %v1246 = vld [vmem:[%s1238 + $0x70] sm:$0xff]
      %s1247 = scalar_lea.vmem %s1, 24
      %v1248 = vld [vmem:[%s1247] sm:$0xf]
      %v1250 = vsel %vm380, %v1239, 0
      %v1253 = vsel %vm380, %v1240, 0
      %v1256 = vsel %vm380, %v1241, 0
      %v1259 = vsel %vm380, %v1242, 0
      %v1262 = vsel %vm380, %v1243, 0
      %v1265 = vsel %vm380, %v1244, 0
      %v1268 = vsel %vm380, %v1245, 0
      %v1271 = vsel %vm380, %v1246, 0
      %v1274 = vsel %vm405, %v1248, 0
      %1276 = vmatprep.subr.mxu0 0.0
      %1277 = vmatpush1.msra.mxu0 0.0
      %1278 = vmatprep.subr.mxu0 0.0
      %1279 = vmatpush1.msra.mxu0 0.0
      %1280 = vmatprep.subr.mxu0 0.0
      %1281 = vmatpush1.msra.mxu0 0.0
      %1282 = vmatprep.subr.mxu0 0.0
      %1283 = vmatpush1.msra.mxu0 0.0
      %1284 = vmatprep.subr.mxu0 0.0
      %1285 = vmatpush1.msra.mxu0 0.0
      %1286 = vmatprep.subr.mxu0 0.0
      %1287 = vmatpush1.msra.mxu0 0.0
      %1288 = vmatprep.subr.mxu0 0.0
      %1289 = vmatpush1.msra.mxu0 0.0
      %1290 = vmatprep.subr.mxu0 0.0
      %1291 = vmatpush1.msra.mxu0 0.0
      %1292 = vmatprep.subr.mxu0 0.0
      %1293 = vmatpush1.msra.mxu0 0.0
      %1294 = vmatprep.subr.mxu0 0.0
      %1295 = vmatpush1.msra.mxu0 0.0
      %1296 = vmatprep.subr.mxu0 0.0
      %1297 = vmatpush1.msra.mxu0 0.0
      %1298 = vmatprep.subr.mxu0 0.0
      %1299 = vmatpush1.msra.mxu0 0.0
      %1300 = vmatprep.subr.mxu0 0.0
      %1301 = vmatpush1.msra.mxu0 0.0
      %1302 = vmatprep.subr.mxu0 0.0
      %1303 = vmatpush1.msra.mxu0 0.0
      %1304 = vmatprep.subr.mxu0 0.0
      %1305 = vmatpush1.msra.mxu0 0.0
      %1306 = vmatprep.subr.mxu0 0.0
      %1307 = vmatpush1.msra.mxu0 %v1274
      %1308 = vmatprep.subr.mxu0 0.0
      %1309 = vmatpush2.msra.mxu0 0.0
      %1310 = vmatprep.subr.mxu0 0.0
      %1311 = vmatpush2.msra.mxu0 0.0
      %1312 = vmatprep.subr.mxu0 0.0
      %1313 = vmatpush2.msra.mxu0 0.0
      %1314 = vmatprep.subr.mxu0 0.0
      %1315 = vmatpush2.msra.mxu0 0.0
      %1316 = vmatprep.subr.mxu0 0.0
      %1317 = vmatpush2.msra.mxu0 0.0
      %1318 = vmatprep.subr.mxu0 0.0
      %1319 = vmatpush2.msra.mxu0 0.0
      %1320 = vmatprep.subr.mxu0 0.0
      %1321 = vmatpush2.msra.mxu0 0.0
      %1322 = vmatprep.subr.mxu0 0.0
      %1323 = vmatpush2.msra.mxu0 0.0
      %1324 = vmatprep.subr.mxu0 0.0
      %1325 = vmatpush2.msra.mxu0 0.0
      %1326 = vmatprep.subr.mxu0 0.0
      %1327 = vmatpush2.msra.mxu0 0.0
      %1328 = vmatprep.subr.mxu0 0.0
      %1329 = vmatpush2.msra.mxu0 0.0
      %1330 = vmatprep.subr.mxu0 0.0
      %1331 = vmatpush2.msra.mxu0 0.0
      %1332 = vmatprep.subr.mxu0 0.0
      %1333 = vmatpush2.msra.mxu0 0.0
      %1334 = vmatprep.subr.mxu0 0.0
      %1335 = vmatpush2.msra.mxu0 0.0
      %1336 = vmatprep.subr.mxu0 0.0
      %1337 = vmatpush2.msra.mxu0 0.0
      %1338 = vmatprep.subr.mxu0 0.0
      %1339 = vmatpush2.msra.mxu0 0.0
      %1340 = vmatprep.mubr.f32.mxu0 0.0
      %1341 = vmatmul.mubr.f32.gmra.mxu0 %v1250
      %v1342 = vpop.f32.mrf.mxu0
      %v1343 = vadd.f32 0.0, %v1342
      %v1344 = vpop.f32.mrf.mxu0
      %1345 = vmatprep.mubr.f32.mxu0 0.0
      %1346 = vmatmul.mubr.f32.gmra.mxu0 %v1253
      %v1347 = vpop.f32.mrf.mxu0
      %v1348 = vadd.f32 0.0, %v1347
      %v1349 = vpop.f32.mrf.mxu0
      %1350 = vmatprep.mubr.f32.mxu0 0.0
      %1351 = vmatmul.mubr.f32.gmra.mxu0 %v1256
      %v1352 = vpop.f32.mrf.mxu0
      %v1353 = vadd.f32 0.0, %v1352
      %v1354 = vpop.f32.mrf.mxu0
      %1355 = vmatprep.mubr.f32.mxu0 0.0
      %1356 = vmatmul.mubr.f32.gmra.mxu0 %v1259
      %v1357 = vpop.f32.mrf.mxu0
      %v1358 = vadd.f32 0.0, %v1357
      %v1359 = vpop.f32.mrf.mxu0
      %1360 = vmatprep.mubr.f32.mxu0 0.0
      %1361 = vmatmul.mubr.f32.gmra.mxu0 %v1262
      %v1362 = vpop.f32.mrf.mxu0
      %v1363 = vadd.f32 0.0, %v1362
      %v1364 = vpop.f32.mrf.mxu0
      %1365 = vmatprep.mubr.f32.mxu0 0.0
      %1366 = vmatmul.mubr.f32.gmra.mxu0 %v1265
      %v1367 = vpop.f32.mrf.mxu0
      %v1368 = vadd.f32 0.0, %v1367
      %v1369 = vpop.f32.mrf.mxu0
      %1370 = vmatprep.mubr.f32.mxu0 0.0
      %1371 = vmatmul.mubr.f32.gmra.mxu0 %v1268
      %v1372 = vpop.f32.mrf.mxu0
      %v1373 = vadd.f32 0.0, %v1372
      %v1374 = vpop.f32.mrf.mxu0
      %1375 = vmatprep.mubr.f32.mxu0 0.0
      %1376 = vmatmul.mubr.f32.gmra.mxu0 %v1271
      %v1377 = vpop.f32.mrf.mxu0
      %v1378 = vpop.f32.mrf.mxu0
      %1379 = vdwg.mxu0
      %v1380 = vadd.f32 %v1231, %v1343
      %v1381 = vadd.f32 %v1232, %v1348
      %v1382 = vadd.f32 %v1233, %v1353
      %v1383 = vadd.f32 %v1234, %v1358
      %v1384 = vadd.f32 %v1235, %v1363
      %v1385 = vadd.f32 %v1236, %v1368
      %v1386 = vadd.f32 %v1237, %v1373
      %s1387 = scalar_lea.vmem %s354, 160
      %v1388 = vld [vmem:[%s1387] sm:$0xff]
      %v1389 = vld [vmem:[%s1387 + $0x10] sm:$0xff]
      %v1390 = vld [vmem:[%s1387 + $0x20] sm:$0xff]
      %v1391 = vld [vmem:[%s1387 + $0x30] sm:$0xff]
      %v1392 = vld [vmem:[%s1387 + $0x40] sm:$0xff]
      %v1393 = vld [vmem:[%s1387 + $0x50] sm:$0xff]
      %v1394 = vld [vmem:[%s1387 + $0x60] sm:$0xff]
      %v1395 = vld [vmem:[%s1387 + $0x70] sm:$0xff]
      %s1396 = scalar_lea.vmem %s1, 28
      %v1397 = vld [vmem:[%s1396] sm:$0xf]
      %v1399 = vsel %vm380, %v1388, 0
      %v1402 = vsel %vm380, %v1389, 0
      %v1405 = vsel %vm380, %v1390, 0
      %v1408 = vsel %vm380, %v1391, 0
      %v1411 = vsel %vm380, %v1392, 0
      %v1414 = vsel %vm380, %v1393, 0
      %v1417 = vsel %vm380, %v1394, 0
      %v1420 = vsel %vm380, %v1395, 0
      %v1423 = vsel %vm405, %v1397, 0
      %1425 = vmatprep.subr.mxu0 0.0
      %1426 = vmatpush1.msra.mxu0 0.0
      %1427 = vmatprep.subr.mxu0 0.0
      %1428 = vmatpush1.msra.mxu0 0.0
      %1429 = vmatprep.subr.mxu0 0.0
      %1430 = vmatpush1.msra.mxu0 0.0
      %1431 = vmatprep.subr.mxu0 0.0
      %1432 = vmatpush1.msra.mxu0 0.0
      %1433 = vmatprep.subr.mxu0 0.0
      %1434 = vmatpush1.msra.mxu0 0.0
      %1435 = vmatprep.subr.mxu0 0.0
      %1436 = vmatpush1.msra.mxu0 0.0
      %1437 = vmatprep.subr.mxu0 0.0
      %1438 = vmatpush1.msra.mxu0 0.0
      %1439 = vmatprep.subr.mxu0 0.0
      %1440 = vmatpush1.msra.mxu0 0.0
      %1441 = vmatprep.subr.mxu0 0.0
      %1442 = vmatpush1.msra.mxu0 0.0
      %1443 = vmatprep.subr.mxu0 0.0
      %1444 = vmatpush1.msra.mxu0 0.0
      %1445 = vmatprep.subr.mxu0 0.0
      %1446 = vmatpush1.msra.mxu0 0.0
      %1447 = vmatprep.subr.mxu0 0.0
      %1448 = vmatpush1.msra.mxu0 0.0
      %1449 = vmatprep.subr.mxu0 0.0
      %1450 = vmatpush1.msra.mxu0 0.0
      %1451 = vmatprep.subr.mxu0 0.0
      %1452 = vmatpush1.msra.mxu0 0.0
      %1453 = vmatprep.subr.mxu0 0.0
      %1454 = vmatpush1.msra.mxu0 0.0
      %1455 = vmatprep.subr.mxu0 0.0
      %1456 = vmatpush1.msra.mxu0 %v1423
      %1457 = vmatprep.subr.mxu0 0.0
      %1458 = vmatpush2.msra.mxu0 0.0
      %1459 = vmatprep.subr.mxu0 0.0
      %1460 = vmatpush2.msra.mxu0 0.0
      %1461 = vmatprep.subr.mxu0 0.0
      %1462 = vmatpush2.msra.mxu0 0.0
      %1463 = vmatprep.subr.mxu0 0.0
      %1464 = vmatpush2.msra.mxu0 0.0
      %1465 = vmatprep.subr.mxu0 0.0
      %1466 = vmatpush2.msra.mxu0 0.0
      %1467 = vmatprep.subr.mxu0 0.0
      %1468 = vmatpush2.msra.mxu0 0.0
      %1469 = vmatprep.subr.mxu0 0.0
      %1470 = vmatpush2.msra.mxu0 0.0
      %1471 = vmatprep.subr.mxu0 0.0
      %1472 = vmatpush2.msra.mxu0 0.0
      %1473 = vmatprep.subr.mxu0 0.0
      %1474 = vmatpush2.msra.mxu0 0.0
      %1475 = vmatprep.subr.mxu0 0.0
      %1476 = vmatpush2.msra.mxu0 0.0
      %1477 = vmatprep.subr.mxu0 0.0
      %1478 = vmatpush2.msra.mxu0 0.0
      %1479 = vmatprep.subr.mxu0 0.0
      %1480 = vmatpush2.msra.mxu0 0.0
      %1481 = vmatprep.subr.mxu0 0.0
      %1482 = vmatpush2.msra.mxu0 0.0
      %1483 = vmatprep.subr.mxu0 0.0
      %1484 = vmatpush2.msra.mxu0 0.0
      %1485 = vmatprep.subr.mxu0 0.0
      %1486 = vmatpush2.msra.mxu0 0.0
      %1487 = vmatprep.subr.mxu0 0.0
      %1488 = vmatpush2.msra.mxu0 0.0
      %1489 = vmatprep.mubr.f32.mxu0 0.0
      %1490 = vmatmul.mubr.f32.gmra.mxu0 %v1399
      %v1491 = vpop.f32.mrf.mxu0
      %v1492 = vadd.f32 0.0, %v1491
      %v1493 = vpop.f32.mrf.mxu0
      %1494 = vmatprep.mubr.f32.mxu0 0.0
      %1495 = vmatmul.mubr.f32.gmra.mxu0 %v1402
      %v1496 = vpop.f32.mrf.mxu0
      %v1497 = vadd.f32 0.0, %v1496
      %v1498 = vpop.f32.mrf.mxu0
      %1499 = vmatprep.mubr.f32.mxu0 0.0
      %1500 = vmatmul.mubr.f32.gmra.mxu0 %v1405
      %v1501 = vpop.f32.mrf.mxu0
      %v1502 = vadd.f32 0.0, %v1501
      %v1503 = vpop.f32.mrf.mxu0
      %1504 = vmatprep.mubr.f32.mxu0 0.0
      %1505 = vmatmul.mubr.f32.gmra.mxu0 %v1408
      %v1506 = vpop.f32.mrf.mxu0
      %v1507 = vadd.f32 0.0, %v1506
      %v1508 = vpop.f32.mrf.mxu0
      %1509 = vmatprep.mubr.f32.mxu0 0.0
      %1510 = vmatmul.mubr.f32.gmra.mxu0 %v1411
      %v1511 = vpop.f32.mrf.mxu0
      %v1512 = vadd.f32 0.0, %v1511
      %v1513 = vpop.f32.mrf.mxu0
      %1514 = vmatprep.mubr.f32.mxu0 0.0
      %1515 = vmatmul.mubr.f32.gmra.mxu0 %v1414
      %v1516 = vpop.f32.mrf.mxu0
      %v1517 = vadd.f32 0.0, %v1516
      %v1518 = vpop.f32.mrf.mxu0
      %1519 = vmatprep.mubr.f32.mxu0 0.0
      %1520 = vmatmul.mubr.f32.gmra.mxu0 %v1417
      %v1521 = vpop.f32.mrf.mxu0
      %v1522 = vadd.f32 0.0, %v1521
      %v1523 = vpop.f32.mrf.mxu0
      %1524 = vmatprep.mubr.f32.mxu0 0.0
      %1525 = vmatmul.mubr.f32.gmra.mxu0 %v1420
      %v1526 = vpop.f32.mrf.mxu0
      %v1527 = vpop.f32.mrf.mxu0
      %1528 = vdwg.mxu0
      %v1529 = vadd.f32 %v1380, %v1492
      %v1530 = vadd.f32 %v1381, %v1497
      %v1531 = vadd.f32 %v1382, %v1502
      %v1532 = vadd.f32 %v1383, %v1507
      %v1533 = vadd.f32 %v1384, %v1512
      %v1534 = vadd.f32 %v1385, %v1517
      %v1535 = vadd.f32 %v1386, %v1522
      %v1536 = vld [vmem:[%s1238 + $0x1] sm:$0xff]
      %v1537 = vld [vmem:[%s1238 + $0x11] sm:$0xff]
      %v1538 = vld [vmem:[%s1238 + $0x21] sm:$0xff]
      %v1539 = vld [vmem:[%s1238 + $0x31] sm:$0xff]
      %v1540 = vld [vmem:[%s1238 + $0x41] sm:$0xff]
      %v1541 = vld [vmem:[%s1238 + $0x51] sm:$0xff]
      %v1542 = vld [vmem:[%s1238 + $0x61] sm:$0xff]
      %v1543 = vld [vmem:[%s1238 + $0x71] sm:$0xff]
      %s1544 = scalar_lea.vmem %s1, 32
      %v1545 = vld [vmem:[%s1544] sm:$0xf]
      %v1547 = vsel %vm380, %v1536, 0
      %v1550 = vsel %vm380, %v1537, 0
      %v1553 = vsel %vm380, %v1538, 0
      %v1556 = vsel %vm380, %v1539, 0
      %v1559 = vsel %vm380, %v1540, 0
      %v1562 = vsel %vm380, %v1541, 0
      %v1565 = vsel %vm380, %v1542, 0
      %v1568 = vsel %vm380, %v1543, 0
      %v1571 = vsel %vm405, %v1545, 0
      %1573 = vmatprep.subr.mxu0 0.0
      %1574 = vmatpush1.msra.mxu0 0.0
      %1575 = vmatprep.subr.mxu0 0.0
      %1576 = vmatpush1.msra.mxu0 0.0
      %1577 = vmatprep.subr.mxu0 0.0
      %1578 = vmatpush1.msra.mxu0 0.0
      %1579 = vmatprep.subr.mxu0 0.0
      %1580 = vmatpush1.msra.mxu0 0.0
      %1581 = vmatprep.subr.mxu0 0.0
      %1582 = vmatpush1.msra.mxu0 0.0
      %1583 = vmatprep.subr.mxu0 0.0
      %1584 = vmatpush1.msra.mxu0 0.0
      %1585 = vmatprep.subr.mxu0 0.0
      %1586 = vmatpush1.msra.mxu0 0.0
      %1587 = vmatprep.subr.mxu0 0.0
      %1588 = vmatpush1.msra.mxu0 0.0
      %1589 = vmatprep.subr.mxu0 0.0
      %1590 = vmatpush1.msra.mxu0 0.0
      %1591 = vmatprep.subr.mxu0 0.0
      %1592 = vmatpush1.msra.mxu0 0.0
      %1593 = vmatprep.subr.mxu0 0.0
      %1594 = vmatpush1.msra.mxu0 0.0
      %1595 = vmatprep.subr.mxu0 0.0
      %1596 = vmatpush1.msra.mxu0 0.0
      %1597 = vmatprep.subr.mxu0 0.0
      %1598 = vmatpush1.msra.mxu0 0.0
      %1599 = vmatprep.subr.mxu0 0.0
      %1600 = vmatpush1.msra.mxu0 0.0
      %1601 = vmatprep.subr.mxu0 0.0
      %1602 = vmatpush1.msra.mxu0 0.0
      %1603 = vmatprep.subr.mxu0 0.0
      %1604 = vmatpush1.msra.mxu0 %v1571
      %1605 = vmatprep.subr.mxu0 0.0
      %1606 = vmatpush2.msra.mxu0 0.0
      %1607 = vmatprep.subr.mxu0 0.0
      %1608 = vmatpush2.msra.mxu0 0.0
      %1609 = vmatprep.subr.mxu0 0.0
      %1610 = vmatpush2.msra.mxu0 0.0
      %1611 = vmatprep.subr.mxu0 0.0
      %1612 = vmatpush2.msra.mxu0 0.0
      %1613 = vmatprep.subr.mxu0 0.0
      %1614 = vmatpush2.msra.mxu0 0.0
      %1615 = vmatprep.subr.mxu0 0.0
      %1616 = vmatpush2.msra.mxu0 0.0
      %1617 = vmatprep.subr.mxu0 0.0
      %1618 = vmatpush2.msra.mxu0 0.0
      %1619 = vmatprep.subr.mxu0 0.0
      %1620 = vmatpush2.msra.mxu0 0.0
      %1621 = vmatprep.subr.mxu0 0.0
      %1622 = vmatpush2.msra.mxu0 0.0
      %1623 = vmatprep.subr.mxu0 0.0
      %1624 = vmatpush2.msra.mxu0 0.0
      %1625 = vmatprep.subr.mxu0 0.0
      %1626 = vmatpush2.msra.mxu0 0.0
      %1627 = vmatprep.subr.mxu0 0.0
      %1628 = vmatpush2.msra.mxu0 0.0
      %1629 = vmatprep.subr.mxu0 0.0
      %1630 = vmatpush2.msra.mxu0 0.0
      %1631 = vmatprep.subr.mxu0 0.0
      %1632 = vmatpush2.msra.mxu0 0.0
      %1633 = vmatprep.subr.mxu0 0.0
      %1634 = vmatpush2.msra.mxu0 0.0
      %1635 = vmatprep.subr.mxu0 0.0
      %1636 = vmatpush2.msra.mxu0 0.0
      %1637 = vmatprep.mubr.f32.mxu0 0.0
      %1638 = vmatmul.mubr.f32.gmra.mxu0 %v1547
      %v1639 = vpop.f32.mrf.mxu0
      %v1640 = vadd.f32 0.0, %v1639
      %v1641 = vpop.f32.mrf.mxu0
      %1642 = vmatprep.mubr.f32.mxu0 0.0
      %1643 = vmatmul.mubr.f32.gmra.mxu0 %v1550
      %v1644 = vpop.f32.mrf.mxu0
      %v1645 = vadd.f32 0.0, %v1644
      %v1646 = vpop.f32.mrf.mxu0
      %1647 = vmatprep.mubr.f32.mxu0 0.0
      %1648 = vmatmul.mubr.f32.gmra.mxu0 %v1553
      %v1649 = vpop.f32.mrf.mxu0
      %v1650 = vadd.f32 0.0, %v1649
      %v1651 = vpop.f32.mrf.mxu0
      %1652 = vmatprep.mubr.f32.mxu0 0.0
      %1653 = vmatmul.mubr.f32.gmra.mxu0 %v1556
      %v1654 = vpop.f32.mrf.mxu0
      %v1655 = vadd.f32 0.0, %v1654
      %v1656 = vpop.f32.mrf.mxu0
      %1657 = vmatprep.mubr.f32.mxu0 0.0
      %1658 = vmatmul.mubr.f32.gmra.mxu0 %v1559
      %v1659 = vpop.f32.mrf.mxu0
      %v1660 = vadd.f32 0.0, %v1659
      %v1661 = vpop.f32.mrf.mxu0
      %1662 = vmatprep.mubr.f32.mxu0 0.0
      %1663 = vmatmul.mubr.f32.gmra.mxu0 %v1562
      %v1664 = vpop.f32.mrf.mxu0
      %v1665 = vadd.f32 0.0, %v1664
      %v1666 = vpop.f32.mrf.mxu0
      %1667 = vmatprep.mubr.f32.mxu0 0.0
      %1668 = vmatmul.mubr.f32.gmra.mxu0 %v1565
      %v1669 = vpop.f32.mrf.mxu0
      %v1670 = vadd.f32 0.0, %v1669
      %v1671 = vpop.f32.mrf.mxu0
      %1672 = vmatprep.mubr.f32.mxu0 0.0
      %1673 = vmatmul.mubr.f32.gmra.mxu0 %v1568
      %v1674 = vpop.f32.mrf.mxu0
      %v1675 = vpop.f32.mrf.mxu0
      %1676 = vdwg.mxu0
      %v1677 = vadd.f32 %v1529, %v1640
      %v1678 = vadd.f32 %v1530, %v1645
      %v1679 = vadd.f32 %v1531, %v1650
      %v1680 = vadd.f32 %v1532, %v1655
      %v1681 = vadd.f32 %v1533, %v1660
      %v1682 = vadd.f32 %v1534, %v1665
      %v1683 = vadd.f32 %v1535, %v1670
      %v1684 = vld [vmem:[%s2] sm:$0x1]
      %v1686 = vlaneseq
      %v1687 = vshrl.u32 %v1686, 7
      %v1688 = vsub.s32 0, %v1687
      %v1689 = vrot.slane %v1684, %v1688
      %v1691 = vadd.f32 %v1677, %v1689
      %v1692 = vadd.f32 %v1678, %v1689
      %v1693 = vadd.f32 %v1679, %v1689
      %v1694 = vadd.f32 %v1680, %v1689
      %v1695 = vadd.f32 %v1681, %v1689
      %v1696 = vadd.f32 %v1682, %v1689
      %v1697 = vadd.f32 %v1683, %v1689
      %v1698 = vmax.f32 %v1691, 0.0
      %v1699 = vmax.f32 %v1692, 0.0
      %v1700 = vmax.f32 %v1693, 0.0
      %v1701 = vmax.f32 %v1694, 0.0
      %v1702 = vmax.f32 %v1695, 0.0
      %v1703 = vmax.f32 %v1696, 0.0
      %v1704 = vmax.f32 %v1697, 0.0
      %v1705 = vmax.f32 %v360, %v370
      %v1706 = vmax.f32 %v361, %v371
      %v1707 = vmax.f32 %v362, %v372
      %v1708 = vmax.f32 %v363, %v373
      %v1709 = vmax.f32 %v364, %v374
      %v1710 = vmax.f32 %v365, %v375
      %v1711 = vmax.f32 %v366, %v376
      %v1712 = vmax.f32 %v367, %v377
      %v1713 = vmax.f32 %v644, %v793
      %v1714 = vmax.f32 %v645, %v794
      %v1715 = vmax.f32 %v646, %v795
      %v1716 = vmax.f32 %v647, %v796
      %v1717 = vmax.f32 %v648, %v797
      %v1718 = vmax.f32 %v649, %v798
      %v1719 = vmax.f32 %v650, %v799
      %v1720 = vmax.f32 %v651, %v800
      %v1721 = vmax.f32 %v942, %v1090
      %v1722 = vmax.f32 %v943, %v1091
      %v1723 = vmax.f32 %v944, %v1092
      %v1724 = vmax.f32 %v945, %v1093
      %v1725 = vmax.f32 %v946, %v1094
      %v1726 = vmax.f32 %v947, %v1095
      %v1727 = vmax.f32 %v948, %v1096
      %v1728 = vmax.f32 %v949, %v1097
      %v1729 = vmax.f32 %v1239, %v1388
      %v1730 = vmax.f32 %v1240, %v1389
      %v1731 = vmax.f32 %v1241, %v1390
      %v1732 = vmax.f32 %v1242, %v1391
      %v1733 = vmax.f32 %v1243, %v1392
      %v1734 = vmax.f32 %v1244, %v1393
      %v1735 = vmax.f32 %v1245, %v1394
      %v1736 = vmax.f32 %v1246, %v1395
      %v1737 = vmax.f32 %v1705, %v1713
      %v1738 = vmax.f32 %v1706, %v1714
      %v1739 = vmax.f32 %v1707, %v1715
      %v1740 = vmax.f32 %v1708, %v1716
      %v1741 = vmax.f32 %v1709, %v1717
      %v1742 = vmax.f32 %v1710, %v1718
      %v1743 = vmax.f32 %v1711, %v1719
      %v1744 = vmax.f32 %v1712, %v1720
      %v1745 = vmax.f32 %v1721, %v1729
      %v1746 = vmax.f32 %v1722, %v1730
      %v1747 = vmax.f32 %v1723, %v1731
      %v1748 = vmax.f32 %v1724, %v1732
      %v1749 = vmax.f32 %v1725, %v1733
      %v1750 = vmax.f32 %v1726, %v1734
      %v1751 = vmax.f32 %v1727, %v1735
      %v1752 = vmax.f32 %v1728, %v1736
      %v1753 = vmax.f32 %v1737, %v1745
      %v1754 = vmax.f32 %v1738, %v1746
      %v1755 = vmax.f32 %v1739, %v1747
      %v1756 = vmax.f32 %v1740, %v1748
      %v1757 = vmax.f32 %v1741, %v1749
      %v1758 = vmax.f32 %v1742, %v1750
      %v1759 = vmax.f32 %v1743, %v1751
      %v1760 = vmax.f32 %v1744, %v1752
      %v1761 = vmax.f32 %v1753, %v1536
      %v1762 = vmax.f32 %v1754, %v1537
      %v1763 = vmax.f32 %v1755, %v1538
      %v1764 = vmax.f32 %v1756, %v1539
      %v1765 = vmax.f32 %v1757, %v1540
      %v1766 = vmax.f32 %v1758, %v1541
      %v1767 = vmax.f32 %v1759, %v1542
      %v1768 = vmax.f32 %v1760, %v1543
      %v1769 = vld [vmem:[%s9] sm:$0xf]
      %1770 = vst.msk [vmem:[#allocation2] sm:$0xff] %vm380, 0.0
      %1771 = vst.msk [vmem:[#allocation2 + $0x8] sm:$0xff] %vm380, 0.0
      %vm1772 = vcmask 24576
      %1773 = vst.msk [vmem:[#allocation2 + $0x10] sm:$0x1] %vm1772, 0.0
      %1774 = vst.msk [vmem:[#allocation2 + $0x18] sm:$0xff] %vm380, 0.0
      %1775 = vst.msk [vmem:[#allocation2 + $0x20] sm:$0xff] %vm380, 0.0
      %1776 = vst.msk [vmem:[#allocation2 + $0x28] sm:$0x1] %vm1772, 0.0
      %1777 = vst.msk [vmem:[#allocation2 + $0x30] sm:$0xff] %vm380, 0.0
      %1778 = vst.msk [vmem:[#allocation2 + $0x38] sm:$0xff] %vm380, 0.0
      %1779 = vst.msk [vmem:[#allocation2 + $0x40] sm:$0x1] %vm1772, 0.0
      %1780 = vst.msk [vmem:[#allocation2 + $0x48] sm:$0xff] %vm380, 0.0
      %1781 = vst.msk [vmem:[#allocation2 + $0x50] sm:$0xff] %vm380, 0.0
      %1782 = vst.msk [vmem:[#allocation2 + $0x58] sm:$0x1] %vm1772, 0.0
      %1783 = vst.msk [vmem:[#allocation2 + $0x60] sm:$0xff] %vm380, 0.0
      %1784 = vst.msk [vmem:[#allocation2 + $0x68] sm:$0xff] %vm380, 0.0
      %1785 = vst.msk [vmem:[#allocation2 + $0x70] sm:$0x1] %vm1772, 0.0
      %1786 = vst.msk [vmem:[#allocation2 + $0x78] sm:$0xff] %vm380, 0.0
      %1787 = vst.msk [vmem:[#allocation2 + $0x80] sm:$0xff] %vm380, 0.0
      %1788 = vst.msk [vmem:[#allocation2 + $0x88] sm:$0x1] %vm1772, 0.0
      %1789 = vst.msk [vmem:[#allocation2 + $0x90] sm:$0xff] %vm380, 0.0
      %1790 = vst.msk [vmem:[#allocation2 + $0x98] sm:$0xff] %vm380, 0.0
      %1791 = vst.msk [vmem:[#allocation2 + $0xa0] sm:$0x1] %vm1772, 0.0
      %1792 = vst.msk [vmem:[#allocation2 + $0xa8] sm:$0xff] %vm380, 0.0
      %1793 = vst.msk [vmem:[#allocation2 + $0xb0] sm:$0xff] %vm380, 0.0
      %1794 = vst.msk [vmem:[#allocation2 + $0xb8] sm:$0x1] %vm1772, 0.0
      %1795 = vst.msk [vmem:[#allocation2 + $0xc0] sm:$0xff] %vm380, 0.0
      %1796 = vst.msk [vmem:[#allocation2 + $0xc8] sm:$0xff] %vm380, 0.0
      %1797 = vst.msk [vmem:[#allocation2 + $0xd0] sm:$0x1] %vm1772, 0.0
      %1798 = vst.msk [vmem:[#allocation2 + $0xd8] sm:$0xff] %vm380, 0.0
      %1799 = vst.msk [vmem:[#allocation2 + $0xe0] sm:$0xff] %vm380, 0.0
      %1800 = vst.msk [vmem:[#allocation2 + $0xe8] sm:$0x1] %vm1772, 0.0
      %1801 = vst.msk [vmem:[#allocation2 + $0xf0] sm:$0xff] %vm380, 0.0
      %1802 = vst.msk [vmem:[#allocation2 + $0xf8] sm:$0xff] %vm380, 0.0
      %1803 = vst.msk [vmem:[#allocation2 + $0x100] sm:$0x1] %vm1772, 0.0
      %1804 = vst.msk [vmem:[#allocation2 + $0x108] sm:$0xff] %vm380, 0.0
      %1805 = vst.msk [vmem:[#allocation2 + $0x110] sm:$0xff] %vm380, 0.0
      %1806 = vst.msk [vmem:[#allocation2 + $0x118] sm:$0x1] %vm1772, 0.0
      %1807 = vst.msk [vmem:[#allocation2 + $0x120] sm:$0xff] %vm380, 0.0
      %1808 = vst.msk [vmem:[#allocation2 + $0x128] sm:$0xff] %vm380, 0.0
      %1809 = vst.msk [vmem:[#allocation2 + $0x130] sm:$0x1] %vm1772, 0.0
      %1810 = vst.msk [vmem:[#allocation2 + $0x138] sm:$0xff] %vm380, 0.0
      %1811 = vst.msk [vmem:[#allocation2 + $0x140] sm:$0xff] %vm380, 0.0
      %1812 = vst.msk [vmem:[#allocation2 + $0x148] sm:$0x1] %vm1772, 0.0
      %1813 = vst.msk [vmem:[#allocation2 + $0x150] sm:$0xff] %vm380, 0.0
      %1814 = vst.msk [vmem:[#allocation2 + $0x158] sm:$0xff] %vm380, 0.0
      %1815 = vst.msk [vmem:[#allocation2 + $0x160] sm:$0x1] %vm1772, 0.0
      %1816 = vst.msk [vmem:[#allocation2 + $0x168] sm:$0xff] %vm380, 0.0
      %1817 = vst.msk [vmem:[#allocation2 + $0x170] sm:$0xff] %vm380, 0.0
      %1818 = vst.msk [vmem:[#allocation2 + $0x178] sm:$0x1] %vm1772, 0.0
      %1819 = vst.msk [vmem:[#allocation2 + $0x180] sm:$0xff] %vm380, 0.0
      %1820 = vst.msk [vmem:[#allocation2 + $0x188] sm:$0xff] %vm380, 0.0
      %1821 = vst.msk [vmem:[#allocation2 + $0x190] sm:$0x1] %vm1772, 0.0
      %1822 = vst.msk [vmem:[#allocation2 + $0x198] sm:$0xff] %vm380, 0.0
      %1823 = vst.msk [vmem:[#allocation2 + $0x1a0] sm:$0xff] %vm380, 0.0
      %1824 = vst.msk [vmem:[#allocation2 + $0x1a8] sm:$0x1] %vm1772, 0.0
      %1825 = vst.msk [vmem:[#allocation2 + $0x1b0] sm:$0xff] %vm380, 0.0
      %1826 = vst.msk [vmem:[#allocation2 + $0x1b8] sm:$0xff] %vm380, 0.0
      %1827 = vst.msk [vmem:[#allocation2 + $0x1c0] sm:$0x1] %vm1772, 0.0
      %1828 = vst.msk [vmem:[#allocation2 + $0x1c8] sm:$0xff] %vm380, 0.0
      %1829 = vst.msk [vmem:[#allocation2 + $0x1d0] sm:$0xff] %vm380, 0.0
      %1830 = vst.msk [vmem:[#allocation2 + $0x1d8] sm:$0x1] %vm1772, 0.0
      %1831 = vst.msk [vmem:[#allocation2 + $0x1e0] sm:$0xff] %vm380, 0.0
      %1832 = vst.msk [vmem:[#allocation2 + $0x1e8] sm:$0xff] %vm380, 0.0
      %1833 = vst.msk [vmem:[#allocation2 + $0x1f0] sm:$0x1] %vm1772, 0.0
      %1834 = vst.msk [vmem:[#allocation2 + $0x1f8] sm:$0xff] %vm380, 0.0
      %1835 = vst.msk [vmem:[#allocation2 + $0x200] sm:$0xff] %vm380, 0.0
      %1836 = vst.msk [vmem:[#allocation2 + $0x208] sm:$0x1] %vm1772, 0.0
      %1837 = vst.msk [vmem:[#allocation2 + $0x210] sm:$0xff] %vm380, 0.0
      %1838 = vst.msk [vmem:[#allocation2 + $0x218] sm:$0xff] %vm380, 0.0
      %1839 = vst.msk [vmem:[#allocation2 + $0x220] sm:$0x1] %vm1772, 0.0
      %1840 = vst.msk [vmem:[#allocation2 + $0x228] sm:$0xff] %vm380, 0.0
      %1841 = vst.msk [vmem:[#allocation2 + $0x230] sm:$0xff] %vm380, 0.0
      %1842 = vst.msk [vmem:[#allocation2 + $0x238] sm:$0x1] %vm1772, 0.0
      %1843 = vst.msk [vmem:[#allocation2 + $0x240] sm:$0xff] %vm380, 0.0
      %1844 = vst.msk [vmem:[#allocation2 + $0x248] sm:$0xff] %vm380, 0.0
      %1845 = vst.msk [vmem:[#allocation2 + $0x250] sm:$0x1] %vm1772, 0.0
      %1846 = vst.msk [vmem:[#allocation2 + $0x258] sm:$0xff] %vm380, 0.0
      %1847 = vst.msk [vmem:[#allocation2 + $0x260] sm:$0xff] %vm380, 0.0
      %1848 = vst.msk [vmem:[#allocation2 + $0x268] sm:$0x1] %vm1772, 0.0
      %1849 = vst.msk [vmem:[#allocation2 + $0x270] sm:$0xff] %vm380, 0.0
      %1850 = vst.msk [vmem:[#allocation2 + $0x278] sm:$0xff] %vm380, 0.0
      %1851 = vst.msk [vmem:[#allocation2 + $0x280] sm:$0x1] %vm1772, 0.0
      %1852 = vst.msk [vmem:[#allocation2 + $0x288] sm:$0xff] %vm380, 0.0
      %1853 = vst.msk [vmem:[#allocation2 + $0x290] sm:$0xff] %vm380, 0.0
      %1854 = vst.msk [vmem:[#allocation2 + $0x298] sm:$0x1] %vm1772, 0.0
      %1855 = vst.msk [vmem:[#allocation2 + $0x2a0] sm:$0xff] %vm380, 0.0
      %1856 = vst.msk [vmem:[#allocation2 + $0x2a8] sm:$0xff] %vm380, 0.0
      %1857 = vst.msk [vmem:[#allocation2 + $0x2b0] sm:$0x1] %vm1772, 0.0
      %1858 = vst.msk [vmem:[#allocation2 + $0x2b8] sm:$0xff] %vm380, 0.0
      %1859 = vst.msk [vmem:[#allocation2 + $0x2c0] sm:$0xff] %vm380, 0.0
      %1860 = vst.msk [vmem:[#allocation2 + $0x2c8] sm:$0x1] %vm1772, 0.0
      %1861 = vst.msk [vmem:[#allocation2 + $0x2d0] sm:$0xff] %vm380, 0.0
      %1862 = vst.msk [vmem:[#allocation2 + $0x2d8] sm:$0xff] %vm380, 0.0
      %1863 = vst.msk [vmem:[#allocation2 + $0x2e0] sm:$0x1] %vm1772, 0.0
      %1864 = vst.msk [vmem:[#allocation2 + $0x2e8] sm:$0xff] %vm380, 0.0
      %1865 = vst.msk [vmem:[#allocation2 + $0x2f0] sm:$0xff] %vm380, 0.0
      %1866 = vst.msk [vmem:[#allocation2 + $0x2f8] sm:$0x1] %vm1772, 0.0
      %1867 = vst.msk [vmem:[#allocation2 + $0x300] sm:$0xff] %vm380, 0.0
      %1868 = vst.msk [vmem:[#allocation2 + $0x308] sm:$0xff] %vm380, 0.0
      %1869 = vst.msk [vmem:[#allocation2 + $0x310] sm:$0x1] %vm1772, 0.0
      %1870 = vst.msk [vmem:[#allocation2 + $0x318] sm:$0xff] %vm380, 0.0
      %1871 = vst.msk [vmem:[#allocation2 + $0x320] sm:$0xff] %vm380, 0.0
      %1872 = vst.msk [vmem:[#allocation2 + $0x328] sm:$0x1] %vm1772, 0.0
      %1873 = vst.msk [vmem:[#allocation2 + $0x330] sm:$0xff] %vm380, 0.0
      %1874 = vst.msk [vmem:[#allocation2 + $0x338] sm:$0xff] %vm380, 0.0
      %1875 = vst.msk [vmem:[#allocation2 + $0x340] sm:$0x1] %vm1772, 0.0
      %1876 = vst.msk [vmem:[#allocation2 + $0x348] sm:$0xff] %vm380, 0.0
      %1877 = vst.msk [vmem:[#allocation2 + $0x350] sm:$0xff] %vm380, 0.0
      %1878 = vst.msk [vmem:[#allocation2 + $0x358] sm:$0x1] %vm1772, 0.0
      %1879 = vst.msk [vmem:[#allocation2 + $0x360] sm:$0xff] %vm380, 0.0
      %1880 = vst.msk [vmem:[#allocation2 + $0x368] sm:$0xff] %vm380, 0.0
      %1881 = vst.msk [vmem:[#allocation2 + $0x370] sm:$0x1] %vm1772, 0.0
      %1882 = vst.msk [vmem:[#allocation2 + $0x378] sm:$0xff] %vm380, 0.0
      %1883 = vst.msk [vmem:[#allocation2 + $0x380] sm:$0xff] %vm380, 0.0
      %1884 = vst.msk [vmem:[#allocation2 + $0x388] sm:$0x1] %vm1772, 0.0
      %1885 = vst.msk [vmem:[#allocation2 + $0x390] sm:$0xff] %vm380, 0.0
      %1886 = vst.msk [vmem:[#allocation2 + $0x398] sm:$0xff] %vm380, 0.0
      %1887 = vst.msk [vmem:[#allocation2 + $0x3a0] sm:$0x1] %vm1772, 0.0
      %1888 = vst.msk [vmem:[#allocation2 + $0x3a8] sm:$0xff] %vm380, 0.0
      %1889 = vst.msk [vmem:[#allocation2 + $0x3b0] sm:$0xff] %vm380, 0.0
      %1890 = vst.msk [vmem:[#allocation2 + $0x3b8] sm:$0x1] %vm1772, 0.0
      %v1891 = vld [vmem:[%s354] sm:$0xff]
      %v1892 = vld [vmem:[%s354 + $0x10] sm:$0xff]
      %v1893 = vld [vmem:[%s354 + $0x20] sm:$0xff]
      %v1894 = vld [vmem:[%s354 + $0x30] sm:$0xff]
      %v1895 = vld [vmem:[%s354 + $0x40] sm:$0xff]
      %v1896 = vld [vmem:[%s354 + $0x50] sm:$0xff]
      %v1897 = vld [vmem:[%s354 + $0x60] sm:$0xff]
      %v1898 = vld [vmem:[%s354 + $0x70] sm:$0xff]
      %v1899 = vld [vmem:[%s3] sm:$0xf]
      %v1900 = vld [vmem:[%s4] sm:$0x1]
      %v1902 = vlaneseq
      %v1903 = vshrl.u32 %v1902, 7
      %v1904 = vsub.s32 0, %v1903
      %v1905 = vrot.slane %v1900, %v1904
      %v1908 = vsel %vm380, %v1891, 0
      %v1911 = vsel %vm380, %v1892, 0
      %v1914 = vsel %vm380, %v1893, 0
      %v1917 = vsel %vm380, %v1894, 0
      %v1920 = vsel %vm380, %v1895, 0
      %v1923 = vsel %vm380, %v1896, 0
      %v1926 = vsel %vm380, %v1897, 0
      %v1929 = vsel %vm380, %v1898, 0
      %v1932 = vsel %vm405, %v1899, 0
      %1934 = vmatprep.subr.mxu0 0.0
      %1935 = vmatpush1.msra.mxu0 0.0
      %1936 = vmatprep.subr.mxu0 0.0
      %1937 = vmatpush1.msra.mxu0 0.0
      %1938 = vmatprep.subr.mxu0 0.0
      %1939 = vmatpush1.msra.mxu0 0.0
      %1940 = vmatprep.subr.mxu0 0.0
      %1941 = vmatpush1.msra.mxu0 0.0
      %1942 = vmatprep.subr.mxu0 0.0
      %1943 = vmatpush1.msra.mxu0 0.0
      %1944 = vmatprep.subr.mxu0 0.0
      %1945 = vmatpush1.msra.mxu0 0.0
      %1946 = vmatprep.subr.mxu0 0.0
      %1947 = vmatpush1.msra.mxu0 0.0
      %1948 = vmatprep.subr.mxu0 0.0
      %1949 = vmatpush1.msra.mxu0 0.0
      %1950 = vmatprep.subr.mxu0 0.0
      %1951 = vmatpush1.msra.mxu0 0.0
      %1952 = vmatprep.subr.mxu0 0.0
      %1953 = vmatpush1.msra.mxu0 0.0
      %1954 = vmatprep.subr.mxu0 0.0
      %1955 = vmatpush1.msra.mxu0 0.0
      %1956 = vmatprep.subr.mxu0 0.0
      %1957 = vmatpush1.msra.mxu0 0.0
      %1958 = vmatprep.subr.mxu0 0.0
      %1959 = vmatpush1.msra.mxu0 0.0
      %1960 = vmatprep.subr.mxu0 0.0
      %1961 = vmatpush1.msra.mxu0 0.0
      %1962 = vmatprep.subr.mxu0 0.0
      %1963 = vmatpush1.msra.mxu0 0.0
      %1964 = vmatprep.subr.mxu0 0.0
      %1965 = vmatpush1.msra.mxu0 %v1932
      %1966 = vmatprep.subr.mxu0 0.0
      %1967 = vmatpush2.msra.mxu0 0.0
      %1968 = vmatprep.subr.mxu0 0.0
      %1969 = vmatpush2.msra.mxu0 0.0
      %1970 = vmatprep.subr.mxu0 0.0
      %1971 = vmatpush2.msra.mxu0 0.0
      %1972 = vmatprep.subr.mxu0 0.0
      %1973 = vmatpush2.msra.mxu0 0.0
      %1974 = vmatprep.subr.mxu0 0.0
      %1975 = vmatpush2.msra.mxu0 0.0
      %1976 = vmatprep.subr.mxu0 0.0
      %1977 = vmatpush2.msra.mxu0 0.0
      %1978 = vmatprep.subr.mxu0 0.0
      %1979 = vmatpush2.msra.mxu0 0.0
      %1980 = vmatprep.subr.mxu0 0.0
      %1981 = vmatpush2.msra.mxu0 0.0
      %1982 = vmatprep.subr.mxu0 0.0
      %1983 = vmatpush2.msra.mxu0 0.0
      %1984 = vmatprep.subr.mxu0 0.0
      %1985 = vmatpush2.msra.mxu0 0.0
      %1986 = vmatprep.subr.mxu0 0.0
      %1987 = vmatpush2.msra.mxu0 0.0
      %1988 = vmatprep.subr.mxu0 0.0
      %1989 = vmatpush2.msra.mxu0 0.0
      %1990 = vmatprep.subr.mxu0 0.0
      %1991 = vmatpush2.msra.mxu0 0.0
      %1992 = vmatprep.subr.mxu0 0.0
      %1993 = vmatpush2.msra.mxu0 0.0
      %1994 = vmatprep.subr.mxu0 0.0
      %1995 = vmatpush2.msra.mxu0 0.0
      %1996 = vmatprep.subr.mxu0 0.0
      %1997 = vmatpush2.msra.mxu0 0.0
      %1998 = vmatprep.mubr.f32.mxu0 0.0
      %1999 = vmatmul.mubr.f32.gmra.mxu0 %v1908
      %v2000 = vpop.f32.mrf.mxu0
      %v2001 = vadd.f32 %v1905, %v2000
      %v2002 = vpop.f32.mrf.mxu0
      %2003 = vmatprep.mubr.f32.mxu0 0.0
      %2004 = vmatmul.mubr.f32.gmra.mxu0 %v1911
      %v2005 = vpop.f32.mrf.mxu0
      %v2006 = vadd.f32 %v1905, %v2005
      %v2007 = vpop.f32.mrf.mxu0
      %2008 = vmatprep.mubr.f32.mxu0 0.0
      %2009 = vmatmul.mubr.f32.gmra.mxu0 %v1914
      %v2010 = vpop.f32.mrf.mxu0
      %v2011 = vadd.f32 %v1905, %v2010
      %v2012 = vpop.f32.mrf.mxu0
      %2013 = vmatprep.mubr.f32.mxu0 0.0
      %2014 = vmatmul.mubr.f32.gmra.mxu0 %v1917
      %v2015 = vpop.f32.mrf.mxu0
      %v2016 = vadd.f32 %v1905, %v2015
      %v2017 = vpop.f32.mrf.mxu0
      %2018 = vmatprep.mubr.f32.mxu0 0.0
      %2019 = vmatmul.mubr.f32.gmra.mxu0 %v1920
      %v2020 = vpop.f32.mrf.mxu0
      %v2021 = vadd.f32 %v1905, %v2020
      %v2022 = vpop.f32.mrf.mxu0
      %2023 = vmatprep.mubr.f32.mxu0 0.0
      %2024 = vmatmul.mubr.f32.gmra.mxu0 %v1923
      %v2025 = vpop.f32.mrf.mxu0
      %v2026 = vadd.f32 %v1905, %v2025
      %v2027 = vpop.f32.mrf.mxu0
      %2028 = vmatprep.mubr.f32.mxu0 0.0
      %2029 = vmatmul.mubr.f32.gmra.mxu0 %v1926
      %v2030 = vpop.f32.mrf.mxu0
      %v2031 = vadd.f32 %v1905, %v2030
      %v2032 = vpop.f32.mrf.mxu0
      %2033 = vmatprep.mubr.f32.mxu0 0.0
      %2034 = vmatmul.mubr.f32.gmra.mxu0 %v1929
      %v2035 = vpop.f32.mrf.mxu0
      %v2036 = vadd.f32 %v1905, %v2035
      %v2037 = vpop.f32.mrf.mxu0
      %2038 = vdwg.mxu0
      %v2039 = vmax.f32 %v2001, 0.0
      %v2040 = vmax.f32 %v2006, 0.0
      %v2041 = vmax.f32 %v2011, 0.0
      %v2042 = vmax.f32 %v2016, 0.0
      %v2043 = vmax.f32 %v2021, 0.0
      %v2044 = vmax.f32 %v2026, 0.0
      %v2045 = vmax.f32 %v2031, 0.0
      %v2046 = vmax.f32 %v2036, 0.0
      %s2047 = scalar_lea.vmem [#allocation2], 24
      %2048 = vst.msk [vmem:[%s2047 + $0x8] sm:$0xff] %vm380, %v2039
      %2049 = vst.msk [vmem:[%s2047 + $0x20] sm:$0xff] %vm380, %v2040
      %2050 = vst.msk [vmem:[%s2047 + $0x38] sm:$0xff] %vm380, %v2041
      %2051 = vst.msk [vmem:[%s2047 + $0x50] sm:$0xff] %vm380, %v2042
      %2052 = vst.msk [vmem:[%s2047 + $0x68] sm:$0xff] %vm380, %v2043
      %2053 = vst.msk [vmem:[%s2047 + $0x80] sm:$0xff] %vm380, %v2044
      %2054 = vst.msk [vmem:[%s2047 + $0x98] sm:$0xff] %vm380, %v2045
      %2055 = vst.msk [vmem:[%s2047 + $0xb0] sm:$0xff] %vm380, %v2046
      %v2056 = vld [vmem:[%s369] sm:$0xff]
      %v2057 = vld [vmem:[%s369 + $0x10] sm:$0xff]
      %v2058 = vld [vmem:[%s369 + $0x20] sm:$0xff]
      %v2059 = vld [vmem:[%s369 + $0x30] sm:$0xff]
      %v2060 = vld [vmem:[%s369 + $0x40] sm:$0xff]
      %v2061 = vld [vmem:[%s369 + $0x50] sm:$0xff]
      %v2062 = vld [vmem:[%s369 + $0x60] sm:$0xff]
      %v2063 = vld [vmem:[%s369 + $0x70] sm:$0xff]
      %v2064 = vld [vmem:[%s3] sm:$0xf]
      %v2065 = vld [vmem:[%s4] sm:$0x1]
      %v2067 = vlaneseq
      %v2068 = vshrl.u32 %v2067, 7
      %v2069 = vsub.s32 0, %v2068
      %v2070 = vrot.slane %v2065, %v2069
      %v2073 = vsel %vm380, %v2056, 0
      %v2076 = vsel %vm380, %v2057, 0
      %v2079 = vsel %vm380, %v2058, 0
      %v2082 = vsel %vm380, %v2059, 0
      %v2085 = vsel %vm380, %v2060, 0
      %v2088 = vsel %vm380, %v2061, 0
      %v2091 = vsel %vm380, %v2062, 0
      %v2094 = vsel %vm380, %v2063, 0
      %v2097 = vsel %vm405, %v2064, 0
      %2099 = vmatprep.subr.mxu0 0.0
      %2100 = vmatpush1.msra.mxu0 0.0
      %2101 = vmatprep.subr.mxu0 0.0
      %2102 = vmatpush1.msra.mxu0 0.0
      %2103 = vmatprep.subr.mxu0 0.0
      %2104 = vmatpush1.msra.mxu0 0.0
      %2105 = vmatprep.subr.mxu0 0.0
      %2106 = vmatpush1.msra.mxu0 0.0
      %2107 = vmatprep.subr.mxu0 0.0
      %2108 = vmatpush1.msra.mxu0 0.0
      %2109 = vmatprep.subr.mxu0 0.0
      %2110 = vmatpush1.msra.mxu0 0.0
      %2111 = vmatprep.subr.mxu0 0.0
      %2112 = vmatpush1.msra.mxu0 0.0
      %2113 = vmatprep.subr.mxu0 0.0
      %2114 = vmatpush1.msra.mxu0 0.0
      %2115 = vmatprep.subr.mxu0 0.0
      %2116 = vmatpush1.msra.mxu0 0.0
      %2117 = vmatprep.subr.mxu0 0.0
      %2118 = vmatpush1.msra.mxu0 0.0
      %2119 = vmatprep.subr.mxu0 0.0
      %2120 = vmatpush1.msra.mxu0 0.0
      %2121 = vmatprep.subr.mxu0 0.0
      %2122 = vmatpush1.msra.mxu0 0.0
      %2123 = vmatprep.subr.mxu0 0.0
      %2124 = vmatpush1.msra.mxu0 0.0
      %2125 = vmatprep.subr.mxu0 0.0
      %2126 = vmatpush1.msra.mxu0 0.0
      %2127 = vmatprep.subr.mxu0 0.0
      %2128 = vmatpush1.msra.mxu0 0.0
      %2129 = vmatprep.subr.mxu0 0.0
      %2130 = vmatpush1.msra.mxu0 %v2097
      %2131 = vmatprep.subr.mxu0 0.0
      %2132 = vmatpush2.msra.mxu0 0.0
      %2133 = vmatprep.subr.mxu0 0.0
      %2134 = vmatpush2.msra.mxu0 0.0
      %2135 = vmatprep.subr.mxu0 0.0
      %2136 = vmatpush2.msra.mxu0 0.0
      %2137 = vmatprep.subr.mxu0 0.0
      %2138 = vmatpush2.msra.mxu0 0.0
      %2139 = vmatprep.subr.mxu0 0.0
      %2140 = vmatpush2.msra.mxu0 0.0
      %2141 = vmatprep.subr.mxu0 0.0
      %2142 = vmatpush2.msra.mxu0 0.0
      %2143 = vmatprep.subr.mxu0 0.0
      %2144 = vmatpush2.msra.mxu0 0.0
      %2145 = vmatprep.subr.mxu0 0.0
      %2146 = vmatpush2.msra.mxu0 0.0
      %2147 = vmatprep.subr.mxu0 0.0
      %2148 = vmatpush2.msra.mxu0 0.0
      %2149 = vmatprep.subr.mxu0 0.0
      %2150 = vmatpush2.msra.mxu0 0.0
      %2151 = vmatprep.subr.mxu0 0.0
      %2152 = vmatpush2.msra.mxu0 0.0
      %2153 = vmatprep.subr.mxu0 0.0
      %2154 = vmatpush2.msra.mxu0 0.0
      %2155 = vmatprep.subr.mxu0 0.0
      %2156 = vmatpush2.msra.mxu0 0.0
      %2157 = vmatprep.subr.mxu0 0.0
      %2158 = vmatpush2.msra.mxu0 0.0
      %2159 = vmatprep.subr.mxu0 0.0
      %2160 = vmatpush2.msra.mxu0 0.0
      %2161 = vmatprep.subr.mxu0 0.0
      %2162 = vmatpush2.msra.mxu0 0.0
      %2163 = vmatprep.mubr.f32.mxu0 0.0
      %2164 = vmatmul.mubr.f32.gmra.mxu0 %v2073
      %v2165 = vpop.f32.mrf.mxu0
      %v2166 = vadd.f32 %v2070, %v2165
      %v2167 = vpop.f32.mrf.mxu0
      %2168 = vmatprep.mubr.f32.mxu0 0.0
      %2169 = vmatmul.mubr.f32.gmra.mxu0 %v2076
      %v2170 = vpop.f32.mrf.mxu0
      %v2171 = vadd.f32 %v2070, %v2170
      %v2172 = vpop.f32.mrf.mxu0
      %2173 = vmatprep.mubr.f32.mxu0 0.0
      %2174 = vmatmul.mubr.f32.gmra.mxu0 %v2079
      %v2175 = vpop.f32.mrf.mxu0
      %v2176 = vadd.f32 %v2070, %v2175
      %v2177 = vpop.f32.mrf.mxu0
      %2178 = vmatprep.mubr.f32.mxu0 0.0
      %2179 = vmatmul.mubr.f32.gmra.mxu0 %v2082
      %v2180 = vpop.f32.mrf.mxu0
      %v2181 = vadd.f32 %v2070, %v2180
      %v2182 = vpop.f32.mrf.mxu0
      %2183 = vmatprep.mubr.f32.mxu0 0.0
      %2184 = vmatmul.mubr.f32.gmra.mxu0 %v2085
      %v2185 = vpop.f32.mrf.mxu0
      %v2186 = vadd.f32 %v2070, %v2185
      %v2187 = vpop.f32.mrf.mxu0
      %2188 = vmatprep.mubr.f32.mxu0 0.0
      %2189 = vmatmul.mubr.f32.gmra.mxu0 %v2088
      %v2190 = vpop.f32.mrf.mxu0
      %v2191 = vadd.f32 %v2070, %v2190
      %v2192 = vpop.f32.mrf.mxu0
      %2193 = vmatprep.mubr.f32.mxu0 0.0
      %2194 = vmatmul.mubr.f32.gmra.mxu0 %v2091
      %v2195 = vpop.f32.mrf.mxu0
      %v2196 = vadd.f32 %v2070, %v2195
      %v2197 = vpop.f32.mrf.mxu0
      %2198 = vmatprep.mubr.f32.mxu0 0.0
      %2199 = vmatmul.mubr.f32.gmra.mxu0 %v2094
      %v2200 = vpop.f32.mrf.mxu0
      %v2201 = vadd.f32 %v2070, %v2200
      %v2202 = vpop.f32.mrf.mxu0
      %2203 = vdwg.mxu0
      %v2204 = vmax.f32 %v2166, 0.0
      %v2205 = vmax.f32 %v2171, 0.0
      %v2206 = vmax.f32 %v2176, 0.0
      %v2207 = vmax.f32 %v2181, 0.0
      %v2208 = vmax.f32 %v2186, 0.0
      %v2209 = vmax.f32 %v2191, 0.0
      %v2210 = vmax.f32 %v2196, 0.0
      %v2211 = vmax.f32 %v2201, 0.0
      %s2212 = scalar_lea.vmem [#allocation2], 264
      %2213 = vst.msk [vmem:[%s2212 + $0x8] sm:$0xff] %vm380, %v2204
      %2214 = vst.msk [vmem:[%s2212 + $0x20] sm:$0xff] %vm380, %v2205
      %2215 = vst.msk [vmem:[%s2212 + $0x38] sm:$0xff] %vm380, %v2206
      %2216 = vst.msk [vmem:[%s2212 + $0x50] sm:$0xff] %vm380, %v2207
      %2217 = vst.msk [vmem:[%s2212 + $0x68] sm:$0xff] %vm380, %v2208
      %2218 = vst.msk [vmem:[%s2212 + $0x80] sm:$0xff] %vm380, %v2209
      %2219 = vst.msk [vmem:[%s2212 + $0x98] sm:$0xff] %vm380, %v2210
      %2220 = vst.msk [vmem:[%s2212 + $0xb0] sm:$0xff] %vm380, %v2211
      %v2221 = vld [vmem:[%s792] sm:$0xff]
      %v2222 = vld [vmem:[%s792 + $0x10] sm:$0xff]
      %v2223 = vld [vmem:[%s792 + $0x20] sm:$0xff]
      %v2224 = vld [vmem:[%s792 + $0x30] sm:$0xff]
      %v2225 = vld [vmem:[%s792 + $0x40] sm:$0xff]
      %v2226 = vld [vmem:[%s792 + $0x50] sm:$0xff]
      %v2227 = vld [vmem:[%s792 + $0x60] sm:$0xff]
      %v2228 = vld [vmem:[%s792 + $0x70] sm:$0xff]
      %v2229 = vld [vmem:[%s3] sm:$0xf]
      %v2230 = vld [vmem:[%s4] sm:$0x1]
      %v2232 = vlaneseq
      %v2233 = vshrl.u32 %v2232, 7
      %v2234 = vsub.s32 0, %v2233
      %v2235 = vrot.slane %v2230, %v2234
      %v2238 = vsel %vm380, %v2221, 0
      %v2241 = vsel %vm380, %v2222, 0
      %v2244 = vsel %vm380, %v2223, 0
      %v2247 = vsel %vm380, %v2224, 0
      %v2250 = vsel %vm380, %v2225, 0
      %v2253 = vsel %vm380, %v2226, 0
      %v2256 = vsel %vm380, %v2227, 0
      %v2259 = vsel %vm380, %v2228, 0
      %v2262 = vsel %vm405, %v2229, 0
      %2264 = vmatprep.subr.mxu0 0.0
      %2265 = vmatpush1.msra.mxu0 0.0
      %2266 = vmatprep.subr.mxu0 0.0
      %2267 = vmatpush1.msra.mxu0 0.0
      %2268 = vmatprep.subr.mxu0 0.0
      %2269 = vmatpush1.msra.mxu0 0.0
      %2270 = vmatprep.subr.mxu0 0.0
      %2271 = vmatpush1.msra.mxu0 0.0
      %2272 = vmatprep.subr.mxu0 0.0
      %2273 = vmatpush1.msra.mxu0 0.0
      %2274 = vmatprep.subr.mxu0 0.0
      %2275 = vmatpush1.msra.mxu0 0.0
      %2276 = vmatprep.subr.mxu0 0.0
      %2277 = vmatpush1.msra.mxu0 0.0
      %2278 = vmatprep.subr.mxu0 0.0
      %2279 = vmatpush1.msra.mxu0 0.0
      %2280 = vmatprep.subr.mxu0 0.0
      %2281 = vmatpush1.msra.mxu0 0.0
      %2282 = vmatprep.subr.mxu0 0.0
      %2283 = vmatpush1.msra.mxu0 0.0
      %2284 = vmatprep.subr.mxu0 0.0
      %2285 = vmatpush1.msra.mxu0 0.0
      %2286 = vmatprep.subr.mxu0 0.0
      %2287 = vmatpush1.msra.mxu0 0.0
      %2288 = vmatprep.subr.mxu0 0.0
      %2289 = vmatpush1.msra.mxu0 0.0
      %2290 = vmatprep.subr.mxu0 0.0
      %2291 = vmatpush1.msra.mxu0 0.0
      %2292 = vmatprep.subr.mxu0 0.0
      %2293 = vmatpush1.msra.mxu0 0.0
      %2294 = vmatprep.subr.mxu0 0.0
      %2295 = vmatpush1.msra.mxu0 %v2262
      %2296 = vmatprep.subr.mxu0 0.0
      %2297 = vmatpush2.msra.mxu0 0.0
      %2298 = vmatprep.subr.mxu0 0.0
      %2299 = vmatpush2.msra.mxu0 0.0
      %2300 = vmatprep.subr.mxu0 0.0
      %2301 = vmatpush2.msra.mxu0 0.0
      %2302 = vmatprep.subr.mxu0 0.0
      %2303 = vmatpush2.msra.mxu0 0.0
      %2304 = vmatprep.subr.mxu0 0.0
      %2305 = vmatpush2.msra.mxu0 0.0
      %2306 = vmatprep.subr.mxu0 0.0
      %2307 = vmatpush2.msra.mxu0 0.0
      %2308 = vmatprep.subr.mxu0 0.0
      %2309 = vmatpush2.msra.mxu0 0.0
      %2310 = vmatprep.subr.mxu0 0.0
      %2311 = vmatpush2.msra.mxu0 0.0
      %2312 = vmatprep.subr.mxu0 0.0
      %2313 = vmatpush2.msra.mxu0 0.0
      %2314 = vmatprep.subr.mxu0 0.0
      %2315 = vmatpush2.msra.mxu0 0.0
      %2316 = vmatprep.subr.mxu0 0.0
      %2317 = vmatpush2.msra.mxu0 0.0
      %2318 = vmatprep.subr.mxu0 0.0
      %2319 = vmatpush2.msra.mxu0 0.0
      %2320 = vmatprep.subr.mxu0 0.0
      %2321 = vmatpush2.msra.mxu0 0.0
      %2322 = vmatprep.subr.mxu0 0.0
      %2323 = vmatpush2.msra.mxu0 0.0
      %2324 = vmatprep.subr.mxu0 0.0
      %2325 = vmatpush2.msra.mxu0 0.0
      %2326 = vmatprep.subr.mxu0 0.0
      %2327 = vmatpush2.msra.mxu0 0.0
      %2328 = vmatprep.mubr.f32.mxu0 0.0
      %2329 = vmatmul.mubr.f32.gmra.mxu0 %v2238
      %v2330 = vpop.f32.mrf.mxu0
      %v2331 = vadd.f32 %v2235, %v2330
      %v2332 = vpop.f32.mrf.mxu0
      %2333 = vmatprep.mubr.f32.mxu0 0.0
      %2334 = vmatmul.mubr.f32.gmra.mxu0 %v2241
      %v2335 = vpop.f32.mrf.mxu0
      %v2336 = vadd.f32 %v2235, %v2335
      %v2337 = vpop.f32.mrf.mxu0
      %2338 = vmatprep.mubr.f32.mxu0 0.0
      %2339 = vmatmul.mubr.f32.gmra.mxu0 %v2244
      %v2340 = vpop.f32.mrf.mxu0
      %v2341 = vadd.f32 %v2235, %v2340
      %v2342 = vpop.f32.mrf.mxu0
      %2343 = vmatprep.mubr.f32.mxu0 0.0
      %2344 = vmatmul.mubr.f32.gmra.mxu0 %v2247
      %v2345 = vpop.f32.mrf.mxu0
      %v2346 = vadd.f32 %v2235, %v2345
      %v2347 = vpop.f32.mrf.mxu0
      %2348 = vmatprep.mubr.f32.mxu0 0.0
      %2349 = vmatmul.mubr.f32.gmra.mxu0 %v2250
      %v2350 = vpop.f32.mrf.mxu0
      %v2351 = vadd.f32 %v2235, %v2350
      %v2352 = vpop.f32.mrf.mxu0
      %2353 = vmatprep.mubr.f32.mxu0 0.0
      %2354 = vmatmul.mubr.f32.gmra.mxu0 %v2253
      %v2355 = vpop.f32.mrf.mxu0
      %v2356 = vadd.f32 %v2235, %v2355
      %v2357 = vpop.f32.mrf.mxu0
      %2358 = vmatprep.mubr.f32.mxu0 0.0
      %2359 = vmatmul.mubr.f32.gmra.mxu0 %v2256
      %v2360 = vpop.f32.mrf.mxu0
      %v2361 = vadd.f32 %v2235, %v2360
      %v2362 = vpop.f32.mrf.mxu0
      %2363 = vmatprep.mubr.f32.mxu0 0.0
      %2364 = vmatmul.mubr.f32.gmra.mxu0 %v2259
      %v2365 = vpop.f32.mrf.mxu0
      %v2366 = vadd.f32 %v2235, %v2365
      %v2367 = vpop.f32.mrf.mxu0
      %2368 = vdwg.mxu0
      %v2369 = vmax.f32 %v2331, 0.0
      %v2370 = vmax.f32 %v2336, 0.0
      %v2371 = vmax.f32 %v2341, 0.0
      %v2372 = vmax.f32 %v2346, 0.0
      %v2373 = vmax.f32 %v2351, 0.0
      %v2374 = vmax.f32 %v2356, 0.0
      %v2375 = vmax.f32 %v2361, 0.0
      %v2376 = vmax.f32 %v2366, 0.0
      %s2377 = scalar_lea.vmem [#allocation2], 504
      %2378 = vst.msk [vmem:[%s2377 + $0x8] sm:$0xff] %vm380, %v2369
      %2379 = vst.msk [vmem:[%s2377 + $0x20] sm:$0xff] %vm380, %v2370
      %2380 = vst.msk [vmem:[%s2377 + $0x38] sm:$0xff] %vm380, %v2371
      %2381 = vst.msk [vmem:[%s2377 + $0x50] sm:$0xff] %vm380, %v2372
      %2382 = vst.msk [vmem:[%s2377 + $0x68] sm:$0xff] %vm380, %v2373
      %2383 = vst.msk [vmem:[%s2377 + $0x80] sm:$0xff] %vm380, %v2374
      %2384 = vst.msk [vmem:[%s2377 + $0x98] sm:$0xff] %vm380, %v2375
      %2385 = vst.msk [vmem:[%s2377 + $0xb0] sm:$0xff] %vm380, %v2376
      %v2386 = vld [vmem:[%s941] sm:$0xff]
      %v2387 = vld [vmem:[%s941 + $0x10] sm:$0xff]
      %v2388 = vld [vmem:[%s941 + $0x20] sm:$0xff]
      %v2389 = vld [vmem:[%s941 + $0x30] sm:$0xff]
      %v2390 = vld [vmem:[%s941 + $0x40] sm:$0xff]
      %v2391 = vld [vmem:[%s941 + $0x50] sm:$0xff]
      %v2392 = vld [vmem:[%s941 + $0x60] sm:$0xff]
      %v2393 = vld [vmem:[%s941 + $0x70] sm:$0xff]
      %v2394 = vld [vmem:[%s3] sm:$0xf]
      %v2395 = vld [vmem:[%s4] sm:$0x1]
      %v2397 = vlaneseq
      %v2398 = vshrl.u32 %v2397, 7
      %v2399 = vsub.s32 0, %v2398
      %v2400 = vrot.slane %v2395, %v2399
      %v2403 = vsel %vm380, %v2386, 0
      %v2406 = vsel %vm380, %v2387, 0
      %v2409 = vsel %vm380, %v2388, 0
      %v2412 = vsel %vm380, %v2389, 0
      %v2415 = vsel %vm380, %v2390, 0
      %v2418 = vsel %vm380, %v2391, 0
      %v2421 = vsel %vm380, %v2392, 0
      %v2424 = vsel %vm380, %v2393, 0
      %v2427 = vsel %vm405, %v2394, 0
      %2429 = vmatprep.subr.mxu0 0.0
      %2430 = vmatpush1.msra.mxu0 0.0
      %2431 = vmatprep.subr.mxu0 0.0
      %2432 = vmatpush1.msra.mxu0 0.0
      %2433 = vmatprep.subr.mxu0 0.0
      %2434 = vmatpush1.msra.mxu0 0.0
      %2435 = vmatprep.subr.mxu0 0.0
      %2436 = vmatpush1.msra.mxu0 0.0
      %2437 = vmatprep.subr.mxu0 0.0
      %2438 = vmatpush1.msra.mxu0 0.0
      %2439 = vmatprep.subr.mxu0 0.0
      %2440 = vmatpush1.msra.mxu0 0.0
      %2441 = vmatprep.subr.mxu0 0.0
      %2442 = vmatpush1.msra.mxu0 0.0
      %2443 = vmatprep.subr.mxu0 0.0
      %2444 = vmatpush1.msra.mxu0 0.0
      %2445 = vmatprep.subr.mxu0 0.0
      %2446 = vmatpush1.msra.mxu0 0.0
      %2447 = vmatprep.subr.mxu0 0.0
      %2448 = vmatpush1.msra.mxu0 0.0
      %2449 = vmatprep.subr.mxu0 0.0
      %2450 = vmatpush1.msra.mxu0 0.0
      %2451 = vmatprep.subr.mxu0 0.0
      %2452 = vmatpush1.msra.mxu0 0.0
      %2453 = vmatprep.subr.mxu0 0.0
      %2454 = vmatpush1.msra.mxu0 0.0
      %2455 = vmatprep.subr.mxu0 0.0
      %2456 = vmatpush1.msra.mxu0 0.0
      %2457 = vmatprep.subr.mxu0 0.0
      %2458 = vmatpush1.msra.mxu0 0.0
      %2459 = vmatprep.subr.mxu0 0.0
      %2460 = vmatpush1.msra.mxu0 %v2427
      %2461 = vmatprep.subr.mxu0 0.0
      %2462 = vmatpush2.msra.mxu0 0.0
      %2463 = vmatprep.subr.mxu0 0.0
      %2464 = vmatpush2.msra.mxu0 0.0
      %2465 = vmatprep.subr.mxu0 0.0
      %2466 = vmatpush2.msra.mxu0 0.0
      %2467 = vmatprep.subr.mxu0 0.0
      %2468 = vmatpush2.msra.mxu0 0.0
      %2469 = vmatprep.subr.mxu0 0.0
      %2470 = vmatpush2.msra.mxu0 0.0
      %2471 = vmatprep.subr.mxu0 0.0
      %2472 = vmatpush2.msra.mxu0 0.0
      %2473 = vmatprep.subr.mxu0 0.0
      %2474 = vmatpush2.msra.mxu0 0.0
      %2475 = vmatprep.subr.mxu0 0.0
      %2476 = vmatpush2.msra.mxu0 0.0
      %2477 = vmatprep.subr.mxu0 0.0
      %2478 = vmatpush2.msra.mxu0 0.0
      %2479 = vmatprep.subr.mxu0 0.0
      %2480 = vmatpush2.msra.mxu0 0.0
      %2481 = vmatprep.subr.mxu0 0.0
      %2482 = vmatpush2.msra.mxu0 0.0
      %2483 = vmatprep.subr.mxu0 0.0
      %2484 = vmatpush2.msra.mxu0 0.0
      %2485 = vmatprep.subr.mxu0 0.0
      %2486 = vmatpush2.msra.mxu0 0.0
      %2487 = vmatprep.subr.mxu0 0.0
      %2488 = vmatpush2.msra.mxu0 0.0
      %2489 = vmatprep.subr.mxu0 0.0
      %2490 = vmatpush2.msra.mxu0 0.0
      %2491 = vmatprep.subr.mxu0 0.0
      %2492 = vmatpush2.msra.mxu0 0.0
      %2493 = vmatprep.mubr.f32.mxu0 0.0
      %2494 = vmatmul.mubr.f32.gmra.mxu0 %v2403
      %v2495 = vpop.f32.mrf.mxu0
      %v2496 = vadd.f32 %v2400, %v2495
      %v2497 = vpop.f32.mrf.mxu0
      %2498 = vmatprep.mubr.f32.mxu0 0.0
      %2499 = vmatmul.mubr.f32.gmra.mxu0 %v2406
      %v2500 = vpop.f32.mrf.mxu0
      %v2501 = vadd.f32 %v2400, %v2500
      %v2502 = vpop.f32.mrf.mxu0
      %2503 = vmatprep.mubr.f32.mxu0 0.0
      %2504 = vmatmul.mubr.f32.gmra.mxu0 %v2409
      %v2505 = vpop.f32.mrf.mxu0
      %v2506 = vadd.f32 %v2400, %v2505
      %v2507 = vpop.f32.mrf.mxu0
      %2508 = vmatprep.mubr.f32.mxu0 0.0
      %2509 = vmatmul.mubr.f32.gmra.mxu0 %v2412
      %v2510 = vpop.f32.mrf.mxu0
      %v2511 = vadd.f32 %v2400, %v2510
      %v2512 = vpop.f32.mrf.mxu0
      %2513 = vmatprep.mubr.f32.mxu0 0.0
      %2514 = vmatmul.mubr.f32.gmra.mxu0 %v2415
      %v2515 = vpop.f32.mrf.mxu0
      %v2516 = vadd.f32 %v2400, %v2515
      %v2517 = vpop.f32.mrf.mxu0
      %2518 = vmatprep.mubr.f32.mxu0 0.0
      %2519 = vmatmul.mubr.f32.gmra.mxu0 %v2418
      %v2520 = vpop.f32.mrf.mxu0
      %v2521 = vadd.f32 %v2400, %v2520
      %v2522 = vpop.f32.mrf.mxu0
      %2523 = vmatprep.mubr.f32.mxu0 0.0
      %2524 = vmatmul.mubr.f32.gmra.mxu0 %v2421
      %v2525 = vpop.f32.mrf.mxu0
      %v2526 = vadd.f32 %v2400, %v2525
      %v2527 = vpop.f32.mrf.mxu0
      %2528 = vmatprep.mubr.f32.mxu0 0.0
      %2529 = vmatmul.mubr.f32.gmra.mxu0 %v2424
      %v2530 = vpop.f32.mrf.mxu0
      %v2531 = vadd.f32 %v2400, %v2530
      %v2532 = vpop.f32.mrf.mxu0
      %2533 = vdwg.mxu0
      %v2534 = vmax.f32 %v2496, 0.0
      %v2535 = vmax.f32 %v2501, 0.0
      %v2536 = vmax.f32 %v2506, 0.0
      %v2537 = vmax.f32 %v2511, 0.0
      %v2538 = vmax.f32 %v2516, 0.0
      %v2539 = vmax.f32 %v2521, 0.0
      %v2540 = vmax.f32 %v2526, 0.0
      %v2541 = vmax.f32 %v2531, 0.0
      %s2542 = scalar_lea.vmem [#allocation2], 744
      %2543 = vst.msk [vmem:[%s2542 + $0x8] sm:$0xff] %vm380, %v2534
      %2544 = vst.msk [vmem:[%s2542 + $0x20] sm:$0xff] %vm380, %v2535
      %2545 = vst.msk [vmem:[%s2542 + $0x38] sm:$0xff] %vm380, %v2536
      %2546 = vst.msk [vmem:[%s2542 + $0x50] sm:$0xff] %vm380, %v2537
      %2547 = vst.msk [vmem:[%s2542 + $0x68] sm:$0xff] %vm380, %v2538
      %2548 = vst.msk [vmem:[%s2542 + $0x80] sm:$0xff] %vm380, %v2539
      %2549 = vst.msk [vmem:[%s2542 + $0x98] sm:$0xff] %vm380, %v2540
      %2550 = vst.msk [vmem:[%s2542 + $0xb0] sm:$0xff] %vm380, %v2541
      %vm2551 = vcmask 48128
      %2552 = vst.msk [vmem:[#allocation3] sm:$0xff] %vm2551, 0.0
      %vm2553 = vcmask 40960
      %2554 = vst.msk [vmem:[#allocation3 + $0x8] sm:$0x1] %vm2553, 0.0
      %2555 = vst.msk [vmem:[#allocation3 + $0x10] sm:$0xff] %vm2551, 0.0
      %2556 = vst.msk [vmem:[#allocation3 + $0x18] sm:$0x1] %vm2553, 0.0
      %2557 = vst.msk [vmem:[#allocation3 + $0x20] sm:$0xff] %vm2551, 0.0
      %2558 = vst.msk [vmem:[#allocation3 + $0x28] sm:$0x1] %vm2553, 0.0
      %2559 = vst.msk [vmem:[#allocation3 + $0x30] sm:$0xff] %vm2551, 0.0
      %2560 = vst.msk [vmem:[#allocation3 + $0x38] sm:$0x1] %vm2553, 0.0
      %2561 = vst.msk [vmem:[#allocation3 + $0x40] sm:$0xff] %vm2551, 0.0
      %2562 = vst.msk [vmem:[#allocation3 + $0x48] sm:$0x1] %vm2553, 0.0
      %2563 = vst.msk [vmem:[#allocation3 + $0x50] sm:$0xff] %vm2551, 0.0
      %2564 = vst.msk [vmem:[#allocation3 + $0x58] sm:$0x1] %vm2553, 0.0
      %2565 = vst.msk [vmem:[#allocation3 + $0x60] sm:$0xff] %vm2551, 0.0
      %2566 = vst.msk [vmem:[#allocation3 + $0x68] sm:$0x1] %vm2553, 0.0
      %2567 = vst.msk [vmem:[#allocation3 + $0x70] sm:$0xff] %vm2551, 0.0
      %2568 = vst.msk [vmem:[#allocation3 + $0x78] sm:$0x1] %vm2553, 0.0
      %2569 = vst.msk [vmem:[#allocation3 + $0x80] sm:$0xff] %vm2551, 0.0
      %2570 = vst.msk [vmem:[#allocation3 + $0x88] sm:$0x1] %vm2553, 0.0
      %2571 = vst.msk [vmem:[#allocation3 + $0x90] sm:$0xff] %vm2551, 0.0
      %2572 = vst.msk [vmem:[#allocation3 + $0x98] sm:$0x1] %vm2553, 0.0
      %2573 = vst.msk [vmem:[#allocation3 + $0xa0] sm:$0xff] %vm2551, 0.0
      %2574 = vst.msk [vmem:[#allocation3 + $0xa8] sm:$0x1] %vm2553, 0.0
      %2575 = vst.msk [vmem:[#allocation3 + $0xb0] sm:$0xff] %vm2551, 0.0
      %2576 = vst.msk [vmem:[#allocation3 + $0xb8] sm:$0x1] %vm2553, 0.0
      %2577 = vst.msk [vmem:[#allocation3 + $0xc0] sm:$0xff] %vm2551, 0.0
      %2578 = vst.msk [vmem:[#allocation3 + $0xc8] sm:$0x1] %vm2553, 0.0
      %2579 = vst.msk [vmem:[#allocation3 + $0xd0] sm:$0xff] %vm2551, 0.0
      %2580 = vst.msk [vmem:[#allocation3 + $0xd8] sm:$0x1] %vm2553, 0.0
      %2581 = vst.msk [vmem:[#allocation3 + $0xe0] sm:$0xff] %vm2551, 0.0
      %2582 = vst.msk [vmem:[#allocation3 + $0xe8] sm:$0x1] %vm2553, 0.0
      %2583 = vst.msk [vmem:[#allocation3 + $0xf0] sm:$0xff] %vm2551, 0.0
      %2584 = vst.msk [vmem:[#allocation3 + $0xf8] sm:$0x1] %vm2553, 0.0
      %2585 = vst.msk [vmem:[#allocation3 + $0x100] sm:$0xff] %vm2551, 0.0
      %2586 = vst.msk [vmem:[#allocation3 + $0x108] sm:$0x1] %vm2553, 0.0
      %2587 = vst.msk [vmem:[#allocation3 + $0x110] sm:$0xff] %vm2551, 0.0
      %2588 = vst.msk [vmem:[#allocation3 + $0x118] sm:$0x1] %vm2553, 0.0
      %2589 = vst.msk [vmem:[#allocation3 + $0x120] sm:$0xff] %vm2551, 0.0
      %2590 = vst.msk [vmem:[#allocation3 + $0x128] sm:$0x1] %vm2553, 0.0
      %2591 = vst.msk [vmem:[#allocation3 + $0x130] sm:$0xff] %vm2551, 0.0
      %2592 = vst.msk [vmem:[#allocation3 + $0x138] sm:$0x1] %vm2553, 0.0
      %2593 = vst.msk [vmem:[#allocation3 + $0x140] sm:$0xff] %vm2551, 0.0
      %2594 = vst.msk [vmem:[#allocation3 + $0x148] sm:$0x1] %vm2553, 0.0
      %2595 = vst.msk [vmem:[#allocation3 + $0x150] sm:$0xff] %vm2551, 0.0
      %2596 = vst.msk [vmem:[#allocation3 + $0x158] sm:$0x1] %vm2553, 0.0
      %2597 = vst.msk [vmem:[#allocation3 + $0x160] sm:$0xff] %vm2551, 0.0
      %2598 = vst.msk [vmem:[#allocation3 + $0x168] sm:$0x1] %vm2553, 0.0
      %2599 = vst.msk [vmem:[#allocation3 + $0x170] sm:$0xff] %vm2551, 0.0
      %2600 = vst.msk [vmem:[#allocation3 + $0x178] sm:$0x1] %vm2553, 0.0
      %2601 = vst.msk [vmem:[#allocation3 + $0x180] sm:$0xff] %vm2551, 0.0
      %2602 = vst.msk [vmem:[#allocation3 + $0x188] sm:$0x1] %vm2553, 0.0
      %2603 = vst.msk [vmem:[#allocation3 + $0x190] sm:$0xff] %vm2551, 0.0
      %2604 = vst.msk [vmem:[#allocation3 + $0x198] sm:$0x1] %vm2553, 0.0
      %2605 = vst.msk [vmem:[#allocation3 + $0x1a0] sm:$0xff] %vm2551, 0.0
      %2606 = vst.msk [vmem:[#allocation3 + $0x1a8] sm:$0x1] %vm2553, 0.0
      %2607 = vst.msk [vmem:[#allocation3 + $0x1b0] sm:$0xff] %vm2551, 0.0
      %2608 = vst.msk [vmem:[#allocation3 + $0x1b8] sm:$0x1] %vm2553, 0.0
      %2609 = vst.msk [vmem:[#allocation3 + $0x1c0] sm:$0xff] %vm2551, 0.0
      %2610 = vst.msk [vmem:[#allocation3 + $0x1c8] sm:$0x1] %vm2553, 0.0
      %2611 = vst.msk [vmem:[#allocation3 + $0x1d0] sm:$0xff] %vm2551, 0.0
      %2612 = vst.msk [vmem:[#allocation3 + $0x1d8] sm:$0x1] %vm2553, 0.0
      %2613 = vst.msk [vmem:[#allocation3 + $0x1e0] sm:$0xff] %vm2551, 0.0
      %2614 = vst.msk [vmem:[#allocation3 + $0x1e8] sm:$0x1] %vm2553, 0.0
      %2615 = vst.msk [vmem:[#allocation3 + $0x1f0] sm:$0xff] %vm2551, 0.0
      %2616 = vst.msk [vmem:[#allocation3 + $0x1f8] sm:$0x1] %vm2553, 0.0
      %2617 = vst.msk [vmem:[#allocation3 + $0x200] sm:$0xff] %vm2551, 0.0
      %2618 = vst.msk [vmem:[#allocation3 + $0x208] sm:$0x1] %vm2553, 0.0
      %2619 = vst.msk [vmem:[#allocation3 + $0x210] sm:$0xff] %vm2551, 0.0
      %2620 = vst.msk [vmem:[#allocation3 + $0x218] sm:$0x1] %vm2553, 0.0
      %2621 = vst.msk [vmem:[#allocation3 + $0x220] sm:$0xff] %vm2551, 0.0
      %2622 = vst.msk [vmem:[#allocation3 + $0x228] sm:$0x1] %vm2553, 0.0
      %2623 = vst.msk [vmem:[#allocation3 + $0x230] sm:$0xff] %vm2551, 0.0
      %2624 = vst.msk [vmem:[#allocation3 + $0x238] sm:$0x1] %vm2553, 0.0
      %s2625 = scalar_lea.vmem [#allocation2], 720
      %v2626 = vld [vmem:[%s2625 + $0x7] sm:$0xff]
      %v2627 = vld [vmem:[%s2625 + $0x1f] sm:$0xff]
      %v2628 = vld [vmem:[%s2625 + $0x37] sm:$0xff]
      %v2629 = vld [vmem:[%s2625 + $0x4f] sm:$0xff]
      %v2630 = vld [vmem:[%s2625 + $0x67] sm:$0xff]
      %v2631 = vld [vmem:[%s2625 + $0x7f] sm:$0xff]
      %v2632 = vld [vmem:[%s2625 + $0x97] sm:$0xff]
      %v2633 = vld [vmem:[%s2625 + $0xaf] sm:$0xff]
      %v2634 = vld [vmem:[%s5] sm:$0xf]
      %s2635 = scalar_lea.vmem [#allocation2], 480
      %v2636 = vld [vmem:[%s2635 + $0x8] sm:$0xff]
      %v2637 = vld [vmem:[%s2635 + $0x20] sm:$0xff]
      %v2638 = vld [vmem:[%s2635 + $0x38] sm:$0xff]
      %v2639 = vld [vmem:[%s2635 + $0x50] sm:$0xff]
      %v2640 = vld [vmem:[%s2635 + $0x68] sm:$0xff]
      %v2641 = vld [vmem:[%s2635 + $0x80] sm:$0xff]
      %v2642 = vld [vmem:[%s2635 + $0x98] sm:$0xff]
      %v2643 = vld [vmem:[%s2635 + $0xb0] sm:$0xff]
      %s2644 = scalar_lea.vmem %s5, 4
      %v2645 = vld [vmem:[%s2644] sm:$0xf]
      %v2647 = vsel %vm380, %v2636, 0
      %v2650 = vsel %vm380, %v2637, 0
      %v2653 = vsel %vm380, %v2638, 0
      %v2656 = vsel %vm380, %v2639, 0
      %v2659 = vsel %vm380, %v2640, 0
      %v2662 = vsel %vm380, %v2641, 0
      %v2665 = vsel %vm380, %v2642, 0
      %v2668 = vsel %vm380, %v2643, 0
      %v2671 = vsel %vm405, %v2645, 0
      %2673 = vmatprep.subr.mxu0 0.0
      %2674 = vmatpush1.msra.mxu0 0.0
      %2675 = vmatprep.subr.mxu0 0.0
      %2676 = vmatpush1.msra.mxu0 0.0
      %2677 = vmatprep.subr.mxu0 0.0
      %2678 = vmatpush1.msra.mxu0 0.0
      %2679 = vmatprep.subr.mxu0 0.0
      %2680 = vmatpush1.msra.mxu0 0.0
      %2681 = vmatprep.subr.mxu0 0.0
      %2682 = vmatpush1.msra.mxu0 0.0
      %2683 = vmatprep.subr.mxu0 0.0
      %2684 = vmatpush1.msra.mxu0 0.0
      %2685 = vmatprep.subr.mxu0 0.0
      %2686 = vmatpush1.msra.mxu0 0.0
      %2687 = vmatprep.subr.mxu0 0.0
      %2688 = vmatpush1.msra.mxu0 0.0
      %2689 = vmatprep.subr.mxu0 0.0
      %2690 = vmatpush1.msra.mxu0 0.0
      %2691 = vmatprep.subr.mxu0 0.0
      %2692 = vmatpush1.msra.mxu0 0.0
      %2693 = vmatprep.subr.mxu0 0.0
      %2694 = vmatpush1.msra.mxu0 0.0
      %2695 = vmatprep.subr.mxu0 0.0
      %2696 = vmatpush1.msra.mxu0 0.0
      %2697 = vmatprep.subr.mxu0 0.0
      %2698 = vmatpush1.msra.mxu0 0.0
      %2699 = vmatprep.subr.mxu0 0.0
      %2700 = vmatpush1.msra.mxu0 0.0
      %2701 = vmatprep.subr.mxu0 0.0
      %2702 = vmatpush1.msra.mxu0 0.0
      %2703 = vmatprep.subr.mxu0 0.0
      %2704 = vmatpush1.msra.mxu0 %v2671
      %2705 = vmatprep.subr.mxu0 0.0
      %2706 = vmatpush2.msra.mxu0 0.0
      %2707 = vmatprep.subr.mxu0 0.0
      %2708 = vmatpush2.msra.mxu0 0.0
      %2709 = vmatprep.subr.mxu0 0.0
      %2710 = vmatpush2.msra.mxu0 0.0
      %2711 = vmatprep.subr.mxu0 0.0
      %2712 = vmatpush2.msra.mxu0 0.0
      %2713 = vmatprep.subr.mxu0 0.0
      %2714 = vmatpush2.msra.mxu0 0.0
      %2715 = vmatprep.subr.mxu0 0.0
      %2716 = vmatpush2.msra.mxu0 0.0
      %2717 = vmatprep.subr.mxu0 0.0
      %2718 = vmatpush2.msra.mxu0 0.0
      %2719 = vmatprep.subr.mxu0 0.0
      %2720 = vmatpush2.msra.mxu0 0.0
      %2721 = vmatprep.subr.mxu0 0.0
      %2722 = vmatpush2.msra.mxu0 0.0
      %2723 = vmatprep.subr.mxu0 0.0
      %2724 = vmatpush2.msra.mxu0 0.0
      %2725 = vmatprep.subr.mxu0 0.0
      %2726 = vmatpush2.msra.mxu0 0.0
      %2727 = vmatprep.subr.mxu0 0.0
      %2728 = vmatpush2.msra.mxu0 0.0
      %2729 = vmatprep.subr.mxu0 0.0
      %2730 = vmatpush2.msra.mxu0 0.0
      %2731 = vmatprep.subr.mxu0 0.0
      %2732 = vmatpush2.msra.mxu0 0.0
      %2733 = vmatprep.subr.mxu0 0.0
      %2734 = vmatpush2.msra.mxu0 0.0
      %2735 = vmatprep.subr.mxu0 0.0
      %2736 = vmatpush2.msra.mxu0 0.0
      %2737 = vmatprep.mubr.f32.mxu0 0.0
      %2738 = vmatmul.mubr.f32.gmra.mxu0 %v2647
      %v2739 = vpop.f32.mrf.mxu0
      %v2740 = vadd.f32 0.0, %v2739
      %v2741 = vpop.f32.mrf.mxu0
      %2742 = vmatprep.mubr.f32.mxu0 0.0
      %2743 = vmatmul.mubr.f32.gmra.mxu0 %v2650
      %v2744 = vpop.f32.mrf.mxu0
      %v2745 = vadd.f32 0.0, %v2744
      %v2746 = vpop.f32.mrf.mxu0
      %2747 = vmatprep.mubr.f32.mxu0 0.0
      %2748 = vmatmul.mubr.f32.gmra.mxu0 %v2653
      %v2749 = vpop.f32.mrf.mxu0
      %v2750 = vadd.f32 0.0, %v2749
      %v2751 = vpop.f32.mrf.mxu0
      %2752 = vmatprep.mubr.f32.mxu0 0.0
      %2753 = vmatmul.mubr.f32.gmra.mxu0 %v2656
      %v2754 = vpop.f32.mrf.mxu0
      %v2755 = vadd.f32 0.0, %v2754
      %v2756 = vpop.f32.mrf.mxu0
      %2757 = vmatprep.mubr.f32.mxu0 0.0
      %2758 = vmatmul.mubr.f32.gmra.mxu0 %v2659
      %v2759 = vpop.f32.mrf.mxu0
      %v2760 = vadd.f32 0.0, %v2759
      %v2761 = vpop.f32.mrf.mxu0
      %2762 = vmatprep.mubr.f32.mxu0 0.0
      %2763 = vmatmul.mubr.f32.gmra.mxu0 %v2662
      %v2764 = vpop.f32.mrf.mxu0
      %v2765 = vadd.f32 0.0, %v2764
      %v2766 = vpop.f32.mrf.mxu0
      %2767 = vmatprep.mubr.f32.mxu0 0.0
      %2768 = vmatmul.mubr.f32.gmra.mxu0 %v2665
      %v2769 = vpop.f32.mrf.mxu0
      %v2770 = vadd.f32 0.0, %v2769
      %v2771 = vpop.f32.mrf.mxu0
      %2772 = vmatprep.mubr.f32.mxu0 0.0
      %2773 = vmatmul.mubr.f32.gmra.mxu0 %v2668
      %v2774 = vpop.f32.mrf.mxu0
      %v2775 = vadd.f32 0.0, %v2774
      %v2776 = vpop.f32.mrf.mxu0
      %2777 = vdwg.mxu0
      %v2779 = vsel %vm380, %v2626, 0
      %v2782 = vsel %vm380, %v2627, 0
      %v2785 = vsel %vm380, %v2628, 0
      %v2788 = vsel %vm380, %v2629, 0
      %v2791 = vsel %vm380, %v2630, 0
      %v2794 = vsel %vm380, %v2631, 0
      %v2797 = vsel %vm380, %v2632, 0
      %v2800 = vsel %vm380, %v2633, 0
      %v2803 = vsel %vm405, %v2634, 0
      %2805 = vmatprep.subr.mxu0 0.0
      %2806 = vmatpush1.msra.mxu0 0.0
      %2807 = vmatprep.subr.mxu0 0.0
      %2808 = vmatpush1.msra.mxu0 0.0
      %2809 = vmatprep.subr.mxu0 0.0
      %2810 = vmatpush1.msra.mxu0 0.0
      %2811 = vmatprep.subr.mxu0 0.0
      %2812 = vmatpush1.msra.mxu0 0.0
      %2813 = vmatprep.subr.mxu0 0.0
      %2814 = vmatpush1.msra.mxu0 0.0
      %2815 = vmatprep.subr.mxu0 0.0
      %2816 = vmatpush1.msra.mxu0 0.0
      %2817 = vmatprep.subr.mxu0 0.0
      %2818 = vmatpush1.msra.mxu0 0.0
      %2819 = vmatprep.subr.mxu0 0.0
      %2820 = vmatpush1.msra.mxu0 0.0
      %2821 = vmatprep.subr.mxu0 0.0
      %2822 = vmatpush1.msra.mxu0 0.0
      %2823 = vmatprep.subr.mxu0 0.0
      %2824 = vmatpush1.msra.mxu0 0.0
      %2825 = vmatprep.subr.mxu0 0.0
      %2826 = vmatpush1.msra.mxu0 0.0
      %2827 = vmatprep.subr.mxu0 0.0
      %2828 = vmatpush1.msra.mxu0 0.0
      %2829 = vmatprep.subr.mxu0 0.0
      %2830 = vmatpush1.msra.mxu0 0.0
      %2831 = vmatprep.subr.mxu0 0.0
      %2832 = vmatpush1.msra.mxu0 0.0
      %2833 = vmatprep.subr.mxu0 0.0
      %2834 = vmatpush1.msra.mxu0 0.0
      %2835 = vmatprep.subr.mxu0 0.0
      %2836 = vmatpush1.msra.mxu0 %v2803
      %2837 = vmatprep.subr.mxu0 0.0
      %2838 = vmatpush2.msra.mxu0 0.0
      %2839 = vmatprep.subr.mxu0 0.0
      %2840 = vmatpush2.msra.mxu0 0.0
      %2841 = vmatprep.subr.mxu0 0.0
      %2842 = vmatpush2.msra.mxu0 0.0
      %2843 = vmatprep.subr.mxu0 0.0
      %2844 = vmatpush2.msra.mxu0 0.0
      %2845 = vmatprep.subr.mxu0 0.0
      %2846 = vmatpush2.msra.mxu0 0.0
      %2847 = vmatprep.subr.mxu0 0.0
      %2848 = vmatpush2.msra.mxu0 0.0
      %2849 = vmatprep.subr.mxu0 0.0
      %2850 = vmatpush2.msra.mxu0 0.0
      %2851 = vmatprep.subr.mxu0 0.0
      %2852 = vmatpush2.msra.mxu0 0.0
      %2853 = vmatprep.subr.mxu0 0.0
      %2854 = vmatpush2.msra.mxu0 0.0
      %2855 = vmatprep.subr.mxu0 0.0
      %2856 = vmatpush2.msra.mxu0 0.0
      %2857 = vmatprep.subr.mxu0 0.0
      %2858 = vmatpush2.msra.mxu0 0.0
      %2859 = vmatprep.subr.mxu0 0.0
      %2860 = vmatpush2.msra.mxu0 0.0
      %2861 = vmatprep.subr.mxu0 0.0
      %2862 = vmatpush2.msra.mxu0 0.0
      %2863 = vmatprep.subr.mxu0 0.0
      %2864 = vmatpush2.msra.mxu0 0.0
      %2865 = vmatprep.subr.mxu0 0.0
      %2866 = vmatpush2.msra.mxu0 0.0
      %2867 = vmatprep.subr.mxu0 0.0
      %2868 = vmatpush2.msra.mxu0 0.0
      %2869 = vmatprep.mubr.f32.mxu0 0.0
      %2870 = vmatmul.mubr.f32.gmra.mxu0 %v2779
      %v2871 = vpop.f32.mrf.mxu0
      %v2872 = vadd.f32 %v2740, %v2871
      %v2873 = vpop.f32.mrf.mxu0
      %2874 = vmatprep.mubr.f32.mxu0 0.0
      %2875 = vmatmul.mubr.f32.gmra.mxu0 %v2782
      %v2876 = vpop.f32.mrf.mxu0
      %v2877 = vadd.f32 %v2745, %v2876
      %v2878 = vpop.f32.mrf.mxu0
      %2879 = vmatprep.mubr.f32.mxu0 0.0
      %2880 = vmatmul.mubr.f32.gmra.mxu0 %v2785
      %v2881 = vpop.f32.mrf.mxu0
      %v2882 = vadd.f32 %v2750, %v2881
      %v2883 = vpop.f32.mrf.mxu0
      %2884 = vmatprep.mubr.f32.mxu0 0.0
      %2885 = vmatmul.mubr.f32.gmra.mxu0 %v2788
      %v2886 = vpop.f32.mrf.mxu0
      %v2887 = vadd.f32 %v2755, %v2886
      %v2888 = vpop.f32.mrf.mxu0
      %2889 = vmatprep.mubr.f32.mxu0 0.0
      %2890 = vmatmul.mubr.f32.gmra.mxu0 %v2791
      %v2891 = vpop.f32.mrf.mxu0
      %v2892 = vadd.f32 %v2760, %v2891
      %v2893 = vpop.f32.mrf.mxu0
      %2894 = vmatprep.mubr.f32.mxu0 0.0
      %2895 = vmatmul.mubr.f32.gmra.mxu0 %v2794
      %v2896 = vpop.f32.mrf.mxu0
      %v2897 = vadd.f32 %v2765, %v2896
      %v2898 = vpop.f32.mrf.mxu0
      %2899 = vmatprep.mubr.f32.mxu0 0.0
      %2900 = vmatmul.mubr.f32.gmra.mxu0 %v2797
      %v2901 = vpop.f32.mrf.mxu0
      %v2902 = vadd.f32 %v2770, %v2901
      %v2903 = vpop.f32.mrf.mxu0
      %2904 = vmatprep.mubr.f32.mxu0 0.0
      %2905 = vmatmul.mubr.f32.gmra.mxu0 %v2800
      %v2906 = vpop.f32.mrf.mxu0
      %v2907 = vadd.f32 %v2775, %v2906
      %v2908 = vpop.f32.mrf.mxu0
      %2909 = vdwg.mxu0
      %v2910 = vld [vmem:[%s2625 + $0x8] sm:$0xff]
      %v2911 = vld [vmem:[%s2625 + $0x20] sm:$0xff]
      %v2912 = vld [vmem:[%s2625 + $0x38] sm:$0xff]
      %v2913 = vld [vmem:[%s2625 + $0x50] sm:$0xff]
      %v2914 = vld [vmem:[%s2625 + $0x68] sm:$0xff]
      %v2915 = vld [vmem:[%s2625 + $0x80] sm:$0xff]
      %v2916 = vld [vmem:[%s2625 + $0x98] sm:$0xff]
      %v2917 = vld [vmem:[%s2625 + $0xb0] sm:$0xff]
      %s2918 = scalar_lea.vmem %s5, 8
      %v2919 = vld [vmem:[%s2918] sm:$0xf]
      %v2921 = vsel %vm380, %v2910, 0
      %v2924 = vsel %vm380, %v2911, 0
      %v2927 = vsel %vm380, %v2912, 0
      %v2930 = vsel %vm380, %v2913, 0
      %v2933 = vsel %vm380, %v2914, 0
      %v2936 = vsel %vm380, %v2915, 0
      %v2939 = vsel %vm380, %v2916, 0
      %v2942 = vsel %vm380, %v2917, 0
      %v2945 = vsel %vm405, %v2919, 0
      %2947 = vmatprep.subr.mxu0 0.0
      %2948 = vmatpush1.msra.mxu0 0.0
      %2949 = vmatprep.subr.mxu0 0.0
      %2950 = vmatpush1.msra.mxu0 0.0
      %2951 = vmatprep.subr.mxu0 0.0
      %2952 = vmatpush1.msra.mxu0 0.0
      %2953 = vmatprep.subr.mxu0 0.0
      %2954 = vmatpush1.msra.mxu0 0.0
      %2955 = vmatprep.subr.mxu0 0.0
      %2956 = vmatpush1.msra.mxu0 0.0
      %2957 = vmatprep.subr.mxu0 0.0
      %2958 = vmatpush1.msra.mxu0 0.0
      %2959 = vmatprep.subr.mxu0 0.0
      %2960 = vmatpush1.msra.mxu0 0.0
      %2961 = vmatprep.subr.mxu0 0.0
      %2962 = vmatpush1.msra.mxu0 0.0
      %2963 = vmatprep.subr.mxu0 0.0
      %2964 = vmatpush1.msra.mxu0 0.0
      %2965 = vmatprep.subr.mxu0 0.0
      %2966 = vmatpush1.msra.mxu0 0.0
      %2967 = vmatprep.subr.mxu0 0.0
      %2968 = vmatpush1.msra.mxu0 0.0
      %2969 = vmatprep.subr.mxu0 0.0
      %2970 = vmatpush1.msra.mxu0 0.0
      %2971 = vmatprep.subr.mxu0 0.0
      %2972 = vmatpush1.msra.mxu0 0.0
      %2973 = vmatprep.subr.mxu0 0.0
      %2974 = vmatpush1.msra.mxu0 0.0
      %2975 = vmatprep.subr.mxu0 0.0
      %2976 = vmatpush1.msra.mxu0 0.0
      %2977 = vmatprep.subr.mxu0 0.0
      %2978 = vmatpush1.msra.mxu0 %v2945
      %2979 = vmatprep.subr.mxu0 0.0
      %2980 = vmatpush2.msra.mxu0 0.0
      %2981 = vmatprep.subr.mxu0 0.0
      %2982 = vmatpush2.msra.mxu0 0.0
      %2983 = vmatprep.subr.mxu0 0.0
      %2984 = vmatpush2.msra.mxu0 0.0
      %2985 = vmatprep.subr.mxu0 0.0
      %2986 = vmatpush2.msra.mxu0 0.0
      %2987 = vmatprep.subr.mxu0 0.0
      %2988 = vmatpush2.msra.mxu0 0.0
      %2989 = vmatprep.subr.mxu0 0.0
      %2990 = vmatpush2.msra.mxu0 0.0
      %2991 = vmatprep.subr.mxu0 0.0
      %2992 = vmatpush2.msra.mxu0 0.0
      %2993 = vmatprep.subr.mxu0 0.0
      %2994 = vmatpush2.msra.mxu0 0.0
      %2995 = vmatprep.subr.mxu0 0.0
      %2996 = vmatpush2.msra.mxu0 0.0
      %2997 = vmatprep.subr.mxu0 0.0
      %2998 = vmatpush2.msra.mxu0 0.0
      %2999 = vmatprep.subr.mxu0 0.0
      %3000 = vmatpush2.msra.mxu0 0.0
      %3001 = vmatprep.subr.mxu0 0.0
      %3002 = vmatpush2.msra.mxu0 0.0
      %3003 = vmatprep.subr.mxu0 0.0
      %3004 = vmatpush2.msra.mxu0 0.0
      %3005 = vmatprep.subr.mxu0 0.0
      %3006 = vmatpush2.msra.mxu0 0.0
      %3007 = vmatprep.subr.mxu0 0.0
      %3008 = vmatpush2.msra.mxu0 0.0
      %3009 = vmatprep.subr.mxu0 0.0
      %3010 = vmatpush2.msra.mxu0 0.0
      %3011 = vmatprep.mubr.f32.mxu0 0.0
      %3012 = vmatmul.mubr.f32.gmra.mxu0 %v2921
      %v3013 = vpop.f32.mrf.mxu0
      %v3014 = vadd.f32 0.0, %v3013
      %v3015 = vpop.f32.mrf.mxu0
      %3016 = vmatprep.mubr.f32.mxu0 0.0
      %3017 = vmatmul.mubr.f32.gmra.mxu0 %v2924
      %v3018 = vpop.f32.mrf.mxu0
      %v3019 = vadd.f32 0.0, %v3018
      %v3020 = vpop.f32.mrf.mxu0
      %3021 = vmatprep.mubr.f32.mxu0 0.0
      %3022 = vmatmul.mubr.f32.gmra.mxu0 %v2927
      %v3023 = vpop.f32.mrf.mxu0
      %v3024 = vadd.f32 0.0, %v3023
      %v3025 = vpop.f32.mrf.mxu0
      %3026 = vmatprep.mubr.f32.mxu0 0.0
      %3027 = vmatmul.mubr.f32.gmra.mxu0 %v2930
      %v3028 = vpop.f32.mrf.mxu0
      %v3029 = vadd.f32 0.0, %v3028
      %v3030 = vpop.f32.mrf.mxu0
      %3031 = vmatprep.mubr.f32.mxu0 0.0
      %3032 = vmatmul.mubr.f32.gmra.mxu0 %v2933
      %v3033 = vpop.f32.mrf.mxu0
      %v3034 = vadd.f32 0.0, %v3033
      %v3035 = vpop.f32.mrf.mxu0
      %3036 = vmatprep.mubr.f32.mxu0 0.0
      %3037 = vmatmul.mubr.f32.gmra.mxu0 %v2936
      %v3038 = vpop.f32.mrf.mxu0
      %v3039 = vadd.f32 0.0, %v3038
      %v3040 = vpop.f32.mrf.mxu0
      %3041 = vmatprep.mubr.f32.mxu0 0.0
      %3042 = vmatmul.mubr.f32.gmra.mxu0 %v2939
      %v3043 = vpop.f32.mrf.mxu0
      %v3044 = vadd.f32 0.0, %v3043
      %v3045 = vpop.f32.mrf.mxu0
      %3046 = vmatprep.mubr.f32.mxu0 0.0
      %3047 = vmatmul.mubr.f32.gmra.mxu0 %v2942
      %v3048 = vpop.f32.mrf.mxu0
      %v3049 = vadd.f32 0.0, %v3048
      %v3050 = vpop.f32.mrf.mxu0
      %3051 = vdwg.mxu0
      %v3052 = vadd.f32 %v2872, %v3014
      %v3053 = vadd.f32 %v2877, %v3019
      %v3054 = vadd.f32 %v2882, %v3024
      %v3055 = vadd.f32 %v2887, %v3029
      %v3056 = vadd.f32 %v2892, %v3034
      %v3057 = vadd.f32 %v2897, %v3039
      %v3058 = vadd.f32 %v2902, %v3044
      %v3059 = vadd.f32 %v2907, %v3049
      %v3060 = vld [vmem:[%s2212 + $0x7] sm:$0xff]
      %v3061 = vld [vmem:[%s2212 + $0x1f] sm:$0xff]
      %v3062 = vld [vmem:[%s2212 + $0x37] sm:$0xff]
      %v3063 = vld [vmem:[%s2212 + $0x4f] sm:$0xff]
      %v3064 = vld [vmem:[%s2212 + $0x67] sm:$0xff]
      %v3065 = vld [vmem:[%s2212 + $0x7f] sm:$0xff]
      %v3066 = vld [vmem:[%s2212 + $0x97] sm:$0xff]
      %v3067 = vld [vmem:[%s2212 + $0xaf] sm:$0xff]
      %s3068 = scalar_lea.vmem %s5, 12
      %v3069 = vld [vmem:[%s3068] sm:$0xf]
      %v3071 = vsel %vm380, %v3060, 0
      %v3074 = vsel %vm380, %v3061, 0
      %v3077 = vsel %vm380, %v3062, 0
      %v3080 = vsel %vm380, %v3063, 0
      %v3083 = vsel %vm380, %v3064, 0
      %v3086 = vsel %vm380, %v3065, 0
      %v3089 = vsel %vm380, %v3066, 0
      %v3092 = vsel %vm380, %v3067, 0
      %v3095 = vsel %vm405, %v3069, 0
      %3097 = vmatprep.subr.mxu0 0.0
      %3098 = vmatpush1.msra.mxu0 0.0
      %3099 = vmatprep.subr.mxu0 0.0
      %3100 = vmatpush1.msra.mxu0 0.0
      %3101 = vmatprep.subr.mxu0 0.0
      %3102 = vmatpush1.msra.mxu0 0.0
      %3103 = vmatprep.subr.mxu0 0.0
      %3104 = vmatpush1.msra.mxu0 0.0
      %3105 = vmatprep.subr.mxu0 0.0
      %3106 = vmatpush1.msra.mxu0 0.0
      %3107 = vmatprep.subr.mxu0 0.0
      %3108 = vmatpush1.msra.mxu0 0.0
      %3109 = vmatprep.subr.mxu0 0.0
      %3110 = vmatpush1.msra.mxu0 0.0
      %3111 = vmatprep.subr.mxu0 0.0
      %3112 = vmatpush1.msra.mxu0 0.0
      %3113 = vmatprep.subr.mxu0 0.0
      %3114 = vmatpush1.msra.mxu0 0.0
      %3115 = vmatprep.subr.mxu0 0.0
      %3116 = vmatpush1.msra.mxu0 0.0
      %3117 = vmatprep.subr.mxu0 0.0
      %3118 = vmatpush1.msra.mxu0 0.0
      %3119 = vmatprep.subr.mxu0 0.0
      %3120 = vmatpush1.msra.mxu0 0.0
      %3121 = vmatprep.subr.mxu0 0.0
      %3122 = vmatpush1.msra.mxu0 0.0
      %3123 = vmatprep.subr.mxu0 0.0
      %3124 = vmatpush1.msra.mxu0 0.0
      %3125 = vmatprep.subr.mxu0 0.0
      %3126 = vmatpush1.msra.mxu0 0.0
      %3127 = vmatprep.subr.mxu0 0.0
      %3128 = vmatpush1.msra.mxu0 %v3095
      %3129 = vmatprep.subr.mxu0 0.0
      %3130 = vmatpush2.msra.mxu0 0.0
      %3131 = vmatprep.subr.mxu0 0.0
      %3132 = vmatpush2.msra.mxu0 0.0
      %3133 = vmatprep.subr.mxu0 0.0
      %3134 = vmatpush2.msra.mxu0 0.0
      %3135 = vmatprep.subr.mxu0 0.0
      %3136 = vmatpush2.msra.mxu0 0.0
      %3137 = vmatprep.subr.mxu0 0.0
      %3138 = vmatpush2.msra.mxu0 0.0
      %3139 = vmatprep.subr.mxu0 0.0
      %3140 = vmatpush2.msra.mxu0 0.0
      %3141 = vmatprep.subr.mxu0 0.0
      %3142 = vmatpush2.msra.mxu0 0.0
      %3143 = vmatprep.subr.mxu0 0.0
      %3144 = vmatpush2.msra.mxu0 0.0
      %3145 = vmatprep.subr.mxu0 0.0
      %3146 = vmatpush2.msra.mxu0 0.0
      %3147 = vmatprep.subr.mxu0 0.0
      %3148 = vmatpush2.msra.mxu0 0.0
      %3149 = vmatprep.subr.mxu0 0.0
      %3150 = vmatpush2.msra.mxu0 0.0
      %3151 = vmatprep.subr.mxu0 0.0
      %3152 = vmatpush2.msra.mxu0 0.0
      %3153 = vmatprep.subr.mxu0 0.0
      %3154 = vmatpush2.msra.mxu0 0.0
      %3155 = vmatprep.subr.mxu0 0.0
      %3156 = vmatpush2.msra.mxu0 0.0
      %3157 = vmatprep.subr.mxu0 0.0
      %3158 = vmatpush2.msra.mxu0 0.0
      %3159 = vmatprep.subr.mxu0 0.0
      %3160 = vmatpush2.msra.mxu0 0.0
      %3161 = vmatprep.mubr.f32.mxu0 0.0
      %3162 = vmatmul.mubr.f32.gmra.mxu0 %v3071
      %v3163 = vpop.f32.mrf.mxu0
      %v3164 = vadd.f32 0.0, %v3163
      %v3165 = vpop.f32.mrf.mxu0
      %3166 = vmatprep.mubr.f32.mxu0 0.0
      %3167 = vmatmul.mubr.f32.gmra.mxu0 %v3074
      %v3168 = vpop.f32.mrf.mxu0
      %v3169 = vadd.f32 0.0, %v3168
      %v3170 = vpop.f32.mrf.mxu0
      %3171 = vmatprep.mubr.f32.mxu0 0.0
      %3172 = vmatmul.mubr.f32.gmra.mxu0 %v3077
      %v3173 = vpop.f32.mrf.mxu0
      %v3174 = vadd.f32 0.0, %v3173
      %v3175 = vpop.f32.mrf.mxu0
      %3176 = vmatprep.mubr.f32.mxu0 0.0
      %3177 = vmatmul.mubr.f32.gmra.mxu0 %v3080
      %v3178 = vpop.f32.mrf.mxu0
      %v3179 = vadd.f32 0.0, %v3178
      %v3180 = vpop.f32.mrf.mxu0
      %3181 = vmatprep.mubr.f32.mxu0 0.0
      %3182 = vmatmul.mubr.f32.gmra.mxu0 %v3083
      %v3183 = vpop.f32.mrf.mxu0
      %v3184 = vadd.f32 0.0, %v3183
      %v3185 = vpop.f32.mrf.mxu0
      %3186 = vmatprep.mubr.f32.mxu0 0.0
      %3187 = vmatmul.mubr.f32.gmra.mxu0 %v3086
      %v3188 = vpop.f32.mrf.mxu0
      %v3189 = vadd.f32 0.0, %v3188
      %v3190 = vpop.f32.mrf.mxu0
      %3191 = vmatprep.mubr.f32.mxu0 0.0
      %3192 = vmatmul.mubr.f32.gmra.mxu0 %v3089
      %v3193 = vpop.f32.mrf.mxu0
      %v3194 = vadd.f32 0.0, %v3193
      %v3195 = vpop.f32.mrf.mxu0
      %3196 = vmatprep.mubr.f32.mxu0 0.0
      %3197 = vmatmul.mubr.f32.gmra.mxu0 %v3092
      %v3198 = vpop.f32.mrf.mxu0
      %v3199 = vadd.f32 0.0, %v3198
      %v3200 = vpop.f32.mrf.mxu0
      %3201 = vdwg.mxu0
      %v3202 = vadd.f32 %v3052, %v3164
      %v3203 = vadd.f32 %v3053, %v3169
      %v3204 = vadd.f32 %v3054, %v3174
      %v3205 = vadd.f32 %v3055, %v3179
      %v3206 = vadd.f32 %v3056, %v3184
      %v3207 = vadd.f32 %v3057, %v3189
      %v3208 = vadd.f32 %v3058, %v3194
      %v3209 = vadd.f32 %v3059, %v3199
      %v3210 = vld [vmem:[%s2047 + $0x8] sm:$0xff]
      %v3211 = vld [vmem:[%s2047 + $0x20] sm:$0xff]
      %v3212 = vld [vmem:[%s2047 + $0x38] sm:$0xff]
      %v3213 = vld [vmem:[%s2047 + $0x50] sm:$0xff]
      %v3214 = vld [vmem:[%s2047 + $0x68] sm:$0xff]
      %v3215 = vld [vmem:[%s2047 + $0x80] sm:$0xff]
      %v3216 = vld [vmem:[%s2047 + $0x98] sm:$0xff]
      %v3217 = vld [vmem:[%s2047 + $0xb0] sm:$0xff]
      %s3218 = scalar_lea.vmem %s5, 16
      %v3219 = vld [vmem:[%s3218] sm:$0xf]
      %v3221 = vsel %vm380, %v3210, 0
      %v3224 = vsel %vm380, %v3211, 0
      %v3227 = vsel %vm380, %v3212, 0
      %v3230 = vsel %vm380, %v3213, 0
      %v3233 = vsel %vm380, %v3214, 0
      %v3236 = vsel %vm380, %v3215, 0
      %v3239 = vsel %vm380, %v3216, 0
      %v3242 = vsel %vm380, %v3217, 0
      %v3245 = vsel %vm405, %v3219, 0
      %3247 = vmatprep.subr.mxu0 0.0
      %3248 = vmatpush1.msra.mxu0 0.0
      %3249 = vmatprep.subr.mxu0 0.0
      %3250 = vmatpush1.msra.mxu0 0.0
      %3251 = vmatprep.subr.mxu0 0.0
      %3252 = vmatpush1.msra.mxu0 0.0
      %3253 = vmatprep.subr.mxu0 0.0
      %3254 = vmatpush1.msra.mxu0 0.0
      %3255 = vmatprep.subr.mxu0 0.0
      %3256 = vmatpush1.msra.mxu0 0.0
      %3257 = vmatprep.subr.mxu0 0.0
      %3258 = vmatpush1.msra.mxu0 0.0
      %3259 = vmatprep.subr.mxu0 0.0
      %3260 = vmatpush1.msra.mxu0 0.0
      %3261 = vmatprep.subr.mxu0 0.0
      %3262 = vmatpush1.msra.mxu0 0.0
      %3263 = vmatprep.subr.mxu0 0.0
      %3264 = vmatpush1.msra.mxu0 0.0
      %3265 = vmatprep.subr.mxu0 0.0
      %3266 = vmatpush1.msra.mxu0 0.0
      %3267 = vmatprep.subr.mxu0 0.0
      %3268 = vmatpush1.msra.mxu0 0.0
      %3269 = vmatprep.subr.mxu0 0.0
      %3270 = vmatpush1.msra.mxu0 0.0
      %3271 = vmatprep.subr.mxu0 0.0
      %3272 = vmatpush1.msra.mxu0 0.0
      %3273 = vmatprep.subr.mxu0 0.0
      %3274 = vmatpush1.msra.mxu0 0.0
      %3275 = vmatprep.subr.mxu0 0.0
      %3276 = vmatpush1.msra.mxu0 0.0
      %3277 = vmatprep.subr.mxu0 0.0
      %3278 = vmatpush1.msra.mxu0 %v3245
      %3279 = vmatprep.subr.mxu0 0.0
      %3280 = vmatpush2.msra.mxu0 0.0
      %3281 = vmatprep.subr.mxu0 0.0
      %3282 = vmatpush2.msra.mxu0 0.0
      %3283 = vmatprep.subr.mxu0 0.0
      %3284 = vmatpush2.msra.mxu0 0.0
      %3285 = vmatprep.subr.mxu0 0.0
      %3286 = vmatpush2.msra.mxu0 0.0
      %3287 = vmatprep.subr.mxu0 0.0
      %3288 = vmatpush2.msra.mxu0 0.0
      %3289 = vmatprep.subr.mxu0 0.0
      %3290 = vmatpush2.msra.mxu0 0.0
      %3291 = vmatprep.subr.mxu0 0.0
      %3292 = vmatpush2.msra.mxu0 0.0
      %3293 = vmatprep.subr.mxu0 0.0
      %3294 = vmatpush2.msra.mxu0 0.0
      %3295 = vmatprep.subr.mxu0 0.0
      %3296 = vmatpush2.msra.mxu0 0.0
      %3297 = vmatprep.subr.mxu0 0.0
      %3298 = vmatpush2.msra.mxu0 0.0
      %3299 = vmatprep.subr.mxu0 0.0
      %3300 = vmatpush2.msra.mxu0 0.0
      %3301 = vmatprep.subr.mxu0 0.0
      %3302 = vmatpush2.msra.mxu0 0.0
      %3303 = vmatprep.subr.mxu0 0.0
      %3304 = vmatpush2.msra.mxu0 0.0
      %3305 = vmatprep.subr.mxu0 0.0
      %3306 = vmatpush2.msra.mxu0 0.0
      %3307 = vmatprep.subr.mxu0 0.0
      %3308 = vmatpush2.msra.mxu0 0.0
      %3309 = vmatprep.subr.mxu0 0.0
      %3310 = vmatpush2.msra.mxu0 0.0
      %3311 = vmatprep.mubr.f32.mxu0 0.0
      %3312 = vmatmul.mubr.f32.gmra.mxu0 %v3221
      %v3313 = vpop.f32.mrf.mxu0
      %v3314 = vadd.f32 0.0, %v3313
      %v3315 = vpop.f32.mrf.mxu0
      %3316 = vmatprep.mubr.f32.mxu0 0.0
      %3317 = vmatmul.mubr.f32.gmra.mxu0 %v3224
      %v3318 = vpop.f32.mrf.mxu0
      %v3319 = vadd.f32 0.0, %v3318
      %v3320 = vpop.f32.mrf.mxu0
      %3321 = vmatprep.mubr.f32.mxu0 0.0
      %3322 = vmatmul.mubr.f32.gmra.mxu0 %v3227
      %v3323 = vpop.f32.mrf.mxu0
      %v3324 = vadd.f32 0.0, %v3323
      %v3325 = vpop.f32.mrf.mxu0
      %3326 = vmatprep.mubr.f32.mxu0 0.0
      %3327 = vmatmul.mubr.f32.gmra.mxu0 %v3230
      %v3328 = vpop.f32.mrf.mxu0
      %v3329 = vadd.f32 0.0, %v3328
      %v3330 = vpop.f32.mrf.mxu0
      %3331 = vmatprep.mubr.f32.mxu0 0.0
      %3332 = vmatmul.mubr.f32.gmra.mxu0 %v3233
      %v3333 = vpop.f32.mrf.mxu0
      %v3334 = vadd.f32 0.0, %v3333
      %v3335 = vpop.f32.mrf.mxu0
      %3336 = vmatprep.mubr.f32.mxu0 0.0
      %3337 = vmatmul.mubr.f32.gmra.mxu0 %v3236
      %v3338 = vpop.f32.mrf.mxu0
      %v3339 = vadd.f32 0.0, %v3338
      %v3340 = vpop.f32.mrf.mxu0
      %3341 = vmatprep.mubr.f32.mxu0 0.0
      %3342 = vmatmul.mubr.f32.gmra.mxu0 %v3239
      %v3343 = vpop.f32.mrf.mxu0
      %v3344 = vadd.f32 0.0, %v3343
      %v3345 = vpop.f32.mrf.mxu0
      %3346 = vmatprep.mubr.f32.mxu0 0.0
      %3347 = vmatmul.mubr.f32.gmra.mxu0 %v3242
      %v3348 = vpop.f32.mrf.mxu0
      %v3349 = vadd.f32 0.0, %v3348
      %v3350 = vpop.f32.mrf.mxu0
      %3351 = vdwg.mxu0
      %v3352 = vadd.f32 %v3202, %v3314
      %v3353 = vadd.f32 %v3203, %v3319
      %v3354 = vadd.f32 %v3204, %v3324
      %v3355 = vadd.f32 %v3205, %v3329
      %v3356 = vadd.f32 %v3206, %v3334
      %v3357 = vadd.f32 %v3207, %v3339
      %v3358 = vadd.f32 %v3208, %v3344
      %v3359 = vadd.f32 %v3209, %v3349
      %v3360 = vld [vmem:[%s2212 + $0x8] sm:$0xff]
      %v3361 = vld [vmem:[%s2212 + $0x20] sm:$0xff]
      %v3362 = vld [vmem:[%s2212 + $0x38] sm:$0xff]
      %v3363 = vld [vmem:[%s2212 + $0x50] sm:$0xff]
      %v3364 = vld [vmem:[%s2212 + $0x68] sm:$0xff]
      %v3365 = vld [vmem:[%s2212 + $0x80] sm:$0xff]
      %v3366 = vld [vmem:[%s2212 + $0x98] sm:$0xff]
      %v3367 = vld [vmem:[%s2212 + $0xb0] sm:$0xff]
      %s3368 = scalar_lea.vmem %s5, 20
      %v3369 = vld [vmem:[%s3368] sm:$0xf]
      %v3371 = vsel %vm380, %v3360, 0
      %v3374 = vsel %vm380, %v3361, 0
      %v3377 = vsel %vm380, %v3362, 0
      %v3380 = vsel %vm380, %v3363, 0
      %v3383 = vsel %vm380, %v3364, 0
      %v3386 = vsel %vm380, %v3365, 0
      %v3389 = vsel %vm380, %v3366, 0
      %v3392 = vsel %vm380, %v3367, 0
      %v3395 = vsel %vm405, %v3369, 0
      %3397 = vmatprep.subr.mxu0 0.0
      %3398 = vmatpush1.msra.mxu0 0.0
      %3399 = vmatprep.subr.mxu0 0.0
      %3400 = vmatpush1.msra.mxu0 0.0
      %3401 = vmatprep.subr.mxu0 0.0
      %3402 = vmatpush1.msra.mxu0 0.0
      %3403 = vmatprep.subr.mxu0 0.0
      %3404 = vmatpush1.msra.mxu0 0.0
      %3405 = vmatprep.subr.mxu0 0.0
      %3406 = vmatpush1.msra.mxu0 0.0
      %3407 = vmatprep.subr.mxu0 0.0
      %3408 = vmatpush1.msra.mxu0 0.0
      %3409 = vmatprep.subr.mxu0 0.0
      %3410 = vmatpush1.msra.mxu0 0.0
      %3411 = vmatprep.subr.mxu0 0.0
      %3412 = vmatpush1.msra.mxu0 0.0
      %3413 = vmatprep.subr.mxu0 0.0
      %3414 = vmatpush1.msra.mxu0 0.0
      %3415 = vmatprep.subr.mxu0 0.0
      %3416 = vmatpush1.msra.mxu0 0.0
      %3417 = vmatprep.subr.mxu0 0.0
      %3418 = vmatpush1.msra.mxu0 0.0
      %3419 = vmatprep.subr.mxu0 0.0
      %3420 = vmatpush1.msra.mxu0 0.0
      %3421 = vmatprep.subr.mxu0 0.0
      %3422 = vmatpush1.msra.mxu0 0.0
      %3423 = vmatprep.subr.mxu0 0.0
      %3424 = vmatpush1.msra.mxu0 0.0
      %3425 = vmatprep.subr.mxu0 0.0
      %3426 = vmatpush1.msra.mxu0 0.0
      %3427 = vmatprep.subr.mxu0 0.0
      %3428 = vmatpush1.msra.mxu0 %v3395
      %3429 = vmatprep.subr.mxu0 0.0
      %3430 = vmatpush2.msra.mxu0 0.0
      %3431 = vmatprep.subr.mxu0 0.0
      %3432 = vmatpush2.msra.mxu0 0.0
      %3433 = vmatprep.subr.mxu0 0.0
      %3434 = vmatpush2.msra.mxu0 0.0
      %3435 = vmatprep.subr.mxu0 0.0
      %3436 = vmatpush2.msra.mxu0 0.0
      %3437 = vmatprep.subr.mxu0 0.0
      %3438 = vmatpush2.msra.mxu0 0.0
      %3439 = vmatprep.subr.mxu0 0.0
      %3440 = vmatpush2.msra.mxu0 0.0
      %3441 = vmatprep.subr.mxu0 0.0
      %3442 = vmatpush2.msra.mxu0 0.0
      %3443 = vmatprep.subr.mxu0 0.0
      %3444 = vmatpush2.msra.mxu0 0.0
      %3445 = vmatprep.subr.mxu0 0.0
      %3446 = vmatpush2.msra.mxu0 0.0
      %3447 = vmatprep.subr.mxu0 0.0
      %3448 = vmatpush2.msra.mxu0 0.0
      %3449 = vmatprep.subr.mxu0 0.0
      %3450 = vmatpush2.msra.mxu0 0.0
      %3451 = vmatprep.subr.mxu0 0.0
      %3452 = vmatpush2.msra.mxu0 0.0
      %3453 = vmatprep.subr.mxu0 0.0
      %3454 = vmatpush2.msra.mxu0 0.0
      %3455 = vmatprep.subr.mxu0 0.0
      %3456 = vmatpush2.msra.mxu0 0.0
      %3457 = vmatprep.subr.mxu0 0.0
      %3458 = vmatpush2.msra.mxu0 0.0
      %3459 = vmatprep.subr.mxu0 0.0
      %3460 = vmatpush2.msra.mxu0 0.0
      %3461 = vmatprep.mubr.f32.mxu0 0.0
      %3462 = vmatmul.mubr.f32.gmra.mxu0 %v3371
      %v3463 = vpop.f32.mrf.mxu0
      %v3464 = vadd.f32 0.0, %v3463
      %v3465 = vpop.f32.mrf.mxu0
      %3466 = vmatprep.mubr.f32.mxu0 0.0
      %3467 = vmatmul.mubr.f32.gmra.mxu0 %v3374
      %v3468 = vpop.f32.mrf.mxu0
      %v3469 = vadd.f32 0.0, %v3468
      %v3470 = vpop.f32.mrf.mxu0
      %3471 = vmatprep.mubr.f32.mxu0 0.0
      %3472 = vmatmul.mubr.f32.gmra.mxu0 %v3377
      %v3473 = vpop.f32.mrf.mxu0
      %v3474 = vadd.f32 0.0, %v3473
      %v3475 = vpop.f32.mrf.mxu0
      %3476 = vmatprep.mubr.f32.mxu0 0.0
      %3477 = vmatmul.mubr.f32.gmra.mxu0 %v3380
      %v3478 = vpop.f32.mrf.mxu0
      %v3479 = vadd.f32 0.0, %v3478
      %v3480 = vpop.f32.mrf.mxu0
      %3481 = vmatprep.mubr.f32.mxu0 0.0
      %3482 = vmatmul.mubr.f32.gmra.mxu0 %v3383
      %v3483 = vpop.f32.mrf.mxu0
      %v3484 = vadd.f32 0.0, %v3483
      %v3485 = vpop.f32.mrf.mxu0
      %3486 = vmatprep.mubr.f32.mxu0 0.0
      %3487 = vmatmul.mubr.f32.gmra.mxu0 %v3386
      %v3488 = vpop.f32.mrf.mxu0
      %v3489 = vadd.f32 0.0, %v3488
      %v3490 = vpop.f32.mrf.mxu0
      %3491 = vmatprep.mubr.f32.mxu0 0.0
      %3492 = vmatmul.mubr.f32.gmra.mxu0 %v3389
      %v3493 = vpop.f32.mrf.mxu0
      %v3494 = vadd.f32 0.0, %v3493
      %v3495 = vpop.f32.mrf.mxu0
      %3496 = vmatprep.mubr.f32.mxu0 0.0
      %3497 = vmatmul.mubr.f32.gmra.mxu0 %v3392
      %v3498 = vpop.f32.mrf.mxu0
      %v3499 = vadd.f32 0.0, %v3498
      %v3500 = vpop.f32.mrf.mxu0
      %3501 = vdwg.mxu0
      %v3502 = vadd.f32 %v3352, %v3464
      %v3503 = vadd.f32 %v3353, %v3469
      %v3504 = vadd.f32 %v3354, %v3474
      %v3505 = vadd.f32 %v3355, %v3479
      %v3506 = vadd.f32 %v3356, %v3484
      %v3507 = vadd.f32 %v3357, %v3489
      %v3508 = vadd.f32 %v3358, %v3494
      %v3509 = vadd.f32 %v3359, %v3499
      %v3510 = vld [vmem:[%s2542 + $0x7] sm:$0xff]
      %v3511 = vld [vmem:[%s2542 + $0x1f] sm:$0xff]
      %v3512 = vld [vmem:[%s2542 + $0x37] sm:$0xff]
      %v3513 = vld [vmem:[%s2542 + $0x4f] sm:$0xff]
      %v3514 = vld [vmem:[%s2542 + $0x67] sm:$0xff]
      %v3515 = vld [vmem:[%s2542 + $0x7f] sm:$0xff]
      %v3516 = vld [vmem:[%s2542 + $0x97] sm:$0xff]
      %v3517 = vld [vmem:[%s2542 + $0xaf] sm:$0xff]
      %s3518 = scalar_lea.vmem %s5, 24
      %v3519 = vld [vmem:[%s3518] sm:$0xf]
      %v3521 = vsel %vm380, %v3510, 0
      %v3524 = vsel %vm380, %v3511, 0
      %v3527 = vsel %vm380, %v3512, 0
      %v3530 = vsel %vm380, %v3513, 0
      %v3533 = vsel %vm380, %v3514, 0
      %v3536 = vsel %vm380, %v3515, 0
      %v3539 = vsel %vm380, %v3516, 0
      %v3542 = vsel %vm380, %v3517, 0
      %v3545 = vsel %vm405, %v3519, 0
      %3547 = vmatprep.subr.mxu0 0.0
      %3548 = vmatpush1.msra.mxu0 0.0
      %3549 = vmatprep.subr.mxu0 0.0
      %3550 = vmatpush1.msra.mxu0 0.0
      %3551 = vmatprep.subr.mxu0 0.0
      %3552 = vmatpush1.msra.mxu0 0.0
      %3553 = vmatprep.subr.mxu0 0.0
      %3554 = vmatpush1.msra.mxu0 0.0
      %3555 = vmatprep.subr.mxu0 0.0
      %3556 = vmatpush1.msra.mxu0 0.0
      %3557 = vmatprep.subr.mxu0 0.0
      %3558 = vmatpush1.msra.mxu0 0.0
      %3559 = vmatprep.subr.mxu0 0.0
      %3560 = vmatpush1.msra.mxu0 0.0
      %3561 = vmatprep.subr.mxu0 0.0
      %3562 = vmatpush1.msra.mxu0 0.0
      %3563 = vmatprep.subr.mxu0 0.0
      %3564 = vmatpush1.msra.mxu0 0.0
      %3565 = vmatprep.subr.mxu0 0.0
      %3566 = vmatpush1.msra.mxu0 0.0
      %3567 = vmatprep.subr.mxu0 0.0
      %3568 = vmatpush1.msra.mxu0 0.0
      %3569 = vmatprep.subr.mxu0 0.0
      %3570 = vmatpush1.msra.mxu0 0.0
      %3571 = vmatprep.subr.mxu0 0.0
      %3572 = vmatpush1.msra.mxu0 0.0
      %3573 = vmatprep.subr.mxu0 0.0
      %3574 = vmatpush1.msra.mxu0 0.0
      %3575 = vmatprep.subr.mxu0 0.0
      %3576 = vmatpush1.msra.mxu0 0.0
      %3577 = vmatprep.subr.mxu0 0.0
      %3578 = vmatpush1.msra.mxu0 %v3545
      %3579 = vmatprep.subr.mxu0 0.0
      %3580 = vmatpush2.msra.mxu0 0.0
      %3581 = vmatprep.subr.mxu0 0.0
      %3582 = vmatpush2.msra.mxu0 0.0
      %3583 = vmatprep.subr.mxu0 0.0
      %3584 = vmatpush2.msra.mxu0 0.0
      %3585 = vmatprep.subr.mxu0 0.0
      %3586 = vmatpush2.msra.mxu0 0.0
      %3587 = vmatprep.subr.mxu0 0.0
      %3588 = vmatpush2.msra.mxu0 0.0
      %3589 = vmatprep.subr.mxu0 0.0
      %3590 = vmatpush2.msra.mxu0 0.0
      %3591 = vmatprep.subr.mxu0 0.0
      %3592 = vmatpush2.msra.mxu0 0.0
      %3593 = vmatprep.subr.mxu0 0.0
      %3594 = vmatpush2.msra.mxu0 0.0
      %3595 = vmatprep.subr.mxu0 0.0
      %3596 = vmatpush2.msra.mxu0 0.0
      %3597 = vmatprep.subr.mxu0 0.0
      %3598 = vmatpush2.msra.mxu0 0.0
      %3599 = vmatprep.subr.mxu0 0.0
      %3600 = vmatpush2.msra.mxu0 0.0
      %3601 = vmatprep.subr.mxu0 0.0
      %3602 = vmatpush2.msra.mxu0 0.0
      %3603 = vmatprep.subr.mxu0 0.0
      %3604 = vmatpush2.msra.mxu0 0.0
      %3605 = vmatprep.subr.mxu0 0.0
      %3606 = vmatpush2.msra.mxu0 0.0
      %3607 = vmatprep.subr.mxu0 0.0
      %3608 = vmatpush2.msra.mxu0 0.0
      %3609 = vmatprep.subr.mxu0 0.0
      %3610 = vmatpush2.msra.mxu0 0.0
      %3611 = vmatprep.mubr.f32.mxu0 0.0
      %3612 = vmatmul.mubr.f32.gmra.mxu0 %v3521
      %v3613 = vpop.f32.mrf.mxu0
      %v3614 = vadd.f32 0.0, %v3613
      %v3615 = vpop.f32.mrf.mxu0
      %3616 = vmatprep.mubr.f32.mxu0 0.0
      %3617 = vmatmul.mubr.f32.gmra.mxu0 %v3524
      %v3618 = vpop.f32.mrf.mxu0
      %v3619 = vadd.f32 0.0, %v3618
      %v3620 = vpop.f32.mrf.mxu0
      %3621 = vmatprep.mubr.f32.mxu0 0.0
      %3622 = vmatmul.mubr.f32.gmra.mxu0 %v3527
      %v3623 = vpop.f32.mrf.mxu0
      %v3624 = vadd.f32 0.0, %v3623
      %v3625 = vpop.f32.mrf.mxu0
      %3626 = vmatprep.mubr.f32.mxu0 0.0
      %3627 = vmatmul.mubr.f32.gmra.mxu0 %v3530
      %v3628 = vpop.f32.mrf.mxu0
      %v3629 = vadd.f32 0.0, %v3628
      %v3630 = vpop.f32.mrf.mxu0
      %3631 = vmatprep.mubr.f32.mxu0 0.0
      %3632 = vmatmul.mubr.f32.gmra.mxu0 %v3533
      %v3633 = vpop.f32.mrf.mxu0
      %v3634 = vadd.f32 0.0, %v3633
      %v3635 = vpop.f32.mrf.mxu0
      %3636 = vmatprep.mubr.f32.mxu0 0.0
      %3637 = vmatmul.mubr.f32.gmra.mxu0 %v3536
      %v3638 = vpop.f32.mrf.mxu0
      %v3639 = vadd.f32 0.0, %v3638
      %v3640 = vpop.f32.mrf.mxu0
      %3641 = vmatprep.mubr.f32.mxu0 0.0
      %3642 = vmatmul.mubr.f32.gmra.mxu0 %v3539
      %v3643 = vpop.f32.mrf.mxu0
      %v3644 = vadd.f32 0.0, %v3643
      %v3645 = vpop.f32.mrf.mxu0
      %3646 = vmatprep.mubr.f32.mxu0 0.0
      %3647 = vmatmul.mubr.f32.gmra.mxu0 %v3542
      %v3648 = vpop.f32.mrf.mxu0
      %v3649 = vadd.f32 0.0, %v3648
      %v3650 = vpop.f32.mrf.mxu0
      %3651 = vdwg.mxu0
      %v3652 = vadd.f32 %v3502, %v3614
      %v3653 = vadd.f32 %v3503, %v3619
      %v3654 = vadd.f32 %v3504, %v3624
      %v3655 = vadd.f32 %v3505, %v3629
      %v3656 = vadd.f32 %v3506, %v3634
      %v3657 = vadd.f32 %v3507, %v3639
      %v3658 = vadd.f32 %v3508, %v3644
      %v3659 = vadd.f32 %v3509, %v3649
      %v3660 = vld [vmem:[%s2377 + $0x8] sm:$0xff]
      %v3661 = vld [vmem:[%s2377 + $0x20] sm:$0xff]
      %v3662 = vld [vmem:[%s2377 + $0x38] sm:$0xff]
      %v3663 = vld [vmem:[%s2377 + $0x50] sm:$0xff]
      %v3664 = vld [vmem:[%s2377 + $0x68] sm:$0xff]
      %v3665 = vld [vmem:[%s2377 + $0x80] sm:$0xff]
      %v3666 = vld [vmem:[%s2377 + $0x98] sm:$0xff]
      %v3667 = vld [vmem:[%s2377 + $0xb0] sm:$0xff]
      %s3668 = scalar_lea.vmem %s5, 28
      %v3669 = vld [vmem:[%s3668] sm:$0xf]
      %v3671 = vsel %vm380, %v3660, 0
      %v3674 = vsel %vm380, %v3661, 0
      %v3677 = vsel %vm380, %v3662, 0
      %v3680 = vsel %vm380, %v3663, 0
      %v3683 = vsel %vm380, %v3664, 0
      %v3686 = vsel %vm380, %v3665, 0
      %v3689 = vsel %vm380, %v3666, 0
      %v3692 = vsel %vm380, %v3667, 0
      %v3695 = vsel %vm405, %v3669, 0
      %3697 = vmatprep.subr.mxu0 0.0
      %3698 = vmatpush1.msra.mxu0 0.0
      %3699 = vmatprep.subr.mxu0 0.0
      %3700 = vmatpush1.msra.mxu0 0.0
      %3701 = vmatprep.subr.mxu0 0.0
      %3702 = vmatpush1.msra.mxu0 0.0
      %3703 = vmatprep.subr.mxu0 0.0
      %3704 = vmatpush1.msra.mxu0 0.0
      %3705 = vmatprep.subr.mxu0 0.0
      %3706 = vmatpush1.msra.mxu0 0.0
      %3707 = vmatprep.subr.mxu0 0.0
      %3708 = vmatpush1.msra.mxu0 0.0
      %3709 = vmatprep.subr.mxu0 0.0
      %3710 = vmatpush1.msra.mxu0 0.0
      %3711 = vmatprep.subr.mxu0 0.0
      %3712 = vmatpush1.msra.mxu0 0.0
      %3713 = vmatprep.subr.mxu0 0.0
      %3714 = vmatpush1.msra.mxu0 0.0
      %3715 = vmatprep.subr.mxu0 0.0
      %3716 = vmatpush1.msra.mxu0 0.0
      %3717 = vmatprep.subr.mxu0 0.0
      %3718 = vmatpush1.msra.mxu0 0.0
      %3719 = vmatprep.subr.mxu0 0.0
      %3720 = vmatpush1.msra.mxu0 0.0
      %3721 = vmatprep.subr.mxu0 0.0
      %3722 = vmatpush1.msra.mxu0 0.0
      %3723 = vmatprep.subr.mxu0 0.0
      %3724 = vmatpush1.msra.mxu0 0.0
      %3725 = vmatprep.subr.mxu0 0.0
      %3726 = vmatpush1.msra.mxu0 0.0
      %3727 = vmatprep.subr.mxu0 0.0
      %3728 = vmatpush1.msra.mxu0 %v3695
      %3729 = vmatprep.subr.mxu0 0.0
      %3730 = vmatpush2.msra.mxu0 0.0
      %3731 = vmatprep.subr.mxu0 0.0
      %3732 = vmatpush2.msra.mxu0 0.0
      %3733 = vmatprep.subr.mxu0 0.0
      %3734 = vmatpush2.msra.mxu0 0.0
      %3735 = vmatprep.subr.mxu0 0.0
      %3736 = vmatpush2.msra.mxu0 0.0
      %3737 = vmatprep.subr.mxu0 0.0
      %3738 = vmatpush2.msra.mxu0 0.0
      %3739 = vmatprep.subr.mxu0 0.0
      %3740 = vmatpush2.msra.mxu0 0.0
      %3741 = vmatprep.subr.mxu0 0.0
      %3742 = vmatpush2.msra.mxu0 0.0
      %3743 = vmatprep.subr.mxu0 0.0
      %3744 = vmatpush2.msra.mxu0 0.0
      %3745 = vmatprep.subr.mxu0 0.0
      %3746 = vmatpush2.msra.mxu0 0.0
      %3747 = vmatprep.subr.mxu0 0.0
      %3748 = vmatpush2.msra.mxu0 0.0
      %3749 = vmatprep.subr.mxu0 0.0
      %3750 = vmatpush2.msra.mxu0 0.0
      %3751 = vmatprep.subr.mxu0 0.0
      %3752 = vmatpush2.msra.mxu0 0.0
      %3753 = vmatprep.subr.mxu0 0.0
      %3754 = vmatpush2.msra.mxu0 0.0
      %3755 = vmatprep.subr.mxu0 0.0
      %3756 = vmatpush2.msra.mxu0 0.0
      %3757 = vmatprep.subr.mxu0 0.0
      %3758 = vmatpush2.msra.mxu0 0.0
      %3759 = vmatprep.subr.mxu0 0.0
      %3760 = vmatpush2.msra.mxu0 0.0
      %3761 = vmatprep.mubr.f32.mxu0 0.0
      %3762 = vmatmul.mubr.f32.gmra.mxu0 %v3671
      %v3763 = vpop.f32.mrf.mxu0
      %v3764 = vadd.f32 0.0, %v3763
      %v3765 = vpop.f32.mrf.mxu0
      %3766 = vmatprep.mubr.f32.mxu0 0.0
      %3767 = vmatmul.mubr.f32.gmra.mxu0 %v3674
      %v3768 = vpop.f32.mrf.mxu0
      %v3769 = vadd.f32 0.0, %v3768
      %v3770 = vpop.f32.mrf.mxu0
      %3771 = vmatprep.mubr.f32.mxu0 0.0
      %3772 = vmatmul.mubr.f32.gmra.mxu0 %v3677
      %v3773 = vpop.f32.mrf.mxu0
      %v3774 = vadd.f32 0.0, %v3773
      %v3775 = vpop.f32.mrf.mxu0
      %3776 = vmatprep.mubr.f32.mxu0 0.0
      %3777 = vmatmul.mubr.f32.gmra.mxu0 %v3680
      %v3778 = vpop.f32.mrf.mxu0
      %v3779 = vadd.f32 0.0, %v3778
      %v3780 = vpop.f32.mrf.mxu0
      %3781 = vmatprep.mubr.f32.mxu0 0.0
      %3782 = vmatmul.mubr.f32.gmra.mxu0 %v3683
      %v3783 = vpop.f32.mrf.mxu0
      %v3784 = vadd.f32 0.0, %v3783
      %v3785 = vpop.f32.mrf.mxu0
      %3786 = vmatprep.mubr.f32.mxu0 0.0
      %3787 = vmatmul.mubr.f32.gmra.mxu0 %v3686
      %v3788 = vpop.f32.mrf.mxu0
      %v3789 = vadd.f32 0.0, %v3788
      %v3790 = vpop.f32.mrf.mxu0
      %3791 = vmatprep.mubr.f32.mxu0 0.0
      %3792 = vmatmul.mubr.f32.gmra.mxu0 %v3689
      %v3793 = vpop.f32.mrf.mxu0
      %v3794 = vadd.f32 0.0, %v3793
      %v3795 = vpop.f32.mrf.mxu0
      %3796 = vmatprep.mubr.f32.mxu0 0.0
      %3797 = vmatmul.mubr.f32.gmra.mxu0 %v3692
      %v3798 = vpop.f32.mrf.mxu0
      %v3799 = vadd.f32 0.0, %v3798
      %v3800 = vpop.f32.mrf.mxu0
      %3801 = vdwg.mxu0
      %v3802 = vadd.f32 %v3652, %v3764
      %v3803 = vadd.f32 %v3653, %v3769
      %v3804 = vadd.f32 %v3654, %v3774
      %v3805 = vadd.f32 %v3655, %v3779
      %v3806 = vadd.f32 %v3656, %v3784
      %v3807 = vadd.f32 %v3657, %v3789
      %v3808 = vadd.f32 %v3658, %v3794
      %v3809 = vadd.f32 %v3659, %v3799
      %v3810 = vld [vmem:[%s2542 + $0x8] sm:$0xff]
      %v3811 = vld [vmem:[%s2542 + $0x20] sm:$0xff]
      %v3812 = vld [vmem:[%s2542 + $0x38] sm:$0xff]
      %v3813 = vld [vmem:[%s2542 + $0x50] sm:$0xff]
      %v3814 = vld [vmem:[%s2542 + $0x68] sm:$0xff]
      %v3815 = vld [vmem:[%s2542 + $0x80] sm:$0xff]
      %v3816 = vld [vmem:[%s2542 + $0x98] sm:$0xff]
      %v3817 = vld [vmem:[%s2542 + $0xb0] sm:$0xff]
      %s3818 = scalar_lea.vmem %s5, 32
      %v3819 = vld [vmem:[%s3818] sm:$0xf]
      %v3821 = vsel %vm380, %v3810, 0
      %v3824 = vsel %vm380, %v3811, 0
      %v3827 = vsel %vm380, %v3812, 0
      %v3830 = vsel %vm380, %v3813, 0
      %v3833 = vsel %vm380, %v3814, 0
      %v3836 = vsel %vm380, %v3815, 0
      %v3839 = vsel %vm380, %v3816, 0
      %v3842 = vsel %vm380, %v3817, 0
      %v3845 = vsel %vm405, %v3819, 0
      %3847 = vmatprep.subr.mxu0 0.0
      %3848 = vmatpush1.msra.mxu0 0.0
      %3849 = vmatprep.subr.mxu0 0.0
      %3850 = vmatpush1.msra.mxu0 0.0
      %3851 = vmatprep.subr.mxu0 0.0
      %3852 = vmatpush1.msra.mxu0 0.0
      %3853 = vmatprep.subr.mxu0 0.0
      %3854 = vmatpush1.msra.mxu0 0.0
      %3855 = vmatprep.subr.mxu0 0.0
      %3856 = vmatpush1.msra.mxu0 0.0
      %3857 = vmatprep.subr.mxu0 0.0
      %3858 = vmatpush1.msra.mxu0 0.0
      %3859 = vmatprep.subr.mxu0 0.0
      %3860 = vmatpush1.msra.mxu0 0.0
      %3861 = vmatprep.subr.mxu0 0.0
      %3862 = vmatpush1.msra.mxu0 0.0
      %3863 = vmatprep.subr.mxu0 0.0
      %3864 = vmatpush1.msra.mxu0 0.0
      %3865 = vmatprep.subr.mxu0 0.0
      %3866 = vmatpush1.msra.mxu0 0.0
      %3867 = vmatprep.subr.mxu0 0.0
      %3868 = vmatpush1.msra.mxu0 0.0
      %3869 = vmatprep.subr.mxu0 0.0
      %3870 = vmatpush1.msra.mxu0 0.0
      %3871 = vmatprep.subr.mxu0 0.0
      %3872 = vmatpush1.msra.mxu0 0.0
      %3873 = vmatprep.subr.mxu0 0.0
      %3874 = vmatpush1.msra.mxu0 0.0
      %3875 = vmatprep.subr.mxu0 0.0
      %3876 = vmatpush1.msra.mxu0 0.0
      %3877 = vmatprep.subr.mxu0 0.0
      %3878 = vmatpush1.msra.mxu0 %v3845
      %3879 = vmatprep.subr.mxu0 0.0
      %3880 = vmatpush2.msra.mxu0 0.0
      %3881 = vmatprep.subr.mxu0 0.0
      %3882 = vmatpush2.msra.mxu0 0.0
      %3883 = vmatprep.subr.mxu0 0.0
      %3884 = vmatpush2.msra.mxu0 0.0
      %3885 = vmatprep.subr.mxu0 0.0
      %3886 = vmatpush2.msra.mxu0 0.0
      %3887 = vmatprep.subr.mxu0 0.0
      %3888 = vmatpush2.msra.mxu0 0.0
      %3889 = vmatprep.subr.mxu0 0.0
      %3890 = vmatpush2.msra.mxu0 0.0
      %3891 = vmatprep.subr.mxu0 0.0
      %3892 = vmatpush2.msra.mxu0 0.0
      %3893 = vmatprep.subr.mxu0 0.0
      %3894 = vmatpush2.msra.mxu0 0.0
      %3895 = vmatprep.subr.mxu0 0.0
      %3896 = vmatpush2.msra.mxu0 0.0
      %3897 = vmatprep.subr.mxu0 0.0
      %3898 = vmatpush2.msra.mxu0 0.0
      %3899 = vmatprep.subr.mxu0 0.0
      %3900 = vmatpush2.msra.mxu0 0.0
      %3901 = vmatprep.subr.mxu0 0.0
      %3902 = vmatpush2.msra.mxu0 0.0
      %3903 = vmatprep.subr.mxu0 0.0
      %3904 = vmatpush2.msra.mxu0 0.0
      %3905 = vmatprep.subr.mxu0 0.0
      %3906 = vmatpush2.msra.mxu0 0.0
      %3907 = vmatprep.subr.mxu0 0.0
      %3908 = vmatpush2.msra.mxu0 0.0
      %3909 = vmatprep.subr.mxu0 0.0
      %3910 = vmatpush2.msra.mxu0 0.0
      %3911 = vmatprep.mubr.f32.mxu0 0.0
      %3912 = vmatmul.mubr.f32.gmra.mxu0 %v3821
      %v3913 = vpop.f32.mrf.mxu0
      %v3914 = vadd.f32 0.0, %v3913
      %v3915 = vpop.f32.mrf.mxu0
      %3916 = vmatprep.mubr.f32.mxu0 0.0
      %3917 = vmatmul.mubr.f32.gmra.mxu0 %v3824
      %v3918 = vpop.f32.mrf.mxu0
      %v3919 = vadd.f32 0.0, %v3918
      %v3920 = vpop.f32.mrf.mxu0
      %3921 = vmatprep.mubr.f32.mxu0 0.0
      %3922 = vmatmul.mubr.f32.gmra.mxu0 %v3827
      %v3923 = vpop.f32.mrf.mxu0
      %v3924 = vadd.f32 0.0, %v3923
      %v3925 = vpop.f32.mrf.mxu0
      %3926 = vmatprep.mubr.f32.mxu0 0.0
      %3927 = vmatmul.mubr.f32.gmra.mxu0 %v3830
      %v3928 = vpop.f32.mrf.mxu0
      %v3929 = vadd.f32 0.0, %v3928
      %v3930 = vpop.f32.mrf.mxu0
      %3931 = vmatprep.mubr.f32.mxu0 0.0
      %3932 = vmatmul.mubr.f32.gmra.mxu0 %v3833
      %v3933 = vpop.f32.mrf.mxu0
      %v3934 = vadd.f32 0.0, %v3933
      %v3935 = vpop.f32.mrf.mxu0
      %3936 = vmatprep.mubr.f32.mxu0 0.0
      %3937 = vmatmul.mubr.f32.gmra.mxu0 %v3836
      %v3938 = vpop.f32.mrf.mxu0
      %v3939 = vadd.f32 0.0, %v3938
      %v3940 = vpop.f32.mrf.mxu0
      %3941 = vmatprep.mubr.f32.mxu0 0.0
      %3942 = vmatmul.mubr.f32.gmra.mxu0 %v3839
      %v3943 = vpop.f32.mrf.mxu0
      %v3944 = vadd.f32 0.0, %v3943
      %v3945 = vpop.f32.mrf.mxu0
      %3946 = vmatprep.mubr.f32.mxu0 0.0
      %3947 = vmatmul.mubr.f32.gmra.mxu0 %v3842
      %v3948 = vpop.f32.mrf.mxu0
      %v3949 = vadd.f32 0.0, %v3948
      %v3950 = vpop.f32.mrf.mxu0
      %3951 = vdwg.mxu0
      %v3952 = vadd.f32 %v3802, %v3914
      %v3953 = vadd.f32 %v3803, %v3919
      %v3954 = vadd.f32 %v3804, %v3924
      %v3955 = vadd.f32 %v3805, %v3929
      %v3956 = vadd.f32 %v3806, %v3934
      %v3957 = vadd.f32 %v3807, %v3939
      %v3958 = vadd.f32 %v3808, %v3944
      %v3959 = vadd.f32 %v3809, %v3949
      %v3960 = vld [vmem:[%s6] sm:$0x1]
      %v3962 = vlaneseq
      %v3963 = vshrl.u32 %v3962, 7
      %v3964 = vsub.s32 0, %v3963
      %v3965 = vrot.slane %v3960, %v3964
      %v3967 = vadd.f32 %v3952, %v3965
      %v3968 = vadd.f32 %v3953, %v3965
      %v3969 = vadd.f32 %v3954, %v3965
      %v3970 = vadd.f32 %v3955, %v3965
      %v3971 = vadd.f32 %v3956, %v3965
      %v3972 = vadd.f32 %v3957, %v3965
      %v3973 = vadd.f32 %v3958, %v3965
      %v3974 = vadd.f32 %v3959, %v3965
      %v3975 = vmax.f32 %v3967, 0.0
      %v3976 = vmax.f32 %v3968, 0.0
      %v3977 = vmax.f32 %v3969, 0.0
      %v3978 = vmax.f32 %v3970, 0.0
      %v3979 = vmax.f32 %v3971, 0.0
      %v3980 = vmax.f32 %v3972, 0.0
      %v3981 = vmax.f32 %v3973, 0.0
      %v3982 = vmax.f32 %v3974, 0.0
      %3983 = vst.msk [vmem:[#allocation3] sm:$0xff] %vm2551, %v3975
      %3984 = vst.msk [vmem:[#allocation3 + $0x10] sm:$0xff] %vm2551, %v3976
      %3985 = vst.msk [vmem:[#allocation3 + $0x20] sm:$0xff] %vm2551, %v3977
      %3986 = vst.msk [vmem:[#allocation3 + $0x30] sm:$0xff] %vm2551, %v3978
      %3987 = vst.msk [vmem:[#allocation3 + $0x40] sm:$0xff] %vm2551, %v3979
      %3988 = vst.msk [vmem:[#allocation3 + $0x50] sm:$0xff] %vm2551, %v3980
      %3989 = vst.msk [vmem:[#allocation3 + $0x60] sm:$0xff] %vm2551, %v3981
      %3990 = vst.msk [vmem:[#allocation3 + $0x70] sm:$0xff] %vm2551, %v3982
      %v3991 = vld [vmem:[%s2635 + $0x8] sm:$0xff]
      %v3992 = vld [vmem:[%s2635 + $0x20] sm:$0xff]
      %v3993 = vld [vmem:[%s2635 + $0x38] sm:$0xff]
      %v3994 = vld [vmem:[%s2635 + $0x50] sm:$0xff]
      %v3995 = vld [vmem:[%s2635 + $0x68] sm:$0xff]
      %v3996 = vld [vmem:[%s2635 + $0x80] sm:$0xff]
      %v3997 = vld [vmem:[%s2635 + $0x98] sm:$0xff]
      %v3998 = vld [vmem:[%s2635 + $0xb0] sm:$0xff]
      %v3999 = vld [vmem:[%s5] sm:$0xf]
      %v4000 = vld [vmem:[%s2625 + $0x8] sm:$0xff]
      %v4001 = vld [vmem:[%s2625 + $0x20] sm:$0xff]
      %v4002 = vld [vmem:[%s2625 + $0x38] sm:$0xff]
      %v4003 = vld [vmem:[%s2625 + $0x50] sm:$0xff]
      %v4004 = vld [vmem:[%s2625 + $0x68] sm:$0xff]
      %v4005 = vld [vmem:[%s2625 + $0x80] sm:$0xff]
      %v4006 = vld [vmem:[%s2625 + $0x98] sm:$0xff]
      %v4007 = vld [vmem:[%s2625 + $0xb0] sm:$0xff]
      %v4008 = vld [vmem:[%s2644] sm:$0xf]
      %v4010 = vsel %vm380, %v4000, 0
      %v4013 = vsel %vm380, %v4001, 0
      %v4016 = vsel %vm380, %v4002, 0
      %v4019 = vsel %vm380, %v4003, 0
      %v4022 = vsel %vm380, %v4004, 0
      %v4025 = vsel %vm380, %v4005, 0
      %v4028 = vsel %vm380, %v4006, 0
      %v4031 = vsel %vm380, %v4007, 0
      %v4034 = vsel %vm405, %v4008, 0
      %4036 = vmatprep.subr.mxu0 0.0
      %4037 = vmatpush1.msra.mxu0 0.0
      %4038 = vmatprep.subr.mxu0 0.0
      %4039 = vmatpush1.msra.mxu0 0.0
      %4040 = vmatprep.subr.mxu0 0.0
      %4041 = vmatpush1.msra.mxu0 0.0
      %4042 = vmatprep.subr.mxu0 0.0
      %4043 = vmatpush1.msra.mxu0 0.0
      %4044 = vmatprep.subr.mxu0 0.0
      %4045 = vmatpush1.msra.mxu0 0.0
      %4046 = vmatprep.subr.mxu0 0.0
      %4047 = vmatpush1.msra.mxu0 0.0
      %4048 = vmatprep.subr.mxu0 0.0
      %4049 = vmatpush1.msra.mxu0 0.0
      %4050 = vmatprep.subr.mxu0 0.0
      %4051 = vmatpush1.msra.mxu0 0.0
      %4052 = vmatprep.subr.mxu0 0.0
      %4053 = vmatpush1.msra.mxu0 0.0
      %4054 = vmatprep.subr.mxu0 0.0
      %4055 = vmatpush1.msra.mxu0 0.0
      %4056 = vmatprep.subr.mxu0 0.0
      %4057 = vmatpush1.msra.mxu0 0.0
      %4058 = vmatprep.subr.mxu0 0.0
      %4059 = vmatpush1.msra.mxu0 0.0
      %4060 = vmatprep.subr.mxu0 0.0
      %4061 = vmatpush1.msra.mxu0 0.0
      %4062 = vmatprep.subr.mxu0 0.0
      %4063 = vmatpush1.msra.mxu0 0.0
      %4064 = vmatprep.subr.mxu0 0.0
      %4065 = vmatpush1.msra.mxu0 0.0
      %4066 = vmatprep.subr.mxu0 0.0
      %4067 = vmatpush1.msra.mxu0 %v4034
      %4068 = vmatprep.subr.mxu0 0.0
      %4069 = vmatpush2.msra.mxu0 0.0
      %4070 = vmatprep.subr.mxu0 0.0
      %4071 = vmatpush2.msra.mxu0 0.0
      %4072 = vmatprep.subr.mxu0 0.0
      %4073 = vmatpush2.msra.mxu0 0.0
      %4074 = vmatprep.subr.mxu0 0.0
      %4075 = vmatpush2.msra.mxu0 0.0
      %4076 = vmatprep.subr.mxu0 0.0
      %4077 = vmatpush2.msra.mxu0 0.0
      %4078 = vmatprep.subr.mxu0 0.0
      %4079 = vmatpush2.msra.mxu0 0.0
      %4080 = vmatprep.subr.mxu0 0.0
      %4081 = vmatpush2.msra.mxu0 0.0
      %4082 = vmatprep.subr.mxu0 0.0
      %4083 = vmatpush2.msra.mxu0 0.0
      %4084 = vmatprep.subr.mxu0 0.0
      %4085 = vmatpush2.msra.mxu0 0.0
      %4086 = vmatprep.subr.mxu0 0.0
      %4087 = vmatpush2.msra.mxu0 0.0
      %4088 = vmatprep.subr.mxu0 0.0
      %4089 = vmatpush2.msra.mxu0 0.0
      %4090 = vmatprep.subr.mxu0 0.0
      %4091 = vmatpush2.msra.mxu0 0.0
      %4092 = vmatprep.subr.mxu0 0.0
      %4093 = vmatpush2.msra.mxu0 0.0
      %4094 = vmatprep.subr.mxu0 0.0
      %4095 = vmatpush2.msra.mxu0 0.0
      %4096 = vmatprep.subr.mxu0 0.0
      %4097 = vmatpush2.msra.mxu0 0.0
      %4098 = vmatprep.subr.mxu0 0.0
      %4099 = vmatpush2.msra.mxu0 0.0
      %4100 = vmatprep.mubr.f32.mxu0 0.0
      %4101 = vmatmul.mubr.f32.gmra.mxu0 %v4010
      %v4102 = vpop.f32.mrf.mxu0
      %v4103 = vadd.f32 0.0, %v4102
      %v4104 = vpop.f32.mrf.mxu0
      %4105 = vmatprep.mubr.f32.mxu0 0.0
      %4106 = vmatmul.mubr.f32.gmra.mxu0 %v4013
      %v4107 = vpop.f32.mrf.mxu0
      %v4108 = vadd.f32 0.0, %v4107
      %v4109 = vpop.f32.mrf.mxu0
      %4110 = vmatprep.mubr.f32.mxu0 0.0
      %4111 = vmatmul.mubr.f32.gmra.mxu0 %v4016
      %v4112 = vpop.f32.mrf.mxu0
      %v4113 = vadd.f32 0.0, %v4112
      %v4114 = vpop.f32.mrf.mxu0
      %4115 = vmatprep.mubr.f32.mxu0 0.0
      %4116 = vmatmul.mubr.f32.gmra.mxu0 %v4019
      %v4117 = vpop.f32.mrf.mxu0
      %v4118 = vadd.f32 0.0, %v4117
      %v4119 = vpop.f32.mrf.mxu0
      %4120 = vmatprep.mubr.f32.mxu0 0.0
      %4121 = vmatmul.mubr.f32.gmra.mxu0 %v4022
      %v4122 = vpop.f32.mrf.mxu0
      %v4123 = vadd.f32 0.0, %v4122
      %v4124 = vpop.f32.mrf.mxu0
      %4125 = vmatprep.mubr.f32.mxu0 0.0
      %4126 = vmatmul.mubr.f32.gmra.mxu0 %v4025
      %v4127 = vpop.f32.mrf.mxu0
      %v4128 = vadd.f32 0.0, %v4127
      %v4129 = vpop.f32.mrf.mxu0
      %4130 = vmatprep.mubr.f32.mxu0 0.0
      %4131 = vmatmul.mubr.f32.gmra.mxu0 %v4028
      %v4132 = vpop.f32.mrf.mxu0
      %v4133 = vadd.f32 0.0, %v4132
      %v4134 = vpop.f32.mrf.mxu0
      %4135 = vmatprep.mubr.f32.mxu0 0.0
      %4136 = vmatmul.mubr.f32.gmra.mxu0 %v4031
      %v4137 = vpop.f32.mrf.mxu0
      %v4138 = vadd.f32 0.0, %v4137
      %v4139 = vpop.f32.mrf.mxu0
      %4140 = vdwg.mxu0
      %v4142 = vsel %vm380, %v3991, 0
      %v4145 = vsel %vm380, %v3992, 0
      %v4148 = vsel %vm380, %v3993, 0
      %v4151 = vsel %vm380, %v3994, 0
      %v4154 = vsel %vm380, %v3995, 0
      %v4157 = vsel %vm380, %v3996, 0
      %v4160 = vsel %vm380, %v3997, 0
      %v4163 = vsel %vm380, %v3998, 0
      %v4166 = vsel %vm405, %v3999, 0
      %4168 = vmatprep.subr.mxu0 0.0
      %4169 = vmatpush1.msra.mxu0 0.0
      %4170 = vmatprep.subr.mxu0 0.0
      %4171 = vmatpush1.msra.mxu0 0.0
      %4172 = vmatprep.subr.mxu0 0.0
      %4173 = vmatpush1.msra.mxu0 0.0
      %4174 = vmatprep.subr.mxu0 0.0
      %4175 = vmatpush1.msra.mxu0 0.0
      %4176 = vmatprep.subr.mxu0 0.0
      %4177 = vmatpush1.msra.mxu0 0.0
      %4178 = vmatprep.subr.mxu0 0.0
      %4179 = vmatpush1.msra.mxu0 0.0
      %4180 = vmatprep.subr.mxu0 0.0
      %4181 = vmatpush1.msra.mxu0 0.0
      %4182 = vmatprep.subr.mxu0 0.0
      %4183 = vmatpush1.msra.mxu0 0.0
      %4184 = vmatprep.subr.mxu0 0.0
      %4185 = vmatpush1.msra.mxu0 0.0
      %4186 = vmatprep.subr.mxu0 0.0
      %4187 = vmatpush1.msra.mxu0 0.0
      %4188 = vmatprep.subr.mxu0 0.0
      %4189 = vmatpush1.msra.mxu0 0.0
      %4190 = vmatprep.subr.mxu0 0.0
      %4191 = vmatpush1.msra.mxu0 0.0
      %4192 = vmatprep.subr.mxu0 0.0
      %4193 = vmatpush1.msra.mxu0 0.0
      %4194 = vmatprep.subr.mxu0 0.0
      %4195 = vmatpush1.msra.mxu0 0.0
      %4196 = vmatprep.subr.mxu0 0.0
      %4197 = vmatpush1.msra.mxu0 0.0
      %4198 = vmatprep.subr.mxu0 0.0
      %4199 = vmatpush1.msra.mxu0 %v4166
      %4200 = vmatprep.subr.mxu0 0.0
      %4201 = vmatpush2.msra.mxu0 0.0
      %4202 = vmatprep.subr.mxu0 0.0
      %4203 = vmatpush2.msra.mxu0 0.0
      %4204 = vmatprep.subr.mxu0 0.0
      %4205 = vmatpush2.msra.mxu0 0.0
      %4206 = vmatprep.subr.mxu0 0.0
      %4207 = vmatpush2.msra.mxu0 0.0
      %4208 = vmatprep.subr.mxu0 0.0
      %4209 = vmatpush2.msra.mxu0 0.0
      %4210 = vmatprep.subr.mxu0 0.0
      %4211 = vmatpush2.msra.mxu0 0.0
      %4212 = vmatprep.subr.mxu0 0.0
      %4213 = vmatpush2.msra.mxu0 0.0
      %4214 = vmatprep.subr.mxu0 0.0
      %4215 = vmatpush2.msra.mxu0 0.0
      %4216 = vmatprep.subr.mxu0 0.0
      %4217 = vmatpush2.msra.mxu0 0.0
      %4218 = vmatprep.subr.mxu0 0.0
      %4219 = vmatpush2.msra.mxu0 0.0
      %4220 = vmatprep.subr.mxu0 0.0
      %4221 = vmatpush2.msra.mxu0 0.0
      %4222 = vmatprep.subr.mxu0 0.0
      %4223 = vmatpush2.msra.mxu0 0.0
      %4224 = vmatprep.subr.mxu0 0.0
      %4225 = vmatpush2.msra.mxu0 0.0
      %4226 = vmatprep.subr.mxu0 0.0
      %4227 = vmatpush2.msra.mxu0 0.0
      %4228 = vmatprep.subr.mxu0 0.0
      %4229 = vmatpush2.msra.mxu0 0.0
      %4230 = vmatprep.subr.mxu0 0.0
      %4231 = vmatpush2.msra.mxu0 0.0
      %4232 = vmatprep.mubr.f32.mxu0 0.0
      %4233 = vmatmul.mubr.f32.gmra.mxu0 %v4142
      %v4234 = vpop.f32.mrf.mxu0
      %v4235 = vadd.f32 %v4103, %v4234
      %v4236 = vpop.f32.mrf.mxu0
      %4237 = vmatprep.mubr.f32.mxu0 0.0
      %4238 = vmatmul.mubr.f32.gmra.mxu0 %v4145
      %v4239 = vpop.f32.mrf.mxu0
      %v4240 = vadd.f32 %v4108, %v4239
      %v4241 = vpop.f32.mrf.mxu0
      %4242 = vmatprep.mubr.f32.mxu0 0.0
      %4243 = vmatmul.mubr.f32.gmra.mxu0 %v4148
      %v4244 = vpop.f32.mrf.mxu0
      %v4245 = vadd.f32 %v4113, %v4244
      %v4246 = vpop.f32.mrf.mxu0
      %4247 = vmatprep.mubr.f32.mxu0 0.0
      %4248 = vmatmul.mubr.f32.gmra.mxu0 %v4151
      %v4249 = vpop.f32.mrf.mxu0
      %v4250 = vadd.f32 %v4118, %v4249
      %v4251 = vpop.f32.mrf.mxu0
      %4252 = vmatprep.mubr.f32.mxu0 0.0
      %4253 = vmatmul.mubr.f32.gmra.mxu0 %v4154
      %v4254 = vpop.f32.mrf.mxu0
      %v4255 = vadd.f32 %v4123, %v4254
      %v4256 = vpop.f32.mrf.mxu0
      %4257 = vmatprep.mubr.f32.mxu0 0.0
      %4258 = vmatmul.mubr.f32.gmra.mxu0 %v4157
      %v4259 = vpop.f32.mrf.mxu0
      %v4260 = vadd.f32 %v4128, %v4259
      %v4261 = vpop.f32.mrf.mxu0
      %4262 = vmatprep.mubr.f32.mxu0 0.0
      %4263 = vmatmul.mubr.f32.gmra.mxu0 %v4160
      %v4264 = vpop.f32.mrf.mxu0
      %v4265 = vadd.f32 %v4133, %v4264
      %v4266 = vpop.f32.mrf.mxu0
      %4267 = vmatprep.mubr.f32.mxu0 0.0
      %4268 = vmatmul.mubr.f32.gmra.mxu0 %v4163
      %v4269 = vpop.f32.mrf.mxu0
      %v4270 = vadd.f32 %v4138, %v4269
      %v4271 = vpop.f32.mrf.mxu0
      %4272 = vdwg.mxu0
      %v4273 = vld [vmem:[%s2635 + $0x9] sm:$0xff]
      %v4274 = vld [vmem:[%s2635 + $0x21] sm:$0xff]
      %v4275 = vld [vmem:[%s2635 + $0x39] sm:$0xff]
      %v4276 = vld [vmem:[%s2635 + $0x51] sm:$0xff]
      %v4277 = vld [vmem:[%s2635 + $0x69] sm:$0xff]
      %v4278 = vld [vmem:[%s2635 + $0x81] sm:$0xff]
      %v4279 = vld [vmem:[%s2635 + $0x99] sm:$0xff]
      %v4280 = vld [vmem:[%s2635 + $0xb1] sm:$0xff]
      %v4281 = vld [vmem:[%s2918] sm:$0xf]
      %v4283 = vsel %vm380, %v4273, 0
      %v4286 = vsel %vm380, %v4274, 0
      %v4289 = vsel %vm380, %v4275, 0
      %v4292 = vsel %vm380, %v4276, 0
      %v4295 = vsel %vm380, %v4277, 0
      %v4298 = vsel %vm380, %v4278, 0
      %v4301 = vsel %vm380, %v4279, 0
      %v4304 = vsel %vm380, %v4280, 0
      %v4307 = vsel %vm405, %v4281, 0
      %4309 = vmatprep.subr.mxu0 0.0
      %4310 = vmatpush1.msra.mxu0 0.0
      %4311 = vmatprep.subr.mxu0 0.0
      %4312 = vmatpush1.msra.mxu0 0.0
      %4313 = vmatprep.subr.mxu0 0.0
      %4314 = vmatpush1.msra.mxu0 0.0
      %4315 = vmatprep.subr.mxu0 0.0
      %4316 = vmatpush1.msra.mxu0 0.0
      %4317 = vmatprep.subr.mxu0 0.0
      %4318 = vmatpush1.msra.mxu0 0.0
      %4319 = vmatprep.subr.mxu0 0.0
      %4320 = vmatpush1.msra.mxu0 0.0
      %4321 = vmatprep.subr.mxu0 0.0
      %4322 = vmatpush1.msra.mxu0 0.0
      %4323 = vmatprep.subr.mxu0 0.0
      %4324 = vmatpush1.msra.mxu0 0.0
      %4325 = vmatprep.subr.mxu0 0.0
      %4326 = vmatpush1.msra.mxu0 0.0
      %4327 = vmatprep.subr.mxu0 0.0
      %4328 = vmatpush1.msra.mxu0 0.0
      %4329 = vmatprep.subr.mxu0 0.0
      %4330 = vmatpush1.msra.mxu0 0.0
      %4331 = vmatprep.subr.mxu0 0.0
      %4332 = vmatpush1.msra.mxu0 0.0
      %4333 = vmatprep.subr.mxu0 0.0
      %4334 = vmatpush1.msra.mxu0 0.0
      %4335 = vmatprep.subr.mxu0 0.0
      %4336 = vmatpush1.msra.mxu0 0.0
      %4337 = vmatprep.subr.mxu0 0.0
      %4338 = vmatpush1.msra.mxu0 0.0
      %4339 = vmatprep.subr.mxu0 0.0
      %4340 = vmatpush1.msra.mxu0 %v4307
      %4341 = vmatprep.subr.mxu0 0.0
      %4342 = vmatpush2.msra.mxu0 0.0
      %4343 = vmatprep.subr.mxu0 0.0
      %4344 = vmatpush2.msra.mxu0 0.0
      %4345 = vmatprep.subr.mxu0 0.0
      %4346 = vmatpush2.msra.mxu0 0.0
      %4347 = vmatprep.subr.mxu0 0.0
      %4348 = vmatpush2.msra.mxu0 0.0
      %4349 = vmatprep.subr.mxu0 0.0
      %4350 = vmatpush2.msra.mxu0 0.0
      %4351 = vmatprep.subr.mxu0 0.0
      %4352 = vmatpush2.msra.mxu0 0.0
      %4353 = vmatprep.subr.mxu0 0.0
      %4354 = vmatpush2.msra.mxu0 0.0
      %4355 = vmatprep.subr.mxu0 0.0
      %4356 = vmatpush2.msra.mxu0 0.0
      %4357 = vmatprep.subr.mxu0 0.0
      %4358 = vmatpush2.msra.mxu0 0.0
      %4359 = vmatprep.subr.mxu0 0.0
      %4360 = vmatpush2.msra.mxu0 0.0
      %4361 = vmatprep.subr.mxu0 0.0
      %4362 = vmatpush2.msra.mxu0 0.0
      %4363 = vmatprep.subr.mxu0 0.0
      %4364 = vmatpush2.msra.mxu0 0.0
      %4365 = vmatprep.subr.mxu0 0.0
      %4366 = vmatpush2.msra.mxu0 0.0
      %4367 = vmatprep.subr.mxu0 0.0
      %4368 = vmatpush2.msra.mxu0 0.0
      %4369 = vmatprep.subr.mxu0 0.0
      %4370 = vmatpush2.msra.mxu0 0.0
      %4371 = vmatprep.subr.mxu0 0.0
      %4372 = vmatpush2.msra.mxu0 0.0
      %4373 = vmatprep.mubr.f32.mxu0 0.0
      %4374 = vmatmul.mubr.f32.gmra.mxu0 %v4283
      %v4375 = vpop.f32.mrf.mxu0
      %v4376 = vadd.f32 0.0, %v4375
      %v4377 = vpop.f32.mrf.mxu0
      %4378 = vmatprep.mubr.f32.mxu0 0.0
      %4379 = vmatmul.mubr.f32.gmra.mxu0 %v4286
      %v4380 = vpop.f32.mrf.mxu0
      %v4381 = vadd.f32 0.0, %v4380
      %v4382 = vpop.f32.mrf.mxu0
      %4383 = vmatprep.mubr.f32.mxu0 0.0
      %4384 = vmatmul.mubr.f32.gmra.mxu0 %v4289
      %v4385 = vpop.f32.mrf.mxu0
      %v4386 = vadd.f32 0.0, %v4385
      %v4387 = vpop.f32.mrf.mxu0
      %4388 = vmatprep.mubr.f32.mxu0 0.0
      %4389 = vmatmul.mubr.f32.gmra.mxu0 %v4292
      %v4390 = vpop.f32.mrf.mxu0
      %v4391 = vadd.f32 0.0, %v4390
      %v4392 = vpop.f32.mrf.mxu0
      %4393 = vmatprep.mubr.f32.mxu0 0.0
      %4394 = vmatmul.mubr.f32.gmra.mxu0 %v4295
      %v4395 = vpop.f32.mrf.mxu0
      %v4396 = vadd.f32 0.0, %v4395
      %v4397 = vpop.f32.mrf.mxu0
      %4398 = vmatprep.mubr.f32.mxu0 0.0
      %4399 = vmatmul.mubr.f32.gmra.mxu0 %v4298
      %v4400 = vpop.f32.mrf.mxu0
      %v4401 = vadd.f32 0.0, %v4400
      %v4402 = vpop.f32.mrf.mxu0
      %4403 = vmatprep.mubr.f32.mxu0 0.0
      %4404 = vmatmul.mubr.f32.gmra.mxu0 %v4301
      %v4405 = vpop.f32.mrf.mxu0
      %v4406 = vadd.f32 0.0, %v4405
      %v4407 = vpop.f32.mrf.mxu0
      %4408 = vmatprep.mubr.f32.mxu0 0.0
      %4409 = vmatmul.mubr.f32.gmra.mxu0 %v4304
      %v4410 = vpop.f32.mrf.mxu0
      %v4411 = vadd.f32 0.0, %v4410
      %v4412 = vpop.f32.mrf.mxu0
      %4413 = vdwg.mxu0
      %v4414 = vadd.f32 %v4235, %v4376
      %v4415 = vadd.f32 %v4240, %v4381
      %v4416 = vadd.f32 %v4245, %v4386
      %v4417 = vadd.f32 %v4250, %v4391
      %v4418 = vadd.f32 %v4255, %v4396
      %v4419 = vadd.f32 %v4260, %v4401
      %v4420 = vadd.f32 %v4265, %v4406
      %v4421 = vadd.f32 %v4270, %v4411
      %v4422 = vld [vmem:[%s2047 + $0x8] sm:$0xff]
      %v4423 = vld [vmem:[%s2047 + $0x20] sm:$0xff]
      %v4424 = vld [vmem:[%s2047 + $0x38] sm:$0xff]
      %v4425 = vld [vmem:[%s2047 + $0x50] sm:$0xff]
      %v4426 = vld [vmem:[%s2047 + $0x68] sm:$0xff]
      %v4427 = vld [vmem:[%s2047 + $0x80] sm:$0xff]
      %v4428 = vld [vmem:[%s2047 + $0x98] sm:$0xff]
      %v4429 = vld [vmem:[%s2047 + $0xb0] sm:$0xff]
      %v4430 = vld [vmem:[%s3068] sm:$0xf]
      %v4432 = vsel %vm380, %v4422, 0
      %v4435 = vsel %vm380, %v4423, 0
      %v4438 = vsel %vm380, %v4424, 0
      %v4441 = vsel %vm380, %v4425, 0
      %v4444 = vsel %vm380, %v4426, 0
      %v4447 = vsel %vm380, %v4427, 0
      %v4450 = vsel %vm380, %v4428, 0
      %v4453 = vsel %vm380, %v4429, 0
      %v4456 = vsel %vm405, %v4430, 0
      %4458 = vmatprep.subr.mxu0 0.0
      %4459 = vmatpush1.msra.mxu0 0.0
      %4460 = vmatprep.subr.mxu0 0.0
      %4461 = vmatpush1.msra.mxu0 0.0
      %4462 = vmatprep.subr.mxu0 0.0
      %4463 = vmatpush1.msra.mxu0 0.0
      %4464 = vmatprep.subr.mxu0 0.0
      %4465 = vmatpush1.msra.mxu0 0.0
      %4466 = vmatprep.subr.mxu0 0.0
      %4467 = vmatpush1.msra.mxu0 0.0
      %4468 = vmatprep.subr.mxu0 0.0
      %4469 = vmatpush1.msra.mxu0 0.0
      %4470 = vmatprep.subr.mxu0 0.0
      %4471 = vmatpush1.msra.mxu0 0.0
      %4472 = vmatprep.subr.mxu0 0.0
      %4473 = vmatpush1.msra.mxu0 0.0
      %4474 = vmatprep.subr.mxu0 0.0
      %4475 = vmatpush1.msra.mxu0 0.0
      %4476 = vmatprep.subr.mxu0 0.0
      %4477 = vmatpush1.msra.mxu0 0.0
      %4478 = vmatprep.subr.mxu0 0.0
      %4479 = vmatpush1.msra.mxu0 0.0
      %4480 = vmatprep.subr.mxu0 0.0
      %4481 = vmatpush1.msra.mxu0 0.0
      %4482 = vmatprep.subr.mxu0 0.0
      %4483 = vmatpush1.msra.mxu0 0.0
      %4484 = vmatprep.subr.mxu0 0.0
      %4485 = vmatpush1.msra.mxu0 0.0
      %4486 = vmatprep.subr.mxu0 0.0
      %4487 = vmatpush1.msra.mxu0 0.0
      %4488 = vmatprep.subr.mxu0 0.0
      %4489 = vmatpush1.msra.mxu0 %v4456
      %4490 = vmatprep.subr.mxu0 0.0
      %4491 = vmatpush2.msra.mxu0 0.0
      %4492 = vmatprep.subr.mxu0 0.0
      %4493 = vmatpush2.msra.mxu0 0.0
      %4494 = vmatprep.subr.mxu0 0.0
      %4495 = vmatpush2.msra.mxu0 0.0
      %4496 = vmatprep.subr.mxu0 0.0
      %4497 = vmatpush2.msra.mxu0 0.0
      %4498 = vmatprep.subr.mxu0 0.0
      %4499 = vmatpush2.msra.mxu0 0.0
      %4500 = vmatprep.subr.mxu0 0.0
      %4501 = vmatpush2.msra.mxu0 0.0
      %4502 = vmatprep.subr.mxu0 0.0
      %4503 = vmatpush2.msra.mxu0 0.0
      %4504 = vmatprep.subr.mxu0 0.0
      %4505 = vmatpush2.msra.mxu0 0.0
      %4506 = vmatprep.subr.mxu0 0.0
      %4507 = vmatpush2.msra.mxu0 0.0
      %4508 = vmatprep.subr.mxu0 0.0
      %4509 = vmatpush2.msra.mxu0 0.0
      %4510 = vmatprep.subr.mxu0 0.0
      %4511 = vmatpush2.msra.mxu0 0.0
      %4512 = vmatprep.subr.mxu0 0.0
      %4513 = vmatpush2.msra.mxu0 0.0
      %4514 = vmatprep.subr.mxu0 0.0
      %4515 = vmatpush2.msra.mxu0 0.0
      %4516 = vmatprep.subr.mxu0 0.0
      %4517 = vmatpush2.msra.mxu0 0.0
      %4518 = vmatprep.subr.mxu0 0.0
      %4519 = vmatpush2.msra.mxu0 0.0
      %4520 = vmatprep.subr.mxu0 0.0
      %4521 = vmatpush2.msra.mxu0 0.0
      %4522 = vmatprep.mubr.f32.mxu0 0.0
      %4523 = vmatmul.mubr.f32.gmra.mxu0 %v4432
      %v4524 = vpop.f32.mrf.mxu0
      %v4525 = vadd.f32 0.0, %v4524
      %v4526 = vpop.f32.mrf.mxu0
      %4527 = vmatprep.mubr.f32.mxu0 0.0
      %4528 = vmatmul.mubr.f32.gmra.mxu0 %v4435
      %v4529 = vpop.f32.mrf.mxu0
      %v4530 = vadd.f32 0.0, %v4529
      %v4531 = vpop.f32.mrf.mxu0
      %4532 = vmatprep.mubr.f32.mxu0 0.0
      %4533 = vmatmul.mubr.f32.gmra.mxu0 %v4438
      %v4534 = vpop.f32.mrf.mxu0
      %v4535 = vadd.f32 0.0, %v4534
      %v4536 = vpop.f32.mrf.mxu0
      %4537 = vmatprep.mubr.f32.mxu0 0.0
      %4538 = vmatmul.mubr.f32.gmra.mxu0 %v4441
      %v4539 = vpop.f32.mrf.mxu0
      %v4540 = vadd.f32 0.0, %v4539
      %v4541 = vpop.f32.mrf.mxu0
      %4542 = vmatprep.mubr.f32.mxu0 0.0
      %4543 = vmatmul.mubr.f32.gmra.mxu0 %v4444
      %v4544 = vpop.f32.mrf.mxu0
      %v4545 = vadd.f32 0.0, %v4544
      %v4546 = vpop.f32.mrf.mxu0
      %4547 = vmatprep.mubr.f32.mxu0 0.0
      %4548 = vmatmul.mubr.f32.gmra.mxu0 %v4447
      %v4549 = vpop.f32.mrf.mxu0
      %v4550 = vadd.f32 0.0, %v4549
      %v4551 = vpop.f32.mrf.mxu0
      %4552 = vmatprep.mubr.f32.mxu0 0.0
      %4553 = vmatmul.mubr.f32.gmra.mxu0 %v4450
      %v4554 = vpop.f32.mrf.mxu0
      %v4555 = vadd.f32 0.0, %v4554
      %v4556 = vpop.f32.mrf.mxu0
      %4557 = vmatprep.mubr.f32.mxu0 0.0
      %4558 = vmatmul.mubr.f32.gmra.mxu0 %v4453
      %v4559 = vpop.f32.mrf.mxu0
      %v4560 = vadd.f32 0.0, %v4559
      %v4561 = vpop.f32.mrf.mxu0
      %4562 = vdwg.mxu0
      %v4563 = vadd.f32 %v4414, %v4525
      %v4564 = vadd.f32 %v4415, %v4530
      %v4565 = vadd.f32 %v4416, %v4535
      %v4566 = vadd.f32 %v4417, %v4540
      %v4567 = vadd.f32 %v4418, %v4545
      %v4568 = vadd.f32 %v4419, %v4550
      %v4569 = vadd.f32 %v4420, %v4555
      %v4570 = vadd.f32 %v4421, %v4560
      %v4571 = vld [vmem:[%s2212 + $0x8] sm:$0xff]
      %v4572 = vld [vmem:[%s2212 + $0x20] sm:$0xff]
      %v4573 = vld [vmem:[%s2212 + $0x38] sm:$0xff]
      %v4574 = vld [vmem:[%s2212 + $0x50] sm:$0xff]
      %v4575 = vld [vmem:[%s2212 + $0x68] sm:$0xff]
      %v4576 = vld [vmem:[%s2212 + $0x80] sm:$0xff]
      %v4577 = vld [vmem:[%s2212 + $0x98] sm:$0xff]
      %v4578 = vld [vmem:[%s2212 + $0xb0] sm:$0xff]
      %v4579 = vld [vmem:[%s3218] sm:$0xf]
      %v4581 = vsel %vm380, %v4571, 0
      %v4584 = vsel %vm380, %v4572, 0
      %v4587 = vsel %vm380, %v4573, 0
      %v4590 = vsel %vm380, %v4574, 0
      %v4593 = vsel %vm380, %v4575, 0
      %v4596 = vsel %vm380, %v4576, 0
      %v4599 = vsel %vm380, %v4577, 0
      %v4602 = vsel %vm380, %v4578, 0
      %v4605 = vsel %vm405, %v4579, 0
      %4607 = vmatprep.subr.mxu0 0.0
      %4608 = vmatpush1.msra.mxu0 0.0
      %4609 = vmatprep.subr.mxu0 0.0
      %4610 = vmatpush1.msra.mxu0 0.0
      %4611 = vmatprep.subr.mxu0 0.0
      %4612 = vmatpush1.msra.mxu0 0.0
      %4613 = vmatprep.subr.mxu0 0.0
      %4614 = vmatpush1.msra.mxu0 0.0
      %4615 = vmatprep.subr.mxu0 0.0
      %4616 = vmatpush1.msra.mxu0 0.0
      %4617 = vmatprep.subr.mxu0 0.0
      %4618 = vmatpush1.msra.mxu0 0.0
      %4619 = vmatprep.subr.mxu0 0.0
      %4620 = vmatpush1.msra.mxu0 0.0
      %4621 = vmatprep.subr.mxu0 0.0
      %4622 = vmatpush1.msra.mxu0 0.0
      %4623 = vmatprep.subr.mxu0 0.0
      %4624 = vmatpush1.msra.mxu0 0.0
      %4625 = vmatprep.subr.mxu0 0.0
      %4626 = vmatpush1.msra.mxu0 0.0
      %4627 = vmatprep.subr.mxu0 0.0
      %4628 = vmatpush1.msra.mxu0 0.0
      %4629 = vmatprep.subr.mxu0 0.0
      %4630 = vmatpush1.msra.mxu0 0.0
      %4631 = vmatprep.subr.mxu0 0.0
      %4632 = vmatpush1.msra.mxu0 0.0
      %4633 = vmatprep.subr.mxu0 0.0
      %4634 = vmatpush1.msra.mxu0 0.0
      %4635 = vmatprep.subr.mxu0 0.0
      %4636 = vmatpush1.msra.mxu0 0.0
      %4637 = vmatprep.subr.mxu0 0.0
      %4638 = vmatpush1.msra.mxu0 %v4605
      %4639 = vmatprep.subr.mxu0 0.0
      %4640 = vmatpush2.msra.mxu0 0.0
      %4641 = vmatprep.subr.mxu0 0.0
      %4642 = vmatpush2.msra.mxu0 0.0
      %4643 = vmatprep.subr.mxu0 0.0
      %4644 = vmatpush2.msra.mxu0 0.0
      %4645 = vmatprep.subr.mxu0 0.0
      %4646 = vmatpush2.msra.mxu0 0.0
      %4647 = vmatprep.subr.mxu0 0.0
      %4648 = vmatpush2.msra.mxu0 0.0
      %4649 = vmatprep.subr.mxu0 0.0
      %4650 = vmatpush2.msra.mxu0 0.0
      %4651 = vmatprep.subr.mxu0 0.0
      %4652 = vmatpush2.msra.mxu0 0.0
      %4653 = vmatprep.subr.mxu0 0.0
      %4654 = vmatpush2.msra.mxu0 0.0
      %4655 = vmatprep.subr.mxu0 0.0
      %4656 = vmatpush2.msra.mxu0 0.0
      %4657 = vmatprep.subr.mxu0 0.0
      %4658 = vmatpush2.msra.mxu0 0.0
      %4659 = vmatprep.subr.mxu0 0.0
      %4660 = vmatpush2.msra.mxu0 0.0
      %4661 = vmatprep.subr.mxu0 0.0
      %4662 = vmatpush2.msra.mxu0 0.0
      %4663 = vmatprep.subr.mxu0 0.0
      %4664 = vmatpush2.msra.mxu0 0.0
      %4665 = vmatprep.subr.mxu0 0.0
      %4666 = vmatpush2.msra.mxu0 0.0
      %4667 = vmatprep.subr.mxu0 0.0
      %4668 = vmatpush2.msra.mxu0 0.0
      %4669 = vmatprep.subr.mxu0 0.0
      %4670 = vmatpush2.msra.mxu0 0.0
      %4671 = vmatprep.mubr.f32.mxu0 0.0
      %4672 = vmatmul.mubr.f32.gmra.mxu0 %v4581
      %v4673 = vpop.f32.mrf.mxu0
      %v4674 = vadd.f32 0.0, %v4673
      %v4675 = vpop.f32.mrf.mxu0
      %4676 = vmatprep.mubr.f32.mxu0 0.0
      %4677 = vmatmul.mubr.f32.gmra.mxu0 %v4584
      %v4678 = vpop.f32.mrf.mxu0
      %v4679 = vadd.f32 0.0, %v4678
      %v4680 = vpop.f32.mrf.mxu0
      %4681 = vmatprep.mubr.f32.mxu0 0.0
      %4682 = vmatmul.mubr.f32.gmra.mxu0 %v4587
      %v4683 = vpop.f32.mrf.mxu0
      %v4684 = vadd.f32 0.0, %v4683
      %v4685 = vpop.f32.mrf.mxu0
      %4686 = vmatprep.mubr.f32.mxu0 0.0
      %4687 = vmatmul.mubr.f32.gmra.mxu0 %v4590
      %v4688 = vpop.f32.mrf.mxu0
      %v4689 = vadd.f32 0.0, %v4688
      %v4690 = vpop.f32.mrf.mxu0
      %4691 = vmatprep.mubr.f32.mxu0 0.0
      %4692 = vmatmul.mubr.f32.gmra.mxu0 %v4593
      %v4693 = vpop.f32.mrf.mxu0
      %v4694 = vadd.f32 0.0, %v4693
      %v4695 = vpop.f32.mrf.mxu0
      %4696 = vmatprep.mubr.f32.mxu0 0.0
      %4697 = vmatmul.mubr.f32.gmra.mxu0 %v4596
      %v4698 = vpop.f32.mrf.mxu0
      %v4699 = vadd.f32 0.0, %v4698
      %v4700 = vpop.f32.mrf.mxu0
      %4701 = vmatprep.mubr.f32.mxu0 0.0
      %4702 = vmatmul.mubr.f32.gmra.mxu0 %v4599
      %v4703 = vpop.f32.mrf.mxu0
      %v4704 = vadd.f32 0.0, %v4703
      %v4705 = vpop.f32.mrf.mxu0
      %4706 = vmatprep.mubr.f32.mxu0 0.0
      %4707 = vmatmul.mubr.f32.gmra.mxu0 %v4602
      %v4708 = vpop.f32.mrf.mxu0
      %v4709 = vadd.f32 0.0, %v4708
      %v4710 = vpop.f32.mrf.mxu0
      %4711 = vdwg.mxu0
      %v4712 = vadd.f32 %v4563, %v4674
      %v4713 = vadd.f32 %v4564, %v4679
      %v4714 = vadd.f32 %v4565, %v4684
      %v4715 = vadd.f32 %v4566, %v4689
      %v4716 = vadd.f32 %v4567, %v4694
      %v4717 = vadd.f32 %v4568, %v4699
      %v4718 = vadd.f32 %v4569, %v4704
      %v4719 = vadd.f32 %v4570, %v4709
      %v4720 = vld [vmem:[%s2047 + $0x9] sm:$0xff]
      %v4721 = vld [vmem:[%s2047 + $0x21] sm:$0xff]
      %v4722 = vld [vmem:[%s2047 + $0x39] sm:$0xff]
      %v4723 = vld [vmem:[%s2047 + $0x51] sm:$0xff]
      %v4724 = vld [vmem:[%s2047 + $0x69] sm:$0xff]
      %v4725 = vld [vmem:[%s2047 + $0x81] sm:$0xff]
      %v4726 = vld [vmem:[%s2047 + $0x99] sm:$0xff]
      %v4727 = vld [vmem:[%s2047 + $0xb1] sm:$0xff]
      %v4728 = vld [vmem:[%s3368] sm:$0xf]
      %v4730 = vsel %vm380, %v4720, 0
      %v4733 = vsel %vm380, %v4721, 0
      %v4736 = vsel %vm380, %v4722, 0
      %v4739 = vsel %vm380, %v4723, 0
      %v4742 = vsel %vm380, %v4724, 0
      %v4745 = vsel %vm380, %v4725, 0
      %v4748 = vsel %vm380, %v4726, 0
      %v4751 = vsel %vm380, %v4727, 0
      %v4754 = vsel %vm405, %v4728, 0
      %4756 = vmatprep.subr.mxu0 0.0
      %4757 = vmatpush1.msra.mxu0 0.0
      %4758 = vmatprep.subr.mxu0 0.0
      %4759 = vmatpush1.msra.mxu0 0.0
      %4760 = vmatprep.subr.mxu0 0.0
      %4761 = vmatpush1.msra.mxu0 0.0
      %4762 = vmatprep.subr.mxu0 0.0
      %4763 = vmatpush1.msra.mxu0 0.0
      %4764 = vmatprep.subr.mxu0 0.0
      %4765 = vmatpush1.msra.mxu0 0.0
      %4766 = vmatprep.subr.mxu0 0.0
      %4767 = vmatpush1.msra.mxu0 0.0
      %4768 = vmatprep.subr.mxu0 0.0
      %4769 = vmatpush1.msra.mxu0 0.0
      %4770 = vmatprep.subr.mxu0 0.0
      %4771 = vmatpush1.msra.mxu0 0.0
      %4772 = vmatprep.subr.mxu0 0.0
      %4773 = vmatpush1.msra.mxu0 0.0
      %4774 = vmatprep.subr.mxu0 0.0
      %4775 = vmatpush1.msra.mxu0 0.0
      %4776 = vmatprep.subr.mxu0 0.0
      %4777 = vmatpush1.msra.mxu0 0.0
      %4778 = vmatprep.subr.mxu0 0.0
      %4779 = vmatpush1.msra.mxu0 0.0
      %4780 = vmatprep.subr.mxu0 0.0
      %4781 = vmatpush1.msra.mxu0 0.0
      %4782 = vmatprep.subr.mxu0 0.0
      %4783 = vmatpush1.msra.mxu0 0.0
      %4784 = vmatprep.subr.mxu0 0.0
      %4785 = vmatpush1.msra.mxu0 0.0
      %4786 = vmatprep.subr.mxu0 0.0
      %4787 = vmatpush1.msra.mxu0 %v4754
      %4788 = vmatprep.subr.mxu0 0.0
      %4789 = vmatpush2.msra.mxu0 0.0
      %4790 = vmatprep.subr.mxu0 0.0
      %4791 = vmatpush2.msra.mxu0 0.0
      %4792 = vmatprep.subr.mxu0 0.0
      %4793 = vmatpush2.msra.mxu0 0.0
      %4794 = vmatprep.subr.mxu0 0.0
      %4795 = vmatpush2.msra.mxu0 0.0
      %4796 = vmatprep.subr.mxu0 0.0
      %4797 = vmatpush2.msra.mxu0 0.0
      %4798 = vmatprep.subr.mxu0 0.0
      %4799 = vmatpush2.msra.mxu0 0.0
      %4800 = vmatprep.subr.mxu0 0.0
      %4801 = vmatpush2.msra.mxu0 0.0
      %4802 = vmatprep.subr.mxu0 0.0
      %4803 = vmatpush2.msra.mxu0 0.0
      %4804 = vmatprep.subr.mxu0 0.0
      %4805 = vmatpush2.msra.mxu0 0.0
      %4806 = vmatprep.subr.mxu0 0.0
      %4807 = vmatpush2.msra.mxu0 0.0
      %4808 = vmatprep.subr.mxu0 0.0
      %4809 = vmatpush2.msra.mxu0 0.0
      %4810 = vmatprep.subr.mxu0 0.0
      %4811 = vmatpush2.msra.mxu0 0.0
      %4812 = vmatprep.subr.mxu0 0.0
      %4813 = vmatpush2.msra.mxu0 0.0
      %4814 = vmatprep.subr.mxu0 0.0
      %4815 = vmatpush2.msra.mxu0 0.0
      %4816 = vmatprep.subr.mxu0 0.0
      %4817 = vmatpush2.msra.mxu0 0.0
      %4818 = vmatprep.subr.mxu0 0.0
      %4819 = vmatpush2.msra.mxu0 0.0
      %4820 = vmatprep.mubr.f32.mxu0 0.0
      %4821 = vmatmul.mubr.f32.gmra.mxu0 %v4730
      %v4822 = vpop.f32.mrf.mxu0
      %v4823 = vadd.f32 0.0, %v4822
      %v4824 = vpop.f32.mrf.mxu0
      %4825 = vmatprep.mubr.f32.mxu0 0.0
      %4826 = vmatmul.mubr.f32.gmra.mxu0 %v4733
      %v4827 = vpop.f32.mrf.mxu0
      %v4828 = vadd.f32 0.0, %v4827
      %v4829 = vpop.f32.mrf.mxu0
      %4830 = vmatprep.mubr.f32.mxu0 0.0
      %4831 = vmatmul.mubr.f32.gmra.mxu0 %v4736
      %v4832 = vpop.f32.mrf.mxu0
      %v4833 = vadd.f32 0.0, %v4832
      %v4834 = vpop.f32.mrf.mxu0
      %4835 = vmatprep.mubr.f32.mxu0 0.0
      %4836 = vmatmul.mubr.f32.gmra.mxu0 %v4739
      %v4837 = vpop.f32.mrf.mxu0
      %v4838 = vadd.f32 0.0, %v4837
      %v4839 = vpop.f32.mrf.mxu0
      %4840 = vmatprep.mubr.f32.mxu0 0.0
      %4841 = vmatmul.mubr.f32.gmra.mxu0 %v4742
      %v4842 = vpop.f32.mrf.mxu0
      %v4843 = vadd.f32 0.0, %v4842
      %v4844 = vpop.f32.mrf.mxu0
      %4845 = vmatprep.mubr.f32.mxu0 0.0
      %4846 = vmatmul.mubr.f32.gmra.mxu0 %v4745
      %v4847 = vpop.f32.mrf.mxu0
      %v4848 = vadd.f32 0.0, %v4847
      %v4849 = vpop.f32.mrf.mxu0
      %4850 = vmatprep.mubr.f32.mxu0 0.0
      %4851 = vmatmul.mubr.f32.gmra.mxu0 %v4748
      %v4852 = vpop.f32.mrf.mxu0
      %v4853 = vadd.f32 0.0, %v4852
      %v4854 = vpop.f32.mrf.mxu0
      %4855 = vmatprep.mubr.f32.mxu0 0.0
      %4856 = vmatmul.mubr.f32.gmra.mxu0 %v4751
      %v4857 = vpop.f32.mrf.mxu0
      %v4858 = vadd.f32 0.0, %v4857
      %v4859 = vpop.f32.mrf.mxu0
      %4860 = vdwg.mxu0
      %v4861 = vadd.f32 %v4712, %v4823
      %v4862 = vadd.f32 %v4713, %v4828
      %v4863 = vadd.f32 %v4714, %v4833
      %v4864 = vadd.f32 %v4715, %v4838
      %v4865 = vadd.f32 %v4716, %v4843
      %v4866 = vadd.f32 %v4717, %v4848
      %v4867 = vadd.f32 %v4718, %v4853
      %v4868 = vadd.f32 %v4719, %v4858
      %v4869 = vld [vmem:[%s2377 + $0x8] sm:$0xff]
      %v4870 = vld [vmem:[%s2377 + $0x20] sm:$0xff]
      %v4871 = vld [vmem:[%s2377 + $0x38] sm:$0xff]
      %v4872 = vld [vmem:[%s2377 + $0x50] sm:$0xff]
      %v4873 = vld [vmem:[%s2377 + $0x68] sm:$0xff]
      %v4874 = vld [vmem:[%s2377 + $0x80] sm:$0xff]
      %v4875 = vld [vmem:[%s2377 + $0x98] sm:$0xff]
      %v4876 = vld [vmem:[%s2377 + $0xb0] sm:$0xff]
      %v4877 = vld [vmem:[%s3518] sm:$0xf]
      %v4879 = vsel %vm380, %v4869, 0
      %v4882 = vsel %vm380, %v4870, 0
      %v4885 = vsel %vm380, %v4871, 0
      %v4888 = vsel %vm380, %v4872, 0
      %v4891 = vsel %vm380, %v4873, 0
      %v4894 = vsel %vm380, %v4874, 0
      %v4897 = vsel %vm380, %v4875, 0
      %v4900 = vsel %vm380, %v4876, 0
      %v4903 = vsel %vm405, %v4877, 0
      %4905 = vmatprep.subr.mxu0 0.0
      %4906 = vmatpush1.msra.mxu0 0.0
      %4907 = vmatprep.subr.mxu0 0.0
      %4908 = vmatpush1.msra.mxu0 0.0
      %4909 = vmatprep.subr.mxu0 0.0
      %4910 = vmatpush1.msra.mxu0 0.0
      %4911 = vmatprep.subr.mxu0 0.0
      %4912 = vmatpush1.msra.mxu0 0.0
      %4913 = vmatprep.subr.mxu0 0.0
      %4914 = vmatpush1.msra.mxu0 0.0
      %4915 = vmatprep.subr.mxu0 0.0
      %4916 = vmatpush1.msra.mxu0 0.0
      %4917 = vmatprep.subr.mxu0 0.0
      %4918 = vmatpush1.msra.mxu0 0.0
      %4919 = vmatprep.subr.mxu0 0.0
      %4920 = vmatpush1.msra.mxu0 0.0
      %4921 = vmatprep.subr.mxu0 0.0
      %4922 = vmatpush1.msra.mxu0 0.0
      %4923 = vmatprep.subr.mxu0 0.0
      %4924 = vmatpush1.msra.mxu0 0.0
      %4925 = vmatprep.subr.mxu0 0.0
      %4926 = vmatpush1.msra.mxu0 0.0
      %4927 = vmatprep.subr.mxu0 0.0
      %4928 = vmatpush1.msra.mxu0 0.0
      %4929 = vmatprep.subr.mxu0 0.0
      %4930 = vmatpush1.msra.mxu0 0.0
      %4931 = vmatprep.subr.mxu0 0.0
      %4932 = vmatpush1.msra.mxu0 0.0
      %4933 = vmatprep.subr.mxu0 0.0
      %4934 = vmatpush1.msra.mxu0 0.0
      %4935 = vmatprep.subr.mxu0 0.0
      %4936 = vmatpush1.msra.mxu0 %v4903
      %4937 = vmatprep.subr.mxu0 0.0
      %4938 = vmatpush2.msra.mxu0 0.0
      %4939 = vmatprep.subr.mxu0 0.0
      %4940 = vmatpush2.msra.mxu0 0.0
      %4941 = vmatprep.subr.mxu0 0.0
      %4942 = vmatpush2.msra.mxu0 0.0
      %4943 = vmatprep.subr.mxu0 0.0
      %4944 = vmatpush2.msra.mxu0 0.0
      %4945 = vmatprep.subr.mxu0 0.0
      %4946 = vmatpush2.msra.mxu0 0.0
      %4947 = vmatprep.subr.mxu0 0.0
      %4948 = vmatpush2.msra.mxu0 0.0
      %4949 = vmatprep.subr.mxu0 0.0
      %4950 = vmatpush2.msra.mxu0 0.0
      %4951 = vmatprep.subr.mxu0 0.0
      %4952 = vmatpush2.msra.mxu0 0.0
      %4953 = vmatprep.subr.mxu0 0.0
      %4954 = vmatpush2.msra.mxu0 0.0
      %4955 = vmatprep.subr.mxu0 0.0
      %4956 = vmatpush2.msra.mxu0 0.0
      %4957 = vmatprep.subr.mxu0 0.0
      %4958 = vmatpush2.msra.mxu0 0.0
      %4959 = vmatprep.subr.mxu0 0.0
      %4960 = vmatpush2.msra.mxu0 0.0
      %4961 = vmatprep.subr.mxu0 0.0
      %4962 = vmatpush2.msra.mxu0 0.0
      %4963 = vmatprep.subr.mxu0 0.0
      %4964 = vmatpush2.msra.mxu0 0.0
      %4965 = vmatprep.subr.mxu0 0.0
      %4966 = vmatpush2.msra.mxu0 0.0
      %4967 = vmatprep.subr.mxu0 0.0
      %4968 = vmatpush2.msra.mxu0 0.0
      %4969 = vmatprep.mubr.f32.mxu0 0.0
      %4970 = vmatmul.mubr.f32.gmra.mxu0 %v4879
      %v4971 = vpop.f32.mrf.mxu0
      %v4972 = vadd.f32 0.0, %v4971
      %v4973 = vpop.f32.mrf.mxu0
      %4974 = vmatprep.mubr.f32.mxu0 0.0
      %4975 = vmatmul.mubr.f32.gmra.mxu0 %v4882
      %v4976 = vpop.f32.mrf.mxu0
      %v4977 = vadd.f32 0.0, %v4976
      %v4978 = vpop.f32.mrf.mxu0
      %4979 = vmatprep.mubr.f32.mxu0 0.0
      %4980 = vmatmul.mubr.f32.gmra.mxu0 %v4885
      %v4981 = vpop.f32.mrf.mxu0
      %v4982 = vadd.f32 0.0, %v4981
      %v4983 = vpop.f32.mrf.mxu0
      %4984 = vmatprep.mubr.f32.mxu0 0.0
      %4985 = vmatmul.mubr.f32.gmra.mxu0 %v4888
      %v4986 = vpop.f32.mrf.mxu0
      %v4987 = vadd.f32 0.0, %v4986
      %v4988 = vpop.f32.mrf.mxu0
      %4989 = vmatprep.mubr.f32.mxu0 0.0
      %4990 = vmatmul.mubr.f32.gmra.mxu0 %v4891
      %v4991 = vpop.f32.mrf.mxu0
      %v4992 = vadd.f32 0.0, %v4991
      %v4993 = vpop.f32.mrf.mxu0
      %4994 = vmatprep.mubr.f32.mxu0 0.0
      %4995 = vmatmul.mubr.f32.gmra.mxu0 %v4894
      %v4996 = vpop.f32.mrf.mxu0
      %v4997 = vadd.f32 0.0, %v4996
      %v4998 = vpop.f32.mrf.mxu0
      %4999 = vmatprep.mubr.f32.mxu0 0.0
      %5000 = vmatmul.mubr.f32.gmra.mxu0 %v4897
      %v5001 = vpop.f32.mrf.mxu0
      %v5002 = vadd.f32 0.0, %v5001
      %v5003 = vpop.f32.mrf.mxu0
      %5004 = vmatprep.mubr.f32.mxu0 0.0
      %5005 = vmatmul.mubr.f32.gmra.mxu0 %v4900
      %v5006 = vpop.f32.mrf.mxu0
      %v5007 = vadd.f32 0.0, %v5006
      %v5008 = vpop.f32.mrf.mxu0
      %5009 = vdwg.mxu0
      %v5010 = vadd.f32 %v4861, %v4972
      %v5011 = vadd.f32 %v4862, %v4977
      %v5012 = vadd.f32 %v4863, %v4982
      %v5013 = vadd.f32 %v4864, %v4987
      %v5014 = vadd.f32 %v4865, %v4992
      %v5015 = vadd.f32 %v4866, %v4997
      %v5016 = vadd.f32 %v4867, %v5002
      %v5017 = vadd.f32 %v4868, %v5007
      %v5018 = vld [vmem:[%s2542 + $0x8] sm:$0xff]
      %v5019 = vld [vmem:[%s2542 + $0x20] sm:$0xff]
      %v5020 = vld [vmem:[%s2542 + $0x38] sm:$0xff]
      %v5021 = vld [vmem:[%s2542 + $0x50] sm:$0xff]
      %v5022 = vld [vmem:[%s2542 + $0x68] sm:$0xff]
      %v5023 = vld [vmem:[%s2542 + $0x80] sm:$0xff]
      %v5024 = vld [vmem:[%s2542 + $0x98] sm:$0xff]
      %v5025 = vld [vmem:[%s2542 + $0xb0] sm:$0xff]
      %v5026 = vld [vmem:[%s3668] sm:$0xf]
      %v5028 = vsel %vm380, %v5018, 0
      %v5031 = vsel %vm380, %v5019, 0
      %v5034 = vsel %vm380, %v5020, 0
      %v5037 = vsel %vm380, %v5021, 0
      %v5040 = vsel %vm380, %v5022, 0
      %v5043 = vsel %vm380, %v5023, 0
      %v5046 = vsel %vm380, %v5024, 0
      %v5049 = vsel %vm380, %v5025, 0
      %v5052 = vsel %vm405, %v5026, 0
      %5054 = vmatprep.subr.mxu0 0.0
      %5055 = vmatpush1.msra.mxu0 0.0
      %5056 = vmatprep.subr.mxu0 0.0
      %5057 = vmatpush1.msra.mxu0 0.0
      %5058 = vmatprep.subr.mxu0 0.0
      %5059 = vmatpush1.msra.mxu0 0.0
      %5060 = vmatprep.subr.mxu0 0.0
      %5061 = vmatpush1.msra.mxu0 0.0
      %5062 = vmatprep.subr.mxu0 0.0
      %5063 = vmatpush1.msra.mxu0 0.0
      %5064 = vmatprep.subr.mxu0 0.0
      %5065 = vmatpush1.msra.mxu0 0.0
      %5066 = vmatprep.subr.mxu0 0.0
      %5067 = vmatpush1.msra.mxu0 0.0
      %5068 = vmatprep.subr.mxu0 0.0
      %5069 = vmatpush1.msra.mxu0 0.0
      %5070 = vmatprep.subr.mxu0 0.0
      %5071 = vmatpush1.msra.mxu0 0.0
      %5072 = vmatprep.subr.mxu0 0.0
      %5073 = vmatpush1.msra.mxu0 0.0
      %5074 = vmatprep.subr.mxu0 0.0
      %5075 = vmatpush1.msra.mxu0 0.0
      %5076 = vmatprep.subr.mxu0 0.0
      %5077 = vmatpush1.msra.mxu0 0.0
      %5078 = vmatprep.subr.mxu0 0.0
      %5079 = vmatpush1.msra.mxu0 0.0
      %5080 = vmatprep.subr.mxu0 0.0
      %5081 = vmatpush1.msra.mxu0 0.0
      %5082 = vmatprep.subr.mxu0 0.0
      %5083 = vmatpush1.msra.mxu0 0.0
      %5084 = vmatprep.subr.mxu0 0.0
      %5085 = vmatpush1.msra.mxu0 %v5052
      %5086 = vmatprep.subr.mxu0 0.0
      %5087 = vmatpush2.msra.mxu0 0.0
      %5088 = vmatprep.subr.mxu0 0.0
      %5089 = vmatpush2.msra.mxu0 0.0
      %5090 = vmatprep.subr.mxu0 0.0
      %5091 = vmatpush2.msra.mxu0 0.0
      %5092 = vmatprep.subr.mxu0 0.0
      %5093 = vmatpush2.msra.mxu0 0.0
      %5094 = vmatprep.subr.mxu0 0.0
      %5095 = vmatpush2.msra.mxu0 0.0
      %5096 = vmatprep.subr.mxu0 0.0
      %5097 = vmatpush2.msra.mxu0 0.0
      %5098 = vmatprep.subr.mxu0 0.0
      %5099 = vmatpush2.msra.mxu0 0.0
      %5100 = vmatprep.subr.mxu0 0.0
      %5101 = vmatpush2.msra.mxu0 0.0
      %5102 = vmatprep.subr.mxu0 0.0
      %5103 = vmatpush2.msra.mxu0 0.0
      %5104 = vmatprep.subr.mxu0 0.0
      %5105 = vmatpush2.msra.mxu0 0.0
      %5106 = vmatprep.subr.mxu0 0.0
      %5107 = vmatpush2.msra.mxu0 0.0
      %5108 = vmatprep.subr.mxu0 0.0
      %5109 = vmatpush2.msra.mxu0 0.0
      %5110 = vmatprep.subr.mxu0 0.0
      %5111 = vmatpush2.msra.mxu0 0.0
      %5112 = vmatprep.subr.mxu0 0.0
      %5113 = vmatpush2.msra.mxu0 0.0
      %5114 = vmatprep.subr.mxu0 0.0
      %5115 = vmatpush2.msra.mxu0 0.0
      %5116 = vmatprep.subr.mxu0 0.0
      %5117 = vmatpush2.msra.mxu0 0.0
      %5118 = vmatprep.mubr.f32.mxu0 0.0
      %5119 = vmatmul.mubr.f32.gmra.mxu0 %v5028
      %v5120 = vpop.f32.mrf.mxu0
      %v5121 = vadd.f32 0.0, %v5120
      %v5122 = vpop.f32.mrf.mxu0
      %5123 = vmatprep.mubr.f32.mxu0 0.0
      %5124 = vmatmul.mubr.f32.gmra.mxu0 %v5031
      %v5125 = vpop.f32.mrf.mxu0
      %v5126 = vadd.f32 0.0, %v5125
      %v5127 = vpop.f32.mrf.mxu0
      %5128 = vmatprep.mubr.f32.mxu0 0.0
      %5129 = vmatmul.mubr.f32.gmra.mxu0 %v5034
      %v5130 = vpop.f32.mrf.mxu0
      %v5131 = vadd.f32 0.0, %v5130
      %v5132 = vpop.f32.mrf.mxu0
      %5133 = vmatprep.mubr.f32.mxu0 0.0
      %5134 = vmatmul.mubr.f32.gmra.mxu0 %v5037
      %v5135 = vpop.f32.mrf.mxu0
      %v5136 = vadd.f32 0.0, %v5135
      %v5137 = vpop.f32.mrf.mxu0
      %5138 = vmatprep.mubr.f32.mxu0 0.0
      %5139 = vmatmul.mubr.f32.gmra.mxu0 %v5040
      %v5140 = vpop.f32.mrf.mxu0
      %v5141 = vadd.f32 0.0, %v5140
      %v5142 = vpop.f32.mrf.mxu0
      %5143 = vmatprep.mubr.f32.mxu0 0.0
      %5144 = vmatmul.mubr.f32.gmra.mxu0 %v5043
      %v5145 = vpop.f32.mrf.mxu0
      %v5146 = vadd.f32 0.0, %v5145
      %v5147 = vpop.f32.mrf.mxu0
      %5148 = vmatprep.mubr.f32.mxu0 0.0
      %5149 = vmatmul.mubr.f32.gmra.mxu0 %v5046
      %v5150 = vpop.f32.mrf.mxu0
      %v5151 = vadd.f32 0.0, %v5150
      %v5152 = vpop.f32.mrf.mxu0
      %5153 = vmatprep.mubr.f32.mxu0 0.0
      %5154 = vmatmul.mubr.f32.gmra.mxu0 %v5049
      %v5155 = vpop.f32.mrf.mxu0
      %v5156 = vadd.f32 0.0, %v5155
      %v5157 = vpop.f32.mrf.mxu0
      %5158 = vdwg.mxu0
      %v5159 = vadd.f32 %v5010, %v5121
      %v5160 = vadd.f32 %v5011, %v5126
      %v5161 = vadd.f32 %v5012, %v5131
      %v5162 = vadd.f32 %v5013, %v5136
      %v5163 = vadd.f32 %v5014, %v5141
      %v5164 = vadd.f32 %v5015, %v5146
      %v5165 = vadd.f32 %v5016, %v5151
      %v5166 = vadd.f32 %v5017, %v5156
      %v5167 = vld [vmem:[%s2377 + $0x9] sm:$0xff]
      %v5168 = vld [vmem:[%s2377 + $0x21] sm:$0xff]
      %v5169 = vld [vmem:[%s2377 + $0x39] sm:$0xff]
      %v5170 = vld [vmem:[%s2377 + $0x51] sm:$0xff]
      %v5171 = vld [vmem:[%s2377 + $0x69] sm:$0xff]
      %v5172 = vld [vmem:[%s2377 + $0x81] sm:$0xff]
      %v5173 = vld [vmem:[%s2377 + $0x99] sm:$0xff]
      %v5174 = vld [vmem:[%s2377 + $0xb1] sm:$0xff]
      %v5175 = vld [vmem:[%s3818] sm:$0xf]
      %v5177 = vsel %vm380, %v5167, 0
      %v5180 = vsel %vm380, %v5168, 0
      %v5183 = vsel %vm380, %v5169, 0
      %v5186 = vsel %vm380, %v5170, 0
      %v5189 = vsel %vm380, %v5171, 0
      %v5192 = vsel %vm380, %v5172, 0
      %v5195 = vsel %vm380, %v5173, 0
      %v5198 = vsel %vm380, %v5174, 0
      %v5201 = vsel %vm405, %v5175, 0
      %5203 = vmatprep.subr.mxu0 0.0
      %5204 = vmatpush1.msra.mxu0 0.0
      %5205 = vmatprep.subr.mxu0 0.0
      %5206 = vmatpush1.msra.mxu0 0.0
      %5207 = vmatprep.subr.mxu0 0.0
      %5208 = vmatpush1.msra.mxu0 0.0
      %5209 = vmatprep.subr.mxu0 0.0
      %5210 = vmatpush1.msra.mxu0 0.0
      %5211 = vmatprep.subr.mxu0 0.0
      %5212 = vmatpush1.msra.mxu0 0.0
      %5213 = vmatprep.subr.mxu0 0.0
      %5214 = vmatpush1.msra.mxu0 0.0
      %5215 = vmatprep.subr.mxu0 0.0
      %5216 = vmatpush1.msra.mxu0 0.0
      %5217 = vmatprep.subr.mxu0 0.0
      %5218 = vmatpush1.msra.mxu0 0.0
      %5219 = vmatprep.subr.mxu0 0.0
      %5220 = vmatpush1.msra.mxu0 0.0
      %5221 = vmatprep.subr.mxu0 0.0
      %5222 = vmatpush1.msra.mxu0 0.0
      %5223 = vmatprep.subr.mxu0 0.0
      %5224 = vmatpush1.msra.mxu0 0.0
      %5225 = vmatprep.subr.mxu0 0.0
      %5226 = vmatpush1.msra.mxu0 0.0
      %5227 = vmatprep.subr.mxu0 0.0
      %5228 = vmatpush1.msra.mxu0 0.0
      %5229 = vmatprep.subr.mxu0 0.0
      %5230 = vmatpush1.msra.mxu0 0.0
      %5231 = vmatprep.subr.mxu0 0.0
      %5232 = vmatpush1.msra.mxu0 0.0
      %5233 = vmatprep.subr.mxu0 0.0
      %5234 = vmatpush1.msra.mxu0 %v5201
      %5235 = vmatprep.subr.mxu0 0.0
      %5236 = vmatpush2.msra.mxu0 0.0
      %5237 = vmatprep.subr.mxu0 0.0
      %5238 = vmatpush2.msra.mxu0 0.0
      %5239 = vmatprep.subr.mxu0 0.0
      %5240 = vmatpush2.msra.mxu0 0.0
      %5241 = vmatprep.subr.mxu0 0.0
      %5242 = vmatpush2.msra.mxu0 0.0
      %5243 = vmatprep.subr.mxu0 0.0
      %5244 = vmatpush2.msra.mxu0 0.0
      %5245 = vmatprep.subr.mxu0 0.0
      %5246 = vmatpush2.msra.mxu0 0.0
      %5247 = vmatprep.subr.mxu0 0.0
      %5248 = vmatpush2.msra.mxu0 0.0
      %5249 = vmatprep.subr.mxu0 0.0
      %5250 = vmatpush2.msra.mxu0 0.0
      %5251 = vmatprep.subr.mxu0 0.0
      %5252 = vmatpush2.msra.mxu0 0.0
      %5253 = vmatprep.subr.mxu0 0.0
      %5254 = vmatpush2.msra.mxu0 0.0
      %5255 = vmatprep.subr.mxu0 0.0
      %5256 = vmatpush2.msra.mxu0 0.0
      %5257 = vmatprep.subr.mxu0 0.0
      %5258 = vmatpush2.msra.mxu0 0.0
      %5259 = vmatprep.subr.mxu0 0.0
      %5260 = vmatpush2.msra.mxu0 0.0
      %5261 = vmatprep.subr.mxu0 0.0
      %5262 = vmatpush2.msra.mxu0 0.0
      %5263 = vmatprep.subr.mxu0 0.0
      %5264 = vmatpush2.msra.mxu0 0.0
      %5265 = vmatprep.subr.mxu0 0.0
      %5266 = vmatpush2.msra.mxu0 0.0
      %5267 = vmatprep.mubr.f32.mxu0 0.0
      %5268 = vmatmul.mubr.f32.gmra.mxu0 %v5177
      %v5269 = vpop.f32.mrf.mxu0
      %v5270 = vadd.f32 0.0, %v5269
      %v5271 = vpop.f32.mrf.mxu0
      %5272 = vmatprep.mubr.f32.mxu0 0.0
      %5273 = vmatmul.mubr.f32.gmra.mxu0 %v5180
      %v5274 = vpop.f32.mrf.mxu0
      %v5275 = vadd.f32 0.0, %v5274
      %v5276 = vpop.f32.mrf.mxu0
      %5277 = vmatprep.mubr.f32.mxu0 0.0
      %5278 = vmatmul.mubr.f32.gmra.mxu0 %v5183
      %v5279 = vpop.f32.mrf.mxu0
      %v5280 = vadd.f32 0.0, %v5279
      %v5281 = vpop.f32.mrf.mxu0
      %5282 = vmatprep.mubr.f32.mxu0 0.0
      %5283 = vmatmul.mubr.f32.gmra.mxu0 %v5186
      %v5284 = vpop.f32.mrf.mxu0
      %v5285 = vadd.f32 0.0, %v5284
      %v5286 = vpop.f32.mrf.mxu0
      %5287 = vmatprep.mubr.f32.mxu0 0.0
      %5288 = vmatmul.mubr.f32.gmra.mxu0 %v5189
      %v5289 = vpop.f32.mrf.mxu0
      %v5290 = vadd.f32 0.0, %v5289
      %v5291 = vpop.f32.mrf.mxu0
      %5292 = vmatprep.mubr.f32.mxu0 0.0
      %5293 = vmatmul.mubr.f32.gmra.mxu0 %v5192
      %v5294 = vpop.f32.mrf.mxu0
      %v5295 = vadd.f32 0.0, %v5294
      %v5296 = vpop.f32.mrf.mxu0
      %5297 = vmatprep.mubr.f32.mxu0 0.0
      %5298 = vmatmul.mubr.f32.gmra.mxu0 %v5195
      %v5299 = vpop.f32.mrf.mxu0
      %v5300 = vadd.f32 0.0, %v5299
      %v5301 = vpop.f32.mrf.mxu0
      %5302 = vmatprep.mubr.f32.mxu0 0.0
      %5303 = vmatmul.mubr.f32.gmra.mxu0 %v5198
      %v5304 = vpop.f32.mrf.mxu0
      %v5305 = vadd.f32 0.0, %v5304
      %v5306 = vpop.f32.mrf.mxu0
      %5307 = vdwg.mxu0
      %v5308 = vadd.f32 %v5159, %v5270
      %v5309 = vadd.f32 %v5160, %v5275
      %v5310 = vadd.f32 %v5161, %v5280
      %v5311 = vadd.f32 %v5162, %v5285
      %v5312 = vadd.f32 %v5163, %v5290
      %v5313 = vadd.f32 %v5164, %v5295
      %v5314 = vadd.f32 %v5165, %v5300
      %v5315 = vadd.f32 %v5166, %v5305
      %v5316 = vld [vmem:[%s6] sm:$0x1]
      %v5318 = vlaneseq
      %v5319 = vshrl.u32 %v5318, 7
      %v5320 = vsub.s32 0, %v5319
      %v5321 = vrot.slane %v5316, %v5320
      %v5323 = vadd.f32 %v5308, %v5321
      %v5324 = vadd.f32 %v5309, %v5321
      %v5325 = vadd.f32 %v5310, %v5321
      %v5326 = vadd.f32 %v5311, %v5321
      %v5327 = vadd.f32 %v5312, %v5321
      %v5328 = vadd.f32 %v5313, %v5321
      %v5329 = vadd.f32 %v5314, %v5321
      %v5330 = vadd.f32 %v5315, %v5321
      %v5331 = vmax.f32 %v5323, 0.0
      %v5332 = vmax.f32 %v5324, 0.0
      %v5333 = vmax.f32 %v5325, 0.0
      %v5334 = vmax.f32 %v5326, 0.0
      %v5335 = vmax.f32 %v5327, 0.0
      %v5336 = vmax.f32 %v5328, 0.0
      %v5337 = vmax.f32 %v5329, 0.0
      %v5338 = vmax.f32 %v5330, 0.0
      %s5339 = scalar_lea.vmem [#allocation3], 144
      %5340 = vst.msk [vmem:[%s5339] sm:$0xff] %vm2551, %v5331
      %5341 = vst.msk [vmem:[%s5339 + $0x10] sm:$0xff] %vm2551, %v5332
      %5342 = vst.msk [vmem:[%s5339 + $0x20] sm:$0xff] %vm2551, %v5333
      %5343 = vst.msk [vmem:[%s5339 + $0x30] sm:$0xff] %vm2551, %v5334
      %5344 = vst.msk [vmem:[%s5339 + $0x40] sm:$0xff] %vm2551, %v5335
      %5345 = vst.msk [vmem:[%s5339 + $0x50] sm:$0xff] %vm2551, %v5336
      %5346 = vst.msk [vmem:[%s5339 + $0x60] sm:$0xff] %vm2551, %v5337
      %5347 = vst.msk [vmem:[%s5339 + $0x70] sm:$0xff] %vm2551, %v5338
      %v5348 = vld [vmem:[%s2212 + $0x7] sm:$0xff]
      %v5349 = vld [vmem:[%s2212 + $0x1f] sm:$0xff]
      %v5350 = vld [vmem:[%s2212 + $0x37] sm:$0xff]
      %v5351 = vld [vmem:[%s2212 + $0x4f] sm:$0xff]
      %v5352 = vld [vmem:[%s2212 + $0x67] sm:$0xff]
      %v5353 = vld [vmem:[%s2212 + $0x7f] sm:$0xff]
      %v5354 = vld [vmem:[%s2212 + $0x97] sm:$0xff]
      %v5355 = vld [vmem:[%s2212 + $0xaf] sm:$0xff]
      %v5356 = vld [vmem:[%s5] sm:$0xf]
      %v5357 = vld [vmem:[%s2047 + $0x8] sm:$0xff]
      %v5358 = vld [vmem:[%s2047 + $0x20] sm:$0xff]
      %v5359 = vld [vmem:[%s2047 + $0x38] sm:$0xff]
      %v5360 = vld [vmem:[%s2047 + $0x50] sm:$0xff]
      %v5361 = vld [vmem:[%s2047 + $0x68] sm:$0xff]
      %v5362 = vld [vmem:[%s2047 + $0x80] sm:$0xff]
      %v5363 = vld [vmem:[%s2047 + $0x98] sm:$0xff]
      %v5364 = vld [vmem:[%s2047 + $0xb0] sm:$0xff]
      %v5365 = vld [vmem:[%s2644] sm:$0xf]
      %v5367 = vsel %vm380, %v5357, 0
      %v5370 = vsel %vm380, %v5358, 0
      %v5373 = vsel %vm380, %v5359, 0
      %v5376 = vsel %vm380, %v5360, 0
      %v5379 = vsel %vm380, %v5361, 0
      %v5382 = vsel %vm380, %v5362, 0
      %v5385 = vsel %vm380, %v5363, 0
      %v5388 = vsel %vm380, %v5364, 0
      %v5391 = vsel %vm405, %v5365, 0
      %5393 = vmatprep.subr.mxu0 0.0
      %5394 = vmatpush1.msra.mxu0 0.0
      %5395 = vmatprep.subr.mxu0 0.0
      %5396 = vmatpush1.msra.mxu0 0.0
      %5397 = vmatprep.subr.mxu0 0.0
      %5398 = vmatpush1.msra.mxu0 0.0
      %5399 = vmatprep.subr.mxu0 0.0
      %5400 = vmatpush1.msra.mxu0 0.0
      %5401 = vmatprep.subr.mxu0 0.0
      %5402 = vmatpush1.msra.mxu0 0.0
      %5403 = vmatprep.subr.mxu0 0.0
      %5404 = vmatpush1.msra.mxu0 0.0
      %5405 = vmatprep.subr.mxu0 0.0
      %5406 = vmatpush1.msra.mxu0 0.0
      %5407 = vmatprep.subr.mxu0 0.0
      %5408 = vmatpush1.msra.mxu0 0.0
      %5409 = vmatprep.subr.mxu0 0.0
      %5410 = vmatpush1.msra.mxu0 0.0
      %5411 = vmatprep.subr.mxu0 0.0
      %5412 = vmatpush1.msra.mxu0 0.0
      %5413 = vmatprep.subr.mxu0 0.0
      %5414 = vmatpush1.msra.mxu0 0.0
      %5415 = vmatprep.subr.mxu0 0.0
      %5416 = vmatpush1.msra.mxu0 0.0
      %5417 = vmatprep.subr.mxu0 0.0
      %5418 = vmatpush1.msra.mxu0 0.0
      %5419 = vmatprep.subr.mxu0 0.0
      %5420 = vmatpush1.msra.mxu0 0.0
      %5421 = vmatprep.subr.mxu0 0.0
      %5422 = vmatpush1.msra.mxu0 0.0
      %5423 = vmatprep.subr.mxu0 0.0
      %5424 = vmatpush1.msra.mxu0 %v5391
      %5425 = vmatprep.subr.mxu0 0.0
      %5426 = vmatpush2.msra.mxu0 0.0
      %5427 = vmatprep.subr.mxu0 0.0
      %5428 = vmatpush2.msra.mxu0 0.0
      %5429 = vmatprep.subr.mxu0 0.0
      %5430 = vmatpush2.msra.mxu0 0.0
      %5431 = vmatprep.subr.mxu0 0.0
      %5432 = vmatpush2.msra.mxu0 0.0
      %5433 = vmatprep.subr.mxu0 0.0
      %5434 = vmatpush2.msra.mxu0 0.0
      %5435 = vmatprep.subr.mxu0 0.0
      %5436 = vmatpush2.msra.mxu0 0.0
      %5437 = vmatprep.subr.mxu0 0.0
      %5438 = vmatpush2.msra.mxu0 0.0
      %5439 = vmatprep.subr.mxu0 0.0
      %5440 = vmatpush2.msra.mxu0 0.0
      %5441 = vmatprep.subr.mxu0 0.0
      %5442 = vmatpush2.msra.mxu0 0.0
      %5443 = vmatprep.subr.mxu0 0.0
      %5444 = vmatpush2.msra.mxu0 0.0
      %5445 = vmatprep.subr.mxu0 0.0
      %5446 = vmatpush2.msra.mxu0 0.0
      %5447 = vmatprep.subr.mxu0 0.0
      %5448 = vmatpush2.msra.mxu0 0.0
      %5449 = vmatprep.subr.mxu0 0.0
      %5450 = vmatpush2.msra.mxu0 0.0
      %5451 = vmatprep.subr.mxu0 0.0
      %5452 = vmatpush2.msra.mxu0 0.0
      %5453 = vmatprep.subr.mxu0 0.0
      %5454 = vmatpush2.msra.mxu0 0.0
      %5455 = vmatprep.subr.mxu0 0.0
      %5456 = vmatpush2.msra.mxu0 0.0
      %5457 = vmatprep.mubr.f32.mxu0 0.0
      %5458 = vmatmul.mubr.f32.gmra.mxu0 %v5367
      %v5459 = vpop.f32.mrf.mxu0
      %v5460 = vadd.f32 0.0, %v5459
      %v5461 = vpop.f32.mrf.mxu0
      %5462 = vmatprep.mubr.f32.mxu0 0.0
      %5463 = vmatmul.mubr.f32.gmra.mxu0 %v5370
      %v5464 = vpop.f32.mrf.mxu0
      %v5465 = vadd.f32 0.0, %v5464
      %v5466 = vpop.f32.mrf.mxu0
      %5467 = vmatprep.mubr.f32.mxu0 0.0
      %5468 = vmatmul.mubr.f32.gmra.mxu0 %v5373
      %v5469 = vpop.f32.mrf.mxu0
      %v5470 = vadd.f32 0.0, %v5469
      %v5471 = vpop.f32.mrf.mxu0
      %5472 = vmatprep.mubr.f32.mxu0 0.0
      %5473 = vmatmul.mubr.f32.gmra.mxu0 %v5376
      %v5474 = vpop.f32.mrf.mxu0
      %v5475 = vadd.f32 0.0, %v5474
      %v5476 = vpop.f32.mrf.mxu0
      %5477 = vmatprep.mubr.f32.mxu0 0.0
      %5478 = vmatmul.mubr.f32.gmra.mxu0 %v5379
      %v5479 = vpop.f32.mrf.mxu0
      %v5480 = vadd.f32 0.0, %v5479
      %v5481 = vpop.f32.mrf.mxu0
      %5482 = vmatprep.mubr.f32.mxu0 0.0
      %5483 = vmatmul.mubr.f32.gmra.mxu0 %v5382
      %v5484 = vpop.f32.mrf.mxu0
      %v5485 = vadd.f32 0.0, %v5484
      %v5486 = vpop.f32.mrf.mxu0
      %5487 = vmatprep.mubr.f32.mxu0 0.0
      %5488 = vmatmul.mubr.f32.gmra.mxu0 %v5385
      %v5489 = vpop.f32.mrf.mxu0
      %v5490 = vadd.f32 0.0, %v5489
      %v5491 = vpop.f32.mrf.mxu0
      %5492 = vmatprep.mubr.f32.mxu0 0.0
      %5493 = vmatmul.mubr.f32.gmra.mxu0 %v5388
      %v5494 = vpop.f32.mrf.mxu0
      %v5495 = vadd.f32 0.0, %v5494
      %v5496 = vpop.f32.mrf.mxu0
      %5497 = vdwg.mxu0
      %v5499 = vsel %vm380, %v5348, 0
      %v5502 = vsel %vm380, %v5349, 0
      %v5505 = vsel %vm380, %v5350, 0
      %v5508 = vsel %vm380, %v5351, 0
      %v5511 = vsel %vm380, %v5352, 0
      %v5514 = vsel %vm380, %v5353, 0
      %v5517 = vsel %vm380, %v5354, 0
      %v5520 = vsel %vm380, %v5355, 0
      %v5523 = vsel %vm405, %v5356, 0
      %5525 = vmatprep.subr.mxu0 0.0
      %5526 = vmatpush1.msra.mxu0 0.0
      %5527 = vmatprep.subr.mxu0 0.0
      %5528 = vmatpush1.msra.mxu0 0.0
      %5529 = vmatprep.subr.mxu0 0.0
      %5530 = vmatpush1.msra.mxu0 0.0
      %5531 = vmatprep.subr.mxu0 0.0
      %5532 = vmatpush1.msra.mxu0 0.0
      %5533 = vmatprep.subr.mxu0 0.0
      %5534 = vmatpush1.msra.mxu0 0.0
      %5535 = vmatprep.subr.mxu0 0.0
      %5536 = vmatpush1.msra.mxu0 0.0
      %5537 = vmatprep.subr.mxu0 0.0
      %5538 = vmatpush1.msra.mxu0 0.0
      %5539 = vmatprep.subr.mxu0 0.0
      %5540 = vmatpush1.msra.mxu0 0.0
      %5541 = vmatprep.subr.mxu0 0.0
      %5542 = vmatpush1.msra.mxu0 0.0
      %5543 = vmatprep.subr.mxu0 0.0
      %5544 = vmatpush1.msra.mxu0 0.0
      %5545 = vmatprep.subr.mxu0 0.0
      %5546 = vmatpush1.msra.mxu0 0.0
      %5547 = vmatprep.subr.mxu0 0.0
      %5548 = vmatpush1.msra.mxu0 0.0
      %5549 = vmatprep.subr.mxu0 0.0
      %5550 = vmatpush1.msra.mxu0 0.0
      %5551 = vmatprep.subr.mxu0 0.0
      %5552 = vmatpush1.msra.mxu0 0.0
      %5553 = vmatprep.subr.mxu0 0.0
      %5554 = vmatpush1.msra.mxu0 0.0
      %5555 = vmatprep.subr.mxu0 0.0
      %5556 = vmatpush1.msra.mxu0 %v5523
      %5557 = vmatprep.subr.mxu0 0.0
      %5558 = vmatpush2.msra.mxu0 0.0
      %5559 = vmatprep.subr.mxu0 0.0
      %5560 = vmatpush2.msra.mxu0 0.0
      %5561 = vmatprep.subr.mxu0 0.0
      %5562 = vmatpush2.msra.mxu0 0.0
      %5563 = vmatprep.subr.mxu0 0.0
      %5564 = vmatpush2.msra.mxu0 0.0
      %5565 = vmatprep.subr.mxu0 0.0
      %5566 = vmatpush2.msra.mxu0 0.0
      %5567 = vmatprep.subr.mxu0 0.0
      %5568 = vmatpush2.msra.mxu0 0.0
      %5569 = vmatprep.subr.mxu0 0.0
      %5570 = vmatpush2.msra.mxu0 0.0
      %5571 = vmatprep.subr.mxu0 0.0
      %5572 = vmatpush2.msra.mxu0 0.0
      %5573 = vmatprep.subr.mxu0 0.0
      %5574 = vmatpush2.msra.mxu0 0.0
      %5575 = vmatprep.subr.mxu0 0.0
      %5576 = vmatpush2.msra.mxu0 0.0
      %5577 = vmatprep.subr.mxu0 0.0
      %5578 = vmatpush2.msra.mxu0 0.0
      %5579 = vmatprep.subr.mxu0 0.0
      %5580 = vmatpush2.msra.mxu0 0.0
      %5581 = vmatprep.subr.mxu0 0.0
      %5582 = vmatpush2.msra.mxu0 0.0
      %5583 = vmatprep.subr.mxu0 0.0
      %5584 = vmatpush2.msra.mxu0 0.0
      %5585 = vmatprep.subr.mxu0 0.0
      %5586 = vmatpush2.msra.mxu0 0.0
      %5587 = vmatprep.subr.mxu0 0.0
      %5588 = vmatpush2.msra.mxu0 0.0
      %5589 = vmatprep.mubr.f32.mxu0 0.0
      %5590 = vmatmul.mubr.f32.gmra.mxu0 %v5499
      %v5591 = vpop.f32.mrf.mxu0
      %v5592 = vadd.f32 %v5460, %v5591
      %v5593 = vpop.f32.mrf.mxu0
      %5594 = vmatprep.mubr.f32.mxu0 0.0
      %5595 = vmatmul.mubr.f32.gmra.mxu0 %v5502
      %v5596 = vpop.f32.mrf.mxu0
      %v5597 = vadd.f32 %v5465, %v5596
      %v5598 = vpop.f32.mrf.mxu0
      %5599 = vmatprep.mubr.f32.mxu0 0.0
      %5600 = vmatmul.mubr.f32.gmra.mxu0 %v5505
      %v5601 = vpop.f32.mrf.mxu0
      %v5602 = vadd.f32 %v5470, %v5601
      %v5603 = vpop.f32.mrf.mxu0
      %5604 = vmatprep.mubr.f32.mxu0 0.0
      %5605 = vmatmul.mubr.f32.gmra.mxu0 %v5508
      %v5606 = vpop.f32.mrf.mxu0
      %v5607 = vadd.f32 %v5475, %v5606
      %v5608 = vpop.f32.mrf.mxu0
      %5609 = vmatprep.mubr.f32.mxu0 0.0
      %5610 = vmatmul.mubr.f32.gmra.mxu0 %v5511
      %v5611 = vpop.f32.mrf.mxu0
      %v5612 = vadd.f32 %v5480, %v5611
      %v5613 = vpop.f32.mrf.mxu0
      %5614 = vmatprep.mubr.f32.mxu0 0.0
      %5615 = vmatmul.mubr.f32.gmra.mxu0 %v5514
      %v5616 = vpop.f32.mrf.mxu0
      %v5617 = vadd.f32 %v5485, %v5616
      %v5618 = vpop.f32.mrf.mxu0
      %5619 = vmatprep.mubr.f32.mxu0 0.0
      %5620 = vmatmul.mubr.f32.gmra.mxu0 %v5517
      %v5621 = vpop.f32.mrf.mxu0
      %v5622 = vadd.f32 %v5490, %v5621
      %v5623 = vpop.f32.mrf.mxu0
      %5624 = vmatprep.mubr.f32.mxu0 0.0
      %5625 = vmatmul.mubr.f32.gmra.mxu0 %v5520
      %v5626 = vpop.f32.mrf.mxu0
      %v5627 = vadd.f32 %v5495, %v5626
      %v5628 = vpop.f32.mrf.mxu0
      %5629 = vdwg.mxu0
      %v5630 = vld [vmem:[%s2212 + $0x8] sm:$0xff]
      %v5631 = vld [vmem:[%s2212 + $0x20] sm:$0xff]
      %v5632 = vld [vmem:[%s2212 + $0x38] sm:$0xff]
      %v5633 = vld [vmem:[%s2212 + $0x50] sm:$0xff]
      %v5634 = vld [vmem:[%s2212 + $0x68] sm:$0xff]
      %v5635 = vld [vmem:[%s2212 + $0x80] sm:$0xff]
      %v5636 = vld [vmem:[%s2212 + $0x98] sm:$0xff]
      %v5637 = vld [vmem:[%s2212 + $0xb0] sm:$0xff]
      %v5638 = vld [vmem:[%s2918] sm:$0xf]
      %v5640 = vsel %vm380, %v5630, 0
      %v5643 = vsel %vm380, %v5631, 0
      %v5646 = vsel %vm380, %v5632, 0
      %v5649 = vsel %vm380, %v5633, 0
      %v5652 = vsel %vm380, %v5634, 0
      %v5655 = vsel %vm380, %v5635, 0
      %v5658 = vsel %vm380, %v5636, 0
      %v5661 = vsel %vm380, %v5637, 0
      %v5664 = vsel %vm405, %v5638, 0
      %5666 = vmatprep.subr.mxu0 0.0
      %5667 = vmatpush1.msra.mxu0 0.0
      %5668 = vmatprep.subr.mxu0 0.0
      %5669 = vmatpush1.msra.mxu0 0.0
      %5670 = vmatprep.subr.mxu0 0.0
      %5671 = vmatpush1.msra.mxu0 0.0
      %5672 = vmatprep.subr.mxu0 0.0
      %5673 = vmatpush1.msra.mxu0 0.0
      %5674 = vmatprep.subr.mxu0 0.0
      %5675 = vmatpush1.msra.mxu0 0.0
      %5676 = vmatprep.subr.mxu0 0.0
      %5677 = vmatpush1.msra.mxu0 0.0
      %5678 = vmatprep.subr.mxu0 0.0
      %5679 = vmatpush1.msra.mxu0 0.0
      %5680 = vmatprep.subr.mxu0 0.0
      %5681 = vmatpush1.msra.mxu0 0.0
      %5682 = vmatprep.subr.mxu0 0.0
      %5683 = vmatpush1.msra.mxu0 0.0
      %5684 = vmatprep.subr.mxu0 0.0
      %5685 = vmatpush1.msra.mxu0 0.0
      %5686 = vmatprep.subr.mxu0 0.0
      %5687 = vmatpush1.msra.mxu0 0.0
      %5688 = vmatprep.subr.mxu0 0.0
      %5689 = vmatpush1.msra.mxu0 0.0
      %5690 = vmatprep.subr.mxu0 0.0
      %5691 = vmatpush1.msra.mxu0 0.0
      %5692 = vmatprep.subr.mxu0 0.0
      %5693 = vmatpush1.msra.mxu0 0.0
      %5694 = vmatprep.subr.mxu0 0.0
      %5695 = vmatpush1.msra.mxu0 0.0
      %5696 = vmatprep.subr.mxu0 0.0
      %5697 = vmatpush1.msra.mxu0 %v5664
      %5698 = vmatprep.subr.mxu0 0.0
      %5699 = vmatpush2.msra.mxu0 0.0
      %5700 = vmatprep.subr.mxu0 0.0
      %5701 = vmatpush2.msra.mxu0 0.0
      %5702 = vmatprep.subr.mxu0 0.0
      %5703 = vmatpush2.msra.mxu0 0.0
      %5704 = vmatprep.subr.mxu0 0.0
      %5705 = vmatpush2.msra.mxu0 0.0
      %5706 = vmatprep.subr.mxu0 0.0
      %5707 = vmatpush2.msra.mxu0 0.0
      %5708 = vmatprep.subr.mxu0 0.0
      %5709 = vmatpush2.msra.mxu0 0.0
      %5710 = vmatprep.subr.mxu0 0.0
      %5711 = vmatpush2.msra.mxu0 0.0
      %5712 = vmatprep.subr.mxu0 0.0
      %5713 = vmatpush2.msra.mxu0 0.0
      %5714 = vmatprep.subr.mxu0 0.0
      %5715 = vmatpush2.msra.mxu0 0.0
      %5716 = vmatprep.subr.mxu0 0.0
      %5717 = vmatpush2.msra.mxu0 0.0
      %5718 = vmatprep.subr.mxu0 0.0
      %5719 = vmatpush2.msra.mxu0 0.0
      %5720 = vmatprep.subr.mxu0 0.0
      %5721 = vmatpush2.msra.mxu0 0.0
      %5722 = vmatprep.subr.mxu0 0.0
      %5723 = vmatpush2.msra.mxu0 0.0
      %5724 = vmatprep.subr.mxu0 0.0
      %5725 = vmatpush2.msra.mxu0 0.0
      %5726 = vmatprep.subr.mxu0 0.0
      %5727 = vmatpush2.msra.mxu0 0.0
      %5728 = vmatprep.subr.mxu0 0.0
      %5729 = vmatpush2.msra.mxu0 0.0
      %5730 = vmatprep.mubr.f32.mxu0 0.0
      %5731 = vmatmul.mubr.f32.gmra.mxu0 %v5640
      %v5732 = vpop.f32.mrf.mxu0
      %v5733 = vadd.f32 0.0, %v5732
      %v5734 = vpop.f32.mrf.mxu0
      %5735 = vmatprep.mubr.f32.mxu0 0.0
      %5736 = vmatmul.mubr.f32.gmra.mxu0 %v5643
      %v5737 = vpop.f32.mrf.mxu0
      %v5738 = vadd.f32 0.0, %v5737
      %v5739 = vpop.f32.mrf.mxu0
      %5740 = vmatprep.mubr.f32.mxu0 0.0
      %5741 = vmatmul.mubr.f32.gmra.mxu0 %v5646
      %v5742 = vpop.f32.mrf.mxu0
      %v5743 = vadd.f32 0.0, %v5742
      %v5744 = vpop.f32.mrf.mxu0
      %5745 = vmatprep.mubr.f32.mxu0 0.0
      %5746 = vmatmul.mubr.f32.gmra.mxu0 %v5649
      %v5747 = vpop.f32.mrf.mxu0
      %v5748 = vadd.f32 0.0, %v5747
      %v5749 = vpop.f32.mrf.mxu0
      %5750 = vmatprep.mubr.f32.mxu0 0.0
      %5751 = vmatmul.mubr.f32.gmra.mxu0 %v5652
      %v5752 = vpop.f32.mrf.mxu0
      %v5753 = vadd.f32 0.0, %v5752
      %v5754 = vpop.f32.mrf.mxu0
      %5755 = vmatprep.mubr.f32.mxu0 0.0
      %5756 = vmatmul.mubr.f32.gmra.mxu0 %v5655
      %v5757 = vpop.f32.mrf.mxu0
      %v5758 = vadd.f32 0.0, %v5757
      %v5759 = vpop.f32.mrf.mxu0
      %5760 = vmatprep.mubr.f32.mxu0 0.0
      %5761 = vmatmul.mubr.f32.gmra.mxu0 %v5658
      %v5762 = vpop.f32.mrf.mxu0
      %v5763 = vadd.f32 0.0, %v5762
      %v5764 = vpop.f32.mrf.mxu0
      %5765 = vmatprep.mubr.f32.mxu0 0.0
      %5766 = vmatmul.mubr.f32.gmra.mxu0 %v5661
      %v5767 = vpop.f32.mrf.mxu0
      %v5768 = vadd.f32 0.0, %v5767
      %v5769 = vpop.f32.mrf.mxu0
      %5770 = vdwg.mxu0
      %v5771 = vadd.f32 %v5592, %v5733
      %v5772 = vadd.f32 %v5597, %v5738
      %v5773 = vadd.f32 %v5602, %v5743
      %v5774 = vadd.f32 %v5607, %v5748
      %v5775 = vadd.f32 %v5612, %v5753
      %v5776 = vadd.f32 %v5617, %v5758
      %v5777 = vadd.f32 %v5622, %v5763
      %v5778 = vadd.f32 %v5627, %v5768
      %v5779 = vld [vmem:[%s2542 + $0x7] sm:$0xff]
      %v5780 = vld [vmem:[%s2542 + $0x1f] sm:$0xff]
      %v5781 = vld [vmem:[%s2542 + $0x37] sm:$0xff]
      %v5782 = vld [vmem:[%s2542 + $0x4f] sm:$0xff]
      %v5783 = vld [vmem:[%s2542 + $0x67] sm:$0xff]
      %v5784 = vld [vmem:[%s2542 + $0x7f] sm:$0xff]
      %v5785 = vld [vmem:[%s2542 + $0x97] sm:$0xff]
      %v5786 = vld [vmem:[%s2542 + $0xaf] sm:$0xff]
      %v5787 = vld [vmem:[%s3068] sm:$0xf]
      %v5789 = vsel %vm380, %v5779, 0
      %v5792 = vsel %vm380, %v5780, 0
      %v5795 = vsel %vm380, %v5781, 0
      %v5798 = vsel %vm380, %v5782, 0
      %v5801 = vsel %vm380, %v5783, 0
      %v5804 = vsel %vm380, %v5784, 0
      %v5807 = vsel %vm380, %v5785, 0
      %v5810 = vsel %vm380, %v5786, 0
      %v5813 = vsel %vm405, %v5787, 0
      %5815 = vmatprep.subr.mxu0 0.0
      %5816 = vmatpush1.msra.mxu0 0.0
      %5817 = vmatprep.subr.mxu0 0.0
      %5818 = vmatpush1.msra.mxu0 0.0
      %5819 = vmatprep.subr.mxu0 0.0
      %5820 = vmatpush1.msra.mxu0 0.0
      %5821 = vmatprep.subr.mxu0 0.0
      %5822 = vmatpush1.msra.mxu0 0.0
      %5823 = vmatprep.subr.mxu0 0.0
      %5824 = vmatpush1.msra.mxu0 0.0
      %5825 = vmatprep.subr.mxu0 0.0
      %5826 = vmatpush1.msra.mxu0 0.0
      %5827 = vmatprep.subr.mxu0 0.0
      %5828 = vmatpush1.msra.mxu0 0.0
      %5829 = vmatprep.subr.mxu0 0.0
      %5830 = vmatpush1.msra.mxu0 0.0
      %5831 = vmatprep.subr.mxu0 0.0
      %5832 = vmatpush1.msra.mxu0 0.0
      %5833 = vmatprep.subr.mxu0 0.0
      %5834 = vmatpush1.msra.mxu0 0.0
      %5835 = vmatprep.subr.mxu0 0.0
      %5836 = vmatpush1.msra.mxu0 0.0
      %5837 = vmatprep.subr.mxu0 0.0
      %5838 = vmatpush1.msra.mxu0 0.0
      %5839 = vmatprep.subr.mxu0 0.0
      %5840 = vmatpush1.msra.mxu0 0.0
      %5841 = vmatprep.subr.mxu0 0.0
      %5842 = vmatpush1.msra.mxu0 0.0
      %5843 = vmatprep.subr.mxu0 0.0
      %5844 = vmatpush1.msra.mxu0 0.0
      %5845 = vmatprep.subr.mxu0 0.0
      %5846 = vmatpush1.msra.mxu0 %v5813
      %5847 = vmatprep.subr.mxu0 0.0
      %5848 = vmatpush2.msra.mxu0 0.0
      %5849 = vmatprep.subr.mxu0 0.0
      %5850 = vmatpush2.msra.mxu0 0.0
      %5851 = vmatprep.subr.mxu0 0.0
      %5852 = vmatpush2.msra.mxu0 0.0
      %5853 = vmatprep.subr.mxu0 0.0
      %5854 = vmatpush2.msra.mxu0 0.0
      %5855 = vmatprep.subr.mxu0 0.0
      %5856 = vmatpush2.msra.mxu0 0.0
      %5857 = vmatprep.subr.mxu0 0.0
      %5858 = vmatpush2.msra.mxu0 0.0
      %5859 = vmatprep.subr.mxu0 0.0
      %5860 = vmatpush2.msra.mxu0 0.0
      %5861 = vmatprep.subr.mxu0 0.0
      %5862 = vmatpush2.msra.mxu0 0.0
      %5863 = vmatprep.subr.mxu0 0.0
      %5864 = vmatpush2.msra.mxu0 0.0
      %5865 = vmatprep.subr.mxu0 0.0
      %5866 = vmatpush2.msra.mxu0 0.0
      %5867 = vmatprep.subr.mxu0 0.0
      %5868 = vmatpush2.msra.mxu0 0.0
      %5869 = vmatprep.subr.mxu0 0.0
      %5870 = vmatpush2.msra.mxu0 0.0
      %5871 = vmatprep.subr.mxu0 0.0
      %5872 = vmatpush2.msra.mxu0 0.0
      %5873 = vmatprep.subr.mxu0 0.0
      %5874 = vmatpush2.msra.mxu0 0.0
      %5875 = vmatprep.subr.mxu0 0.0
      %5876 = vmatpush2.msra.mxu0 0.0
      %5877 = vmatprep.subr.mxu0 0.0
      %5878 = vmatpush2.msra.mxu0 0.0
      %5879 = vmatprep.mubr.f32.mxu0 0.0
      %5880 = vmatmul.mubr.f32.gmra.mxu0 %v5789
      %v5881 = vpop.f32.mrf.mxu0
      %v5882 = vadd.f32 0.0, %v5881
      %v5883 = vpop.f32.mrf.mxu0
      %5884 = vmatprep.mubr.f32.mxu0 0.0
      %5885 = vmatmul.mubr.f32.gmra.mxu0 %v5792
      %v5886 = vpop.f32.mrf.mxu0
      %v5887 = vadd.f32 0.0, %v5886
      %v5888 = vpop.f32.mrf.mxu0
      %5889 = vmatprep.mubr.f32.mxu0 0.0
      %5890 = vmatmul.mubr.f32.gmra.mxu0 %v5795
      %v5891 = vpop.f32.mrf.mxu0
      %v5892 = vadd.f32 0.0, %v5891
      %v5893 = vpop.f32.mrf.mxu0
      %5894 = vmatprep.mubr.f32.mxu0 0.0
      %5895 = vmatmul.mubr.f32.gmra.mxu0 %v5798
      %v5896 = vpop.f32.mrf.mxu0
      %v5897 = vadd.f32 0.0, %v5896
      %v5898 = vpop.f32.mrf.mxu0
      %5899 = vmatprep.mubr.f32.mxu0 0.0
      %5900 = vmatmul.mubr.f32.gmra.mxu0 %v5801
      %v5901 = vpop.f32.mrf.mxu0
      %v5902 = vadd.f32 0.0, %v5901
      %v5903 = vpop.f32.mrf.mxu0
      %5904 = vmatprep.mubr.f32.mxu0 0.0
      %5905 = vmatmul.mubr.f32.gmra.mxu0 %v5804
      %v5906 = vpop.f32.mrf.mxu0
      %v5907 = vadd.f32 0.0, %v5906
      %v5908 = vpop.f32.mrf.mxu0
      %5909 = vmatprep.mubr.f32.mxu0 0.0
      %5910 = vmatmul.mubr.f32.gmra.mxu0 %v5807
      %v5911 = vpop.f32.mrf.mxu0
      %v5912 = vadd.f32 0.0, %v5911
      %v5913 = vpop.f32.mrf.mxu0
      %5914 = vmatprep.mubr.f32.mxu0 0.0
      %5915 = vmatmul.mubr.f32.gmra.mxu0 %v5810
      %v5916 = vpop.f32.mrf.mxu0
      %v5917 = vadd.f32 0.0, %v5916
      %v5918 = vpop.f32.mrf.mxu0
      %5919 = vdwg.mxu0
      %v5920 = vadd.f32 %v5771, %v5882
      %v5921 = vadd.f32 %v5772, %v5887
      %v5922 = vadd.f32 %v5773, %v5892
      %v5923 = vadd.f32 %v5774, %v5897
      %v5924 = vadd.f32 %v5775, %v5902
      %v5925 = vadd.f32 %v5776, %v5907
      %v5926 = vadd.f32 %v5777, %v5912
      %v5927 = vadd.f32 %v5778, %v5917
      %v5928 = vld [vmem:[%s2377 + $0x8] sm:$0xff]
      %v5929 = vld [vmem:[%s2377 + $0x20] sm:$0xff]
      %v5930 = vld [vmem:[%s2377 + $0x38] sm:$0xff]
      %v5931 = vld [vmem:[%s2377 + $0x50] sm:$0xff]
      %v5932 = vld [vmem:[%s2377 + $0x68] sm:$0xff]
      %v5933 = vld [vmem:[%s2377 + $0x80] sm:$0xff]
      %v5934 = vld [vmem:[%s2377 + $0x98] sm:$0xff]
      %v5935 = vld [vmem:[%s2377 + $0xb0] sm:$0xff]
      %v5936 = vld [vmem:[%s3218] sm:$0xf]
      %v5938 = vsel %vm380, %v5928, 0
      %v5941 = vsel %vm380, %v5929, 0
      %v5944 = vsel %vm380, %v5930, 0
      %v5947 = vsel %vm380, %v5931, 0
      %v5950 = vsel %vm380, %v5932, 0
      %v5953 = vsel %vm380, %v5933, 0
      %v5956 = vsel %vm380, %v5934, 0
      %v5959 = vsel %vm380, %v5935, 0
      %v5962 = vsel %vm405, %v5936, 0
      %5964 = vmatprep.subr.mxu0 0.0
      %5965 = vmatpush1.msra.mxu0 0.0
      %5966 = vmatprep.subr.mxu0 0.0
      %5967 = vmatpush1.msra.mxu0 0.0
      %5968 = vmatprep.subr.mxu0 0.0
      %5969 = vmatpush1.msra.mxu0 0.0
      %5970 = vmatprep.subr.mxu0 0.0
      %5971 = vmatpush1.msra.mxu0 0.0
      %5972 = vmatprep.subr.mxu0 0.0
      %5973 = vmatpush1.msra.mxu0 0.0
      %5974 = vmatprep.subr.mxu0 0.0
      %5975 = vmatpush1.msra.mxu0 0.0
      %5976 = vmatprep.subr.mxu0 0.0
      %5977 = vmatpush1.msra.mxu0 0.0
      %5978 = vmatprep.subr.mxu0 0.0
      %5979 = vmatpush1.msra.mxu0 0.0
      %5980 = vmatprep.subr.mxu0 0.0
      %5981 = vmatpush1.msra.mxu0 0.0
      %5982 = vmatprep.subr.mxu0 0.0
      %5983 = vmatpush1.msra.mxu0 0.0
      %5984 = vmatprep.subr.mxu0 0.0
      %5985 = vmatpush1.msra.mxu0 0.0
      %5986 = vmatprep.subr.mxu0 0.0
      %5987 = vmatpush1.msra.mxu0 0.0
      %5988 = vmatprep.subr.mxu0 0.0
      %5989 = vmatpush1.msra.mxu0 0.0
      %5990 = vmatprep.subr.mxu0 0.0
      %5991 = vmatpush1.msra.mxu0 0.0
      %5992 = vmatprep.subr.mxu0 0.0
      %5993 = vmatpush1.msra.mxu0 0.0
      %5994 = vmatprep.subr.mxu0 0.0
      %5995 = vmatpush1.msra.mxu0 %v5962
      %5996 = vmatprep.subr.mxu0 0.0
      %5997 = vmatpush2.msra.mxu0 0.0
      %5998 = vmatprep.subr.mxu0 0.0
      %5999 = vmatpush2.msra.mxu0 0.0
      %6000 = vmatprep.subr.mxu0 0.0
      %6001 = vmatpush2.msra.mxu0 0.0
      %6002 = vmatprep.subr.mxu0 0.0
      %6003 = vmatpush2.msra.mxu0 0.0
      %6004 = vmatprep.subr.mxu0 0.0
      %6005 = vmatpush2.msra.mxu0 0.0
      %6006 = vmatprep.subr.mxu0 0.0
      %6007 = vmatpush2.msra.mxu0 0.0
      %6008 = vmatprep.subr.mxu0 0.0
      %6009 = vmatpush2.msra.mxu0 0.0
      %6010 = vmatprep.subr.mxu0 0.0
      %6011 = vmatpush2.msra.mxu0 0.0
      %6012 = vmatprep.subr.mxu0 0.0
      %6013 = vmatpush2.msra.mxu0 0.0
      %6014 = vmatprep.subr.mxu0 0.0
      %6015 = vmatpush2.msra.mxu0 0.0
      %6016 = vmatprep.subr.mxu0 0.0
      %6017 = vmatpush2.msra.mxu0 0.0
      %6018 = vmatprep.subr.mxu0 0.0
      %6019 = vmatpush2.msra.mxu0 0.0
      %6020 = vmatprep.subr.mxu0 0.0
      %6021 = vmatpush2.msra.mxu0 0.0
      %6022 = vmatprep.subr.mxu0 0.0
      %6023 = vmatpush2.msra.mxu0 0.0
      %6024 = vmatprep.subr.mxu0 0.0
      %6025 = vmatpush2.msra.mxu0 0.0
      %6026 = vmatprep.subr.mxu0 0.0
      %6027 = vmatpush2.msra.mxu0 0.0
      %6028 = vmatprep.mubr.f32.mxu0 0.0
      %6029 = vmatmul.mubr.f32.gmra.mxu0 %v5938
      %v6030 = vpop.f32.mrf.mxu0
      %v6031 = vadd.f32 0.0, %v6030
      %v6032 = vpop.f32.mrf.mxu0
      %6033 = vmatprep.mubr.f32.mxu0 0.0
      %6034 = vmatmul.mubr.f32.gmra.mxu0 %v5941
      %v6035 = vpop.f32.mrf.mxu0
      %v6036 = vadd.f32 0.0, %v6035
      %v6037 = vpop.f32.mrf.mxu0
      %6038 = vmatprep.mubr.f32.mxu0 0.0
      %6039 = vmatmul.mubr.f32.gmra.mxu0 %v5944
      %v6040 = vpop.f32.mrf.mxu0
      %v6041 = vadd.f32 0.0, %v6040
      %v6042 = vpop.f32.mrf.mxu0
      %6043 = vmatprep.mubr.f32.mxu0 0.0
      %6044 = vmatmul.mubr.f32.gmra.mxu0 %v5947
      %v6045 = vpop.f32.mrf.mxu0
      %v6046 = vadd.f32 0.0, %v6045
      %v6047 = vpop.f32.mrf.mxu0
      %6048 = vmatprep.mubr.f32.mxu0 0.0
      %6049 = vmatmul.mubr.f32.gmra.mxu0 %v5950
      %v6050 = vpop.f32.mrf.mxu0
      %v6051 = vadd.f32 0.0, %v6050
      %v6052 = vpop.f32.mrf.mxu0
      %6053 = vmatprep.mubr.f32.mxu0 0.0
      %6054 = vmatmul.mubr.f32.gmra.mxu0 %v5953
      %v6055 = vpop.f32.mrf.mxu0
      %v6056 = vadd.f32 0.0, %v6055
      %v6057 = vpop.f32.mrf.mxu0
      %6058 = vmatprep.mubr.f32.mxu0 0.0
      %6059 = vmatmul.mubr.f32.gmra.mxu0 %v5956
      %v6060 = vpop.f32.mrf.mxu0
      %v6061 = vadd.f32 0.0, %v6060
      %v6062 = vpop.f32.mrf.mxu0
      %6063 = vmatprep.mubr.f32.mxu0 0.0
      %6064 = vmatmul.mubr.f32.gmra.mxu0 %v5959
      %v6065 = vpop.f32.mrf.mxu0
      %v6066 = vadd.f32 0.0, %v6065
      %v6067 = vpop.f32.mrf.mxu0
      %6068 = vdwg.mxu0
      %v6069 = vadd.f32 %v5920, %v6031
      %v6070 = vadd.f32 %v5921, %v6036
      %v6071 = vadd.f32 %v5922, %v6041
      %v6072 = vadd.f32 %v5923, %v6046
      %v6073 = vadd.f32 %v5924, %v6051
      %v6074 = vadd.f32 %v5925, %v6056
      %v6075 = vadd.f32 %v5926, %v6061
      %v6076 = vadd.f32 %v5927, %v6066
      %v6077 = vld [vmem:[%s2542 + $0x8] sm:$0xff]
      %v6078 = vld [vmem:[%s2542 + $0x20] sm:$0xff]
      %v6079 = vld [vmem:[%s2542 + $0x38] sm:$0xff]
      %v6080 = vld [vmem:[%s2542 + $0x50] sm:$0xff]
      %v6081 = vld [vmem:[%s2542 + $0x68] sm:$0xff]
      %v6082 = vld [vmem:[%s2542 + $0x80] sm:$0xff]
      %v6083 = vld [vmem:[%s2542 + $0x98] sm:$0xff]
      %v6084 = vld [vmem:[%s2542 + $0xb0] sm:$0xff]
      %v6085 = vld [vmem:[%s3368] sm:$0xf]
      %v6087 = vsel %vm380, %v6077, 0
      %v6090 = vsel %vm380, %v6078, 0
      %v6093 = vsel %vm380, %v6079, 0
      %v6096 = vsel %vm380, %v6080, 0
      %v6099 = vsel %vm380, %v6081, 0
      %v6102 = vsel %vm380, %v6082, 0
      %v6105 = vsel %vm380, %v6083, 0
      %v6108 = vsel %vm380, %v6084, 0
      %v6111 = vsel %vm405, %v6085, 0
      %6113 = vmatprep.subr.mxu0 0.0
      %6114 = vmatpush1.msra.mxu0 0.0
      %6115 = vmatprep.subr.mxu0 0.0
      %6116 = vmatpush1.msra.mxu0 0.0
      %6117 = vmatprep.subr.mxu0 0.0
      %6118 = vmatpush1.msra.mxu0 0.0
      %6119 = vmatprep.subr.mxu0 0.0
      %6120 = vmatpush1.msra.mxu0 0.0
      %6121 = vmatprep.subr.mxu0 0.0
      %6122 = vmatpush1.msra.mxu0 0.0
      %6123 = vmatprep.subr.mxu0 0.0
      %6124 = vmatpush1.msra.mxu0 0.0
      %6125 = vmatprep.subr.mxu0 0.0
      %6126 = vmatpush1.msra.mxu0 0.0
      %6127 = vmatprep.subr.mxu0 0.0
      %6128 = vmatpush1.msra.mxu0 0.0
      %6129 = vmatprep.subr.mxu0 0.0
      %6130 = vmatpush1.msra.mxu0 0.0
      %6131 = vmatprep.subr.mxu0 0.0
      %6132 = vmatpush1.msra.mxu0 0.0
      %6133 = vmatprep.subr.mxu0 0.0
      %6134 = vmatpush1.msra.mxu0 0.0
      %6135 = vmatprep.subr.mxu0 0.0
      %6136 = vmatpush1.msra.mxu0 0.0
      %6137 = vmatprep.subr.mxu0 0.0
      %6138 = vmatpush1.msra.mxu0 0.0
      %6139 = vmatprep.subr.mxu0 0.0
      %6140 = vmatpush1.msra.mxu0 0.0
      %6141 = vmatprep.subr.mxu0 0.0
      %6142 = vmatpush1.msra.mxu0 0.0
      %6143 = vmatprep.subr.mxu0 0.0
      %6144 = vmatpush1.msra.mxu0 %v6111
      %6145 = vmatprep.subr.mxu0 0.0
      %6146 = vmatpush2.msra.mxu0 0.0
      %6147 = vmatprep.subr.mxu0 0.0
      %6148 = vmatpush2.msra.mxu0 0.0
      %6149 = vmatprep.subr.mxu0 0.0
      %6150 = vmatpush2.msra.mxu0 0.0
      %6151 = vmatprep.subr.mxu0 0.0
      %6152 = vmatpush2.msra.mxu0 0.0
      %6153 = vmatprep.subr.mxu0 0.0
      %6154 = vmatpush2.msra.mxu0 0.0
      %6155 = vmatprep.subr.mxu0 0.0
      %6156 = vmatpush2.msra.mxu0 0.0
      %6157 = vmatprep.subr.mxu0 0.0
      %6158 = vmatpush2.msra.mxu0 0.0
      %6159 = vmatprep.subr.mxu0 0.0
      %6160 = vmatpush2.msra.mxu0 0.0
      %6161 = vmatprep.subr.mxu0 0.0
      %6162 = vmatpush2.msra.mxu0 0.0
      %6163 = vmatprep.subr.mxu0 0.0
      %6164 = vmatpush2.msra.mxu0 0.0
      %6165 = vmatprep.subr.mxu0 0.0
      %6166 = vmatpush2.msra.mxu0 0.0
      %6167 = vmatprep.subr.mxu0 0.0
      %6168 = vmatpush2.msra.mxu0 0.0
      %6169 = vmatprep.subr.mxu0 0.0
      %6170 = vmatpush2.msra.mxu0 0.0
      %6171 = vmatprep.subr.mxu0 0.0
      %6172 = vmatpush2.msra.mxu0 0.0
      %6173 = vmatprep.subr.mxu0 0.0
      %6174 = vmatpush2.msra.mxu0 0.0
      %6175 = vmatprep.subr.mxu0 0.0
      %6176 = vmatpush2.msra.mxu0 0.0
      %6177 = vmatprep.mubr.f32.mxu0 0.0
      %6178 = vmatmul.mubr.f32.gmra.mxu0 %v6087
      %v6179 = vpop.f32.mrf.mxu0
      %v6180 = vadd.f32 0.0, %v6179
      %v6181 = vpop.f32.mrf.mxu0
      %6182 = vmatprep.mubr.f32.mxu0 0.0
      %6183 = vmatmul.mubr.f32.gmra.mxu0 %v6090
      %v6184 = vpop.f32.mrf.mxu0
      %v6185 = vadd.f32 0.0, %v6184
      %v6186 = vpop.f32.mrf.mxu0
      %6187 = vmatprep.mubr.f32.mxu0 0.0
      %6188 = vmatmul.mubr.f32.gmra.mxu0 %v6093
      %v6189 = vpop.f32.mrf.mxu0
      %v6190 = vadd.f32 0.0, %v6189
      %v6191 = vpop.f32.mrf.mxu0
      %6192 = vmatprep.mubr.f32.mxu0 0.0
      %6193 = vmatmul.mubr.f32.gmra.mxu0 %v6096
      %v6194 = vpop.f32.mrf.mxu0
      %v6195 = vadd.f32 0.0, %v6194
      %v6196 = vpop.f32.mrf.mxu0
      %6197 = vmatprep.mubr.f32.mxu0 0.0
      %6198 = vmatmul.mubr.f32.gmra.mxu0 %v6099
      %v6199 = vpop.f32.mrf.mxu0
      %v6200 = vadd.f32 0.0, %v6199
      %v6201 = vpop.f32.mrf.mxu0
      %6202 = vmatprep.mubr.f32.mxu0 0.0
      %6203 = vmatmul.mubr.f32.gmra.mxu0 %v6102
      %v6204 = vpop.f32.mrf.mxu0
      %v6205 = vadd.f32 0.0, %v6204
      %v6206 = vpop.f32.mrf.mxu0
      %6207 = vmatprep.mubr.f32.mxu0 0.0
      %6208 = vmatmul.mubr.f32.gmra.mxu0 %v6105
      %v6209 = vpop.f32.mrf.mxu0
      %v6210 = vadd.f32 0.0, %v6209
      %v6211 = vpop.f32.mrf.mxu0
      %6212 = vmatprep.mubr.f32.mxu0 0.0
      %6213 = vmatmul.mubr.f32.gmra.mxu0 %v6108
      %v6214 = vpop.f32.mrf.mxu0
      %v6215 = vadd.f32 0.0, %v6214
      %v6216 = vpop.f32.mrf.mxu0
      %6217 = vdwg.mxu0
      %v6218 = vadd.f32 %v6069, %v6180
      %v6219 = vadd.f32 %v6070, %v6185
      %v6220 = vadd.f32 %v6071, %v6190
      %v6221 = vadd.f32 %v6072, %v6195
      %v6222 = vadd.f32 %v6073, %v6200
      %v6223 = vadd.f32 %v6074, %v6205
      %v6224 = vadd.f32 %v6075, %v6210
      %v6225 = vadd.f32 %v6076, %v6215
      %s6226 = scalar_lea.vmem [#allocation2], 288
      %v6227 = vld [vmem:[%s6226 + $0x7] sm:$0xff]
      %v6228 = vld [vmem:[%s6226 + $0x1f] sm:$0xff]
      %v6229 = vld [vmem:[%s6226 + $0x37] sm:$0xff]
      %v6230 = vld [vmem:[%s6226 + $0x4f] sm:$0xff]
      %v6231 = vld [vmem:[%s6226 + $0x67] sm:$0xff]
      %v6232 = vld [vmem:[%s6226 + $0x7f] sm:$0xff]
      %v6233 = vld [vmem:[%s6226 + $0x97] sm:$0xff]
      %v6234 = vld [vmem:[%s6226 + $0xaf] sm:$0xff]
      %v6235 = vld [vmem:[%s3518] sm:$0xf]
      %v6237 = vsel %vm380, %v6227, 0
      %v6240 = vsel %vm380, %v6228, 0
      %v6243 = vsel %vm380, %v6229, 0
      %v6246 = vsel %vm380, %v6230, 0
      %v6249 = vsel %vm380, %v6231, 0
      %v6252 = vsel %vm380, %v6232, 0
      %v6255 = vsel %vm380, %v6233, 0
      %v6258 = vsel %vm380, %v6234, 0
      %v6261 = vsel %vm405, %v6235, 0
      %6263 = vmatprep.subr.mxu0 0.0
      %6264 = vmatpush1.msra.mxu0 0.0
      %6265 = vmatprep.subr.mxu0 0.0
      %6266 = vmatpush1.msra.mxu0 0.0
      %6267 = vmatprep.subr.mxu0 0.0
      %6268 = vmatpush1.msra.mxu0 0.0
      %6269 = vmatprep.subr.mxu0 0.0
      %6270 = vmatpush1.msra.mxu0 0.0
      %6271 = vmatprep.subr.mxu0 0.0
      %6272 = vmatpush1.msra.mxu0 0.0
      %6273 = vmatprep.subr.mxu0 0.0
      %6274 = vmatpush1.msra.mxu0 0.0
      %6275 = vmatprep.subr.mxu0 0.0
      %6276 = vmatpush1.msra.mxu0 0.0
      %6277 = vmatprep.subr.mxu0 0.0
      %6278 = vmatpush1.msra.mxu0 0.0
      %6279 = vmatprep.subr.mxu0 0.0
      %6280 = vmatpush1.msra.mxu0 0.0
      %6281 = vmatprep.subr.mxu0 0.0
      %6282 = vmatpush1.msra.mxu0 0.0
      %6283 = vmatprep.subr.mxu0 0.0
      %6284 = vmatpush1.msra.mxu0 0.0
      %6285 = vmatprep.subr.mxu0 0.0
      %6286 = vmatpush1.msra.mxu0 0.0
      %6287 = vmatprep.subr.mxu0 0.0
      %6288 = vmatpush1.msra.mxu0 0.0
      %6289 = vmatprep.subr.mxu0 0.0
      %6290 = vmatpush1.msra.mxu0 0.0
      %6291 = vmatprep.subr.mxu0 0.0
      %6292 = vmatpush1.msra.mxu0 0.0
      %6293 = vmatprep.subr.mxu0 0.0
      %6294 = vmatpush1.msra.mxu0 %v6261
      %6295 = vmatprep.subr.mxu0 0.0
      %6296 = vmatpush2.msra.mxu0 0.0
      %6297 = vmatprep.subr.mxu0 0.0
      %6298 = vmatpush2.msra.mxu0 0.0
      %6299 = vmatprep.subr.mxu0 0.0
      %6300 = vmatpush2.msra.mxu0 0.0
      %6301 = vmatprep.subr.mxu0 0.0
      %6302 = vmatpush2.msra.mxu0 0.0
      %6303 = vmatprep.subr.mxu0 0.0
      %6304 = vmatpush2.msra.mxu0 0.0
      %6305 = vmatprep.subr.mxu0 0.0
      %6306 = vmatpush2.msra.mxu0 0.0
      %6307 = vmatprep.subr.mxu0 0.0
      %6308 = vmatpush2.msra.mxu0 0.0
      %6309 = vmatprep.subr.mxu0 0.0
      %6310 = vmatpush2.msra.mxu0 0.0
      %6311 = vmatprep.subr.mxu0 0.0
      %6312 = vmatpush2.msra.mxu0 0.0
      %6313 = vmatprep.subr.mxu0 0.0
      %6314 = vmatpush2.msra.mxu0 0.0
      %6315 = vmatprep.subr.mxu0 0.0
      %6316 = vmatpush2.msra.mxu0 0.0
      %6317 = vmatprep.subr.mxu0 0.0
      %6318 = vmatpush2.msra.mxu0 0.0
      %6319 = vmatprep.subr.mxu0 0.0
      %6320 = vmatpush2.msra.mxu0 0.0
      %6321 = vmatprep.subr.mxu0 0.0
      %6322 = vmatpush2.msra.mxu0 0.0
      %6323 = vmatprep.subr.mxu0 0.0
      %6324 = vmatpush2.msra.mxu0 0.0
      %6325 = vmatprep.subr.mxu0 0.0
      %6326 = vmatpush2.msra.mxu0 0.0
      %6327 = vmatprep.mubr.f32.mxu0 0.0
      %6328 = vmatmul.mubr.f32.gmra.mxu0 %v6237
      %v6329 = vpop.f32.mrf.mxu0
      %v6330 = vadd.f32 0.0, %v6329
      %v6331 = vpop.f32.mrf.mxu0
      %6332 = vmatprep.mubr.f32.mxu0 0.0
      %6333 = vmatmul.mubr.f32.gmra.mxu0 %v6240
      %v6334 = vpop.f32.mrf.mxu0
      %v6335 = vadd.f32 0.0, %v6334
      %v6336 = vpop.f32.mrf.mxu0
      %6337 = vmatprep.mubr.f32.mxu0 0.0
      %6338 = vmatmul.mubr.f32.gmra.mxu0 %v6243
      %v6339 = vpop.f32.mrf.mxu0
      %v6340 = vadd.f32 0.0, %v6339
      %v6341 = vpop.f32.mrf.mxu0
      %6342 = vmatprep.mubr.f32.mxu0 0.0
      %6343 = vmatmul.mubr.f32.gmra.mxu0 %v6246
      %v6344 = vpop.f32.mrf.mxu0
      %v6345 = vadd.f32 0.0, %v6344
      %v6346 = vpop.f32.mrf.mxu0
      %6347 = vmatprep.mubr.f32.mxu0 0.0
      %6348 = vmatmul.mubr.f32.gmra.mxu0 %v6249
      %v6349 = vpop.f32.mrf.mxu0
      %v6350 = vadd.f32 0.0, %v6349
      %v6351 = vpop.f32.mrf.mxu0
      %6352 = vmatprep.mubr.f32.mxu0 0.0
      %6353 = vmatmul.mubr.f32.gmra.mxu0 %v6252
      %v6354 = vpop.f32.mrf.mxu0
      %v6355 = vadd.f32 0.0, %v6354
      %v6356 = vpop.f32.mrf.mxu0
      %6357 = vmatprep.mubr.f32.mxu0 0.0
      %6358 = vmatmul.mubr.f32.gmra.mxu0 %v6255
      %v6359 = vpop.f32.mrf.mxu0
      %v6360 = vadd.f32 0.0, %v6359
      %v6361 = vpop.f32.mrf.mxu0
      %6362 = vmatprep.mubr.f32.mxu0 0.0
      %6363 = vmatmul.mubr.f32.gmra.mxu0 %v6258
      %v6364 = vpop.f32.mrf.mxu0
      %v6365 = vadd.f32 0.0, %v6364
      %v6366 = vpop.f32.mrf.mxu0
      %6367 = vdwg.mxu0
      %v6368 = vadd.f32 %v6218, %v6330
      %v6369 = vadd.f32 %v6219, %v6335
      %v6370 = vadd.f32 %v6220, %v6340
      %v6371 = vadd.f32 %v6221, %v6345
      %v6372 = vadd.f32 %v6222, %v6350
      %v6373 = vadd.f32 %v6223, %v6355
      %v6374 = vadd.f32 %v6224, %v6360
      %v6375 = vadd.f32 %v6225, %v6365
      %s6376 = scalar_lea.vmem [#allocation2], 48
      %v6377 = vld [vmem:[%s6376 + $0x8] sm:$0xff]
      %v6378 = vld [vmem:[%s6376 + $0x20] sm:$0xff]
      %v6379 = vld [vmem:[%s6376 + $0x38] sm:$0xff]
      %v6380 = vld [vmem:[%s6376 + $0x50] sm:$0xff]
      %v6381 = vld [vmem:[%s6376 + $0x68] sm:$0xff]
      %v6382 = vld [vmem:[%s6376 + $0x80] sm:$0xff]
      %v6383 = vld [vmem:[%s6376 + $0x98] sm:$0xff]
      %v6384 = vld [vmem:[%s6376 + $0xb0] sm:$0xff]
      %v6385 = vld [vmem:[%s3668] sm:$0xf]
      %v6387 = vsel %vm380, %v6377, 0
      %v6390 = vsel %vm380, %v6378, 0
      %v6393 = vsel %vm380, %v6379, 0
      %v6396 = vsel %vm380, %v6380, 0
      %v6399 = vsel %vm380, %v6381, 0
      %v6402 = vsel %vm380, %v6382, 0
      %v6405 = vsel %vm380, %v6383, 0
      %v6408 = vsel %vm380, %v6384, 0
      %v6411 = vsel %vm405, %v6385, 0
      %6413 = vmatprep.subr.mxu0 0.0
      %6414 = vmatpush1.msra.mxu0 0.0
      %6415 = vmatprep.subr.mxu0 0.0
      %6416 = vmatpush1.msra.mxu0 0.0
      %6417 = vmatprep.subr.mxu0 0.0
      %6418 = vmatpush1.msra.mxu0 0.0
      %6419 = vmatprep.subr.mxu0 0.0
      %6420 = vmatpush1.msra.mxu0 0.0
      %6421 = vmatprep.subr.mxu0 0.0
      %6422 = vmatpush1.msra.mxu0 0.0
      %6423 = vmatprep.subr.mxu0 0.0
      %6424 = vmatpush1.msra.mxu0 0.0
      %6425 = vmatprep.subr.mxu0 0.0
      %6426 = vmatpush1.msra.mxu0 0.0
      %6427 = vmatprep.subr.mxu0 0.0
      %6428 = vmatpush1.msra.mxu0 0.0
      %6429 = vmatprep.subr.mxu0 0.0
      %6430 = vmatpush1.msra.mxu0 0.0
      %6431 = vmatprep.subr.mxu0 0.0
      %6432 = vmatpush1.msra.mxu0 0.0
      %6433 = vmatprep.subr.mxu0 0.0
      %6434 = vmatpush1.msra.mxu0 0.0
      %6435 = vmatprep.subr.mxu0 0.0
      %6436 = vmatpush1.msra.mxu0 0.0
      %6437 = vmatprep.subr.mxu0 0.0
      %6438 = vmatpush1.msra.mxu0 0.0
      %6439 = vmatprep.subr.mxu0 0.0
      %6440 = vmatpush1.msra.mxu0 0.0
      %6441 = vmatprep.subr.mxu0 0.0
      %6442 = vmatpush1.msra.mxu0 0.0
      %6443 = vmatprep.subr.mxu0 0.0
      %6444 = vmatpush1.msra.mxu0 %v6411
      %6445 = vmatprep.subr.mxu0 0.0
      %6446 = vmatpush2.msra.mxu0 0.0
      %6447 = vmatprep.subr.mxu0 0.0
      %6448 = vmatpush2.msra.mxu0 0.0
      %6449 = vmatprep.subr.mxu0 0.0
      %6450 = vmatpush2.msra.mxu0 0.0
      %6451 = vmatprep.subr.mxu0 0.0
      %6452 = vmatpush2.msra.mxu0 0.0
      %6453 = vmatprep.subr.mxu0 0.0
      %6454 = vmatpush2.msra.mxu0 0.0
      %6455 = vmatprep.subr.mxu0 0.0
      %6456 = vmatpush2.msra.mxu0 0.0
      %6457 = vmatprep.subr.mxu0 0.0
      %6458 = vmatpush2.msra.mxu0 0.0
      %6459 = vmatprep.subr.mxu0 0.0
      %6460 = vmatpush2.msra.mxu0 0.0
      %6461 = vmatprep.subr.mxu0 0.0
      %6462 = vmatpush2.msra.mxu0 0.0
      %6463 = vmatprep.subr.mxu0 0.0
      %6464 = vmatpush2.msra.mxu0 0.0
      %6465 = vmatprep.subr.mxu0 0.0
      %6466 = vmatpush2.msra.mxu0 0.0
      %6467 = vmatprep.subr.mxu0 0.0
      %6468 = vmatpush2.msra.mxu0 0.0
      %6469 = vmatprep.subr.mxu0 0.0
      %6470 = vmatpush2.msra.mxu0 0.0
      %6471 = vmatprep.subr.mxu0 0.0
      %6472 = vmatpush2.msra.mxu0 0.0
      %6473 = vmatprep.subr.mxu0 0.0
      %6474 = vmatpush2.msra.mxu0 0.0
      %6475 = vmatprep.subr.mxu0 0.0
      %6476 = vmatpush2.msra.mxu0 0.0
      %6477 = vmatprep.mubr.f32.mxu0 0.0
      %6478 = vmatmul.mubr.f32.gmra.mxu0 %v6387
      %v6479 = vpop.f32.mrf.mxu0
      %v6480 = vadd.f32 0.0, %v6479
      %v6481 = vpop.f32.mrf.mxu0
      %6482 = vmatprep.mubr.f32.mxu0 0.0
      %6483 = vmatmul.mubr.f32.gmra.mxu0 %v6390
      %v6484 = vpop.f32.mrf.mxu0
      %v6485 = vadd.f32 0.0, %v6484
      %v6486 = vpop.f32.mrf.mxu0
      %6487 = vmatprep.mubr.f32.mxu0 0.0
      %6488 = vmatmul.mubr.f32.gmra.mxu0 %v6393
      %v6489 = vpop.f32.mrf.mxu0
      %v6490 = vadd.f32 0.0, %v6489
      %v6491 = vpop.f32.mrf.mxu0
      %6492 = vmatprep.mubr.f32.mxu0 0.0
      %6493 = vmatmul.mubr.f32.gmra.mxu0 %v6396
      %v6494 = vpop.f32.mrf.mxu0
      %v6495 = vadd.f32 0.0, %v6494
      %v6496 = vpop.f32.mrf.mxu0
      %6497 = vmatprep.mubr.f32.mxu0 0.0
      %6498 = vmatmul.mubr.f32.gmra.mxu0 %v6399
      %v6499 = vpop.f32.mrf.mxu0
      %v6500 = vadd.f32 0.0, %v6499
      %v6501 = vpop.f32.mrf.mxu0
      %6502 = vmatprep.mubr.f32.mxu0 0.0
      %6503 = vmatmul.mubr.f32.gmra.mxu0 %v6402
      %v6504 = vpop.f32.mrf.mxu0
      %v6505 = vadd.f32 0.0, %v6504
      %v6506 = vpop.f32.mrf.mxu0
      %6507 = vmatprep.mubr.f32.mxu0 0.0
      %6508 = vmatmul.mubr.f32.gmra.mxu0 %v6405
      %v6509 = vpop.f32.mrf.mxu0
      %v6510 = vadd.f32 0.0, %v6509
      %v6511 = vpop.f32.mrf.mxu0
      %6512 = vmatprep.mubr.f32.mxu0 0.0
      %6513 = vmatmul.mubr.f32.gmra.mxu0 %v6408
      %v6514 = vpop.f32.mrf.mxu0
      %v6515 = vadd.f32 0.0, %v6514
      %v6516 = vpop.f32.mrf.mxu0
      %6517 = vdwg.mxu0
      %v6518 = vadd.f32 %v6368, %v6480
      %v6519 = vadd.f32 %v6369, %v6485
      %v6520 = vadd.f32 %v6370, %v6490
      %v6521 = vadd.f32 %v6371, %v6495
      %v6522 = vadd.f32 %v6372, %v6500
      %v6523 = vadd.f32 %v6373, %v6505
      %v6524 = vadd.f32 %v6374, %v6510
      %v6525 = vadd.f32 %v6375, %v6515
      %v6526 = vld [vmem:[%s6226 + $0x8] sm:$0xff]
      %v6527 = vld [vmem:[%s6226 + $0x20] sm:$0xff]
      %v6528 = vld [vmem:[%s6226 + $0x38] sm:$0xff]
      %v6529 = vld [vmem:[%s6226 + $0x50] sm:$0xff]
      %v6530 = vld [vmem:[%s6226 + $0x68] sm:$0xff]
      %v6531 = vld [vmem:[%s6226 + $0x80] sm:$0xff]
      %v6532 = vld [vmem:[%s6226 + $0x98] sm:$0xff]
      %v6533 = vld [vmem:[%s6226 + $0xb0] sm:$0xff]
      %v6534 = vld [vmem:[%s3818] sm:$0xf]
      %v6536 = vsel %vm380, %v6526, 0
      %v6539 = vsel %vm380, %v6527, 0
      %v6542 = vsel %vm380, %v6528, 0
      %v6545 = vsel %vm380, %v6529, 0
      %v6548 = vsel %vm380, %v6530, 0
      %v6551 = vsel %vm380, %v6531, 0
      %v6554 = vsel %vm380, %v6532, 0
      %v6557 = vsel %vm380, %v6533, 0
      %v6560 = vsel %vm405, %v6534, 0
      %6562 = vmatprep.subr.mxu0 0.0
      %6563 = vmatpush1.msra.mxu0 0.0
      %6564 = vmatprep.subr.mxu0 0.0
      %6565 = vmatpush1.msra.mxu0 0.0
      %6566 = vmatprep.subr.mxu0 0.0
      %6567 = vmatpush1.msra.mxu0 0.0
      %6568 = vmatprep.subr.mxu0 0.0
      %6569 = vmatpush1.msra.mxu0 0.0
      %6570 = vmatprep.subr.mxu0 0.0
      %6571 = vmatpush1.msra.mxu0 0.0
      %6572 = vmatprep.subr.mxu0 0.0
      %6573 = vmatpush1.msra.mxu0 0.0
      %6574 = vmatprep.subr.mxu0 0.0
      %6575 = vmatpush1.msra.mxu0 0.0
      %6576 = vmatprep.subr.mxu0 0.0
      %6577 = vmatpush1.msra.mxu0 0.0
      %6578 = vmatprep.subr.mxu0 0.0
      %6579 = vmatpush1.msra.mxu0 0.0
      %6580 = vmatprep.subr.mxu0 0.0
      %6581 = vmatpush1.msra.mxu0 0.0
      %6582 = vmatprep.subr.mxu0 0.0
      %6583 = vmatpush1.msra.mxu0 0.0
      %6584 = vmatprep.subr.mxu0 0.0
      %6585 = vmatpush1.msra.mxu0 0.0
      %6586 = vmatprep.subr.mxu0 0.0
      %6587 = vmatpush1.msra.mxu0 0.0
      %6588 = vmatprep.subr.mxu0 0.0
      %6589 = vmatpush1.msra.mxu0 0.0
      %6590 = vmatprep.subr.mxu0 0.0
      %6591 = vmatpush1.msra.mxu0 0.0
      %6592 = vmatprep.subr.mxu0 0.0
      %6593 = vmatpush1.msra.mxu0 %v6560
      %6594 = vmatprep.subr.mxu0 0.0
      %6595 = vmatpush2.msra.mxu0 0.0
      %6596 = vmatprep.subr.mxu0 0.0
      %6597 = vmatpush2.msra.mxu0 0.0
      %6598 = vmatprep.subr.mxu0 0.0
      %6599 = vmatpush2.msra.mxu0 0.0
      %6600 = vmatprep.subr.mxu0 0.0
      %6601 = vmatpush2.msra.mxu0 0.0
      %6602 = vmatprep.subr.mxu0 0.0
      %6603 = vmatpush2.msra.mxu0 0.0
      %6604 = vmatprep.subr.mxu0 0.0
      %6605 = vmatpush2.msra.mxu0 0.0
      %6606 = vmatprep.subr.mxu0 0.0
      %6607 = vmatpush2.msra.mxu0 0.0
      %6608 = vmatprep.subr.mxu0 0.0
      %6609 = vmatpush2.msra.mxu0 0.0
      %6610 = vmatprep.subr.mxu0 0.0
      %6611 = vmatpush2.msra.mxu0 0.0
      %6612 = vmatprep.subr.mxu0 0.0
      %6613 = vmatpush2.msra.mxu0 0.0
      %6614 = vmatprep.subr.mxu0 0.0
      %6615 = vmatpush2.msra.mxu0 0.0
      %6616 = vmatprep.subr.mxu0 0.0
      %6617 = vmatpush2.msra.mxu0 0.0
      %6618 = vmatprep.subr.mxu0 0.0
      %6619 = vmatpush2.msra.mxu0 0.0
      %6620 = vmatprep.subr.mxu0 0.0
      %6621 = vmatpush2.msra.mxu0 0.0
      %6622 = vmatprep.subr.mxu0 0.0
      %6623 = vmatpush2.msra.mxu0 0.0
      %6624 = vmatprep.subr.mxu0 0.0
      %6625 = vmatpush2.msra.mxu0 0.0
      %6626 = vmatprep.mubr.f32.mxu0 0.0
      %6627 = vmatmul.mubr.f32.gmra.mxu0 %v6536
      %v6628 = vpop.f32.mrf.mxu0
      %v6629 = vadd.f32 0.0, %v6628
      %v6630 = vpop.f32.mrf.mxu0
      %6631 = vmatprep.mubr.f32.mxu0 0.0
      %6632 = vmatmul.mubr.f32.gmra.mxu0 %v6539
      %v6633 = vpop.f32.mrf.mxu0
      %v6634 = vadd.f32 0.0, %v6633
      %v6635 = vpop.f32.mrf.mxu0
      %6636 = vmatprep.mubr.f32.mxu0 0.0
      %6637 = vmatmul.mubr.f32.gmra.mxu0 %v6542
      %v6638 = vpop.f32.mrf.mxu0
      %v6639 = vadd.f32 0.0, %v6638
      %v6640 = vpop.f32.mrf.mxu0
      %6641 = vmatprep.mubr.f32.mxu0 0.0
      %6642 = vmatmul.mubr.f32.gmra.mxu0 %v6545
      %v6643 = vpop.f32.mrf.mxu0
      %v6644 = vadd.f32 0.0, %v6643
      %v6645 = vpop.f32.mrf.mxu0
      %6646 = vmatprep.mubr.f32.mxu0 0.0
      %6647 = vmatmul.mubr.f32.gmra.mxu0 %v6548
      %v6648 = vpop.f32.mrf.mxu0
      %v6649 = vadd.f32 0.0, %v6648
      %v6650 = vpop.f32.mrf.mxu0
      %6651 = vmatprep.mubr.f32.mxu0 0.0
      %6652 = vmatmul.mubr.f32.gmra.mxu0 %v6551
      %v6653 = vpop.f32.mrf.mxu0
      %v6654 = vadd.f32 0.0, %v6653
      %v6655 = vpop.f32.mrf.mxu0
      %6656 = vmatprep.mubr.f32.mxu0 0.0
      %6657 = vmatmul.mubr.f32.gmra.mxu0 %v6554
      %v6658 = vpop.f32.mrf.mxu0
      %v6659 = vadd.f32 0.0, %v6658
      %v6660 = vpop.f32.mrf.mxu0
      %6661 = vmatprep.mubr.f32.mxu0 0.0
      %6662 = vmatmul.mubr.f32.gmra.mxu0 %v6557
      %v6663 = vpop.f32.mrf.mxu0
      %v6664 = vadd.f32 0.0, %v6663
      %v6665 = vpop.f32.mrf.mxu0
      %6666 = vdwg.mxu0
      %v6667 = vadd.f32 %v6518, %v6629
      %v6668 = vadd.f32 %v6519, %v6634
      %v6669 = vadd.f32 %v6520, %v6639
      %v6670 = vadd.f32 %v6521, %v6644
      %v6671 = vadd.f32 %v6522, %v6649
      %v6672 = vadd.f32 %v6523, %v6654
      %v6673 = vadd.f32 %v6524, %v6659
      %v6674 = vadd.f32 %v6525, %v6664
      %v6675 = vld [vmem:[%s6] sm:$0x1]
      %v6677 = vlaneseq
      %v6678 = vshrl.u32 %v6677, 7
      %v6679 = vsub.s32 0, %v6678
      %v6680 = vrot.slane %v6675, %v6679
      %v6682 = vadd.f32 %v6667, %v6680
      %v6683 = vadd.f32 %v6668, %v6680
      %v6684 = vadd.f32 %v6669, %v6680
      %v6685 = vadd.f32 %v6670, %v6680
      %v6686 = vadd.f32 %v6671, %v6680
      %v6687 = vadd.f32 %v6672, %v6680
      %v6688 = vadd.f32 %v6673, %v6680
      %v6689 = vadd.f32 %v6674, %v6680
      %v6690 = vmax.f32 %v6682, 0.0
      %v6691 = vmax.f32 %v6683, 0.0
      %v6692 = vmax.f32 %v6684, 0.0
      %v6693 = vmax.f32 %v6685, 0.0
      %v6694 = vmax.f32 %v6686, 0.0
      %v6695 = vmax.f32 %v6687, 0.0
      %v6696 = vmax.f32 %v6688, 0.0
      %v6697 = vmax.f32 %v6689, 0.0
      %s6698 = scalar_lea.vmem [#allocation3], 288
      %6699 = vst.msk [vmem:[%s6698] sm:$0xff] %vm2551, %v6690
      %6700 = vst.msk [vmem:[%s6698 + $0x10] sm:$0xff] %vm2551, %v6691
      %6701 = vst.msk [vmem:[%s6698 + $0x20] sm:$0xff] %vm2551, %v6692
      %6702 = vst.msk [vmem:[%s6698 + $0x30] sm:$0xff] %vm2551, %v6693
      %6703 = vst.msk [vmem:[%s6698 + $0x40] sm:$0xff] %vm2551, %v6694
      %6704 = vst.msk [vmem:[%s6698 + $0x50] sm:$0xff] %vm2551, %v6695
      %6705 = vst.msk [vmem:[%s6698 + $0x60] sm:$0xff] %vm2551, %v6696
      %6706 = vst.msk [vmem:[%s6698 + $0x70] sm:$0xff] %vm2551, %v6697
      %v6707 = vld [vmem:[%s2047 + $0x8] sm:$0xff]
      %v6708 = vld [vmem:[%s2047 + $0x20] sm:$0xff]
      %v6709 = vld [vmem:[%s2047 + $0x38] sm:$0xff]
      %v6710 = vld [vmem:[%s2047 + $0x50] sm:$0xff]
      %v6711 = vld [vmem:[%s2047 + $0x68] sm:$0xff]
      %v6712 = vld [vmem:[%s2047 + $0x80] sm:$0xff]
      %v6713 = vld [vmem:[%s2047 + $0x98] sm:$0xff]
      %v6714 = vld [vmem:[%s2047 + $0xb0] sm:$0xff]
      %v6715 = vld [vmem:[%s5] sm:$0xf]
      %v6716 = vld [vmem:[%s2212 + $0x8] sm:$0xff]
      %v6717 = vld [vmem:[%s2212 + $0x20] sm:$0xff]
      %v6718 = vld [vmem:[%s2212 + $0x38] sm:$0xff]
      %v6719 = vld [vmem:[%s2212 + $0x50] sm:$0xff]
      %v6720 = vld [vmem:[%s2212 + $0x68] sm:$0xff]
      %v6721 = vld [vmem:[%s2212 + $0x80] sm:$0xff]
      %v6722 = vld [vmem:[%s2212 + $0x98] sm:$0xff]
      %v6723 = vld [vmem:[%s2212 + $0xb0] sm:$0xff]
      %v6724 = vld [vmem:[%s2644] sm:$0xf]
      %v6726 = vsel %vm380, %v6716, 0
      %v6729 = vsel %vm380, %v6717, 0
      %v6732 = vsel %vm380, %v6718, 0
      %v6735 = vsel %vm380, %v6719, 0
      %v6738 = vsel %vm380, %v6720, 0
      %v6741 = vsel %vm380, %v6721, 0
      %v6744 = vsel %vm380, %v6722, 0
      %v6747 = vsel %vm380, %v6723, 0
      %v6750 = vsel %vm405, %v6724, 0
      %6752 = vmatprep.subr.mxu0 0.0
      %6753 = vmatpush1.msra.mxu0 0.0
      %6754 = vmatprep.subr.mxu0 0.0
      %6755 = vmatpush1.msra.mxu0 0.0
      %6756 = vmatprep.subr.mxu0 0.0
      %6757 = vmatpush1.msra.mxu0 0.0
      %6758 = vmatprep.subr.mxu0 0.0
      %6759 = vmatpush1.msra.mxu0 0.0
      %6760 = vmatprep.subr.mxu0 0.0
      %6761 = vmatpush1.msra.mxu0 0.0
      %6762 = vmatprep.subr.mxu0 0.0
      %6763 = vmatpush1.msra.mxu0 0.0
      %6764 = vmatprep.subr.mxu0 0.0
      %6765 = vmatpush1.msra.mxu0 0.0
      %6766 = vmatprep.subr.mxu0 0.0
      %6767 = vmatpush1.msra.mxu0 0.0
      %6768 = vmatprep.subr.mxu0 0.0
      %6769 = vmatpush1.msra.mxu0 0.0
      %6770 = vmatprep.subr.mxu0 0.0
      %6771 = vmatpush1.msra.mxu0 0.0
      %6772 = vmatprep.subr.mxu0 0.0
      %6773 = vmatpush1.msra.mxu0 0.0
      %6774 = vmatprep.subr.mxu0 0.0
      %6775 = vmatpush1.msra.mxu0 0.0
      %6776 = vmatprep.subr.mxu0 0.0
      %6777 = vmatpush1.msra.mxu0 0.0
      %6778 = vmatprep.subr.mxu0 0.0
      %6779 = vmatpush1.msra.mxu0 0.0
      %6780 = vmatprep.subr.mxu0 0.0
      %6781 = vmatpush1.msra.mxu0 0.0
      %6782 = vmatprep.subr.mxu0 0.0
      %6783 = vmatpush1.msra.mxu0 %v6750
      %6784 = vmatprep.subr.mxu0 0.0
      %6785 = vmatpush2.msra.mxu0 0.0
      %6786 = vmatprep.subr.mxu0 0.0
      %6787 = vmatpush2.msra.mxu0 0.0
      %6788 = vmatprep.subr.mxu0 0.0
      %6789 = vmatpush2.msra.mxu0 0.0
      %6790 = vmatprep.subr.mxu0 0.0
      %6791 = vmatpush2.msra.mxu0 0.0
      %6792 = vmatprep.subr.mxu0 0.0
      %6793 = vmatpush2.msra.mxu0 0.0
      %6794 = vmatprep.subr.mxu0 0.0
      %6795 = vmatpush2.msra.mxu0 0.0
      %6796 = vmatprep.subr.mxu0 0.0
      %6797 = vmatpush2.msra.mxu0 0.0
      %6798 = vmatprep.subr.mxu0 0.0
      %6799 = vmatpush2.msra.mxu0 0.0
      %6800 = vmatprep.subr.mxu0 0.0
      %6801 = vmatpush2.msra.mxu0 0.0
      %6802 = vmatprep.subr.mxu0 0.0
      %6803 = vmatpush2.msra.mxu0 0.0
      %6804 = vmatprep.subr.mxu0 0.0
      %6805 = vmatpush2.msra.mxu0 0.0
      %6806 = vmatprep.subr.mxu0 0.0
      %6807 = vmatpush2.msra.mxu0 0.0
      %6808 = vmatprep.subr.mxu0 0.0
      %6809 = vmatpush2.msra.mxu0 0.0
      %6810 = vmatprep.subr.mxu0 0.0
      %6811 = vmatpush2.msra.mxu0 0.0
      %6812 = vmatprep.subr.mxu0 0.0
      %6813 = vmatpush2.msra.mxu0 0.0
      %6814 = vmatprep.subr.mxu0 0.0
      %6815 = vmatpush2.msra.mxu0 0.0
      %6816 = vmatprep.mubr.f32.mxu0 0.0
      %6817 = vmatmul.mubr.f32.gmra.mxu0 %v6726
      %v6818 = vpop.f32.mrf.mxu0
      %v6819 = vadd.f32 0.0, %v6818
      %v6820 = vpop.f32.mrf.mxu0
      %6821 = vmatprep.mubr.f32.mxu0 0.0
      %6822 = vmatmul.mubr.f32.gmra.mxu0 %v6729
      %v6823 = vpop.f32.mrf.mxu0
      %v6824 = vadd.f32 0.0, %v6823
      %v6825 = vpop.f32.mrf.mxu0
      %6826 = vmatprep.mubr.f32.mxu0 0.0
      %6827 = vmatmul.mubr.f32.gmra.mxu0 %v6732
      %v6828 = vpop.f32.mrf.mxu0
      %v6829 = vadd.f32 0.0, %v6828
      %v6830 = vpop.f32.mrf.mxu0
      %6831 = vmatprep.mubr.f32.mxu0 0.0
      %6832 = vmatmul.mubr.f32.gmra.mxu0 %v6735
      %v6833 = vpop.f32.mrf.mxu0
      %v6834 = vadd.f32 0.0, %v6833
      %v6835 = vpop.f32.mrf.mxu0
      %6836 = vmatprep.mubr.f32.mxu0 0.0
      %6837 = vmatmul.mubr.f32.gmra.mxu0 %v6738
      %v6838 = vpop.f32.mrf.mxu0
      %v6839 = vadd.f32 0.0, %v6838
      %v6840 = vpop.f32.mrf.mxu0
      %6841 = vmatprep.mubr.f32.mxu0 0.0
      %6842 = vmatmul.mubr.f32.gmra.mxu0 %v6741
      %v6843 = vpop.f32.mrf.mxu0
      %v6844 = vadd.f32 0.0, %v6843
      %v6845 = vpop.f32.mrf.mxu0
      %6846 = vmatprep.mubr.f32.mxu0 0.0
      %6847 = vmatmul.mubr.f32.gmra.mxu0 %v6744
      %v6848 = vpop.f32.mrf.mxu0
      %v6849 = vadd.f32 0.0, %v6848
      %v6850 = vpop.f32.mrf.mxu0
      %6851 = vmatprep.mubr.f32.mxu0 0.0
      %6852 = vmatmul.mubr.f32.gmra.mxu0 %v6747
      %v6853 = vpop.f32.mrf.mxu0
      %v6854 = vadd.f32 0.0, %v6853
      %v6855 = vpop.f32.mrf.mxu0
      %6856 = vdwg.mxu0
      %v6858 = vsel %vm380, %v6707, 0
      %v6861 = vsel %vm380, %v6708, 0
      %v6864 = vsel %vm380, %v6709, 0
      %v6867 = vsel %vm380, %v6710, 0
      %v6870 = vsel %vm380, %v6711, 0
      %v6873 = vsel %vm380, %v6712, 0
      %v6876 = vsel %vm380, %v6713, 0
      %v6879 = vsel %vm380, %v6714, 0
      %v6882 = vsel %vm405, %v6715, 0
      %6884 = vmatprep.subr.mxu0 0.0
      %6885 = vmatpush1.msra.mxu0 0.0
      %6886 = vmatprep.subr.mxu0 0.0
      %6887 = vmatpush1.msra.mxu0 0.0
      %6888 = vmatprep.subr.mxu0 0.0
      %6889 = vmatpush1.msra.mxu0 0.0
      %6890 = vmatprep.subr.mxu0 0.0
      %6891 = vmatpush1.msra.mxu0 0.0
      %6892 = vmatprep.subr.mxu0 0.0
      %6893 = vmatpush1.msra.mxu0 0.0
      %6894 = vmatprep.subr.mxu0 0.0
      %6895 = vmatpush1.msra.mxu0 0.0
      %6896 = vmatprep.subr.mxu0 0.0
      %6897 = vmatpush1.msra.mxu0 0.0
      %6898 = vmatprep.subr.mxu0 0.0
      %6899 = vmatpush1.msra.mxu0 0.0
      %6900 = vmatprep.subr.mxu0 0.0
      %6901 = vmatpush1.msra.mxu0 0.0
      %6902 = vmatprep.subr.mxu0 0.0
      %6903 = vmatpush1.msra.mxu0 0.0
      %6904 = vmatprep.subr.mxu0 0.0
      %6905 = vmatpush1.msra.mxu0 0.0
      %6906 = vmatprep.subr.mxu0 0.0
      %6907 = vmatpush1.msra.mxu0 0.0
      %6908 = vmatprep.subr.mxu0 0.0
      %6909 = vmatpush1.msra.mxu0 0.0
      %6910 = vmatprep.subr.mxu0 0.0
      %6911 = vmatpush1.msra.mxu0 0.0
      %6912 = vmatprep.subr.mxu0 0.0
      %6913 = vmatpush1.msra.mxu0 0.0
      %6914 = vmatprep.subr.mxu0 0.0
      %6915 = vmatpush1.msra.mxu0 %v6882
      %6916 = vmatprep.subr.mxu0 0.0
      %6917 = vmatpush2.msra.mxu0 0.0
      %6918 = vmatprep.subr.mxu0 0.0
      %6919 = vmatpush2.msra.mxu0 0.0
      %6920 = vmatprep.subr.mxu0 0.0
      %6921 = vmatpush2.msra.mxu0 0.0
      %6922 = vmatprep.subr.mxu0 0.0
      %6923 = vmatpush2.msra.mxu0 0.0
      %6924 = vmatprep.subr.mxu0 0.0
      %6925 = vmatpush2.msra.mxu0 0.0
      %6926 = vmatprep.subr.mxu0 0.0
      %6927 = vmatpush2.msra.mxu0 0.0
      %6928 = vmatprep.subr.mxu0 0.0
      %6929 = vmatpush2.msra.mxu0 0.0
      %6930 = vmatprep.subr.mxu0 0.0
      %6931 = vmatpush2.msra.mxu0 0.0
      %6932 = vmatprep.subr.mxu0 0.0
      %6933 = vmatpush2.msra.mxu0 0.0
      %6934 = vmatprep.subr.mxu0 0.0
      %6935 = vmatpush2.msra.mxu0 0.0
      %6936 = vmatprep.subr.mxu0 0.0
      %6937 = vmatpush2.msra.mxu0 0.0
      %6938 = vmatprep.subr.mxu0 0.0
      %6939 = vmatpush2.msra.mxu0 0.0
      %6940 = vmatprep.subr.mxu0 0.0
      %6941 = vmatpush2.msra.mxu0 0.0
      %6942 = vmatprep.subr.mxu0 0.0
      %6943 = vmatpush2.msra.mxu0 0.0
      %6944 = vmatprep.subr.mxu0 0.0
      %6945 = vmatpush2.msra.mxu0 0.0
      %6946 = vmatprep.subr.mxu0 0.0
      %6947 = vmatpush2.msra.mxu0 0.0
      %6948 = vmatprep.mubr.f32.mxu0 0.0
      %6949 = vmatmul.mubr.f32.gmra.mxu0 %v6858
      %v6950 = vpop.f32.mrf.mxu0
      %v6951 = vadd.f32 %v6819, %v6950
      %v6952 = vpop.f32.mrf.mxu0
      %6953 = vmatprep.mubr.f32.mxu0 0.0
      %6954 = vmatmul.mubr.f32.gmra.mxu0 %v6861
      %v6955 = vpop.f32.mrf.mxu0
      %v6956 = vadd.f32 %v6824, %v6955
      %v6957 = vpop.f32.mrf.mxu0
      %6958 = vmatprep.mubr.f32.mxu0 0.0
      %6959 = vmatmul.mubr.f32.gmra.mxu0 %v6864
      %v6960 = vpop.f32.mrf.mxu0
      %v6961 = vadd.f32 %v6829, %v6960
      %v6962 = vpop.f32.mrf.mxu0
      %6963 = vmatprep.mubr.f32.mxu0 0.0
      %6964 = vmatmul.mubr.f32.gmra.mxu0 %v6867
      %v6965 = vpop.f32.mrf.mxu0
      %v6966 = vadd.f32 %v6834, %v6965
      %v6967 = vpop.f32.mrf.mxu0
      %6968 = vmatprep.mubr.f32.mxu0 0.0
      %6969 = vmatmul.mubr.f32.gmra.mxu0 %v6870
      %v6970 = vpop.f32.mrf.mxu0
      %v6971 = vadd.f32 %v6839, %v6970
      %v6972 = vpop.f32.mrf.mxu0
      %6973 = vmatprep.mubr.f32.mxu0 0.0
      %6974 = vmatmul.mubr.f32.gmra.mxu0 %v6873
      %v6975 = vpop.f32.mrf.mxu0
      %v6976 = vadd.f32 %v6844, %v6975
      %v6977 = vpop.f32.mrf.mxu0
      %6978 = vmatprep.mubr.f32.mxu0 0.0
      %6979 = vmatmul.mubr.f32.gmra.mxu0 %v6876
      %v6980 = vpop.f32.mrf.mxu0
      %v6981 = vadd.f32 %v6849, %v6980
      %v6982 = vpop.f32.mrf.mxu0
      %6983 = vmatprep.mubr.f32.mxu0 0.0
      %6984 = vmatmul.mubr.f32.gmra.mxu0 %v6879
      %v6985 = vpop.f32.mrf.mxu0
      %v6986 = vadd.f32 %v6854, %v6985
      %v6987 = vpop.f32.mrf.mxu0
      %6988 = vdwg.mxu0
      %v6989 = vld [vmem:[%s2047 + $0x9] sm:$0xff]
      %v6990 = vld [vmem:[%s2047 + $0x21] sm:$0xff]
      %v6991 = vld [vmem:[%s2047 + $0x39] sm:$0xff]
      %v6992 = vld [vmem:[%s2047 + $0x51] sm:$0xff]
      %v6993 = vld [vmem:[%s2047 + $0x69] sm:$0xff]
      %v6994 = vld [vmem:[%s2047 + $0x81] sm:$0xff]
      %v6995 = vld [vmem:[%s2047 + $0x99] sm:$0xff]
      %v6996 = vld [vmem:[%s2047 + $0xb1] sm:$0xff]
      %v6997 = vld [vmem:[%s2918] sm:$0xf]
      %v6999 = vsel %vm380, %v6989, 0
      %v7002 = vsel %vm380, %v6990, 0
      %v7005 = vsel %vm380, %v6991, 0
      %v7008 = vsel %vm380, %v6992, 0
      %v7011 = vsel %vm380, %v6993, 0
      %v7014 = vsel %vm380, %v6994, 0
      %v7017 = vsel %vm380, %v6995, 0
      %v7020 = vsel %vm380, %v6996, 0
      %v7023 = vsel %vm405, %v6997, 0
      %7025 = vmatprep.subr.mxu0 0.0
      %7026 = vmatpush1.msra.mxu0 0.0
      %7027 = vmatprep.subr.mxu0 0.0
      %7028 = vmatpush1.msra.mxu0 0.0
      %7029 = vmatprep.subr.mxu0 0.0
      %7030 = vmatpush1.msra.mxu0 0.0
      %7031 = vmatprep.subr.mxu0 0.0
      %7032 = vmatpush1.msra.mxu0 0.0
      %7033 = vmatprep.subr.mxu0 0.0
      %7034 = vmatpush1.msra.mxu0 0.0
      %7035 = vmatprep.subr.mxu0 0.0
      %7036 = vmatpush1.msra.mxu0 0.0
      %7037 = vmatprep.subr.mxu0 0.0
      %7038 = vmatpush1.msra.mxu0 0.0
      %7039 = vmatprep.subr.mxu0 0.0
      %7040 = vmatpush1.msra.mxu0 0.0
      %7041 = vmatprep.subr.mxu0 0.0
      %7042 = vmatpush1.msra.mxu0 0.0
      %7043 = vmatprep.subr.mxu0 0.0
      %7044 = vmatpush1.msra.mxu0 0.0
      %7045 = vmatprep.subr.mxu0 0.0
      %7046 = vmatpush1.msra.mxu0 0.0
      %7047 = vmatprep.subr.mxu0 0.0
      %7048 = vmatpush1.msra.mxu0 0.0
      %7049 = vmatprep.subr.mxu0 0.0
      %7050 = vmatpush1.msra.mxu0 0.0
      %7051 = vmatprep.subr.mxu0 0.0
      %7052 = vmatpush1.msra.mxu0 0.0
      %7053 = vmatprep.subr.mxu0 0.0
      %7054 = vmatpush1.msra.mxu0 0.0
      %7055 = vmatprep.subr.mxu0 0.0
      %7056 = vmatpush1.msra.mxu0 %v7023
      %7057 = vmatprep.subr.mxu0 0.0
      %7058 = vmatpush2.msra.mxu0 0.0
      %7059 = vmatprep.subr.mxu0 0.0
      %7060 = vmatpush2.msra.mxu0 0.0
      %7061 = vmatprep.subr.mxu0 0.0
      %7062 = vmatpush2.msra.mxu0 0.0
      %7063 = vmatprep.subr.mxu0 0.0
      %7064 = vmatpush2.msra.mxu0 0.0
      %7065 = vmatprep.subr.mxu0 0.0
      %7066 = vmatpush2.msra.mxu0 0.0
      %7067 = vmatprep.subr.mxu0 0.0
      %7068 = vmatpush2.msra.mxu0 0.0
      %7069 = vmatprep.subr.mxu0 0.0
      %7070 = vmatpush2.msra.mxu0 0.0
      %7071 = vmatprep.subr.mxu0 0.0
      %7072 = vmatpush2.msra.mxu0 0.0
      %7073 = vmatprep.subr.mxu0 0.0
      %7074 = vmatpush2.msra.mxu0 0.0
      %7075 = vmatprep.subr.mxu0 0.0
      %7076 = vmatpush2.msra.mxu0 0.0
      %7077 = vmatprep.subr.mxu0 0.0
      %7078 = vmatpush2.msra.mxu0 0.0
      %7079 = vmatprep.subr.mxu0 0.0
      %7080 = vmatpush2.msra.mxu0 0.0
      %7081 = vmatprep.subr.mxu0 0.0
      %7082 = vmatpush2.msra.mxu0 0.0
      %7083 = vmatprep.subr.mxu0 0.0
      %7084 = vmatpush2.msra.mxu0 0.0
      %7085 = vmatprep.subr.mxu0 0.0
      %7086 = vmatpush2.msra.mxu0 0.0
      %7087 = vmatprep.subr.mxu0 0.0
      %7088 = vmatpush2.msra.mxu0 0.0
      %7089 = vmatprep.mubr.f32.mxu0 0.0
      %7090 = vmatmul.mubr.f32.gmra.mxu0 %v6999
      %v7091 = vpop.f32.mrf.mxu0
      %v7092 = vadd.f32 0.0, %v7091
      %v7093 = vpop.f32.mrf.mxu0
      %7094 = vmatprep.mubr.f32.mxu0 0.0
      %7095 = vmatmul.mubr.f32.gmra.mxu0 %v7002
      %v7096 = vpop.f32.mrf.mxu0
      %v7097 = vadd.f32 0.0, %v7096
      %v7098 = vpop.f32.mrf.mxu0
      %7099 = vmatprep.mubr.f32.mxu0 0.0
      %7100 = vmatmul.mubr.f32.gmra.mxu0 %v7005
      %v7101 = vpop.f32.mrf.mxu0
      %v7102 = vadd.f32 0.0, %v7101
      %v7103 = vpop.f32.mrf.mxu0
      %7104 = vmatprep.mubr.f32.mxu0 0.0
      %7105 = vmatmul.mubr.f32.gmra.mxu0 %v7008
      %v7106 = vpop.f32.mrf.mxu0
      %v7107 = vadd.f32 0.0, %v7106
      %v7108 = vpop.f32.mrf.mxu0
      %7109 = vmatprep.mubr.f32.mxu0 0.0
      %7110 = vmatmul.mubr.f32.gmra.mxu0 %v7011
      %v7111 = vpop.f32.mrf.mxu0
      %v7112 = vadd.f32 0.0, %v7111
      %v7113 = vpop.f32.mrf.mxu0
      %7114 = vmatprep.mubr.f32.mxu0 0.0
      %7115 = vmatmul.mubr.f32.gmra.mxu0 %v7014
      %v7116 = vpop.f32.mrf.mxu0
      %v7117 = vadd.f32 0.0, %v7116
      %v7118 = vpop.f32.mrf.mxu0
      %7119 = vmatprep.mubr.f32.mxu0 0.0
      %7120 = vmatmul.mubr.f32.gmra.mxu0 %v7017
      %v7121 = vpop.f32.mrf.mxu0
      %v7122 = vadd.f32 0.0, %v7121
      %v7123 = vpop.f32.mrf.mxu0
      %7124 = vmatprep.mubr.f32.mxu0 0.0
      %7125 = vmatmul.mubr.f32.gmra.mxu0 %v7020
      %v7126 = vpop.f32.mrf.mxu0
      %v7127 = vadd.f32 0.0, %v7126
      %v7128 = vpop.f32.mrf.mxu0
      %7129 = vdwg.mxu0
      %v7130 = vadd.f32 %v6951, %v7092
      %v7131 = vadd.f32 %v6956, %v7097
      %v7132 = vadd.f32 %v6961, %v7102
      %v7133 = vadd.f32 %v6966, %v7107
      %v7134 = vadd.f32 %v6971, %v7112
      %v7135 = vadd.f32 %v6976, %v7117
      %v7136 = vadd.f32 %v6981, %v7122
      %v7137 = vadd.f32 %v6986, %v7127
      %v7138 = vld [vmem:[%s2377 + $0x8] sm:$0xff]
      %v7139 = vld [vmem:[%s2377 + $0x20] sm:$0xff]
      %v7140 = vld [vmem:[%s2377 + $0x38] sm:$0xff]
      %v7141 = vld [vmem:[%s2377 + $0x50] sm:$0xff]
      %v7142 = vld [vmem:[%s2377 + $0x68] sm:$0xff]
      %v7143 = vld [vmem:[%s2377 + $0x80] sm:$0xff]
      %v7144 = vld [vmem:[%s2377 + $0x98] sm:$0xff]
      %v7145 = vld [vmem:[%s2377 + $0xb0] sm:$0xff]
      %v7146 = vld [vmem:[%s3068] sm:$0xf]
      %v7148 = vsel %vm380, %v7138, 0
      %v7151 = vsel %vm380, %v7139, 0
      %v7154 = vsel %vm380, %v7140, 0
      %v7157 = vsel %vm380, %v7141, 0
      %v7160 = vsel %vm380, %v7142, 0
      %v7163 = vsel %vm380, %v7143, 0
      %v7166 = vsel %vm380, %v7144, 0
      %v7169 = vsel %vm380, %v7145, 0
      %v7172 = vsel %vm405, %v7146, 0
      %7174 = vmatprep.subr.mxu0 0.0
      %7175 = vmatpush1.msra.mxu0 0.0
      %7176 = vmatprep.subr.mxu0 0.0
      %7177 = vmatpush1.msra.mxu0 0.0
      %7178 = vmatprep.subr.mxu0 0.0
      %7179 = vmatpush1.msra.mxu0 0.0
      %7180 = vmatprep.subr.mxu0 0.0
      %7181 = vmatpush1.msra.mxu0 0.0
      %7182 = vmatprep.subr.mxu0 0.0
      %7183 = vmatpush1.msra.mxu0 0.0
      %7184 = vmatprep.subr.mxu0 0.0
      %7185 = vmatpush1.msra.mxu0 0.0
      %7186 = vmatprep.subr.mxu0 0.0
      %7187 = vmatpush1.msra.mxu0 0.0
      %7188 = vmatprep.subr.mxu0 0.0
      %7189 = vmatpush1.msra.mxu0 0.0
      %7190 = vmatprep.subr.mxu0 0.0
      %7191 = vmatpush1.msra.mxu0 0.0
      %7192 = vmatprep.subr.mxu0 0.0
      %7193 = vmatpush1.msra.mxu0 0.0
      %7194 = vmatprep.subr.mxu0 0.0
      %7195 = vmatpush1.msra.mxu0 0.0
      %7196 = vmatprep.subr.mxu0 0.0
      %7197 = vmatpush1.msra.mxu0 0.0
      %7198 = vmatprep.subr.mxu0 0.0
      %7199 = vmatpush1.msra.mxu0 0.0
      %7200 = vmatprep.subr.mxu0 0.0
      %7201 = vmatpush1.msra.mxu0 0.0
      %7202 = vmatprep.subr.mxu0 0.0
      %7203 = vmatpush1.msra.mxu0 0.0
      %7204 = vmatprep.subr.mxu0 0.0
      %7205 = vmatpush1.msra.mxu0 %v7172
      %7206 = vmatprep.subr.mxu0 0.0
      %7207 = vmatpush2.msra.mxu0 0.0
      %7208 = vmatprep.subr.mxu0 0.0
      %7209 = vmatpush2.msra.mxu0 0.0
      %7210 = vmatprep.subr.mxu0 0.0
      %7211 = vmatpush2.msra.mxu0 0.0
      %7212 = vmatprep.subr.mxu0 0.0
      %7213 = vmatpush2.msra.mxu0 0.0
      %7214 = vmatprep.subr.mxu0 0.0
      %7215 = vmatpush2.msra.mxu0 0.0
      %7216 = vmatprep.subr.mxu0 0.0
      %7217 = vmatpush2.msra.mxu0 0.0
      %7218 = vmatprep.subr.mxu0 0.0
      %7219 = vmatpush2.msra.mxu0 0.0
      %7220 = vmatprep.subr.mxu0 0.0
      %7221 = vmatpush2.msra.mxu0 0.0
      %7222 = vmatprep.subr.mxu0 0.0
      %7223 = vmatpush2.msra.mxu0 0.0
      %7224 = vmatprep.subr.mxu0 0.0
      %7225 = vmatpush2.msra.mxu0 0.0
      %7226 = vmatprep.subr.mxu0 0.0
      %7227 = vmatpush2.msra.mxu0 0.0
      %7228 = vmatprep.subr.mxu0 0.0
      %7229 = vmatpush2.msra.mxu0 0.0
      %7230 = vmatprep.subr.mxu0 0.0
      %7231 = vmatpush2.msra.mxu0 0.0
      %7232 = vmatprep.subr.mxu0 0.0
      %7233 = vmatpush2.msra.mxu0 0.0
      %7234 = vmatprep.subr.mxu0 0.0
      %7235 = vmatpush2.msra.mxu0 0.0
      %7236 = vmatprep.subr.mxu0 0.0
      %7237 = vmatpush2.msra.mxu0 0.0
      %7238 = vmatprep.mubr.f32.mxu0 0.0
      %7239 = vmatmul.mubr.f32.gmra.mxu0 %v7148
      %v7240 = vpop.f32.mrf.mxu0
      %v7241 = vadd.f32 0.0, %v7240
      %v7242 = vpop.f32.mrf.mxu0
      %7243 = vmatprep.mubr.f32.mxu0 0.0
      %7244 = vmatmul.mubr.f32.gmra.mxu0 %v7151
      %v7245 = vpop.f32.mrf.mxu0
      %v7246 = vadd.f32 0.0, %v7245
      %v7247 = vpop.f32.mrf.mxu0
      %7248 = vmatprep.mubr.f32.mxu0 0.0
      %7249 = vmatmul.mubr.f32.gmra.mxu0 %v7154
      %v7250 = vpop.f32.mrf.mxu0
      %v7251 = vadd.f32 0.0, %v7250
      %v7252 = vpop.f32.mrf.mxu0
      %7253 = vmatprep.mubr.f32.mxu0 0.0
      %7254 = vmatmul.mubr.f32.gmra.mxu0 %v7157
      %v7255 = vpop.f32.mrf.mxu0
      %v7256 = vadd.f32 0.0, %v7255
      %v7257 = vpop.f32.mrf.mxu0
      %7258 = vmatprep.mubr.f32.mxu0 0.0
      %7259 = vmatmul.mubr.f32.gmra.mxu0 %v7160
      %v7260 = vpop.f32.mrf.mxu0
      %v7261 = vadd.f32 0.0, %v7260
      %v7262 = vpop.f32.mrf.mxu0
      %7263 = vmatprep.mubr.f32.mxu0 0.0
      %7264 = vmatmul.mubr.f32.gmra.mxu0 %v7163
      %v7265 = vpop.f32.mrf.mxu0
      %v7266 = vadd.f32 0.0, %v7265
      %v7267 = vpop.f32.mrf.mxu0
      %7268 = vmatprep.mubr.f32.mxu0 0.0
      %7269 = vmatmul.mubr.f32.gmra.mxu0 %v7166
      %v7270 = vpop.f32.mrf.mxu0
      %v7271 = vadd.f32 0.0, %v7270
      %v7272 = vpop.f32.mrf.mxu0
      %7273 = vmatprep.mubr.f32.mxu0 0.0
      %7274 = vmatmul.mubr.f32.gmra.mxu0 %v7169
      %v7275 = vpop.f32.mrf.mxu0
      %v7276 = vadd.f32 0.0, %v7275
      %v7277 = vpop.f32.mrf.mxu0
      %7278 = vdwg.mxu0
      %v7279 = vadd.f32 %v7130, %v7241
      %v7280 = vadd.f32 %v7131, %v7246
      %v7281 = vadd.f32 %v7132, %v7251
      %v7282 = vadd.f32 %v7133, %v7256
      %v7283 = vadd.f32 %v7134, %v7261
      %v7284 = vadd.f32 %v7135, %v7266
      %v7285 = vadd.f32 %v7136, %v7271
      %v7286 = vadd.f32 %v7137, %v7276
      %v7287 = vld [vmem:[%s2542 + $0x8] sm:$0xff]
      %v7288 = vld [vmem:[%s2542 + $0x20] sm:$0xff]
      %v7289 = vld [vmem:[%s2542 + $0x38] sm:$0xff]
      %v7290 = vld [vmem:[%s2542 + $0x50] sm:$0xff]
      %v7291 = vld [vmem:[%s2542 + $0x68] sm:$0xff]
      %v7292 = vld [vmem:[%s2542 + $0x80] sm:$0xff]
      %v7293 = vld [vmem:[%s2542 + $0x98] sm:$0xff]
      %v7294 = vld [vmem:[%s2542 + $0xb0] sm:$0xff]
      %v7295 = vld [vmem:[%s3218] sm:$0xf]
      %v7297 = vsel %vm380, %v7287, 0
      %v7300 = vsel %vm380, %v7288, 0
      %v7303 = vsel %vm380, %v7289, 0
      %v7306 = vsel %vm380, %v7290, 0
      %v7309 = vsel %vm380, %v7291, 0
      %v7312 = vsel %vm380, %v7292, 0
      %v7315 = vsel %vm380, %v7293, 0
      %v7318 = vsel %vm380, %v7294, 0
      %v7321 = vsel %vm405, %v7295, 0
      %7323 = vmatprep.subr.mxu0 0.0
      %7324 = vmatpush1.msra.mxu0 0.0
      %7325 = vmatprep.subr.mxu0 0.0
      %7326 = vmatpush1.msra.mxu0 0.0
      %7327 = vmatprep.subr.mxu0 0.0
      %7328 = vmatpush1.msra.mxu0 0.0
      %7329 = vmatprep.subr.mxu0 0.0
      %7330 = vmatpush1.msra.mxu0 0.0
      %7331 = vmatprep.subr.mxu0 0.0
      %7332 = vmatpush1.msra.mxu0 0.0
      %7333 = vmatprep.subr.mxu0 0.0
      %7334 = vmatpush1.msra.mxu0 0.0
      %7335 = vmatprep.subr.mxu0 0.0
      %7336 = vmatpush1.msra.mxu0 0.0
      %7337 = vmatprep.subr.mxu0 0.0
      %7338 = vmatpush1.msra.mxu0 0.0
      %7339 = vmatprep.subr.mxu0 0.0
      %7340 = vmatpush1.msra.mxu0 0.0
      %7341 = vmatprep.subr.mxu0 0.0
      %7342 = vmatpush1.msra.mxu0 0.0
      %7343 = vmatprep.subr.mxu0 0.0
      %7344 = vmatpush1.msra.mxu0 0.0
      %7345 = vmatprep.subr.mxu0 0.0
      %7346 = vmatpush1.msra.mxu0 0.0
      %7347 = vmatprep.subr.mxu0 0.0
      %7348 = vmatpush1.msra.mxu0 0.0
      %7349 = vmatprep.subr.mxu0 0.0
      %7350 = vmatpush1.msra.mxu0 0.0
      %7351 = vmatprep.subr.mxu0 0.0
      %7352 = vmatpush1.msra.mxu0 0.0
      %7353 = vmatprep.subr.mxu0 0.0
      %7354 = vmatpush1.msra.mxu0 %v7321
      %7355 = vmatprep.subr.mxu0 0.0
      %7356 = vmatpush2.msra.mxu0 0.0
      %7357 = vmatprep.subr.mxu0 0.0
      %7358 = vmatpush2.msra.mxu0 0.0
      %7359 = vmatprep.subr.mxu0 0.0
      %7360 = vmatpush2.msra.mxu0 0.0
      %7361 = vmatprep.subr.mxu0 0.0
      %7362 = vmatpush2.msra.mxu0 0.0
      %7363 = vmatprep.subr.mxu0 0.0
      %7364 = vmatpush2.msra.mxu0 0.0
      %7365 = vmatprep.subr.mxu0 0.0
      %7366 = vmatpush2.msra.mxu0 0.0
      %7367 = vmatprep.subr.mxu0 0.0
      %7368 = vmatpush2.msra.mxu0 0.0
      %7369 = vmatprep.subr.mxu0 0.0
      %7370 = vmatpush2.msra.mxu0 0.0
      %7371 = vmatprep.subr.mxu0 0.0
      %7372 = vmatpush2.msra.mxu0 0.0
      %7373 = vmatprep.subr.mxu0 0.0
      %7374 = vmatpush2.msra.mxu0 0.0
      %7375 = vmatprep.subr.mxu0 0.0
      %7376 = vmatpush2.msra.mxu0 0.0
      %7377 = vmatprep.subr.mxu0 0.0
      %7378 = vmatpush2.msra.mxu0 0.0
      %7379 = vmatprep.subr.mxu0 0.0
      %7380 = vmatpush2.msra.mxu0 0.0
      %7381 = vmatprep.subr.mxu0 0.0
      %7382 = vmatpush2.msra.mxu0 0.0
      %7383 = vmatprep.subr.mxu0 0.0
      %7384 = vmatpush2.msra.mxu0 0.0
      %7385 = vmatprep.subr.mxu0 0.0
      %7386 = vmatpush2.msra.mxu0 0.0
      %7387 = vmatprep.mubr.f32.mxu0 0.0
      %7388 = vmatmul.mubr.f32.gmra.mxu0 %v7297
      %v7389 = vpop.f32.mrf.mxu0
      %v7390 = vadd.f32 0.0, %v7389
      %v7391 = vpop.f32.mrf.mxu0
      %7392 = vmatprep.mubr.f32.mxu0 0.0
      %7393 = vmatmul.mubr.f32.gmra.mxu0 %v7300
      %v7394 = vpop.f32.mrf.mxu0
      %v7395 = vadd.f32 0.0, %v7394
      %v7396 = vpop.f32.mrf.mxu0
      %7397 = vmatprep.mubr.f32.mxu0 0.0
      %7398 = vmatmul.mubr.f32.gmra.mxu0 %v7303
      %v7399 = vpop.f32.mrf.mxu0
      %v7400 = vadd.f32 0.0, %v7399
      %v7401 = vpop.f32.mrf.mxu0
      %7402 = vmatprep.mubr.f32.mxu0 0.0
      %7403 = vmatmul.mubr.f32.gmra.mxu0 %v7306
      %v7404 = vpop.f32.mrf.mxu0
      %v7405 = vadd.f32 0.0, %v7404
      %v7406 = vpop.f32.mrf.mxu0
      %7407 = vmatprep.mubr.f32.mxu0 0.0
      %7408 = vmatmul.mubr.f32.gmra.mxu0 %v7309
      %v7409 = vpop.f32.mrf.mxu0
      %v7410 = vadd.f32 0.0, %v7409
      %v7411 = vpop.f32.mrf.mxu0
      %7412 = vmatprep.mubr.f32.mxu0 0.0
      %7413 = vmatmul.mubr.f32.gmra.mxu0 %v7312
      %v7414 = vpop.f32.mrf.mxu0
      %v7415 = vadd.f32 0.0, %v7414
      %v7416 = vpop.f32.mrf.mxu0
      %7417 = vmatprep.mubr.f32.mxu0 0.0
      %7418 = vmatmul.mubr.f32.gmra.mxu0 %v7315
      %v7419 = vpop.f32.mrf.mxu0
      %v7420 = vadd.f32 0.0, %v7419
      %v7421 = vpop.f32.mrf.mxu0
      %7422 = vmatprep.mubr.f32.mxu0 0.0
      %7423 = vmatmul.mubr.f32.gmra.mxu0 %v7318
      %v7424 = vpop.f32.mrf.mxu0
      %v7425 = vadd.f32 0.0, %v7424
      %v7426 = vpop.f32.mrf.mxu0
      %7427 = vdwg.mxu0
      %v7428 = vadd.f32 %v7279, %v7390
      %v7429 = vadd.f32 %v7280, %v7395
      %v7430 = vadd.f32 %v7281, %v7400
      %v7431 = vadd.f32 %v7282, %v7405
      %v7432 = vadd.f32 %v7283, %v7410
      %v7433 = vadd.f32 %v7284, %v7415
      %v7434 = vadd.f32 %v7285, %v7420
      %v7435 = vadd.f32 %v7286, %v7425
      %v7436 = vld [vmem:[%s2377 + $0x9] sm:$0xff]
      %v7437 = vld [vmem:[%s2377 + $0x21] sm:$0xff]
      %v7438 = vld [vmem:[%s2377 + $0x39] sm:$0xff]
      %v7439 = vld [vmem:[%s2377 + $0x51] sm:$0xff]
      %v7440 = vld [vmem:[%s2377 + $0x69] sm:$0xff]
      %v7441 = vld [vmem:[%s2377 + $0x81] sm:$0xff]
      %v7442 = vld [vmem:[%s2377 + $0x99] sm:$0xff]
      %v7443 = vld [vmem:[%s2377 + $0xb1] sm:$0xff]
      %v7444 = vld [vmem:[%s3368] sm:$0xf]
      %v7446 = vsel %vm380, %v7436, 0
      %v7449 = vsel %vm380, %v7437, 0
      %v7452 = vsel %vm380, %v7438, 0
      %v7455 = vsel %vm380, %v7439, 0
      %v7458 = vsel %vm380, %v7440, 0
      %v7461 = vsel %vm380, %v7441, 0
      %v7464 = vsel %vm380, %v7442, 0
      %v7467 = vsel %vm380, %v7443, 0
      %v7470 = vsel %vm405, %v7444, 0
      %7472 = vmatprep.subr.mxu0 0.0
      %7473 = vmatpush1.msra.mxu0 0.0
      %7474 = vmatprep.subr.mxu0 0.0
      %7475 = vmatpush1.msra.mxu0 0.0
      %7476 = vmatprep.subr.mxu0 0.0
      %7477 = vmatpush1.msra.mxu0 0.0
      %7478 = vmatprep.subr.mxu0 0.0
      %7479 = vmatpush1.msra.mxu0 0.0
      %7480 = vmatprep.subr.mxu0 0.0
      %7481 = vmatpush1.msra.mxu0 0.0
      %7482 = vmatprep.subr.mxu0 0.0
      %7483 = vmatpush1.msra.mxu0 0.0
      %7484 = vmatprep.subr.mxu0 0.0
      %7485 = vmatpush1.msra.mxu0 0.0
      %7486 = vmatprep.subr.mxu0 0.0
      %7487 = vmatpush1.msra.mxu0 0.0
      %7488 = vmatprep.subr.mxu0 0.0
      %7489 = vmatpush1.msra.mxu0 0.0
      %7490 = vmatprep.subr.mxu0 0.0
      %7491 = vmatpush1.msra.mxu0 0.0
      %7492 = vmatprep.subr.mxu0 0.0
      %7493 = vmatpush1.msra.mxu0 0.0
      %7494 = vmatprep.subr.mxu0 0.0
      %7495 = vmatpush1.msra.mxu0 0.0
      %7496 = vmatprep.subr.mxu0 0.0
      %7497 = vmatpush1.msra.mxu0 0.0
      %7498 = vmatprep.subr.mxu0 0.0
      %7499 = vmatpush1.msra.mxu0 0.0
      %7500 = vmatprep.subr.mxu0 0.0
      %7501 = vmatpush1.msra.mxu0 0.0
      %7502 = vmatprep.subr.mxu0 0.0
      %7503 = vmatpush1.msra.mxu0 %v7470
      %7504 = vmatprep.subr.mxu0 0.0
      %7505 = vmatpush2.msra.mxu0 0.0
      %7506 = vmatprep.subr.mxu0 0.0
      %7507 = vmatpush2.msra.mxu0 0.0
      %7508 = vmatprep.subr.mxu0 0.0
      %7509 = vmatpush2.msra.mxu0 0.0
      %7510 = vmatprep.subr.mxu0 0.0
      %7511 = vmatpush2.msra.mxu0 0.0
      %7512 = vmatprep.subr.mxu0 0.0
      %7513 = vmatpush2.msra.mxu0 0.0
      %7514 = vmatprep.subr.mxu0 0.0
      %7515 = vmatpush2.msra.mxu0 0.0
      %7516 = vmatprep.subr.mxu0 0.0
      %7517 = vmatpush2.msra.mxu0 0.0
      %7518 = vmatprep.subr.mxu0 0.0
      %7519 = vmatpush2.msra.mxu0 0.0
      %7520 = vmatprep.subr.mxu0 0.0
      %7521 = vmatpush2.msra.mxu0 0.0
      %7522 = vmatprep.subr.mxu0 0.0
      %7523 = vmatpush2.msra.mxu0 0.0
      %7524 = vmatprep.subr.mxu0 0.0
      %7525 = vmatpush2.msra.mxu0 0.0
      %7526 = vmatprep.subr.mxu0 0.0
      %7527 = vmatpush2.msra.mxu0 0.0
      %7528 = vmatprep.subr.mxu0 0.0
      %7529 = vmatpush2.msra.mxu0 0.0
      %7530 = vmatprep.subr.mxu0 0.0
      %7531 = vmatpush2.msra.mxu0 0.0
      %7532 = vmatprep.subr.mxu0 0.0
      %7533 = vmatpush2.msra.mxu0 0.0
      %7534 = vmatprep.subr.mxu0 0.0
      %7535 = vmatpush2.msra.mxu0 0.0
      %7536 = vmatprep.mubr.f32.mxu0 0.0
      %7537 = vmatmul.mubr.f32.gmra.mxu0 %v7446
      %v7538 = vpop.f32.mrf.mxu0
      %v7539 = vadd.f32 0.0, %v7538
      %v7540 = vpop.f32.mrf.mxu0
      %7541 = vmatprep.mubr.f32.mxu0 0.0
      %7542 = vmatmul.mubr.f32.gmra.mxu0 %v7449
      %v7543 = vpop.f32.mrf.mxu0
      %v7544 = vadd.f32 0.0, %v7543
      %v7545 = vpop.f32.mrf.mxu0
      %7546 = vmatprep.mubr.f32.mxu0 0.0
      %7547 = vmatmul.mubr.f32.gmra.mxu0 %v7452
      %v7548 = vpop.f32.mrf.mxu0
      %v7549 = vadd.f32 0.0, %v7548
      %v7550 = vpop.f32.mrf.mxu0
      %7551 = vmatprep.mubr.f32.mxu0 0.0
      %7552 = vmatmul.mubr.f32.gmra.mxu0 %v7455
      %v7553 = vpop.f32.mrf.mxu0
      %v7554 = vadd.f32 0.0, %v7553
      %v7555 = vpop.f32.mrf.mxu0
      %7556 = vmatprep.mubr.f32.mxu0 0.0
      %7557 = vmatmul.mubr.f32.gmra.mxu0 %v7458
      %v7558 = vpop.f32.mrf.mxu0
      %v7559 = vadd.f32 0.0, %v7558
      %v7560 = vpop.f32.mrf.mxu0
      %7561 = vmatprep.mubr.f32.mxu0 0.0
      %7562 = vmatmul.mubr.f32.gmra.mxu0 %v7461
      %v7563 = vpop.f32.mrf.mxu0
      %v7564 = vadd.f32 0.0, %v7563
      %v7565 = vpop.f32.mrf.mxu0
      %7566 = vmatprep.mubr.f32.mxu0 0.0
      %7567 = vmatmul.mubr.f32.gmra.mxu0 %v7464
      %v7568 = vpop.f32.mrf.mxu0
      %v7569 = vadd.f32 0.0, %v7568
      %v7570 = vpop.f32.mrf.mxu0
      %7571 = vmatprep.mubr.f32.mxu0 0.0
      %7572 = vmatmul.mubr.f32.gmra.mxu0 %v7467
      %v7573 = vpop.f32.mrf.mxu0
      %v7574 = vadd.f32 0.0, %v7573
      %v7575 = vpop.f32.mrf.mxu0
      %7576 = vdwg.mxu0
      %v7577 = vadd.f32 %v7428, %v7539
      %v7578 = vadd.f32 %v7429, %v7544
      %v7579 = vadd.f32 %v7430, %v7549
      %v7580 = vadd.f32 %v7431, %v7554
      %v7581 = vadd.f32 %v7432, %v7559
      %v7582 = vadd.f32 %v7433, %v7564
      %v7583 = vadd.f32 %v7434, %v7569
      %v7584 = vadd.f32 %v7435, %v7574
      %v7585 = vld [vmem:[%s6376 + $0x8] sm:$0xff]
      %v7586 = vld [vmem:[%s6376 + $0x20] sm:$0xff]
      %v7587 = vld [vmem:[%s6376 + $0x38] sm:$0xff]
      %v7588 = vld [vmem:[%s6376 + $0x50] sm:$0xff]
      %v7589 = vld [vmem:[%s6376 + $0x68] sm:$0xff]
      %v7590 = vld [vmem:[%s6376 + $0x80] sm:$0xff]
      %v7591 = vld [vmem:[%s6376 + $0x98] sm:$0xff]
      %v7592 = vld [vmem:[%s6376 + $0xb0] sm:$0xff]
      %v7593 = vld [vmem:[%s3518] sm:$0xf]
      %v7595 = vsel %vm380, %v7585, 0
      %v7598 = vsel %vm380, %v7586, 0
      %v7601 = vsel %vm380, %v7587, 0
      %v7604 = vsel %vm380, %v7588, 0
      %v7607 = vsel %vm380, %v7589, 0
      %v7610 = vsel %vm380, %v7590, 0
      %v7613 = vsel %vm380, %v7591, 0
      %v7616 = vsel %vm380, %v7592, 0
      %v7619 = vsel %vm405, %v7593, 0
      %7621 = vmatprep.subr.mxu0 0.0
      %7622 = vmatpush1.msra.mxu0 0.0
      %7623 = vmatprep.subr.mxu0 0.0
      %7624 = vmatpush1.msra.mxu0 0.0
      %7625 = vmatprep.subr.mxu0 0.0
      %7626 = vmatpush1.msra.mxu0 0.0
      %7627 = vmatprep.subr.mxu0 0.0
      %7628 = vmatpush1.msra.mxu0 0.0
      %7629 = vmatprep.subr.mxu0 0.0
      %7630 = vmatpush1.msra.mxu0 0.0
      %7631 = vmatprep.subr.mxu0 0.0
      %7632 = vmatpush1.msra.mxu0 0.0
      %7633 = vmatprep.subr.mxu0 0.0
      %7634 = vmatpush1.msra.mxu0 0.0
      %7635 = vmatprep.subr.mxu0 0.0
      %7636 = vmatpush1.msra.mxu0 0.0
      %7637 = vmatprep.subr.mxu0 0.0
      %7638 = vmatpush1.msra.mxu0 0.0
      %7639 = vmatprep.subr.mxu0 0.0
      %7640 = vmatpush1.msra.mxu0 0.0
      %7641 = vmatprep.subr.mxu0 0.0
      %7642 = vmatpush1.msra.mxu0 0.0
      %7643 = vmatprep.subr.mxu0 0.0
      %7644 = vmatpush1.msra.mxu0 0.0
      %7645 = vmatprep.subr.mxu0 0.0
      %7646 = vmatpush1.msra.mxu0 0.0
      %7647 = vmatprep.subr.mxu0 0.0
      %7648 = vmatpush1.msra.mxu0 0.0
      %7649 = vmatprep.subr.mxu0 0.0
      %7650 = vmatpush1.msra.mxu0 0.0
      %7651 = vmatprep.subr.mxu0 0.0
      %7652 = vmatpush1.msra.mxu0 %v7619
      %7653 = vmatprep.subr.mxu0 0.0
      %7654 = vmatpush2.msra.mxu0 0.0
      %7655 = vmatprep.subr.mxu0 0.0
      %7656 = vmatpush2.msra.mxu0 0.0
      %7657 = vmatprep.subr.mxu0 0.0
      %7658 = vmatpush2.msra.mxu0 0.0
      %7659 = vmatprep.subr.mxu0 0.0
      %7660 = vmatpush2.msra.mxu0 0.0
      %7661 = vmatprep.subr.mxu0 0.0
      %7662 = vmatpush2.msra.mxu0 0.0
      %7663 = vmatprep.subr.mxu0 0.0
      %7664 = vmatpush2.msra.mxu0 0.0
      %7665 = vmatprep.subr.mxu0 0.0
      %7666 = vmatpush2.msra.mxu0 0.0
      %7667 = vmatprep.subr.mxu0 0.0
      %7668 = vmatpush2.msra.mxu0 0.0
      %7669 = vmatprep.subr.mxu0 0.0
      %7670 = vmatpush2.msra.mxu0 0.0
      %7671 = vmatprep.subr.mxu0 0.0
      %7672 = vmatpush2.msra.mxu0 0.0
      %7673 = vmatprep.subr.mxu0 0.0
      %7674 = vmatpush2.msra.mxu0 0.0
      %7675 = vmatprep.subr.mxu0 0.0
      %7676 = vmatpush2.msra.mxu0 0.0
      %7677 = vmatprep.subr.mxu0 0.0
      %7678 = vmatpush2.msra.mxu0 0.0
      %7679 = vmatprep.subr.mxu0 0.0
      %7680 = vmatpush2.msra.mxu0 0.0
      %7681 = vmatprep.subr.mxu0 0.0
      %7682 = vmatpush2.msra.mxu0 0.0
      %7683 = vmatprep.subr.mxu0 0.0
      %7684 = vmatpush2.msra.mxu0 0.0
      %7685 = vmatprep.mubr.f32.mxu0 0.0
      %7686 = vmatmul.mubr.f32.gmra.mxu0 %v7595
      %v7687 = vpop.f32.mrf.mxu0
      %v7688 = vadd.f32 0.0, %v7687
      %v7689 = vpop.f32.mrf.mxu0
      %7690 = vmatprep.mubr.f32.mxu0 0.0
      %7691 = vmatmul.mubr.f32.gmra.mxu0 %v7598
      %v7692 = vpop.f32.mrf.mxu0
      %v7693 = vadd.f32 0.0, %v7692
      %v7694 = vpop.f32.mrf.mxu0
      %7695 = vmatprep.mubr.f32.mxu0 0.0
      %7696 = vmatmul.mubr.f32.gmra.mxu0 %v7601
      %v7697 = vpop.f32.mrf.mxu0
      %v7698 = vadd.f32 0.0, %v7697
      %v7699 = vpop.f32.mrf.mxu0
      %7700 = vmatprep.mubr.f32.mxu0 0.0
      %7701 = vmatmul.mubr.f32.gmra.mxu0 %v7604
      %v7702 = vpop.f32.mrf.mxu0
      %v7703 = vadd.f32 0.0, %v7702
      %v7704 = vpop.f32.mrf.mxu0
      %7705 = vmatprep.mubr.f32.mxu0 0.0
      %7706 = vmatmul.mubr.f32.gmra.mxu0 %v7607
      %v7707 = vpop.f32.mrf.mxu0
      %v7708 = vadd.f32 0.0, %v7707
      %v7709 = vpop.f32.mrf.mxu0
      %7710 = vmatprep.mubr.f32.mxu0 0.0
      %7711 = vmatmul.mubr.f32.gmra.mxu0 %v7610
      %v7712 = vpop.f32.mrf.mxu0
      %v7713 = vadd.f32 0.0, %v7712
      %v7714 = vpop.f32.mrf.mxu0
      %7715 = vmatprep.mubr.f32.mxu0 0.0
      %7716 = vmatmul.mubr.f32.gmra.mxu0 %v7613
      %v7717 = vpop.f32.mrf.mxu0
      %v7718 = vadd.f32 0.0, %v7717
      %v7719 = vpop.f32.mrf.mxu0
      %7720 = vmatprep.mubr.f32.mxu0 0.0
      %7721 = vmatmul.mubr.f32.gmra.mxu0 %v7616
      %v7722 = vpop.f32.mrf.mxu0
      %v7723 = vadd.f32 0.0, %v7722
      %v7724 = vpop.f32.mrf.mxu0
      %7725 = vdwg.mxu0
      %v7726 = vadd.f32 %v7577, %v7688
      %v7727 = vadd.f32 %v7578, %v7693
      %v7728 = vadd.f32 %v7579, %v7698
      %v7729 = vadd.f32 %v7580, %v7703
      %v7730 = vadd.f32 %v7581, %v7708
      %v7731 = vadd.f32 %v7582, %v7713
      %v7732 = vadd.f32 %v7583, %v7718
      %v7733 = vadd.f32 %v7584, %v7723
      %v7734 = vld [vmem:[%s6226 + $0x8] sm:$0xff]
      %v7735 = vld [vmem:[%s6226 + $0x20] sm:$0xff]
      %v7736 = vld [vmem:[%s6226 + $0x38] sm:$0xff]
      %v7737 = vld [vmem:[%s6226 + $0x50] sm:$0xff]
      %v7738 = vld [vmem:[%s6226 + $0x68] sm:$0xff]
      %v7739 = vld [vmem:[%s6226 + $0x80] sm:$0xff]
      %v7740 = vld [vmem:[%s6226 + $0x98] sm:$0xff]
      %v7741 = vld [vmem:[%s6226 + $0xb0] sm:$0xff]
      %v7742 = vld [vmem:[%s3668] sm:$0xf]
      %v7744 = vsel %vm380, %v7734, 0
      %v7747 = vsel %vm380, %v7735, 0
      %v7750 = vsel %vm380, %v7736, 0
      %v7753 = vsel %vm380, %v7737, 0
      %v7756 = vsel %vm380, %v7738, 0
      %v7759 = vsel %vm380, %v7739, 0
      %v7762 = vsel %vm380, %v7740, 0
      %v7765 = vsel %vm380, %v7741, 0
      %v7768 = vsel %vm405, %v7742, 0
      %7770 = vmatprep.subr.mxu0 0.0
      %7771 = vmatpush1.msra.mxu0 0.0
      %7772 = vmatprep.subr.mxu0 0.0
      %7773 = vmatpush1.msra.mxu0 0.0
      %7774 = vmatprep.subr.mxu0 0.0
      %7775 = vmatpush1.msra.mxu0 0.0
      %7776 = vmatprep.subr.mxu0 0.0
      %7777 = vmatpush1.msra.mxu0 0.0
      %7778 = vmatprep.subr.mxu0 0.0
      %7779 = vmatpush1.msra.mxu0 0.0
      %7780 = vmatprep.subr.mxu0 0.0
      %7781 = vmatpush1.msra.mxu0 0.0
      %7782 = vmatprep.subr.mxu0 0.0
      %7783 = vmatpush1.msra.mxu0 0.0
      %7784 = vmatprep.subr.mxu0 0.0
      %7785 = vmatpush1.msra.mxu0 0.0
      %7786 = vmatprep.subr.mxu0 0.0
      %7787 = vmatpush1.msra.mxu0 0.0
      %7788 = vmatprep.subr.mxu0 0.0
      %7789 = vmatpush1.msra.mxu0 0.0
      %7790 = vmatprep.subr.mxu0 0.0
      %7791 = vmatpush1.msra.mxu0 0.0
      %7792 = vmatprep.subr.mxu0 0.0
      %7793 = vmatpush1.msra.mxu0 0.0
      %7794 = vmatprep.subr.mxu0 0.0
      %7795 = vmatpush1.msra.mxu0 0.0
      %7796 = vmatprep.subr.mxu0 0.0
      %7797 = vmatpush1.msra.mxu0 0.0
      %7798 = vmatprep.subr.mxu0 0.0
      %7799 = vmatpush1.msra.mxu0 0.0
      %7800 = vmatprep.subr.mxu0 0.0
      %7801 = vmatpush1.msra.mxu0 %v7768
      %7802 = vmatprep.subr.mxu0 0.0
      %7803 = vmatpush2.msra.mxu0 0.0
      %7804 = vmatprep.subr.mxu0 0.0
      %7805 = vmatpush2.msra.mxu0 0.0
      %7806 = vmatprep.subr.mxu0 0.0
      %7807 = vmatpush2.msra.mxu0 0.0
      %7808 = vmatprep.subr.mxu0 0.0
      %7809 = vmatpush2.msra.mxu0 0.0
      %7810 = vmatprep.subr.mxu0 0.0
      %7811 = vmatpush2.msra.mxu0 0.0
      %7812 = vmatprep.subr.mxu0 0.0
      %7813 = vmatpush2.msra.mxu0 0.0
      %7814 = vmatprep.subr.mxu0 0.0
      %7815 = vmatpush2.msra.mxu0 0.0
      %7816 = vmatprep.subr.mxu0 0.0
      %7817 = vmatpush2.msra.mxu0 0.0
      %7818 = vmatprep.subr.mxu0 0.0
      %7819 = vmatpush2.msra.mxu0 0.0
      %7820 = vmatprep.subr.mxu0 0.0
      %7821 = vmatpush2.msra.mxu0 0.0
      %7822 = vmatprep.subr.mxu0 0.0
      %7823 = vmatpush2.msra.mxu0 0.0
      %7824 = vmatprep.subr.mxu0 0.0
      %7825 = vmatpush2.msra.mxu0 0.0
      %7826 = vmatprep.subr.mxu0 0.0
      %7827 = vmatpush2.msra.mxu0 0.0
      %7828 = vmatprep.subr.mxu0 0.0
      %7829 = vmatpush2.msra.mxu0 0.0
      %7830 = vmatprep.subr.mxu0 0.0
      %7831 = vmatpush2.msra.mxu0 0.0
      %7832 = vmatprep.subr.mxu0 0.0
      %7833 = vmatpush2.msra.mxu0 0.0
      %7834 = vmatprep.mubr.f32.mxu0 0.0
      %7835 = vmatmul.mubr.f32.gmra.mxu0 %v7744
      %v7836 = vpop.f32.mrf.mxu0
      %v7837 = vadd.f32 0.0, %v7836
      %v7838 = vpop.f32.mrf.mxu0
      %7839 = vmatprep.mubr.f32.mxu0 0.0
      %7840 = vmatmul.mubr.f32.gmra.mxu0 %v7747
      %v7841 = vpop.f32.mrf.mxu0
      %v7842 = vadd.f32 0.0, %v7841
      %v7843 = vpop.f32.mrf.mxu0
      %7844 = vmatprep.mubr.f32.mxu0 0.0
      %7845 = vmatmul.mubr.f32.gmra.mxu0 %v7750
      %v7846 = vpop.f32.mrf.mxu0
      %v7847 = vadd.f32 0.0, %v7846
      %v7848 = vpop.f32.mrf.mxu0
      %7849 = vmatprep.mubr.f32.mxu0 0.0
      %7850 = vmatmul.mubr.f32.gmra.mxu0 %v7753
      %v7851 = vpop.f32.mrf.mxu0
      %v7852 = vadd.f32 0.0, %v7851
      %v7853 = vpop.f32.mrf.mxu0
      %7854 = vmatprep.mubr.f32.mxu0 0.0
      %7855 = vmatmul.mubr.f32.gmra.mxu0 %v7756
      %v7856 = vpop.f32.mrf.mxu0
      %v7857 = vadd.f32 0.0, %v7856
      %v7858 = vpop.f32.mrf.mxu0
      %7859 = vmatprep.mubr.f32.mxu0 0.0
      %7860 = vmatmul.mubr.f32.gmra.mxu0 %v7759
      %v7861 = vpop.f32.mrf.mxu0
      %v7862 = vadd.f32 0.0, %v7861
      %v7863 = vpop.f32.mrf.mxu0
      %7864 = vmatprep.mubr.f32.mxu0 0.0
      %7865 = vmatmul.mubr.f32.gmra.mxu0 %v7762
      %v7866 = vpop.f32.mrf.mxu0
      %v7867 = vadd.f32 0.0, %v7866
      %v7868 = vpop.f32.mrf.mxu0
      %7869 = vmatprep.mubr.f32.mxu0 0.0
      %7870 = vmatmul.mubr.f32.gmra.mxu0 %v7765
      %v7871 = vpop.f32.mrf.mxu0
      %v7872 = vadd.f32 0.0, %v7871
      %v7873 = vpop.f32.mrf.mxu0
      %7874 = vdwg.mxu0
      %v7875 = vadd.f32 %v7726, %v7837
      %v7876 = vadd.f32 %v7727, %v7842
      %v7877 = vadd.f32 %v7728, %v7847
      %v7878 = vadd.f32 %v7729, %v7852
      %v7879 = vadd.f32 %v7730, %v7857
      %v7880 = vadd.f32 %v7731, %v7862
      %v7881 = vadd.f32 %v7732, %v7867
      %v7882 = vadd.f32 %v7733, %v7872
      %v7883 = vld [vmem:[%s6376 + $0x9] sm:$0xff]
      %v7884 = vld [vmem:[%s6376 + $0x21] sm:$0xff]
      %v7885 = vld [vmem:[%s6376 + $0x39] sm:$0xff]
      %v7886 = vld [vmem:[%s6376 + $0x51] sm:$0xff]
      %v7887 = vld [vmem:[%s6376 + $0x69] sm:$0xff]
      %v7888 = vld [vmem:[%s6376 + $0x81] sm:$0xff]
      %v7889 = vld [vmem:[%s6376 + $0x99] sm:$0xff]
      %v7890 = vld [vmem:[%s6376 + $0xb1] sm:$0xff]
      %v7891 = vld [vmem:[%s3818] sm:$0xf]
      %v7893 = vsel %vm380, %v7883, 0
      %v7896 = vsel %vm380, %v7884, 0
      %v7899 = vsel %vm380, %v7885, 0
      %v7902 = vsel %vm380, %v7886, 0
      %v7905 = vsel %vm380, %v7887, 0
      %v7908 = vsel %vm380, %v7888, 0
      %v7911 = vsel %vm380, %v7889, 0
      %v7914 = vsel %vm380, %v7890, 0
      %v7917 = vsel %vm405, %v7891, 0
      %7919 = vmatprep.subr.mxu0 0.0
      %7920 = vmatpush1.msra.mxu0 0.0
      %7921 = vmatprep.subr.mxu0 0.0
      %7922 = vmatpush1.msra.mxu0 0.0
      %7923 = vmatprep.subr.mxu0 0.0
      %7924 = vmatpush1.msra.mxu0 0.0
      %7925 = vmatprep.subr.mxu0 0.0
      %7926 = vmatpush1.msra.mxu0 0.0
      %7927 = vmatprep.subr.mxu0 0.0
      %7928 = vmatpush1.msra.mxu0 0.0
      %7929 = vmatprep.subr.mxu0 0.0
      %7930 = vmatpush1.msra.mxu0 0.0
      %7931 = vmatprep.subr.mxu0 0.0
      %7932 = vmatpush1.msra.mxu0 0.0
      %7933 = vmatprep.subr.mxu0 0.0
      %7934 = vmatpush1.msra.mxu0 0.0
      %7935 = vmatprep.subr.mxu0 0.0
      %7936 = vmatpush1.msra.mxu0 0.0
      %7937 = vmatprep.subr.mxu0 0.0
      %7938 = vmatpush1.msra.mxu0 0.0
      %7939 = vmatprep.subr.mxu0 0.0
      %7940 = vmatpush1.msra.mxu0 0.0
      %7941 = vmatprep.subr.mxu0 0.0
      %7942 = vmatpush1.msra.mxu0 0.0
      %7943 = vmatprep.subr.mxu0 0.0
      %7944 = vmatpush1.msra.mxu0 0.0
      %7945 = vmatprep.subr.mxu0 0.0
      %7946 = vmatpush1.msra.mxu0 0.0
      %7947 = vmatprep.subr.mxu0 0.0
      %7948 = vmatpush1.msra.mxu0 0.0
      %7949 = vmatprep.subr.mxu0 0.0
      %7950 = vmatpush1.msra.mxu0 %v7917
      %7951 = vmatprep.subr.mxu0 0.0
      %7952 = vmatpush2.msra.mxu0 0.0
      %7953 = vmatprep.subr.mxu0 0.0
      %7954 = vmatpush2.msra.mxu0 0.0
      %7955 = vmatprep.subr.mxu0 0.0
      %7956 = vmatpush2.msra.mxu0 0.0
      %7957 = vmatprep.subr.mxu0 0.0
      %7958 = vmatpush2.msra.mxu0 0.0
      %7959 = vmatprep.subr.mxu0 0.0
      %7960 = vmatpush2.msra.mxu0 0.0
      %7961 = vmatprep.subr.mxu0 0.0
      %7962 = vmatpush2.msra.mxu0 0.0
      %7963 = vmatprep.subr.mxu0 0.0
      %7964 = vmatpush2.msra.mxu0 0.0
      %7965 = vmatprep.subr.mxu0 0.0
      %7966 = vmatpush2.msra.mxu0 0.0
      %7967 = vmatprep.subr.mxu0 0.0
      %7968 = vmatpush2.msra.mxu0 0.0
      %7969 = vmatprep.subr.mxu0 0.0
      %7970 = vmatpush2.msra.mxu0 0.0
      %7971 = vmatprep.subr.mxu0 0.0
      %7972 = vmatpush2.msra.mxu0 0.0
      %7973 = vmatprep.subr.mxu0 0.0
      %7974 = vmatpush2.msra.mxu0 0.0
      %7975 = vmatprep.subr.mxu0 0.0
      %7976 = vmatpush2.msra.mxu0 0.0
      %7977 = vmatprep.subr.mxu0 0.0
      %7978 = vmatpush2.msra.mxu0 0.0
      %7979 = vmatprep.subr.mxu0 0.0
      %7980 = vmatpush2.msra.mxu0 0.0
      %7981 = vmatprep.subr.mxu0 0.0
      %7982 = vmatpush2.msra.mxu0 0.0
      %7983 = vmatprep.mubr.f32.mxu0 0.0
      %7984 = vmatmul.mubr.f32.gmra.mxu0 %v7893
      %v7985 = vpop.f32.mrf.mxu0
      %v7986 = vadd.f32 0.0, %v7985
      %v7987 = vpop.f32.mrf.mxu0
      %7988 = vmatprep.mubr.f32.mxu0 0.0
      %7989 = vmatmul.mubr.f32.gmra.mxu0 %v7896
      %v7990 = vpop.f32.mrf.mxu0
      %v7991 = vadd.f32 0.0, %v7990
      %v7992 = vpop.f32.mrf.mxu0
      %7993 = vmatprep.mubr.f32.mxu0 0.0
      %7994 = vmatmul.mubr.f32.gmra.mxu0 %v7899
      %v7995 = vpop.f32.mrf.mxu0
      %v7996 = vadd.f32 0.0, %v7995
      %v7997 = vpop.f32.mrf.mxu0
      %7998 = vmatprep.mubr.f32.mxu0 0.0
      %7999 = vmatmul.mubr.f32.gmra.mxu0 %v7902
      %v8000 = vpop.f32.mrf.mxu0
      %v8001 = vadd.f32 0.0, %v8000
      %v8002 = vpop.f32.mrf.mxu0
      %8003 = vmatprep.mubr.f32.mxu0 0.0
      %8004 = vmatmul.mubr.f32.gmra.mxu0 %v7905
      %v8005 = vpop.f32.mrf.mxu0
      %v8006 = vadd.f32 0.0, %v8005
      %v8007 = vpop.f32.mrf.mxu0
      %8008 = vmatprep.mubr.f32.mxu0 0.0
      %8009 = vmatmul.mubr.f32.gmra.mxu0 %v7908
      %v8010 = vpop.f32.mrf.mxu0
      %v8011 = vadd.f32 0.0, %v8010
      %v8012 = vpop.f32.mrf.mxu0
      %8013 = vmatprep.mubr.f32.mxu0 0.0
      %8014 = vmatmul.mubr.f32.gmra.mxu0 %v7911
      %v8015 = vpop.f32.mrf.mxu0
      %v8016 = vadd.f32 0.0, %v8015
      %v8017 = vpop.f32.mrf.mxu0
      %8018 = vmatprep.mubr.f32.mxu0 0.0
      %8019 = vmatmul.mubr.f32.gmra.mxu0 %v7914
      %v8020 = vpop.f32.mrf.mxu0
      %v8021 = vadd.f32 0.0, %v8020
      %v8022 = vpop.f32.mrf.mxu0
      %8023 = vdwg.mxu0
      %v8024 = vadd.f32 %v7875, %v7986
      %v8025 = vadd.f32 %v7876, %v7991
      %v8026 = vadd.f32 %v7877, %v7996
      %v8027 = vadd.f32 %v7878, %v8001
      %v8028 = vadd.f32 %v7879, %v8006
      %v8029 = vadd.f32 %v7880, %v8011
      %v8030 = vadd.f32 %v7881, %v8016
      %v8031 = vadd.f32 %v7882, %v8021
      %v8032 = vld [vmem:[%s6] sm:$0x1]
      %v8034 = vlaneseq
      %v8035 = vshrl.u32 %v8034, 7
      %v8036 = vsub.s32 0, %v8035
      %v8037 = vrot.slane %v8032, %v8036
      %v8039 = vadd.f32 %v8024, %v8037
      %v8040 = vadd.f32 %v8025, %v8037
      %v8041 = vadd.f32 %v8026, %v8037
      %v8042 = vadd.f32 %v8027, %v8037
      %v8043 = vadd.f32 %v8028, %v8037
      %v8044 = vadd.f32 %v8029, %v8037
      %v8045 = vadd.f32 %v8030, %v8037
      %v8046 = vadd.f32 %v8031, %v8037
      %v8047 = vmax.f32 %v8039, 0.0
      %v8048 = vmax.f32 %v8040, 0.0
      %v8049 = vmax.f32 %v8041, 0.0
      %v8050 = vmax.f32 %v8042, 0.0
      %v8051 = vmax.f32 %v8043, 0.0
      %v8052 = vmax.f32 %v8044, 0.0
      %v8053 = vmax.f32 %v8045, 0.0
      %v8054 = vmax.f32 %v8046, 0.0
      %s8055 = scalar_lea.vmem [#allocation3], 432
      %8056 = vst.msk [vmem:[%s8055] sm:$0xff] %vm2551, %v8047
      %8057 = vst.msk [vmem:[%s8055 + $0x10] sm:$0xff] %vm2551, %v8048
      %8058 = vst.msk [vmem:[%s8055 + $0x20] sm:$0xff] %vm2551, %v8049
      %8059 = vst.msk [vmem:[%s8055 + $0x30] sm:$0xff] %vm2551, %v8050
      %8060 = vst.msk [vmem:[%s8055 + $0x40] sm:$0xff] %vm2551, %v8051
      %8061 = vst.msk [vmem:[%s8055 + $0x50] sm:$0xff] %vm2551, %v8052
      %8062 = vst.msk [vmem:[%s8055 + $0x60] sm:$0xff] %vm2551, %v8053
      %8063 = vst.msk [vmem:[%s8055 + $0x70] sm:$0xff] %vm2551, %v8054
      %v8064 = vld [vmem:[#allocation3] sm:$0xff]
      %v8065 = vld [vmem:[#allocation3 + $0x10] sm:$0xff]
      %v8066 = vld [vmem:[#allocation3 + $0x20] sm:$0xff]
      %v8067 = vld [vmem:[#allocation3 + $0x30] sm:$0xff]
      %v8068 = vld [vmem:[#allocation3 + $0x40] sm:$0xff]
      %v8069 = vld [vmem:[#allocation3 + $0x50] sm:$0xff]
      %v8070 = vld [vmem:[#allocation3 + $0x60] sm:$0xff]
      %v8071 = vld [vmem:[#allocation3 + $0x70] sm:$0xff]
      %v8072 = vld [vmem:[%s7] sm:$0x3f]
      %v8073 = vld [vmem:[%s5339] sm:$0xff]
      %v8074 = vld [vmem:[%s5339 + $0x10] sm:$0xff]
      %v8075 = vld [vmem:[%s5339 + $0x20] sm:$0xff]
      %v8076 = vld [vmem:[%s5339 + $0x30] sm:$0xff]
      %v8077 = vld [vmem:[%s5339 + $0x40] sm:$0xff]
      %v8078 = vld [vmem:[%s5339 + $0x50] sm:$0xff]
      %v8079 = vld [vmem:[%s5339 + $0x60] sm:$0xff]
      %v8080 = vld [vmem:[%s5339 + $0x70] sm:$0xff]
      %s8081 = scalar_lea.vmem %s7, 8
      %v8082 = vld [vmem:[%s8081] sm:$0x3f]
      %v8084 = vsel %vm2551, %v8073, 0
      %v8087 = vsel %vm2551, %v8074, 0
      %v8090 = vsel %vm2551, %v8075, 0
      %v8093 = vsel %vm2551, %v8076, 0
      %v8096 = vsel %vm2551, %v8077, 0
      %v8099 = vsel %vm2551, %v8078, 0
      %v8102 = vsel %vm2551, %v8079, 0
      %v8105 = vsel %vm2551, %v8080, 0
      %vm8107 = vcmask 1045504
      %v8109 = vsel %vm8107, %v8082, 0
      %8111 = vmatprep.subr.mxu0 0.0
      %8112 = vmatpush1.msra.mxu0 0.0
      %8113 = vmatprep.subr.mxu0 0.0
      %8114 = vmatpush1.msra.mxu0 0.0
      %8115 = vmatprep.subr.mxu0 0.0
      %8116 = vmatpush1.msra.mxu0 0.0
      %8117 = vmatprep.subr.mxu0 0.0
      %8118 = vmatpush1.msra.mxu0 0.0
      %8119 = vmatprep.subr.mxu0 0.0
      %8120 = vmatpush1.msra.mxu0 0.0
      %8121 = vmatprep.subr.mxu0 0.0
      %8122 = vmatpush1.msra.mxu0 0.0
      %8123 = vmatprep.subr.mxu0 0.0
      %8124 = vmatpush1.msra.mxu0 0.0
      %8125 = vmatprep.subr.mxu0 0.0
      %8126 = vmatpush1.msra.mxu0 0.0
      %8127 = vmatprep.subr.mxu0 0.0
      %8128 = vmatpush1.msra.mxu0 0.0
      %8129 = vmatprep.subr.mxu0 0.0
      %8130 = vmatpush1.msra.mxu0 0.0
      %8131 = vmatprep.subr.mxu0 0.0
      %8132 = vmatpush1.msra.mxu0 0.0
      %8133 = vmatprep.subr.mxu0 0.0
      %8134 = vmatpush1.msra.mxu0 0.0
      %8135 = vmatprep.subr.mxu0 0.0
      %8136 = vmatpush1.msra.mxu0 0.0
      %8137 = vmatprep.subr.mxu0 0.0
      %8138 = vmatpush1.msra.mxu0 0.0
      %8139 = vmatprep.subr.mxu0 0.0
      %8140 = vmatpush1.msra.mxu0 0.0
      %8141 = vmatprep.subr.mxu0 0.0
      %8142 = vmatpush1.msra.mxu0 %v8109
      %8143 = vmatprep.subr.mxu0 0.0
      %8144 = vmatpush2.msra.mxu0 0.0
      %8145 = vmatprep.subr.mxu0 0.0
      %8146 = vmatpush2.msra.mxu0 0.0
      %8147 = vmatprep.subr.mxu0 0.0
      %8148 = vmatpush2.msra.mxu0 0.0
      %8149 = vmatprep.subr.mxu0 0.0
      %8150 = vmatpush2.msra.mxu0 0.0
      %8151 = vmatprep.subr.mxu0 0.0
      %8152 = vmatpush2.msra.mxu0 0.0
      %8153 = vmatprep.subr.mxu0 0.0
      %8154 = vmatpush2.msra.mxu0 0.0
      %8155 = vmatprep.subr.mxu0 0.0
      %8156 = vmatpush2.msra.mxu0 0.0
      %8157 = vmatprep.subr.mxu0 0.0
      %8158 = vmatpush2.msra.mxu0 0.0
      %8159 = vmatprep.subr.mxu0 0.0
      %8160 = vmatpush2.msra.mxu0 0.0
      %8161 = vmatprep.subr.mxu0 0.0
      %8162 = vmatpush2.msra.mxu0 0.0
      %8163 = vmatprep.subr.mxu0 0.0
      %8164 = vmatpush2.msra.mxu0 0.0
      %8165 = vmatprep.subr.mxu0 0.0
      %8166 = vmatpush2.msra.mxu0 0.0
      %8167 = vmatprep.subr.mxu0 0.0
      %8168 = vmatpush2.msra.mxu0 0.0
      %8169 = vmatprep.subr.mxu0 0.0
      %8170 = vmatpush2.msra.mxu0 0.0
      %8171 = vmatprep.subr.mxu0 0.0
      %8172 = vmatpush2.msra.mxu0 0.0
      %8173 = vmatprep.subr.mxu0 0.0
      %8174 = vmatpush2.msra.mxu0 0.0
      %8175 = vmatprep.mubr.f32.mxu0 0.0
      %8176 = vmatmul.mubr.f32.gmra.mxu0 %v8084
      %v8177 = vpop.f32.mrf.mxu0
      %v8178 = vadd.f32 0.0, %v8177
      %v8179 = vpop.f32.mrf.mxu0
      %8180 = vmatprep.mubr.f32.mxu0 0.0
      %8181 = vmatmul.mubr.f32.gmra.mxu0 %v8087
      %v8182 = vpop.f32.mrf.mxu0
      %v8183 = vadd.f32 0.0, %v8182
      %v8184 = vpop.f32.mrf.mxu0
      %8185 = vmatprep.mubr.f32.mxu0 0.0
      %8186 = vmatmul.mubr.f32.gmra.mxu0 %v8090
      %v8187 = vpop.f32.mrf.mxu0
      %v8188 = vadd.f32 0.0, %v8187
      %v8189 = vpop.f32.mrf.mxu0
      %8190 = vmatprep.mubr.f32.mxu0 0.0
      %8191 = vmatmul.mubr.f32.gmra.mxu0 %v8093
      %v8192 = vpop.f32.mrf.mxu0
      %v8193 = vadd.f32 0.0, %v8192
      %v8194 = vpop.f32.mrf.mxu0
      %8195 = vmatprep.mubr.f32.mxu0 0.0
      %8196 = vmatmul.mubr.f32.gmra.mxu0 %v8096
      %v8197 = vpop.f32.mrf.mxu0
      %v8198 = vadd.f32 0.0, %v8197
      %v8199 = vpop.f32.mrf.mxu0
      %8200 = vmatprep.mubr.f32.mxu0 0.0
      %8201 = vmatmul.mubr.f32.gmra.mxu0 %v8099
      %v8202 = vpop.f32.mrf.mxu0
      %v8203 = vadd.f32 0.0, %v8202
      %v8204 = vpop.f32.mrf.mxu0
      %8205 = vmatprep.mubr.f32.mxu0 0.0
      %8206 = vmatmul.mubr.f32.gmra.mxu0 %v8102
      %v8207 = vpop.f32.mrf.mxu0
      %v8208 = vadd.f32 0.0, %v8207
      %v8209 = vpop.f32.mrf.mxu0
      %8210 = vmatprep.mubr.f32.mxu0 0.0
      %8211 = vmatmul.mubr.f32.gmra.mxu0 %v8105
      %v8212 = vpop.f32.mrf.mxu0
      %v8213 = vpop.f32.mrf.mxu0
      %8214 = vdwg.mxu0
      %v8216 = vsel %vm2551, %v8064, 0
      %v8219 = vsel %vm2551, %v8065, 0
      %v8222 = vsel %vm2551, %v8066, 0
      %v8225 = vsel %vm2551, %v8067, 0
      %v8228 = vsel %vm2551, %v8068, 0
      %v8231 = vsel %vm2551, %v8069, 0
      %v8234 = vsel %vm2551, %v8070, 0
      %v8237 = vsel %vm2551, %v8071, 0
      %v8240 = vsel %vm8107, %v8072, 0
      %8242 = vmatprep.subr.mxu0 0.0
      %8243 = vmatpush1.msra.mxu0 0.0
      %8244 = vmatprep.subr.mxu0 0.0
      %8245 = vmatpush1.msra.mxu0 0.0
      %8246 = vmatprep.subr.mxu0 0.0
      %8247 = vmatpush1.msra.mxu0 0.0
      %8248 = vmatprep.subr.mxu0 0.0
      %8249 = vmatpush1.msra.mxu0 0.0
      %8250 = vmatprep.subr.mxu0 0.0
      %8251 = vmatpush1.msra.mxu0 0.0
      %8252 = vmatprep.subr.mxu0 0.0
      %8253 = vmatpush1.msra.mxu0 0.0
      %8254 = vmatprep.subr.mxu0 0.0
      %8255 = vmatpush1.msra.mxu0 0.0
      %8256 = vmatprep.subr.mxu0 0.0
      %8257 = vmatpush1.msra.mxu0 0.0
      %8258 = vmatprep.subr.mxu0 0.0
      %8259 = vmatpush1.msra.mxu0 0.0
      %8260 = vmatprep.subr.mxu0 0.0
      %8261 = vmatpush1.msra.mxu0 0.0
      %8262 = vmatprep.subr.mxu0 0.0
      %8263 = vmatpush1.msra.mxu0 0.0
      %8264 = vmatprep.subr.mxu0 0.0
      %8265 = vmatpush1.msra.mxu0 0.0
      %8266 = vmatprep.subr.mxu0 0.0
      %8267 = vmatpush1.msra.mxu0 0.0
      %8268 = vmatprep.subr.mxu0 0.0
      %8269 = vmatpush1.msra.mxu0 0.0
      %8270 = vmatprep.subr.mxu0 0.0
      %8271 = vmatpush1.msra.mxu0 0.0
      %8272 = vmatprep.subr.mxu0 0.0
      %8273 = vmatpush1.msra.mxu0 %v8240
      %8274 = vmatprep.subr.mxu0 0.0
      %8275 = vmatpush2.msra.mxu0 0.0
      %8276 = vmatprep.subr.mxu0 0.0
      %8277 = vmatpush2.msra.mxu0 0.0
      %8278 = vmatprep.subr.mxu0 0.0
      %8279 = vmatpush2.msra.mxu0 0.0
      %8280 = vmatprep.subr.mxu0 0.0
      %8281 = vmatpush2.msra.mxu0 0.0
      %8282 = vmatprep.subr.mxu0 0.0
      %8283 = vmatpush2.msra.mxu0 0.0
      %8284 = vmatprep.subr.mxu0 0.0
      %8285 = vmatpush2.msra.mxu0 0.0
      %8286 = vmatprep.subr.mxu0 0.0
      %8287 = vmatpush2.msra.mxu0 0.0
      %8288 = vmatprep.subr.mxu0 0.0
      %8289 = vmatpush2.msra.mxu0 0.0
      %8290 = vmatprep.subr.mxu0 0.0
      %8291 = vmatpush2.msra.mxu0 0.0
      %8292 = vmatprep.subr.mxu0 0.0
      %8293 = vmatpush2.msra.mxu0 0.0
      %8294 = vmatprep.subr.mxu0 0.0
      %8295 = vmatpush2.msra.mxu0 0.0
      %8296 = vmatprep.subr.mxu0 0.0
      %8297 = vmatpush2.msra.mxu0 0.0
      %8298 = vmatprep.subr.mxu0 0.0
      %8299 = vmatpush2.msra.mxu0 0.0
      %8300 = vmatprep.subr.mxu0 0.0
      %8301 = vmatpush2.msra.mxu0 0.0
      %8302 = vmatprep.subr.mxu0 0.0
      %8303 = vmatpush2.msra.mxu0 0.0
      %8304 = vmatprep.subr.mxu0 0.0
      %8305 = vmatpush2.msra.mxu0 0.0
      %8306 = vmatprep.mubr.f32.mxu0 0.0
      %8307 = vmatmul.mubr.f32.gmra.mxu0 %v8216
      %v8308 = vpop.f32.mrf.mxu0
      %v8309 = vadd.f32 %v8178, %v8308
      %v8310 = vpop.f32.mrf.mxu0
      %8311 = vmatprep.mubr.f32.mxu0 0.0
      %8312 = vmatmul.mubr.f32.gmra.mxu0 %v8219
      %v8313 = vpop.f32.mrf.mxu0
      %v8314 = vadd.f32 %v8183, %v8313
      %v8315 = vpop.f32.mrf.mxu0
      %8316 = vmatprep.mubr.f32.mxu0 0.0
      %8317 = vmatmul.mubr.f32.gmra.mxu0 %v8222
      %v8318 = vpop.f32.mrf.mxu0
      %v8319 = vadd.f32 %v8188, %v8318
      %v8320 = vpop.f32.mrf.mxu0
      %8321 = vmatprep.mubr.f32.mxu0 0.0
      %8322 = vmatmul.mubr.f32.gmra.mxu0 %v8225
      %v8323 = vpop.f32.mrf.mxu0
      %v8324 = vadd.f32 %v8193, %v8323
      %v8325 = vpop.f32.mrf.mxu0
      %8326 = vmatprep.mubr.f32.mxu0 0.0
      %8327 = vmatmul.mubr.f32.gmra.mxu0 %v8228
      %v8328 = vpop.f32.mrf.mxu0
      %v8329 = vadd.f32 %v8198, %v8328
      %v8330 = vpop.f32.mrf.mxu0
      %8331 = vmatprep.mubr.f32.mxu0 0.0
      %8332 = vmatmul.mubr.f32.gmra.mxu0 %v8231
      %v8333 = vpop.f32.mrf.mxu0
      %v8334 = vadd.f32 %v8203, %v8333
      %v8335 = vpop.f32.mrf.mxu0
      %8336 = vmatprep.mubr.f32.mxu0 0.0
      %8337 = vmatmul.mubr.f32.gmra.mxu0 %v8234
      %v8338 = vpop.f32.mrf.mxu0
      %v8339 = vadd.f32 %v8208, %v8338
      %v8340 = vpop.f32.mrf.mxu0
      %8341 = vmatprep.mubr.f32.mxu0 0.0
      %8342 = vmatmul.mubr.f32.gmra.mxu0 %v8237
      %v8343 = vpop.f32.mrf.mxu0
      %v8344 = vpop.f32.mrf.mxu0
      %8345 = vdwg.mxu0
      %v8346 = vld [vmem:[#allocation3 + $0x1] sm:$0xff]
      %v8347 = vld [vmem:[#allocation3 + $0x11] sm:$0xff]
      %v8348 = vld [vmem:[#allocation3 + $0x21] sm:$0xff]
      %v8349 = vld [vmem:[#allocation3 + $0x31] sm:$0xff]
      %v8350 = vld [vmem:[#allocation3 + $0x41] sm:$0xff]
      %v8351 = vld [vmem:[#allocation3 + $0x51] sm:$0xff]
      %v8352 = vld [vmem:[#allocation3 + $0x61] sm:$0xff]
      %v8353 = vld [vmem:[#allocation3 + $0x71] sm:$0xff]
      %s8354 = scalar_lea.vmem %s7, 16
      %v8355 = vld [vmem:[%s8354] sm:$0x3f]
      %v8357 = vsel %vm2551, %v8346, 0
      %v8360 = vsel %vm2551, %v8347, 0
      %v8363 = vsel %vm2551, %v8348, 0
      %v8366 = vsel %vm2551, %v8349, 0
      %v8369 = vsel %vm2551, %v8350, 0
      %v8372 = vsel %vm2551, %v8351, 0
      %v8375 = vsel %vm2551, %v8352, 0
      %v8378 = vsel %vm2551, %v8353, 0
      %v8381 = vsel %vm8107, %v8355, 0
      %8383 = vmatprep.subr.mxu0 0.0
      %8384 = vmatpush1.msra.mxu0 0.0
      %8385 = vmatprep.subr.mxu0 0.0
      %8386 = vmatpush1.msra.mxu0 0.0
      %8387 = vmatprep.subr.mxu0 0.0
      %8388 = vmatpush1.msra.mxu0 0.0
      %8389 = vmatprep.subr.mxu0 0.0
      %8390 = vmatpush1.msra.mxu0 0.0
      %8391 = vmatprep.subr.mxu0 0.0
      %8392 = vmatpush1.msra.mxu0 0.0
      %8393 = vmatprep.subr.mxu0 0.0
      %8394 = vmatpush1.msra.mxu0 0.0
      %8395 = vmatprep.subr.mxu0 0.0
      %8396 = vmatpush1.msra.mxu0 0.0
      %8397 = vmatprep.subr.mxu0 0.0
      %8398 = vmatpush1.msra.mxu0 0.0
      %8399 = vmatprep.subr.mxu0 0.0
      %8400 = vmatpush1.msra.mxu0 0.0
      %8401 = vmatprep.subr.mxu0 0.0
      %8402 = vmatpush1.msra.mxu0 0.0
      %8403 = vmatprep.subr.mxu0 0.0
      %8404 = vmatpush1.msra.mxu0 0.0
      %8405 = vmatprep.subr.mxu0 0.0
      %8406 = vmatpush1.msra.mxu0 0.0
      %8407 = vmatprep.subr.mxu0 0.0
      %8408 = vmatpush1.msra.mxu0 0.0
      %8409 = vmatprep.subr.mxu0 0.0
      %8410 = vmatpush1.msra.mxu0 0.0
      %8411 = vmatprep.subr.mxu0 0.0
      %8412 = vmatpush1.msra.mxu0 0.0
      %8413 = vmatprep.subr.mxu0 0.0
      %8414 = vmatpush1.msra.mxu0 %v8381
      %8415 = vmatprep.subr.mxu0 0.0
      %8416 = vmatpush2.msra.mxu0 0.0
      %8417 = vmatprep.subr.mxu0 0.0
      %8418 = vmatpush2.msra.mxu0 0.0
      %8419 = vmatprep.subr.mxu0 0.0
      %8420 = vmatpush2.msra.mxu0 0.0
      %8421 = vmatprep.subr.mxu0 0.0
      %8422 = vmatpush2.msra.mxu0 0.0
      %8423 = vmatprep.subr.mxu0 0.0
      %8424 = vmatpush2.msra.mxu0 0.0
      %8425 = vmatprep.subr.mxu0 0.0
      %8426 = vmatpush2.msra.mxu0 0.0
      %8427 = vmatprep.subr.mxu0 0.0
      %8428 = vmatpush2.msra.mxu0 0.0
      %8429 = vmatprep.subr.mxu0 0.0
      %8430 = vmatpush2.msra.mxu0 0.0
      %8431 = vmatprep.subr.mxu0 0.0
      %8432 = vmatpush2.msra.mxu0 0.0
      %8433 = vmatprep.subr.mxu0 0.0
      %8434 = vmatpush2.msra.mxu0 0.0
      %8435 = vmatprep.subr.mxu0 0.0
      %8436 = vmatpush2.msra.mxu0 0.0
      %8437 = vmatprep.subr.mxu0 0.0
      %8438 = vmatpush2.msra.mxu0 0.0
      %8439 = vmatprep.subr.mxu0 0.0
      %8440 = vmatpush2.msra.mxu0 0.0
      %8441 = vmatprep.subr.mxu0 0.0
      %8442 = vmatpush2.msra.mxu0 0.0
      %8443 = vmatprep.subr.mxu0 0.0
      %8444 = vmatpush2.msra.mxu0 0.0
      %8445 = vmatprep.subr.mxu0 0.0
      %8446 = vmatpush2.msra.mxu0 0.0
      %8447 = vmatprep.mubr.f32.mxu0 0.0
      %8448 = vmatmul.mubr.f32.gmra.mxu0 %v8357
      %v8449 = vpop.f32.mrf.mxu0
      %v8450 = vadd.f32 0.0, %v8449
      %v8451 = vpop.f32.mrf.mxu0
      %8452 = vmatprep.mubr.f32.mxu0 0.0
      %8453 = vmatmul.mubr.f32.gmra.mxu0 %v8360
      %v8454 = vpop.f32.mrf.mxu0
      %v8455 = vadd.f32 0.0, %v8454
      %v8456 = vpop.f32.mrf.mxu0
      %8457 = vmatprep.mubr.f32.mxu0 0.0
      %8458 = vmatmul.mubr.f32.gmra.mxu0 %v8363
      %v8459 = vpop.f32.mrf.mxu0
      %v8460 = vadd.f32 0.0, %v8459
      %v8461 = vpop.f32.mrf.mxu0
      %8462 = vmatprep.mubr.f32.mxu0 0.0
      %8463 = vmatmul.mubr.f32.gmra.mxu0 %v8366
      %v8464 = vpop.f32.mrf.mxu0
      %v8465 = vadd.f32 0.0, %v8464
      %v8466 = vpop.f32.mrf.mxu0
      %8467 = vmatprep.mubr.f32.mxu0 0.0
      %8468 = vmatmul.mubr.f32.gmra.mxu0 %v8369
      %v8469 = vpop.f32.mrf.mxu0
      %v8470 = vadd.f32 0.0, %v8469
      %v8471 = vpop.f32.mrf.mxu0
      %8472 = vmatprep.mubr.f32.mxu0 0.0
      %8473 = vmatmul.mubr.f32.gmra.mxu0 %v8372
      %v8474 = vpop.f32.mrf.mxu0
      %v8475 = vadd.f32 0.0, %v8474
      %v8476 = vpop.f32.mrf.mxu0
      %8477 = vmatprep.mubr.f32.mxu0 0.0
      %8478 = vmatmul.mubr.f32.gmra.mxu0 %v8375
      %v8479 = vpop.f32.mrf.mxu0
      %v8480 = vadd.f32 0.0, %v8479
      %v8481 = vpop.f32.mrf.mxu0
      %8482 = vmatprep.mubr.f32.mxu0 0.0
      %8483 = vmatmul.mubr.f32.gmra.mxu0 %v8378
      %v8484 = vpop.f32.mrf.mxu0
      %v8485 = vpop.f32.mrf.mxu0
      %8486 = vdwg.mxu0
      %v8487 = vadd.f32 %v8309, %v8450
      %v8488 = vadd.f32 %v8314, %v8455
      %v8489 = vadd.f32 %v8319, %v8460
      %v8490 = vadd.f32 %v8324, %v8465
      %v8491 = vadd.f32 %v8329, %v8470
      %v8492 = vadd.f32 %v8334, %v8475
      %v8493 = vadd.f32 %v8339, %v8480
      %v8494 = vld [vmem:[%s6698] sm:$0xff]
      %v8495 = vld [vmem:[%s6698 + $0x10] sm:$0xff]
      %v8496 = vld [vmem:[%s6698 + $0x20] sm:$0xff]
      %v8497 = vld [vmem:[%s6698 + $0x30] sm:$0xff]
      %v8498 = vld [vmem:[%s6698 + $0x40] sm:$0xff]
      %v8499 = vld [vmem:[%s6698 + $0x50] sm:$0xff]
      %v8500 = vld [vmem:[%s6698 + $0x60] sm:$0xff]
      %v8501 = vld [vmem:[%s6698 + $0x70] sm:$0xff]
      %s8502 = scalar_lea.vmem %s7, 24
      %v8503 = vld [vmem:[%s8502] sm:$0x3f]
      %v8505 = vsel %vm2551, %v8494, 0
      %v8508 = vsel %vm2551, %v8495, 0
      %v8511 = vsel %vm2551, %v8496, 0
      %v8514 = vsel %vm2551, %v8497, 0
      %v8517 = vsel %vm2551, %v8498, 0
      %v8520 = vsel %vm2551, %v8499, 0
      %v8523 = vsel %vm2551, %v8500, 0
      %v8526 = vsel %vm2551, %v8501, 0
      %v8529 = vsel %vm8107, %v8503, 0
      %8531 = vmatprep.subr.mxu0 0.0
      %8532 = vmatpush1.msra.mxu0 0.0
      %8533 = vmatprep.subr.mxu0 0.0
      %8534 = vmatpush1.msra.mxu0 0.0
      %8535 = vmatprep.subr.mxu0 0.0
      %8536 = vmatpush1.msra.mxu0 0.0
      %8537 = vmatprep.subr.mxu0 0.0
      %8538 = vmatpush1.msra.mxu0 0.0
      %8539 = vmatprep.subr.mxu0 0.0
      %8540 = vmatpush1.msra.mxu0 0.0
      %8541 = vmatprep.subr.mxu0 0.0
      %8542 = vmatpush1.msra.mxu0 0.0
      %8543 = vmatprep.subr.mxu0 0.0
      %8544 = vmatpush1.msra.mxu0 0.0
      %8545 = vmatprep.subr.mxu0 0.0
      %8546 = vmatpush1.msra.mxu0 0.0
      %8547 = vmatprep.subr.mxu0 0.0
      %8548 = vmatpush1.msra.mxu0 0.0
      %8549 = vmatprep.subr.mxu0 0.0
      %8550 = vmatpush1.msra.mxu0 0.0
      %8551 = vmatprep.subr.mxu0 0.0
      %8552 = vmatpush1.msra.mxu0 0.0
      %8553 = vmatprep.subr.mxu0 0.0
      %8554 = vmatpush1.msra.mxu0 0.0
      %8555 = vmatprep.subr.mxu0 0.0
      %8556 = vmatpush1.msra.mxu0 0.0
      %8557 = vmatprep.subr.mxu0 0.0
      %8558 = vmatpush1.msra.mxu0 0.0
      %8559 = vmatprep.subr.mxu0 0.0
      %8560 = vmatpush1.msra.mxu0 0.0
      %8561 = vmatprep.subr.mxu0 0.0
      %8562 = vmatpush1.msra.mxu0 %v8529
      %8563 = vmatprep.subr.mxu0 0.0
      %8564 = vmatpush2.msra.mxu0 0.0
      %8565 = vmatprep.subr.mxu0 0.0
      %8566 = vmatpush2.msra.mxu0 0.0
      %8567 = vmatprep.subr.mxu0 0.0
      %8568 = vmatpush2.msra.mxu0 0.0
      %8569 = vmatprep.subr.mxu0 0.0
      %8570 = vmatpush2.msra.mxu0 0.0
      %8571 = vmatprep.subr.mxu0 0.0
      %8572 = vmatpush2.msra.mxu0 0.0
      %8573 = vmatprep.subr.mxu0 0.0
      %8574 = vmatpush2.msra.mxu0 0.0
      %8575 = vmatprep.subr.mxu0 0.0
      %8576 = vmatpush2.msra.mxu0 0.0
      %8577 = vmatprep.subr.mxu0 0.0
      %8578 = vmatpush2.msra.mxu0 0.0
      %8579 = vmatprep.subr.mxu0 0.0
      %8580 = vmatpush2.msra.mxu0 0.0
      %8581 = vmatprep.subr.mxu0 0.0
      %8582 = vmatpush2.msra.mxu0 0.0
      %8583 = vmatprep.subr.mxu0 0.0
      %8584 = vmatpush2.msra.mxu0 0.0
      %8585 = vmatprep.subr.mxu0 0.0
      %8586 = vmatpush2.msra.mxu0 0.0
      %8587 = vmatprep.subr.mxu0 0.0
      %8588 = vmatpush2.msra.mxu0 0.0
      %8589 = vmatprep.subr.mxu0 0.0
      %8590 = vmatpush2.msra.mxu0 0.0
      %8591 = vmatprep.subr.mxu0 0.0
      %8592 = vmatpush2.msra.mxu0 0.0
      %8593 = vmatprep.subr.mxu0 0.0
      %8594 = vmatpush2.msra.mxu0 0.0
      %8595 = vmatprep.mubr.f32.mxu0 0.0
      %8596 = vmatmul.mubr.f32.gmra.mxu0 %v8505
      %v8597 = vpop.f32.mrf.mxu0
      %v8598 = vadd.f32 0.0, %v8597
      %v8599 = vpop.f32.mrf.mxu0
      %8600 = vmatprep.mubr.f32.mxu0 0.0
      %8601 = vmatmul.mubr.f32.gmra.mxu0 %v8508
      %v8602 = vpop.f32.mrf.mxu0
      %v8603 = vadd.f32 0.0, %v8602
      %v8604 = vpop.f32.mrf.mxu0
      %8605 = vmatprep.mubr.f32.mxu0 0.0
      %8606 = vmatmul.mubr.f32.gmra.mxu0 %v8511
      %v8607 = vpop.f32.mrf.mxu0
      %v8608 = vadd.f32 0.0, %v8607
      %v8609 = vpop.f32.mrf.mxu0
      %8610 = vmatprep.mubr.f32.mxu0 0.0
      %8611 = vmatmul.mubr.f32.gmra.mxu0 %v8514
      %v8612 = vpop.f32.mrf.mxu0
      %v8613 = vadd.f32 0.0, %v8612
      %v8614 = vpop.f32.mrf.mxu0
      %8615 = vmatprep.mubr.f32.mxu0 0.0
      %8616 = vmatmul.mubr.f32.gmra.mxu0 %v8517
      %v8617 = vpop.f32.mrf.mxu0
      %v8618 = vadd.f32 0.0, %v8617
      %v8619 = vpop.f32.mrf.mxu0
      %8620 = vmatprep.mubr.f32.mxu0 0.0
      %8621 = vmatmul.mubr.f32.gmra.mxu0 %v8520
      %v8622 = vpop.f32.mrf.mxu0
      %v8623 = vadd.f32 0.0, %v8622
      %v8624 = vpop.f32.mrf.mxu0
      %8625 = vmatprep.mubr.f32.mxu0 0.0
      %8626 = vmatmul.mubr.f32.gmra.mxu0 %v8523
      %v8627 = vpop.f32.mrf.mxu0
      %v8628 = vadd.f32 0.0, %v8627
      %v8629 = vpop.f32.mrf.mxu0
      %8630 = vmatprep.mubr.f32.mxu0 0.0
      %8631 = vmatmul.mubr.f32.gmra.mxu0 %v8526
      %v8632 = vpop.f32.mrf.mxu0
      %v8633 = vpop.f32.mrf.mxu0
      %8634 = vdwg.mxu0
      %v8635 = vadd.f32 %v8487, %v8598
      %v8636 = vadd.f32 %v8488, %v8603
      %v8637 = vadd.f32 %v8489, %v8608
      %v8638 = vadd.f32 %v8490, %v8613
      %v8639 = vadd.f32 %v8491, %v8618
      %v8640 = vadd.f32 %v8492, %v8623
      %v8641 = vadd.f32 %v8493, %v8628
      %v8642 = vld [vmem:[%s8055] sm:$0xff]
      %v8643 = vld [vmem:[%s8055 + $0x10] sm:$0xff]
      %v8644 = vld [vmem:[%s8055 + $0x20] sm:$0xff]
      %v8645 = vld [vmem:[%s8055 + $0x30] sm:$0xff]
      %v8646 = vld [vmem:[%s8055 + $0x40] sm:$0xff]
      %v8647 = vld [vmem:[%s8055 + $0x50] sm:$0xff]
      %v8648 = vld [vmem:[%s8055 + $0x60] sm:$0xff]
      %v8649 = vld [vmem:[%s8055 + $0x70] sm:$0xff]
      %s8650 = scalar_lea.vmem %s7, 32
      %v8651 = vld [vmem:[%s8650] sm:$0x3f]
      %v8653 = vsel %vm2551, %v8642, 0
      %v8656 = vsel %vm2551, %v8643, 0
      %v8659 = vsel %vm2551, %v8644, 0
      %v8662 = vsel %vm2551, %v8645, 0
      %v8665 = vsel %vm2551, %v8646, 0
      %v8668 = vsel %vm2551, %v8647, 0
      %v8671 = vsel %vm2551, %v8648, 0
      %v8674 = vsel %vm2551, %v8649, 0
      %v8677 = vsel %vm8107, %v8651, 0
      %8679 = vmatprep.subr.mxu0 0.0
      %8680 = vmatpush1.msra.mxu0 0.0
      %8681 = vmatprep.subr.mxu0 0.0
      %8682 = vmatpush1.msra.mxu0 0.0
      %8683 = vmatprep.subr.mxu0 0.0
      %8684 = vmatpush1.msra.mxu0 0.0
      %8685 = vmatprep.subr.mxu0 0.0
      %8686 = vmatpush1.msra.mxu0 0.0
      %8687 = vmatprep.subr.mxu0 0.0
      %8688 = vmatpush1.msra.mxu0 0.0
      %8689 = vmatprep.subr.mxu0 0.0
      %8690 = vmatpush1.msra.mxu0 0.0
      %8691 = vmatprep.subr.mxu0 0.0
      %8692 = vmatpush1.msra.mxu0 0.0
      %8693 = vmatprep.subr.mxu0 0.0
      %8694 = vmatpush1.msra.mxu0 0.0
      %8695 = vmatprep.subr.mxu0 0.0
      %8696 = vmatpush1.msra.mxu0 0.0
      %8697 = vmatprep.subr.mxu0 0.0
      %8698 = vmatpush1.msra.mxu0 0.0
      %8699 = vmatprep.subr.mxu0 0.0
      %8700 = vmatpush1.msra.mxu0 0.0
      %8701 = vmatprep.subr.mxu0 0.0
      %8702 = vmatpush1.msra.mxu0 0.0
      %8703 = vmatprep.subr.mxu0 0.0
      %8704 = vmatpush1.msra.mxu0 0.0
      %8705 = vmatprep.subr.mxu0 0.0
      %8706 = vmatpush1.msra.mxu0 0.0
      %8707 = vmatprep.subr.mxu0 0.0
      %8708 = vmatpush1.msra.mxu0 0.0
      %8709 = vmatprep.subr.mxu0 0.0
      %8710 = vmatpush1.msra.mxu0 %v8677
      %8711 = vmatprep.subr.mxu0 0.0
      %8712 = vmatpush2.msra.mxu0 0.0
      %8713 = vmatprep.subr.mxu0 0.0
      %8714 = vmatpush2.msra.mxu0 0.0
      %8715 = vmatprep.subr.mxu0 0.0
      %8716 = vmatpush2.msra.mxu0 0.0
      %8717 = vmatprep.subr.mxu0 0.0
      %8718 = vmatpush2.msra.mxu0 0.0
      %8719 = vmatprep.subr.mxu0 0.0
      %8720 = vmatpush2.msra.mxu0 0.0
      %8721 = vmatprep.subr.mxu0 0.0
      %8722 = vmatpush2.msra.mxu0 0.0
      %8723 = vmatprep.subr.mxu0 0.0
      %8724 = vmatpush2.msra.mxu0 0.0
      %8725 = vmatprep.subr.mxu0 0.0
      %8726 = vmatpush2.msra.mxu0 0.0
      %8727 = vmatprep.subr.mxu0 0.0
      %8728 = vmatpush2.msra.mxu0 0.0
      %8729 = vmatprep.subr.mxu0 0.0
      %8730 = vmatpush2.msra.mxu0 0.0
      %8731 = vmatprep.subr.mxu0 0.0
      %8732 = vmatpush2.msra.mxu0 0.0
      %8733 = vmatprep.subr.mxu0 0.0
      %8734 = vmatpush2.msra.mxu0 0.0
      %8735 = vmatprep.subr.mxu0 0.0
      %8736 = vmatpush2.msra.mxu0 0.0
      %8737 = vmatprep.subr.mxu0 0.0
      %8738 = vmatpush2.msra.mxu0 0.0
      %8739 = vmatprep.subr.mxu0 0.0
      %8740 = vmatpush2.msra.mxu0 0.0
      %8741 = vmatprep.subr.mxu0 0.0
      %8742 = vmatpush2.msra.mxu0 0.0
      %8743 = vmatprep.mubr.f32.mxu0 0.0
      %8744 = vmatmul.mubr.f32.gmra.mxu0 %v8653
      %v8745 = vpop.f32.mrf.mxu0
      %v8746 = vadd.f32 0.0, %v8745
      %v8747 = vpop.f32.mrf.mxu0
      %8748 = vmatprep.mubr.f32.mxu0 0.0
      %8749 = vmatmul.mubr.f32.gmra.mxu0 %v8656
      %v8750 = vpop.f32.mrf.mxu0
      %v8751 = vadd.f32 0.0, %v8750
      %v8752 = vpop.f32.mrf.mxu0
      %8753 = vmatprep.mubr.f32.mxu0 0.0
      %8754 = vmatmul.mubr.f32.gmra.mxu0 %v8659
      %v8755 = vpop.f32.mrf.mxu0
      %v8756 = vadd.f32 0.0, %v8755
      %v8757 = vpop.f32.mrf.mxu0
      %8758 = vmatprep.mubr.f32.mxu0 0.0
      %8759 = vmatmul.mubr.f32.gmra.mxu0 %v8662
      %v8760 = vpop.f32.mrf.mxu0
      %v8761 = vadd.f32 0.0, %v8760
      %v8762 = vpop.f32.mrf.mxu0
      %8763 = vmatprep.mubr.f32.mxu0 0.0
      %8764 = vmatmul.mubr.f32.gmra.mxu0 %v8665
      %v8765 = vpop.f32.mrf.mxu0
      %v8766 = vadd.f32 0.0, %v8765
      %v8767 = vpop.f32.mrf.mxu0
      %8768 = vmatprep.mubr.f32.mxu0 0.0
      %8769 = vmatmul.mubr.f32.gmra.mxu0 %v8668
      %v8770 = vpop.f32.mrf.mxu0
      %v8771 = vadd.f32 0.0, %v8770
      %v8772 = vpop.f32.mrf.mxu0
      %8773 = vmatprep.mubr.f32.mxu0 0.0
      %8774 = vmatmul.mubr.f32.gmra.mxu0 %v8671
      %v8775 = vpop.f32.mrf.mxu0
      %v8776 = vadd.f32 0.0, %v8775
      %v8777 = vpop.f32.mrf.mxu0
      %8778 = vmatprep.mubr.f32.mxu0 0.0
      %8779 = vmatmul.mubr.f32.gmra.mxu0 %v8674
      %v8780 = vpop.f32.mrf.mxu0
      %v8781 = vpop.f32.mrf.mxu0
      %8782 = vdwg.mxu0
      %v8783 = vadd.f32 %v8635, %v8746
      %v8784 = vadd.f32 %v8636, %v8751
      %v8785 = vadd.f32 %v8637, %v8756
      %v8786 = vadd.f32 %v8638, %v8761
      %v8787 = vadd.f32 %v8639, %v8766
      %v8788 = vadd.f32 %v8640, %v8771
      %v8789 = vadd.f32 %v8641, %v8776
      %v8790 = vld [vmem:[%s6698 + $0x1] sm:$0xff]
      %v8791 = vld [vmem:[%s6698 + $0x11] sm:$0xff]
      %v8792 = vld [vmem:[%s6698 + $0x21] sm:$0xff]
      %v8793 = vld [vmem:[%s6698 + $0x31] sm:$0xff]
      %v8794 = vld [vmem:[%s6698 + $0x41] sm:$0xff]
      %v8795 = vld [vmem:[%s6698 + $0x51] sm:$0xff]
      %v8796 = vld [vmem:[%s6698 + $0x61] sm:$0xff]
      %v8797 = vld [vmem:[%s6698 + $0x71] sm:$0xff]
      %s8798 = scalar_lea.vmem %s7, 40
      %v8799 = vld [vmem:[%s8798] sm:$0x3f]
      %v8801 = vsel %vm2551, %v8790, 0
      %v8804 = vsel %vm2551, %v8791, 0
      %v8807 = vsel %vm2551, %v8792, 0
      %v8810 = vsel %vm2551, %v8793, 0
      %v8813 = vsel %vm2551, %v8794, 0
      %v8816 = vsel %vm2551, %v8795, 0
      %v8819 = vsel %vm2551, %v8796, 0
      %v8822 = vsel %vm2551, %v8797, 0
      %v8825 = vsel %vm8107, %v8799, 0
      %8827 = vmatprep.subr.mxu0 0.0
      %8828 = vmatpush1.msra.mxu0 0.0
      %8829 = vmatprep.subr.mxu0 0.0
      %8830 = vmatpush1.msra.mxu0 0.0
      %8831 = vmatprep.subr.mxu0 0.0
      %8832 = vmatpush1.msra.mxu0 0.0
      %8833 = vmatprep.subr.mxu0 0.0
      %8834 = vmatpush1.msra.mxu0 0.0
      %8835 = vmatprep.subr.mxu0 0.0
      %8836 = vmatpush1.msra.mxu0 0.0
      %8837 = vmatprep.subr.mxu0 0.0
      %8838 = vmatpush1.msra.mxu0 0.0
      %8839 = vmatprep.subr.mxu0 0.0
      %8840 = vmatpush1.msra.mxu0 0.0
      %8841 = vmatprep.subr.mxu0 0.0
      %8842 = vmatpush1.msra.mxu0 0.0
      %8843 = vmatprep.subr.mxu0 0.0
      %8844 = vmatpush1.msra.mxu0 0.0
      %8845 = vmatprep.subr.mxu0 0.0
      %8846 = vmatpush1.msra.mxu0 0.0
      %8847 = vmatprep.subr.mxu0 0.0
      %8848 = vmatpush1.msra.mxu0 0.0
      %8849 = vmatprep.subr.mxu0 0.0
      %8850 = vmatpush1.msra.mxu0 0.0
      %8851 = vmatprep.subr.mxu0 0.0
      %8852 = vmatpush1.msra.mxu0 0.0
      %8853 = vmatprep.subr.mxu0 0.0
      %8854 = vmatpush1.msra.mxu0 0.0
      %8855 = vmatprep.subr.mxu0 0.0
      %8856 = vmatpush1.msra.mxu0 0.0
      %8857 = vmatprep.subr.mxu0 0.0
      %8858 = vmatpush1.msra.mxu0 %v8825
      %8859 = vmatprep.subr.mxu0 0.0
      %8860 = vmatpush2.msra.mxu0 0.0
      %8861 = vmatprep.subr.mxu0 0.0
      %8862 = vmatpush2.msra.mxu0 0.0
      %8863 = vmatprep.subr.mxu0 0.0
      %8864 = vmatpush2.msra.mxu0 0.0
      %8865 = vmatprep.subr.mxu0 0.0
      %8866 = vmatpush2.msra.mxu0 0.0
      %8867 = vmatprep.subr.mxu0 0.0
      %8868 = vmatpush2.msra.mxu0 0.0
      %8869 = vmatprep.subr.mxu0 0.0
      %8870 = vmatpush2.msra.mxu0 0.0
      %8871 = vmatprep.subr.mxu0 0.0
      %8872 = vmatpush2.msra.mxu0 0.0
      %8873 = vmatprep.subr.mxu0 0.0
      %8874 = vmatpush2.msra.mxu0 0.0
      %8875 = vmatprep.subr.mxu0 0.0
      %8876 = vmatpush2.msra.mxu0 0.0
      %8877 = vmatprep.subr.mxu0 0.0
      %8878 = vmatpush2.msra.mxu0 0.0
      %8879 = vmatprep.subr.mxu0 0.0
      %8880 = vmatpush2.msra.mxu0 0.0
      %8881 = vmatprep.subr.mxu0 0.0
      %8882 = vmatpush2.msra.mxu0 0.0
      %8883 = vmatprep.subr.mxu0 0.0
      %8884 = vmatpush2.msra.mxu0 0.0
      %8885 = vmatprep.subr.mxu0 0.0
      %8886 = vmatpush2.msra.mxu0 0.0
      %8887 = vmatprep.subr.mxu0 0.0
      %8888 = vmatpush2.msra.mxu0 0.0
      %8889 = vmatprep.subr.mxu0 0.0
      %8890 = vmatpush2.msra.mxu0 0.0
      %8891 = vmatprep.mubr.f32.mxu0 0.0
      %8892 = vmatmul.mubr.f32.gmra.mxu0 %v8801
      %v8893 = vpop.f32.mrf.mxu0
      %v8894 = vadd.f32 0.0, %v8893
      %v8895 = vpop.f32.mrf.mxu0
      %8896 = vmatprep.mubr.f32.mxu0 0.0
      %8897 = vmatmul.mubr.f32.gmra.mxu0 %v8804
      %v8898 = vpop.f32.mrf.mxu0
      %v8899 = vadd.f32 0.0, %v8898
      %v8900 = vpop.f32.mrf.mxu0
      %8901 = vmatprep.mubr.f32.mxu0 0.0
      %8902 = vmatmul.mubr.f32.gmra.mxu0 %v8807
      %v8903 = vpop.f32.mrf.mxu0
      %v8904 = vadd.f32 0.0, %v8903
      %v8905 = vpop.f32.mrf.mxu0
      %8906 = vmatprep.mubr.f32.mxu0 0.0
      %8907 = vmatmul.mubr.f32.gmra.mxu0 %v8810
      %v8908 = vpop.f32.mrf.mxu0
      %v8909 = vadd.f32 0.0, %v8908
      %v8910 = vpop.f32.mrf.mxu0
      %8911 = vmatprep.mubr.f32.mxu0 0.0
      %8912 = vmatmul.mubr.f32.gmra.mxu0 %v8813
      %v8913 = vpop.f32.mrf.mxu0
      %v8914 = vadd.f32 0.0, %v8913
      %v8915 = vpop.f32.mrf.mxu0
      %8916 = vmatprep.mubr.f32.mxu0 0.0
      %8917 = vmatmul.mubr.f32.gmra.mxu0 %v8816
      %v8918 = vpop.f32.mrf.mxu0
      %v8919 = vadd.f32 0.0, %v8918
      %v8920 = vpop.f32.mrf.mxu0
      %8921 = vmatprep.mubr.f32.mxu0 0.0
      %8922 = vmatmul.mubr.f32.gmra.mxu0 %v8819
      %v8923 = vpop.f32.mrf.mxu0
      %v8924 = vadd.f32 0.0, %v8923
      %v8925 = vpop.f32.mrf.mxu0
      %8926 = vmatprep.mubr.f32.mxu0 0.0
      %8927 = vmatmul.mubr.f32.gmra.mxu0 %v8822
      %v8928 = vpop.f32.mrf.mxu0
      %v8929 = vpop.f32.mrf.mxu0
      %8930 = vdwg.mxu0
      %v8931 = vadd.f32 %v8783, %v8894
      %v8932 = vadd.f32 %v8784, %v8899
      %v8933 = vadd.f32 %v8785, %v8904
      %v8934 = vadd.f32 %v8786, %v8909
      %v8935 = vadd.f32 %v8787, %v8914
      %v8936 = vadd.f32 %v8788, %v8919
      %v8937 = vadd.f32 %v8789, %v8924
      %s8938 = scalar_lea.vmem [#allocation3], 16
      %v8939 = vld [vmem:[%s8938] sm:$0xff]
      %v8940 = vld [vmem:[%s8938 + $0x10] sm:$0xff]
      %v8941 = vld [vmem:[%s8938 + $0x20] sm:$0xff]
      %v8942 = vld [vmem:[%s8938 + $0x30] sm:$0xff]
      %v8943 = vld [vmem:[%s8938 + $0x40] sm:$0xff]
      %v8944 = vld [vmem:[%s8938 + $0x50] sm:$0xff]
      %v8945 = vld [vmem:[%s8938 + $0x60] sm:$0xff]
      %v8946 = vld [vmem:[%s8938 + $0x70] sm:$0xff]
      %s8947 = scalar_lea.vmem %s7, 48
      %v8948 = vld [vmem:[%s8947] sm:$0x3f]
      %v8950 = vsel %vm2551, %v8939, 0
      %v8953 = vsel %vm2551, %v8940, 0
      %v8956 = vsel %vm2551, %v8941, 0
      %v8959 = vsel %vm2551, %v8942, 0
      %v8962 = vsel %vm2551, %v8943, 0
      %v8965 = vsel %vm2551, %v8944, 0
      %v8968 = vsel %vm2551, %v8945, 0
      %v8971 = vsel %vm2551, %v8946, 0
      %v8974 = vsel %vm8107, %v8948, 0
      %8976 = vmatprep.subr.mxu0 0.0
      %8977 = vmatpush1.msra.mxu0 0.0
      %8978 = vmatprep.subr.mxu0 0.0
      %8979 = vmatpush1.msra.mxu0 0.0
      %8980 = vmatprep.subr.mxu0 0.0
      %8981 = vmatpush1.msra.mxu0 0.0
      %8982 = vmatprep.subr.mxu0 0.0
      %8983 = vmatpush1.msra.mxu0 0.0
      %8984 = vmatprep.subr.mxu0 0.0
      %8985 = vmatpush1.msra.mxu0 0.0
      %8986 = vmatprep.subr.mxu0 0.0
      %8987 = vmatpush1.msra.mxu0 0.0
      %8988 = vmatprep.subr.mxu0 0.0
      %8989 = vmatpush1.msra.mxu0 0.0
      %8990 = vmatprep.subr.mxu0 0.0
      %8991 = vmatpush1.msra.mxu0 0.0
      %8992 = vmatprep.subr.mxu0 0.0
      %8993 = vmatpush1.msra.mxu0 0.0
      %8994 = vmatprep.subr.mxu0 0.0
      %8995 = vmatpush1.msra.mxu0 0.0
      %8996 = vmatprep.subr.mxu0 0.0
      %8997 = vmatpush1.msra.mxu0 0.0
      %8998 = vmatprep.subr.mxu0 0.0
      %8999 = vmatpush1.msra.mxu0 0.0
      %9000 = vmatprep.subr.mxu0 0.0
      %9001 = vmatpush1.msra.mxu0 0.0
      %9002 = vmatprep.subr.mxu0 0.0
      %9003 = vmatpush1.msra.mxu0 0.0
      %9004 = vmatprep.subr.mxu0 0.0
      %9005 = vmatpush1.msra.mxu0 0.0
      %9006 = vmatprep.subr.mxu0 0.0
      %9007 = vmatpush1.msra.mxu0 %v8974
      %9008 = vmatprep.subr.mxu0 0.0
      %9009 = vmatpush2.msra.mxu0 0.0
      %9010 = vmatprep.subr.mxu0 0.0
      %9011 = vmatpush2.msra.mxu0 0.0
      %9012 = vmatprep.subr.mxu0 0.0
      %9013 = vmatpush2.msra.mxu0 0.0
      %9014 = vmatprep.subr.mxu0 0.0
      %9015 = vmatpush2.msra.mxu0 0.0
      %9016 = vmatprep.subr.mxu0 0.0
      %9017 = vmatpush2.msra.mxu0 0.0
      %9018 = vmatprep.subr.mxu0 0.0
      %9019 = vmatpush2.msra.mxu0 0.0
      %9020 = vmatprep.subr.mxu0 0.0
      %9021 = vmatpush2.msra.mxu0 0.0
      %9022 = vmatprep.subr.mxu0 0.0
      %9023 = vmatpush2.msra.mxu0 0.0
      %9024 = vmatprep.subr.mxu0 0.0
      %9025 = vmatpush2.msra.mxu0 0.0
      %9026 = vmatprep.subr.mxu0 0.0
      %9027 = vmatpush2.msra.mxu0 0.0
      %9028 = vmatprep.subr.mxu0 0.0
      %9029 = vmatpush2.msra.mxu0 0.0
      %9030 = vmatprep.subr.mxu0 0.0
      %9031 = vmatpush2.msra.mxu0 0.0
      %9032 = vmatprep.subr.mxu0 0.0
      %9033 = vmatpush2.msra.mxu0 0.0
      %9034 = vmatprep.subr.mxu0 0.0
      %9035 = vmatpush2.msra.mxu0 0.0
      %9036 = vmatprep.subr.mxu0 0.0
      %9037 = vmatpush2.msra.mxu0 0.0
      %9038 = vmatprep.subr.mxu0 0.0
      %9039 = vmatpush2.msra.mxu0 0.0
      %9040 = vmatprep.mubr.f32.mxu0 0.0
      %9041 = vmatmul.mubr.f32.gmra.mxu0 %v8950
      %v9042 = vpop.f32.mrf.mxu0
      %v9043 = vadd.f32 0.0, %v9042
      %v9044 = vpop.f32.mrf.mxu0
      %9045 = vmatprep.mubr.f32.mxu0 0.0
      %9046 = vmatmul.mubr.f32.gmra.mxu0 %v8953
      %v9047 = vpop.f32.mrf.mxu0
      %v9048 = vadd.f32 0.0, %v9047
      %v9049 = vpop.f32.mrf.mxu0
      %9050 = vmatprep.mubr.f32.mxu0 0.0
      %9051 = vmatmul.mubr.f32.gmra.mxu0 %v8956
      %v9052 = vpop.f32.mrf.mxu0
      %v9053 = vadd.f32 0.0, %v9052
      %v9054 = vpop.f32.mrf.mxu0
      %9055 = vmatprep.mubr.f32.mxu0 0.0
      %9056 = vmatmul.mubr.f32.gmra.mxu0 %v8959
      %v9057 = vpop.f32.mrf.mxu0
      %v9058 = vadd.f32 0.0, %v9057
      %v9059 = vpop.f32.mrf.mxu0
      %9060 = vmatprep.mubr.f32.mxu0 0.0
      %9061 = vmatmul.mubr.f32.gmra.mxu0 %v8962
      %v9062 = vpop.f32.mrf.mxu0
      %v9063 = vadd.f32 0.0, %v9062
      %v9064 = vpop.f32.mrf.mxu0
      %9065 = vmatprep.mubr.f32.mxu0 0.0
      %9066 = vmatmul.mubr.f32.gmra.mxu0 %v8965
      %v9067 = vpop.f32.mrf.mxu0
      %v9068 = vadd.f32 0.0, %v9067
      %v9069 = vpop.f32.mrf.mxu0
      %9070 = vmatprep.mubr.f32.mxu0 0.0
      %9071 = vmatmul.mubr.f32.gmra.mxu0 %v8968
      %v9072 = vpop.f32.mrf.mxu0
      %v9073 = vadd.f32 0.0, %v9072
      %v9074 = vpop.f32.mrf.mxu0
      %9075 = vmatprep.mubr.f32.mxu0 0.0
      %9076 = vmatmul.mubr.f32.gmra.mxu0 %v8971
      %v9077 = vpop.f32.mrf.mxu0
      %v9078 = vpop.f32.mrf.mxu0
      %9079 = vdwg.mxu0
      %v9080 = vadd.f32 %v8931, %v9043
      %v9081 = vadd.f32 %v8932, %v9048
      %v9082 = vadd.f32 %v8933, %v9053
      %v9083 = vadd.f32 %v8934, %v9058
      %v9084 = vadd.f32 %v8935, %v9063
      %v9085 = vadd.f32 %v8936, %v9068
      %v9086 = vadd.f32 %v8937, %v9073
      %s9087 = scalar_lea.vmem [#allocation3], 160
      %v9088 = vld [vmem:[%s9087] sm:$0xff]
      %v9089 = vld [vmem:[%s9087 + $0x10] sm:$0xff]
      %v9090 = vld [vmem:[%s9087 + $0x20] sm:$0xff]
      %v9091 = vld [vmem:[%s9087 + $0x30] sm:$0xff]
      %v9092 = vld [vmem:[%s9087 + $0x40] sm:$0xff]
      %v9093 = vld [vmem:[%s9087 + $0x50] sm:$0xff]
      %v9094 = vld [vmem:[%s9087 + $0x60] sm:$0xff]
      %v9095 = vld [vmem:[%s9087 + $0x70] sm:$0xff]
      %s9096 = scalar_lea.vmem %s7, 56
      %v9097 = vld [vmem:[%s9096] sm:$0x3f]
      %v9099 = vsel %vm2551, %v9088, 0
      %v9102 = vsel %vm2551, %v9089, 0
      %v9105 = vsel %vm2551, %v9090, 0
      %v9108 = vsel %vm2551, %v9091, 0
      %v9111 = vsel %vm2551, %v9092, 0
      %v9114 = vsel %vm2551, %v9093, 0
      %v9117 = vsel %vm2551, %v9094, 0
      %v9120 = vsel %vm2551, %v9095, 0
      %v9123 = vsel %vm8107, %v9097, 0
      %9125 = vmatprep.subr.mxu0 0.0
      %9126 = vmatpush1.msra.mxu0 0.0
      %9127 = vmatprep.subr.mxu0 0.0
      %9128 = vmatpush1.msra.mxu0 0.0
      %9129 = vmatprep.subr.mxu0 0.0
      %9130 = vmatpush1.msra.mxu0 0.0
      %9131 = vmatprep.subr.mxu0 0.0
      %9132 = vmatpush1.msra.mxu0 0.0
      %9133 = vmatprep.subr.mxu0 0.0
      %9134 = vmatpush1.msra.mxu0 0.0
      %9135 = vmatprep.subr.mxu0 0.0
      %9136 = vmatpush1.msra.mxu0 0.0
      %9137 = vmatprep.subr.mxu0 0.0
      %9138 = vmatpush1.msra.mxu0 0.0
      %9139 = vmatprep.subr.mxu0 0.0
      %9140 = vmatpush1.msra.mxu0 0.0
      %9141 = vmatprep.subr.mxu0 0.0
      %9142 = vmatpush1.msra.mxu0 0.0
      %9143 = vmatprep.subr.mxu0 0.0
      %9144 = vmatpush1.msra.mxu0 0.0
      %9145 = vmatprep.subr.mxu0 0.0
      %9146 = vmatpush1.msra.mxu0 0.0
      %9147 = vmatprep.subr.mxu0 0.0
      %9148 = vmatpush1.msra.mxu0 0.0
      %9149 = vmatprep.subr.mxu0 0.0
      %9150 = vmatpush1.msra.mxu0 0.0
      %9151 = vmatprep.subr.mxu0 0.0
      %9152 = vmatpush1.msra.mxu0 0.0
      %9153 = vmatprep.subr.mxu0 0.0
      %9154 = vmatpush1.msra.mxu0 0.0
      %9155 = vmatprep.subr.mxu0 0.0
      %9156 = vmatpush1.msra.mxu0 %v9123
      %9157 = vmatprep.subr.mxu0 0.0
      %9158 = vmatpush2.msra.mxu0 0.0
      %9159 = vmatprep.subr.mxu0 0.0
      %9160 = vmatpush2.msra.mxu0 0.0
      %9161 = vmatprep.subr.mxu0 0.0
      %9162 = vmatpush2.msra.mxu0 0.0
      %9163 = vmatprep.subr.mxu0 0.0
      %9164 = vmatpush2.msra.mxu0 0.0
      %9165 = vmatprep.subr.mxu0 0.0
      %9166 = vmatpush2.msra.mxu0 0.0
      %9167 = vmatprep.subr.mxu0 0.0
      %9168 = vmatpush2.msra.mxu0 0.0
      %9169 = vmatprep.subr.mxu0 0.0
      %9170 = vmatpush2.msra.mxu0 0.0
      %9171 = vmatprep.subr.mxu0 0.0
      %9172 = vmatpush2.msra.mxu0 0.0
      %9173 = vmatprep.subr.mxu0 0.0
      %9174 = vmatpush2.msra.mxu0 0.0
      %9175 = vmatprep.subr.mxu0 0.0
      %9176 = vmatpush2.msra.mxu0 0.0
      %9177 = vmatprep.subr.mxu0 0.0
      %9178 = vmatpush2.msra.mxu0 0.0
      %9179 = vmatprep.subr.mxu0 0.0
      %9180 = vmatpush2.msra.mxu0 0.0
      %9181 = vmatprep.subr.mxu0 0.0
      %9182 = vmatpush2.msra.mxu0 0.0
      %9183 = vmatprep.subr.mxu0 0.0
      %9184 = vmatpush2.msra.mxu0 0.0
      %9185 = vmatprep.subr.mxu0 0.0
      %9186 = vmatpush2.msra.mxu0 0.0
      %9187 = vmatprep.subr.mxu0 0.0
      %9188 = vmatpush2.msra.mxu0 0.0
      %9189 = vmatprep.mubr.f32.mxu0 0.0
      %9190 = vmatmul.mubr.f32.gmra.mxu0 %v9099
      %v9191 = vpop.f32.mrf.mxu0
      %v9192 = vadd.f32 0.0, %v9191
      %v9193 = vpop.f32.mrf.mxu0
      %9194 = vmatprep.mubr.f32.mxu0 0.0
      %9195 = vmatmul.mubr.f32.gmra.mxu0 %v9102
      %v9196 = vpop.f32.mrf.mxu0
      %v9197 = vadd.f32 0.0, %v9196
      %v9198 = vpop.f32.mrf.mxu0
      %9199 = vmatprep.mubr.f32.mxu0 0.0
      %9200 = vmatmul.mubr.f32.gmra.mxu0 %v9105
      %v9201 = vpop.f32.mrf.mxu0
      %v9202 = vadd.f32 0.0, %v9201
      %v9203 = vpop.f32.mrf.mxu0
      %9204 = vmatprep.mubr.f32.mxu0 0.0
      %9205 = vmatmul.mubr.f32.gmra.mxu0 %v9108
      %v9206 = vpop.f32.mrf.mxu0
      %v9207 = vadd.f32 0.0, %v9206
      %v9208 = vpop.f32.mrf.mxu0
      %9209 = vmatprep.mubr.f32.mxu0 0.0
      %9210 = vmatmul.mubr.f32.gmra.mxu0 %v9111
      %v9211 = vpop.f32.mrf.mxu0
      %v9212 = vadd.f32 0.0, %v9211
      %v9213 = vpop.f32.mrf.mxu0
      %9214 = vmatprep.mubr.f32.mxu0 0.0
      %9215 = vmatmul.mubr.f32.gmra.mxu0 %v9114
      %v9216 = vpop.f32.mrf.mxu0
      %v9217 = vadd.f32 0.0, %v9216
      %v9218 = vpop.f32.mrf.mxu0
      %9219 = vmatprep.mubr.f32.mxu0 0.0
      %9220 = vmatmul.mubr.f32.gmra.mxu0 %v9117
      %v9221 = vpop.f32.mrf.mxu0
      %v9222 = vadd.f32 0.0, %v9221
      %v9223 = vpop.f32.mrf.mxu0
      %9224 = vmatprep.mubr.f32.mxu0 0.0
      %9225 = vmatmul.mubr.f32.gmra.mxu0 %v9120
      %v9226 = vpop.f32.mrf.mxu0
      %v9227 = vpop.f32.mrf.mxu0
      %9228 = vdwg.mxu0
      %v9229 = vadd.f32 %v9080, %v9192
      %v9230 = vadd.f32 %v9081, %v9197
      %v9231 = vadd.f32 %v9082, %v9202
      %v9232 = vadd.f32 %v9083, %v9207
      %v9233 = vadd.f32 %v9084, %v9212
      %v9234 = vadd.f32 %v9085, %v9217
      %v9235 = vadd.f32 %v9086, %v9222
      %v9236 = vld [vmem:[%s8938 + $0x1] sm:$0xff]
      %v9237 = vld [vmem:[%s8938 + $0x11] sm:$0xff]
      %v9238 = vld [vmem:[%s8938 + $0x21] sm:$0xff]
      %v9239 = vld [vmem:[%s8938 + $0x31] sm:$0xff]
      %v9240 = vld [vmem:[%s8938 + $0x41] sm:$0xff]
      %v9241 = vld [vmem:[%s8938 + $0x51] sm:$0xff]
      %v9242 = vld [vmem:[%s8938 + $0x61] sm:$0xff]
      %v9243 = vld [vmem:[%s8938 + $0x71] sm:$0xff]
      %s9244 = scalar_lea.vmem %s7, 64
      %v9245 = vld [vmem:[%s9244] sm:$0x3f]
      %v9247 = vsel %vm2551, %v9236, 0
      %v9250 = vsel %vm2551, %v9237, 0
      %v9253 = vsel %vm2551, %v9238, 0
      %v9256 = vsel %vm2551, %v9239, 0
      %v9259 = vsel %vm2551, %v9240, 0
      %v9262 = vsel %vm2551, %v9241, 0
      %v9265 = vsel %vm2551, %v9242, 0
      %v9268 = vsel %vm2551, %v9243, 0
      %v9271 = vsel %vm8107, %v9245, 0
      %9273 = vmatprep.subr.mxu0 0.0
      %9274 = vmatpush1.msra.mxu0 0.0
      %9275 = vmatprep.subr.mxu0 0.0
      %9276 = vmatpush1.msra.mxu0 0.0
      %9277 = vmatprep.subr.mxu0 0.0
      %9278 = vmatpush1.msra.mxu0 0.0
      %9279 = vmatprep.subr.mxu0 0.0
      %9280 = vmatpush1.msra.mxu0 0.0
      %9281 = vmatprep.subr.mxu0 0.0
      %9282 = vmatpush1.msra.mxu0 0.0
      %9283 = vmatprep.subr.mxu0 0.0
      %9284 = vmatpush1.msra.mxu0 0.0
      %9285 = vmatprep.subr.mxu0 0.0
      %9286 = vmatpush1.msra.mxu0 0.0
      %9287 = vmatprep.subr.mxu0 0.0
      %9288 = vmatpush1.msra.mxu0 0.0
      %9289 = vmatprep.subr.mxu0 0.0
      %9290 = vmatpush1.msra.mxu0 0.0
      %9291 = vmatprep.subr.mxu0 0.0
      %9292 = vmatpush1.msra.mxu0 0.0
      %9293 = vmatprep.subr.mxu0 0.0
      %9294 = vmatpush1.msra.mxu0 0.0
      %9295 = vmatprep.subr.mxu0 0.0
      %9296 = vmatpush1.msra.mxu0 0.0
      %9297 = vmatprep.subr.mxu0 0.0
      %9298 = vmatpush1.msra.mxu0 0.0
      %9299 = vmatprep.subr.mxu0 0.0
      %9300 = vmatpush1.msra.mxu0 0.0
      %9301 = vmatprep.subr.mxu0 0.0
      %9302 = vmatpush1.msra.mxu0 0.0
      %9303 = vmatprep.subr.mxu0 0.0
      %9304 = vmatpush1.msra.mxu0 %v9271
      %9305 = vmatprep.subr.mxu0 0.0
      %9306 = vmatpush2.msra.mxu0 0.0
      %9307 = vmatprep.subr.mxu0 0.0
      %9308 = vmatpush2.msra.mxu0 0.0
      %9309 = vmatprep.subr.mxu0 0.0
      %9310 = vmatpush2.msra.mxu0 0.0
      %9311 = vmatprep.subr.mxu0 0.0
      %9312 = vmatpush2.msra.mxu0 0.0
      %9313 = vmatprep.subr.mxu0 0.0
      %9314 = vmatpush2.msra.mxu0 0.0
      %9315 = vmatprep.subr.mxu0 0.0
      %9316 = vmatpush2.msra.mxu0 0.0
      %9317 = vmatprep.subr.mxu0 0.0
      %9318 = vmatpush2.msra.mxu0 0.0
      %9319 = vmatprep.subr.mxu0 0.0
      %9320 = vmatpush2.msra.mxu0 0.0
      %9321 = vmatprep.subr.mxu0 0.0
      %9322 = vmatpush2.msra.mxu0 0.0
      %9323 = vmatprep.subr.mxu0 0.0
      %9324 = vmatpush2.msra.mxu0 0.0
      %9325 = vmatprep.subr.mxu0 0.0
      %9326 = vmatpush2.msra.mxu0 0.0
      %9327 = vmatprep.subr.mxu0 0.0
      %9328 = vmatpush2.msra.mxu0 0.0
      %9329 = vmatprep.subr.mxu0 0.0
      %9330 = vmatpush2.msra.mxu0 0.0
      %9331 = vmatprep.subr.mxu0 0.0
      %9332 = vmatpush2.msra.mxu0 0.0
      %9333 = vmatprep.subr.mxu0 0.0
      %9334 = vmatpush2.msra.mxu0 0.0
      %9335 = vmatprep.subr.mxu0 0.0
      %9336 = vmatpush2.msra.mxu0 0.0
      %9337 = vmatprep.mubr.f32.mxu0 0.0
      %9338 = vmatmul.mubr.f32.gmra.mxu0 %v9247
      %v9339 = vpop.f32.mrf.mxu0
      %v9340 = vadd.f32 0.0, %v9339
      %v9341 = vpop.f32.mrf.mxu0
      %9342 = vmatprep.mubr.f32.mxu0 0.0
      %9343 = vmatmul.mubr.f32.gmra.mxu0 %v9250
      %v9344 = vpop.f32.mrf.mxu0
      %v9345 = vadd.f32 0.0, %v9344
      %v9346 = vpop.f32.mrf.mxu0
      %9347 = vmatprep.mubr.f32.mxu0 0.0
      %9348 = vmatmul.mubr.f32.gmra.mxu0 %v9253
      %v9349 = vpop.f32.mrf.mxu0
      %v9350 = vadd.f32 0.0, %v9349
      %v9351 = vpop.f32.mrf.mxu0
      %9352 = vmatprep.mubr.f32.mxu0 0.0
      %9353 = vmatmul.mubr.f32.gmra.mxu0 %v9256
      %v9354 = vpop.f32.mrf.mxu0
      %v9355 = vadd.f32 0.0, %v9354
      %v9356 = vpop.f32.mrf.mxu0
      %9357 = vmatprep.mubr.f32.mxu0 0.0
      %9358 = vmatmul.mubr.f32.gmra.mxu0 %v9259
      %v9359 = vpop.f32.mrf.mxu0
      %v9360 = vadd.f32 0.0, %v9359
      %v9361 = vpop.f32.mrf.mxu0
      %9362 = vmatprep.mubr.f32.mxu0 0.0
      %9363 = vmatmul.mubr.f32.gmra.mxu0 %v9262
      %v9364 = vpop.f32.mrf.mxu0
      %v9365 = vadd.f32 0.0, %v9364
      %v9366 = vpop.f32.mrf.mxu0
      %9367 = vmatprep.mubr.f32.mxu0 0.0
      %9368 = vmatmul.mubr.f32.gmra.mxu0 %v9265
      %v9369 = vpop.f32.mrf.mxu0
      %v9370 = vadd.f32 0.0, %v9369
      %v9371 = vpop.f32.mrf.mxu0
      %9372 = vmatprep.mubr.f32.mxu0 0.0
      %9373 = vmatmul.mubr.f32.gmra.mxu0 %v9268
      %v9374 = vpop.f32.mrf.mxu0
      %v9375 = vpop.f32.mrf.mxu0
      %9376 = vdwg.mxu0
      %v9377 = vadd.f32 %v9229, %v9340
      %v9378 = vadd.f32 %v9230, %v9345
      %v9379 = vadd.f32 %v9231, %v9350
      %v9380 = vadd.f32 %v9232, %v9355
      %v9381 = vadd.f32 %v9233, %v9360
      %v9382 = vadd.f32 %v9234, %v9365
      %v9383 = vadd.f32 %v9235, %v9370
      %v9384 = vld [vmem:[%s8] sm:$0x1]
      %v9386 = vlaneseq
      %v9387 = vshrl.u32 %v9386, 7
      %v9388 = vsub.s32 0, %v9387
      %v9389 = vrot.slane %v9384, %v9388
      %v9391 = vadd.f32 %v9377, %v9389
      %v9392 = vadd.f32 %v9378, %v9389
      %v9393 = vadd.f32 %v9379, %v9389
      %v9394 = vadd.f32 %v9380, %v9389
      %v9395 = vadd.f32 %v9381, %v9389
      %v9396 = vadd.f32 %v9382, %v9389
      %v9397 = vadd.f32 %v9383, %v9389
      %v9398 = vmax.f32 %v9391, 0.0
      %v9399 = vmax.f32 %v9392, 0.0
      %v9400 = vmax.f32 %v9393, 0.0
      %v9401 = vmax.f32 %v9394, 0.0
      %v9402 = vmax.f32 %v9395, 0.0
      %v9403 = vmax.f32 %v9396, 0.0
      %v9404 = vmax.f32 %v9397, 0.0
      %v9406 = vsel %vm380, %v1761, 0
      %v9409 = vsel %vm380, %v1762, 0
      %v9412 = vsel %vm380, %v1763, 0
      %v9415 = vsel %vm380, %v1764, 0
      %v9418 = vsel %vm380, %v1765, 0
      %v9421 = vsel %vm380, %v1766, 0
      %v9424 = vsel %vm380, %v1767, 0
      %v9427 = vsel %vm380, %v1768, 0
      %v9430 = vsel %vm405, %v1769, 0
      %9432 = vmatprep.subr.mxu0 0.0
      %9433 = vmatpush1.msra.mxu0 0.0
      %9434 = vmatprep.subr.mxu0 0.0
      %9435 = vmatpush1.msra.mxu0 0.0
      %9436 = vmatprep.subr.mxu0 0.0
      %9437 = vmatpush1.msra.mxu0 0.0
      %9438 = vmatprep.subr.mxu0 0.0
      %9439 = vmatpush1.msra.mxu0 0.0
      %9440 = vmatprep.subr.mxu0 0.0
      %9441 = vmatpush1.msra.mxu0 0.0
      %9442 = vmatprep.subr.mxu0 0.0
      %9443 = vmatpush1.msra.mxu0 0.0
      %9444 = vmatprep.subr.mxu0 0.0
      %9445 = vmatpush1.msra.mxu0 0.0
      %9446 = vmatprep.subr.mxu0 0.0
      %9447 = vmatpush1.msra.mxu0 0.0
      %9448 = vmatprep.subr.mxu0 0.0
      %9449 = vmatpush1.msra.mxu0 0.0
      %9450 = vmatprep.subr.mxu0 0.0
      %9451 = vmatpush1.msra.mxu0 0.0
      %9452 = vmatprep.subr.mxu0 0.0
      %9453 = vmatpush1.msra.mxu0 0.0
      %9454 = vmatprep.subr.mxu0 0.0
      %9455 = vmatpush1.msra.mxu0 0.0
      %9456 = vmatprep.subr.mxu0 0.0
      %9457 = vmatpush1.msra.mxu0 0.0
      %9458 = vmatprep.subr.mxu0 0.0
      %9459 = vmatpush1.msra.mxu0 0.0
      %9460 = vmatprep.subr.mxu0 0.0
      %9461 = vmatpush1.msra.mxu0 0.0
      %9462 = vmatprep.subr.mxu0 0.0
      %9463 = vmatpush1.msra.mxu0 %v9430
      %9464 = vmatprep.subr.mxu0 0.0
      %9465 = vmatpush2.msra.mxu0 0.0
      %9466 = vmatprep.subr.mxu0 0.0
      %9467 = vmatpush2.msra.mxu0 0.0
      %9468 = vmatprep.subr.mxu0 0.0
      %9469 = vmatpush2.msra.mxu0 0.0
      %9470 = vmatprep.subr.mxu0 0.0
      %9471 = vmatpush2.msra.mxu0 0.0
      %9472 = vmatprep.subr.mxu0 0.0
      %9473 = vmatpush2.msra.mxu0 0.0
      %9474 = vmatprep.subr.mxu0 0.0
      %9475 = vmatpush2.msra.mxu0 0.0
      %9476 = vmatprep.subr.mxu0 0.0
      %9477 = vmatpush2.msra.mxu0 0.0
      %9478 = vmatprep.subr.mxu0 0.0
      %9479 = vmatpush2.msra.mxu0 0.0
      %9480 = vmatprep.subr.mxu0 0.0
      %9481 = vmatpush2.msra.mxu0 0.0
      %9482 = vmatprep.subr.mxu0 0.0
      %9483 = vmatpush2.msra.mxu0 0.0
      %9484 = vmatprep.subr.mxu0 0.0
      %9485 = vmatpush2.msra.mxu0 0.0
      %9486 = vmatprep.subr.mxu0 0.0
      %9487 = vmatpush2.msra.mxu0 0.0
      %9488 = vmatprep.subr.mxu0 0.0
      %9489 = vmatpush2.msra.mxu0 0.0
      %9490 = vmatprep.subr.mxu0 0.0
      %9491 = vmatpush2.msra.mxu0 0.0
      %9492 = vmatprep.subr.mxu0 0.0
      %9493 = vmatpush2.msra.mxu0 0.0
      %9494 = vmatprep.subr.mxu0 0.0
      %9495 = vmatpush2.msra.mxu0 0.0
      %9496 = vmatprep.mubr.f32.mxu0 0.0
      %9497 = vmatmul.mubr.f32.gmra.mxu0 %v9406
      %v9498 = vpop.f32.mrf.mxu0
      %v9499 = vadd.f32 %v1698, %v9498
      %v9500 = vpop.f32.mrf.mxu0
      %9501 = vmatprep.mubr.f32.mxu0 0.0
      %9502 = vmatmul.mubr.f32.gmra.mxu0 %v9409
      %v9503 = vpop.f32.mrf.mxu0
      %v9504 = vadd.f32 %v1699, %v9503
      %v9505 = vpop.f32.mrf.mxu0
      %9506 = vmatprep.mubr.f32.mxu0 0.0
      %9507 = vmatmul.mubr.f32.gmra.mxu0 %v9412
      %v9508 = vpop.f32.mrf.mxu0
      %v9509 = vadd.f32 %v1700, %v9508
      %v9510 = vpop.f32.mrf.mxu0
      %9511 = vmatprep.mubr.f32.mxu0 0.0
      %9512 = vmatmul.mubr.f32.gmra.mxu0 %v9415
      %v9513 = vpop.f32.mrf.mxu0
      %v9514 = vadd.f32 %v1701, %v9513
      %v9515 = vpop.f32.mrf.mxu0
      %9516 = vmatprep.mubr.f32.mxu0 0.0
      %9517 = vmatmul.mubr.f32.gmra.mxu0 %v9418
      %v9518 = vpop.f32.mrf.mxu0
      %v9519 = vadd.f32 %v1702, %v9518
      %v9520 = vpop.f32.mrf.mxu0
      %9521 = vmatprep.mubr.f32.mxu0 0.0
      %9522 = vmatmul.mubr.f32.gmra.mxu0 %v9421
      %v9523 = vpop.f32.mrf.mxu0
      %v9524 = vadd.f32 %v1703, %v9523
      %v9525 = vpop.f32.mrf.mxu0
      %9526 = vmatprep.mubr.f32.mxu0 0.0
      %9527 = vmatmul.mubr.f32.gmra.mxu0 %v9424
      %v9528 = vpop.f32.mrf.mxu0
      %v9529 = vadd.f32 %v1704, %v9528
      %v9530 = vpop.f32.mrf.mxu0
      %9531 = vmatprep.mubr.f32.mxu0 0.0
      %9532 = vmatmul.mubr.f32.gmra.mxu0 %v9427
      %v9533 = vpop.f32.mrf.mxu0
      %v9534 = vpop.f32.mrf.mxu0
      %9535 = vdwg.mxu0
      %v9536 = vadd.f32 %v9499, %v9398
      %v9537 = vadd.f32 %v9504, %v9399
      %v9538 = vadd.f32 %v9509, %v9400
      %v9539 = vadd.f32 %v9514, %v9401
      %v9540 = vadd.f32 %v9519, %v9402
      %v9541 = vadd.f32 %v9524, %v9403
      %v9542 = vadd.f32 %v9529, %v9404
      %vm9543 = vcmask 145408
      %9544 = vst.msk [vmem:[%s359] sm:$0x7f] %vm9543, %v9536
      %9545 = vst.msk [vmem:[%s359 + $0x8] sm:$0x7f] %vm9543, %v9537
      %9546 = vst.msk [vmem:[%s359 + $0x10] sm:$0x7f] %vm9543, %v9538
      %9547 = vst.msk [vmem:[%s359 + $0x18] sm:$0x7f] %vm9543, %v9539
      %9548 = vst.msk [vmem:[%s359 + $0x20] sm:$0x7f] %vm9543, %v9540
      %9549 = vst.msk [vmem:[%s359 + $0x28] sm:$0x7f] %vm9543, %v9541
      %9550 = vst.msk [vmem:[%s359 + $0x30] sm:$0x7f] %vm9543, %v9542
      %p9551 = scmp.lt.s32.totalorder %s21, 1
      %s9552 = scalar_select %p9551, %s21, 1
      %s9553 = smul.addr %s9552, 7
      %s9554 = smul.addr %s9553, 8
      %s9555 = scalar_lea.vmem %s10, %s9554
      // Predicated region
      $region61: #{reduction_a_forward.1} parent=59 // pred_check
        %p9556 = pneg %p254
      $region62: #{reduction_a_forward.1} parent=59 // pred_check_branch
        %9558 = sbr.rel (%p9556) target = $region64
      $region63: #{reduction_a_forward.1} parent=59 // pred_region
        _
      $region64: #{reduction_a_forward.1} parent=59 // pred_fallthru
        _
    $region60: #{reduction_a_forward.1} parent=5 // pred_fallthru
      _
    %p9559 = scmp.le.s32.totalorder 2, %s16
    // Predicated region
    $region65: #{reduction_a_forward.1} parent=5 // pred_check
      %p9560 = pneg %p9559
    $region66: #{reduction_a_forward.1} parent=5 // pred_check_branch
      %9562 = sbr.rel (%p9560) target = $region68
    $region67: #{reduction_a_forward.1} parent=5 // pred_region
      %s9563 = ssub.s32 %s16, 2
      // Predicated region
      $region69: #{reduction_a_forward.1} parent=67 // pred_check
        %p9564 = pneg %p260
      $region70: #{reduction_a_forward.1} parent=67 // pred_check_branch
        %9566 = sbr.rel (%p9564) target = $region72
      $region71: #{reduction_a_forward.1} parent=67 // pred_region
        %p9567 = scmp.lt.s32.totalorder %s22, 1
        %s9568 = scalar_select %p9567, %s22, 1
        %s9569 = smul.addr %s9568, 7
        %s9570 = smul.addr %s9569, 8
        %s9571 = scalar_lea.vmem %s10, %s9570
      $region72: #{reduction_a_forward.1} parent=67 // pred_fallthru
        _
    $region68: #{reduction_a_forward.1} parent=5 // pred_fallthru
      _
  $region6: #{reduction_a_forward.1} parent=0 // loop_footer
    %s20 = sadd.s32 1, %s16
  $region7: #{reduction_a_forward.1} parent=0 // loop_footer_branch
    %15 = sbr.rel target = $region3
  $region8: #{reduction_a_forward.1} parent=0 // loop_exit
    _

</llo_original>
